<compile_context>
chip_gen: v6e
topology: v6e:2x2x1
jax: 0.10.0
libtpu: 0.0.40
codegen_flags: <defaults>
</compile_context>

<pallas_src>
import functools

import jax
import jax.numpy as jnp
from jax.experimental import pallas as pl
from jax.experimental.pallas import tpu as pltpu


# ----------------------------- in-kernel compute ----------------------------

def _pool_16(get_view, w_ref, scale, bias):
    """9-tap conv + BN + ReLU + 2x2 maxpool from 16 stride-2 phase views.

    get_view(idx) -> (tm, cpad) bf16 view idx (idx = u*4 + v holds
    x_pad[n, 2i+u, 2j+v, :] on the pooled grid).  w_ref: (9, cpad, Cout) bf16.
    Returns the pooled activation (tm, Cout) in f32.
    """
    pooled = None
    for pr in range(2):                 # output phase inside the 2x2 pool window
        for pc in range(2):
            # Running accumulation of the 9 taps (MRB-friendly on v7x).
            acc = jnp.dot(get_view(pr * 4 + pc), w_ref[0],
                          preferred_element_type=jnp.float32)
            for t in range(1, 9):
                dh, dw = divmod(t, 3)
                acc = acc + jnp.dot(get_view((pr + dh) * 4 + (pc + dw)), w_ref[t],
                                    preferred_element_type=jnp.float32)
            y = jnp.maximum(acc * scale + bias, 0.0)          # BN + ReLU (f32)
            pooled = y if pooled is None else jnp.maximum(pooled, y)
    return pooled


def _pool_cat(get_phase, w, scale, bias):
    """Tap-concatenated conv + BN + ReLU + 2x2 maxpool: ONE matmul per phase.

    get_phase(p) -> (tm, Kc) bf16 (taps concatenated along K for output phase
    p = pr*2 + pc).  w: (Kc, Cout) bf16.  Returns (tm, Cout) f32.
    """
    pooled = None
    for p in range(4):
        y = jnp.dot(get_phase(p), w, preferred_element_type=jnp.float32)
        y = jnp.maximum(y * scale + bias, 0.0)
        pooled = y if pooled is None else jnp.maximum(pooled, y)
    return pooled


def _conv_block_kernel(v_ref, w_ref, s_ref, b_ref, o_ref, *, tap_concat):
    scale, bias = s_ref[...], b_ref[...]
    if tap_concat:
        pooled = _pool_cat(lambda p: v_ref[p], w_ref[...], scale, bias)
    else:
        pooled = _pool_16(lambda t: v_ref[t], w_ref, scale, bias)
    o_ref[...] = pooled.astype(o_ref.dtype)


def _gap_fc_kernel(v_ref, w_ref, s_ref, b_ref, fw_ref, fb_ref, o_ref, acc_ref,
                   *, tap_concat, inv_area):
    """Last stage: conv+BN+ReLU+pool on one per-image row chunk, GAP partial
    sums accumulated into acc_ref, FC only in the last chunk's epilogue."""
    m = pl.program_id(1)

    @pl.when(m == 0)
    def _():
        acc_ref[...] = jnp.zeros_like(acc_ref)

    scale, bias = s_ref[...], b_ref[...]
    if tap_concat:
        pooled = _pool_cat(lambda p: v_ref[p, 0], w_ref[...], scale, bias)
    else:
        pooled = _pool_16(lambda t: v_ref[t, 0], w_ref, scale, bias)
    acc_ref[...] += jnp.sum(pooled, axis=0, keepdims=True)    # GAP partial sum

    @pl.when(m == pl.num_programs(1) - 1)
    def _():
        feat = acc_ref[...] * inv_area                        # (1, Cout) GAP
        logits = jnp.dot(feat, fw_ref[...],
                         preferred_element_type=jnp.float32) + fb_ref[...]
        o_ref[...] = logits[None]                             # (1, 1, classes)


# ------------------------------- host-side prep -----------------------------

def _fold_bn(conv_b, gamma, beta, mean, var, eps):
    scale = (gamma / jnp.sqrt(var + eps)).astype(jnp.float32)
    bias = (beta - mean * scale + conv_b * scale).astype(jnp.float32)
    return scale.reshape(1, -1), bias.reshape(1, -1)


def _prep_16view(x, w_oihw, conv_b, gamma, beta, mean, var, eps):
    """bf16 16-phase views (16, M, cpad), tap weights (9, cpad, Cout), BN."""
    N, H, W, Cin = x.shape
    Cout = w_oihw.shape[0]
    x = x.astype(jnp.bfloat16)
    cpad = -(-Cin // 8) * 8
    if cpad != Cin:
        x = jnp.pad(x, ((0, 0), (0, 0), (0, 0), (0, cpad - Cin)))
    xp = jnp.pad(x, ((0, 0), (1, 1), (1, 1), (0, 0)))
    views = [xp[:, u:u + H:2, v:v + W:2, :] for u in range(4) for v in range(4)]
    views = jnp.stack(views, axis=0).reshape(16, N * (H // 2) * (W // 2), cpad)

    w_taps = jnp.transpose(w_oihw, (2, 3, 1, 0)).reshape(9, Cin, Cout)
    if cpad != Cin:
        w_taps = jnp.pad(w_taps, ((0, 0), (0, cpad - Cin), (0, 0)))
    w_taps = w_taps.astype(jnp.bfloat16)
    scale, bias = _fold_bn(conv_b, gamma, beta, mean, var, eps)
    return views, w_taps, scale, bias


def _prep_tapcat(x, w_oihw, conv_b, gamma, beta, mean, var, eps):
    """bf16 tap-concatenated phases (4, M, Kc) and weights (Kc, Cout), Kc=9*Cin
    rounded up to a multiple of 16 (clean bf16 sublane packing)."""
    N, H, W, Cin = x.shape
    Cout = w_oihw.shape[0]
    x = x.astype(jnp.bfloat16)
    xp = jnp.pad(x, ((0, 0), (1, 1), (1, 1), (0, 0)))
    K = 9 * Cin
    Kc = -(-K // 16) * 16
    phases = []
    for pr in range(2):
        for pc in range(2):
            taps = [xp[:, pr + dh:pr + dh + H:2, pc + dw:pc + dw + W:2, :]
                    for dh in range(3) for dw in range(3)]
            phases.append(jnp.concatenate(taps, axis=-1))      # (N,H2,W2,9*Cin)
    views = jnp.stack(phases, axis=0).reshape(4, N * (H // 2) * (W // 2), K)
    if Kc != K:
        views = jnp.pad(views, ((0, 0), (0, 0), (0, Kc - K)))

    w_cat = jnp.transpose(w_oihw, (2, 3, 1, 0)).reshape(K, Cout)
    if Kc != K:
        w_cat = jnp.pad(w_cat, ((0, Kc - K), (0, 0)))
    w_cat = w_cat.astype(jnp.bfloat16)
    scale, bias = _fold_bn(conv_b, gamma, beta, mean, var, eps)
    return views, w_cat, scale, bias


def _pick_tile(total, cap):
    """Largest divisor of `total` that is <= cap and a multiple of 8 (TPU
    sublane-aligned); falls back to `total` (full dim is always layout-legal,
    and only hit for tiny/odd extents)."""
    for d in range(min(cap, total), 7, -1):
        if d % 8 == 0 and total % d == 0:
            return d
    return total


# --------------------------------- layers -----------------------------------

def conv_block(x, w_oihw, conv_b, gamma, beta, mean, var,
               *, eps=1e-5, block_rows=1024, tap_concat=False):
    """Conv(3x3,p=1)+BN(eval)+ReLU+MaxPool(2): (N,H,W,Cin) -> (N,H/2,W/2,Cout)."""
    N, H, W, _ = x.shape
    assert H % 2 == 0 and W % 2 == 0, "MaxPool2d(2) path assumes even H, W"
    Cout = w_oihw.shape[0]
    H2, W2 = H // 2, W // 2
    M = N * H2 * W2

    prep = _prep_tapcat if tap_concat else _prep_16view
    views, wk, scale, bias = prep(x, w_oihw, conv_b, gamma, beta, mean, var, eps)
    nview, _, Kc = views.shape

    tm = _pick_tile(M, block_rows)
    kernel = functools.partial(_conv_block_kernel, tap_concat=tap_concat)

    out = pl.pallas_call(
        kernel,
        grid=(M // tm,),
        in_specs=[
            pl.BlockSpec((nview, tm, Kc), lambda i: (0, i, 0)),
            pl.BlockSpec(wk.shape, lambda i: (0,) * wk.ndim),
            pl.BlockSpec((1, Cout), lambda i: (0, 0)),
            pl.BlockSpec((1, Cout), lambda i: (0, 0)),
        ],
        out_specs=pl.BlockSpec((tm, Cout), lambda i: (i, 0)),
        out_shape=jax.ShapeDtypeStruct((M, Cout), jnp.bfloat16),
        compiler_params=pltpu.CompilerParams(
            dimension_semantics=("parallel",)),
    )(views, wk, scale, bias)
    return out.reshape(N, H2, W2, Cout)


def conv_block_gap_fc(x, w_oihw, conv_b, gamma, beta, mean, var, fc_w, fc_b,
                      *, eps=1e-5, block_rows=1024, tap_concat=False):
    """Last stage: conv+BN+ReLU+pool fused with AdaptiveAvgPool2d(1)+Linear."""
    N, H, W, _ = x.shape
    assert H % 2 == 0 and W % 2 == 0, "MaxPool2d(2) path assumes even H, W"
    Cout = w_oihw.shape[0]
    H2, W2 = H // 2, W // 2
    R = H2 * W2                                   # pooled rows per image
    num_classes = fc_w.shape[0]

    prep = _prep_tapcat if tap_concat else _prep_16view
    views, wk, scale, bias = prep(x, w_oihw, conv_b, gamma, beta, mean, var, eps)
    nview, _, Kc = views.shape
    views = views.reshape(nview, N, R, Kc)        # expose image axis for GAP tiling

    fw = jnp.transpose(fc_w).astype(jnp.float32)  # (Cout, num_classes)
    fb = fc_b.reshape(1, num_classes).astype(jnp.float32)

    tr = _pick_tile(R, block_rows)                # per-image row chunk
    kernel = functools.partial(_gap_fc_kernel, tap_concat=tap_concat,
                               inv_area=1.0 / R)

    out = pl.pallas_call(
        kernel,
        grid=(N, R // tr),
        in_specs=[
            pl.BlockSpec((nview, 1, tr, Kc), lambda n, m: (0, n, m, 0)),
            pl.BlockSpec(wk.shape, lambda n, m: (0,) * wk.ndim),
            pl.BlockSpec((1, Cout), lambda n, m: (0, 0)),
            pl.BlockSpec((1, Cout), lambda n, m: (0, 0)),
            pl.BlockSpec((Cout, num_classes), lambda n, m: (0, 0)),
            pl.BlockSpec((1, num_classes), lambda n, m: (0, 0)),
        ],
        out_specs=pl.BlockSpec((1, 1, num_classes), lambda n, m: (n, 0, 0)),
        out_shape=jax.ShapeDtypeStruct((N, 1, num_classes), jnp.float32),
        scratch_shapes=[pltpu.VMEM((1, Cout), jnp.float32)],  # GAP accumulator
        compiler_params=pltpu.CompilerParams(
            dimension_semantics=("parallel", "arbitrary")),
    )(views, wk, scale, bias, fw, fb)
    return out.reshape(N, num_classes)


# --------------------------------- the model --------------------------------

def init_params(key, num_classes=2):
    chans = [(1, 32), (32, 64), (64, 128)]
    params = {}
    keys = jax.random.split(key, 8)
    for i, (cin, cout) in enumerate(chans):
        kw, kb, kg, kbt = jax.random.split(keys[i], 4)
        params[f"conv{i}_w"] = 0.1 * jax.random.normal(kw, (cout, cin, 3, 3), jnp.float32)
        params[f"conv{i}_b"] = 0.05 * jax.random.normal(kb, (cout,), jnp.float32)
        params[f"bn{i}_gamma"] = 1.0 + 0.1 * jax.random.normal(kg, (cout,), jnp.float32)
        params[f"bn{i}_beta"] = 0.05 * jax.random.normal(kbt, (cout,), jnp.float32)
        params[f"bn{i}_mean"] = jnp.zeros((cout,), jnp.float32)
        params[f"bn{i}_var"] = jnp.ones((cout,), jnp.float32)
    kfw, kfb = jax.random.split(keys[7])
    params["fc_w"] = 0.1 * jax.random.normal(kfw, (num_classes, 128), jnp.float32)
    params["fc_b"] = 0.05 * jax.random.normal(kfb, (num_classes,), jnp.float32)
    return params


def simple_cnn_gray_forward(params, x_nchw, *, block_rows=1024):
    # x_nchw: (N, 1, H, W) float32  ->  logits (N, num_classes)
    x = jnp.transpose(x_nchw, (0, 2, 3, 1))                   # NCHW -> NHWC
    # Stage 1 (Cin=1): tap-concatenated K so each pool phase is one matmul.
    x = conv_block(
        x, params["conv0_w"], params["conv0_b"],
        params["bn0_gamma"], params["bn0_beta"],
        params["bn0_mean"], params["bn0_var"],
        block_rows=block_rows, tap_concat=True)
    # Stage 2: 16-phase-view form (4x replication); set tap_concat=True on v7x.
    x = conv_block(
        x, params["conv1_w"], params["conv1_b"],
        params["bn1_gamma"], params["bn1_beta"],
        params["bn1_mean"], params["bn1_var"],
        block_rows=block_rows, tap_concat=False)
    # Stage 3 + GAP + FC fused; M tiled per image, GAP accumulated in VMEM.
    return conv_block_gap_fc(
        x, params["conv2_w"], params["conv2_b"],
        params["bn2_gamma"], params["bn2_beta"],
        params["bn2_mean"], params["bn2_var"],
        params["fc_w"], params["fc_b"],
        block_rows=block_rows, tap_concat=False)


# ----------------------------------- main ------------------------------------

if __name__ == "__main__":
    key = jax.random.PRNGKey(0)
    k_param, k_x = jax.random.split(key)
    params = init_params(k_param, num_classes=2)
    x = jax.random.normal(k_x, (2, 1, 16, 16), jnp.float32)   # NCHW like PyTorch
    # block_rows=64 so stage 1 runs a multi-step parallel grid at this toy size;
    # production-sized inputs use the 1024 default (working set ~4-6 MiB/step).
    fwd = jax.jit(functools.partial(simple_cnn_gray_forward, block_rows=64))
    logits = fwd(params, x)
    jax.block_until_ready(logits)
    assert logits.shape == (2, 2)
    assert bool(jnp.all(jnp.isfinite(logits)))
    print("KERNEL_OK")
</pallas_src>

<mosaic_0001>
module attributes {stable_mosaic.version = 11 : i64} {
  func.func @_conv_block_kernel(%arg0: i32, %arg1: memref<4x64x16xbf16, #tpu.memory_space<vmem>>, %arg2: memref<16x32xbf16, #tpu.memory_space<vmem>>, %arg3: memref<1x32xf32, #tpu.memory_space<vmem>>, %arg4: memref<1x32xf32, #tpu.memory_space<vmem>>, %arg5: memref<64x32xbf16, #tpu.memory_space<vmem>>) attributes {dimension_semantics = [#tpu.dimension_semantics<parallel>], iteration_bounds = array<i64: 2>, scalar_prefetch = 0 : i64, scratch_operands = 0 : i64, tpu.core_type = #tpu.core_type<tc>, window_params = [{transform_indices = @transform_0, window_bounds = array<i64: 4, 64, 16>}, {pipeline_mode = #tpu.pipeline_mode<synchronous>, transform_indices = @transform_1, window_bounds = array<i64: 16, 32>}, {pipeline_mode = #tpu.pipeline_mode<synchronous>, transform_indices = @transform_2, window_bounds = array<i64: 1, 32>}, {pipeline_mode = #tpu.pipeline_mode<synchronous>, transform_indices = @transform_3, window_bounds = array<i64: 1, 32>}, {transform_indices = @transform_4, window_bounds = array<i64: 64, 32>}]} {
    %c0 = arith.constant 0 : index
    %c0_0 = arith.constant 0 : index
    %0 = vector.load %arg3[%c0, %c0_0] : memref<1x32xf32, #tpu.memory_space<vmem>>, vector<1x32xf32>
    %c0_1 = arith.constant 0 : index
    %c0_2 = arith.constant 0 : index
    %1 = vector.load %arg4[%c0_1, %c0_2] : memref<1x32xf32, #tpu.memory_space<vmem>>, vector<1x32xf32>
    %c0_3 = arith.constant 0 : index
    %c0_4 = arith.constant 0 : index
    %2 = vector.load %arg2[%c0_3, %c0_4] : memref<16x32xbf16, #tpu.memory_space<vmem>>, vector<16x32xbf16>
    %c0_5 = arith.constant 0 : index
    %c0_6 = arith.constant 0 : index
    %c0_7 = arith.constant 0 : index
    %3 = vector.load %arg1[%c0_5, %c0_6, %c0_7] : memref<4x64x16xbf16, #tpu.memory_space<vmem>>, vector<1x64x16xbf16>
    %4 = vector.shape_cast %3 : vector<1x64x16xbf16> to vector<64x16xbf16>
    %cst = arith.constant dense<0.000000e+00> : vector<64x32xf32>
    %5 = tpu.matmul %4, %2, %cst {dimension_numbers = #tpu.dot_dimension_numbers<[1], [0], [0], [1], [0, 0, 1, 1], [], []>} : vector<64x16xbf16>, vector<16x32xbf16>, vector<64x32xf32> -> vector<64x32xf32>
    %6 = vector.broadcast %0 : vector<1x32xf32> to vector<64x32xf32>
    %7 = arith.mulf %5, %6 : vector<64x32xf32>
    %8 = vector.broadcast %1 : vector<1x32xf32> to vector<64x32xf32>
    %9 = arith.addf %7, %8 : vector<64x32xf32>
    %cst_8 = arith.constant 0.000000e+00 : f32
    %10 = vector.broadcast %cst_8 : f32 to vector<64x32xf32>
    %11 = arith.maximumf %9, %10 : vector<64x32xf32>
    %c1 = arith.constant 1 : index
    %c0_9 = arith.constant 0 : index
    %c0_10 = arith.constant 0 : index
    %12 = vector.load %arg1[%c1, %c0_9, %c0_10] : memref<4x64x16xbf16, #tpu.memory_space<vmem>>, vector<1x64x16xbf16>
    %13 = vector.shape_cast %12 : vector<1x64x16xbf16> to vector<64x16xbf16>
    %cst_11 = arith.constant dense<0.000000e+00> : vector<64x32xf32>
    %14 = tpu.matmul %13, %2, %cst_11 {dimension_numbers = #tpu.dot_dimension_numbers<[1], [0], [0], [1], [0, 0, 1, 1], [], []>} : vector<64x16xbf16>, vector<16x32xbf16>, vector<64x32xf32> -> vector<64x32xf32>
    %15 = vector.broadcast %0 : vector<1x32xf32> to vector<64x32xf32>
    %16 = arith.mulf %14, %15 : vector<64x32xf32>
    %17 = vector.broadcast %1 : vector<1x32xf32> to vector<64x32xf32>
    %18 = arith.addf %16, %17 : vector<64x32xf32>
    %cst_12 = arith.constant 0.000000e+00 : f32
    %19 = vector.broadcast %cst_12 : f32 to vector<64x32xf32>
    %20 = arith.maximumf %18, %19 : vector<64x32xf32>
    %21 = arith.maximumf %11, %20 : vector<64x32xf32>
    %c2 = arith.constant 2 : index
    %c0_13 = arith.constant 0 : index
    %c0_14 = arith.constant 0 : index
    %22 = vector.load %arg1[%c2, %c0_13, %c0_14] : memref<4x64x16xbf16, #tpu.memory_space<vmem>>, vector<1x64x16xbf16>
    %23 = vector.shape_cast %22 : vector<1x64x16xbf16> to vector<64x16xbf16>
    %cst_15 = arith.constant dense<0.000000e+00> : vector<64x32xf32>
    %24 = tpu.matmul %23, %2, %cst_15 {dimension_numbers = #tpu.dot_dimension_numbers<[1], [0], [0], [1], [0, 0, 1, 1], [], []>} : vector<64x16xbf16>, vector<16x32xbf16>, vector<64x32xf32> -> vector<64x32xf32>
    %25 = vector.broadcast %0 : vector<1x32xf32> to vector<64x32xf32>
    %26 = arith.mulf %24, %25 : vector<64x32xf32>
    %27 = vector.broadcast %1 : vector<1x32xf32> to vector<64x32xf32>
    %28 = arith.addf %26, %27 : vector<64x32xf32>
    %cst_16 = arith.constant 0.000000e+00 : f32
    %29 = vector.broadcast %cst_16 : f32 to vector<64x32xf32>
    %30 = arith.maximumf %28, %29 : vector<64x32xf32>
    %31 = arith.maximumf %21, %30 : vector<64x32xf32>
    %c3 = arith.constant 3 : index
    %c0_17 = arith.constant 0 : index
    %c0_18 = arith.constant 0 : index
    %32 = vector.load %arg1[%c3, %c0_17, %c0_18] : memref<4x64x16xbf16, #tpu.memory_space<vmem>>, vector<1x64x16xbf16>
    %33 = vector.shape_cast %32 : vector<1x64x16xbf16> to vector<64x16xbf16>
    %cst_19 = arith.constant dense<0.000000e+00> : vector<64x32xf32>
    %34 = tpu.matmul %33, %2, %cst_19 {dimension_numbers = #tpu.dot_dimension_numbers<[1], [0], [0], [1], [0, 0, 1, 1], [], []>} : vector<64x16xbf16>, vector<16x32xbf16>, vector<64x32xf32> -> vector<64x32xf32>
    %35 = vector.broadcast %0 : vector<1x32xf32> to vector<64x32xf32>
    %36 = arith.mulf %34, %35 : vector<64x32xf32>
    %37 = vector.broadcast %1 : vector<1x32xf32> to vector<64x32xf32>
    %38 = arith.addf %36, %37 : vector<64x32xf32>
    %cst_20 = arith.constant 0.000000e+00 : f32
    %39 = vector.broadcast %cst_20 : f32 to vector<64x32xf32>
    %40 = arith.maximumf %38, %39 : vector<64x32xf32>
    %41 = arith.maximumf %31, %40 : vector<64x32xf32>
    %42 = arith.truncf %41 : vector<64x32xf32> to vector<64x32xbf16>
    %c0_21 = arith.constant 0 : index
    %c0_22 = arith.constant 0 : index
    %43 = vector.load %arg5[%c0_21, %c0_22] : memref<64x32xbf16, #tpu.memory_space<vmem>>, vector<64x32xbf16>
    tpu.vector_store %arg5[%c0_21, %c0_22], %42 {strides = array<i32>} : memref<64x32xbf16, #tpu.memory_space<vmem>>, vector<64x32xbf16>,
    return
  }
  func.func @transform_0(%arg0: i32) -> (i32, i32, i32) {
    %c0_i32 = arith.constant 0 : i32
    %c0_i32_0 = arith.constant 0 : i32
    %c0_i32_1 = arith.constant 0 : i32
    return %c0_i32, %arg0, %c0_i32_0 : i32, i32, i32
  }
  func.func @transform_1(%arg0: i32) -> (i32, i32) {
    %c0_i32 = arith.constant 0 : i32
    %c0_i32_0 = arith.constant 0 : i32
    %c0_i32_1 = arith.constant 0 : i32
    return %c0_i32, %c0_i32_0 : i32, i32
  }
  func.func @transform_2(%arg0: i32) -> (i32, i32) {
    %c0_i32 = arith.constant 0 : i32
    %c0_i32_0 = arith.constant 0 : i32
    %c0_i32_1 = arith.constant 0 : i32
    return %c0_i32, %c0_i32_0 : i32, i32
  }
  func.func @transform_3(%arg0: i32) -> (i32, i32) {
    %c0_i32 = arith.constant 0 : i32
    %c0_i32_0 = arith.constant 0 : i32
    %c0_i32_1 = arith.constant 0 : i32
    return %c0_i32, %c0_i32_0 : i32, i32
  }
  func.func @transform_4(%arg0: i32) -> (i32, i32) {
    %c0_i32 = arith.constant 0 : i32
    %c0_i32_0 = arith.constant 0 : i32
    return %arg0, %c0_i32 : i32, i32
  }
}

module attributes {stable_mosaic.version = 11 : i64} {
  func.func @_conv_block_kernel(%arg0: i32, %arg1: memref<16x32x32xbf16, #tpu.memory_space<vmem>>, %arg2: memref<9x32x64xbf16, #tpu.memory_space<vmem>>, %arg3: memref<1x64xf32, #tpu.memory_space<vmem>>, %arg4: memref<1x64xf32, #tpu.memory_space<vmem>>, %arg5: memref<32x64xbf16, #tpu.memory_space<vmem>>) attributes {dimension_semantics = [#tpu.dimension_semantics<parallel>], iteration_bounds = array<i64: 1>, scalar_prefetch = 0 : i64, scratch_operands = 0 : i64, tpu.core_type = #tpu.core_type<tc>, window_params = [{transform_indices = @transform_0, window_bounds = array<i64: 16, 32, 32>}, {pipeline_mode = #tpu.pipeline_mode<synchronous>, transform_indices = @transform_1, window_bounds = array<i64: 9, 32, 64>}, {pipeline_mode = #tpu.pipeline_mode<synchronous>, transform_indices = @transform_2, window_bounds = array<i64: 1, 64>}, {pipeline_mode = #tpu.pipeline_mode<synchronous>, transform_indices = @transform_3, window_bounds = array<i64: 1, 64>}, {transform_indices = @transform_4, window_bounds = array<i64: 32, 64>}]} {
    %c0 = arith.constant 0 : index
    %c0_0 = arith.constant 0 : index
    %0 = vector.load %arg3[%c0, %c0_0] : memref<1x64xf32, #tpu.memory_space<vmem>>, vector<1x64xf32>
    %c0_1 = arith.constant 0 : index
    %c0_2 = arith.constant 0 : index
    %1 = vector.load %arg4[%c0_1, %c0_2] : memref<1x64xf32, #tpu.memory_space<vmem>>, vector<1x64xf32>
    %c0_3 = arith.constant 0 : index
    %c0_4 = arith.constant 0 : index
    %c0_5 = arith.constant 0 : index
    %2 = vector.load %arg1[%c0_3, %c0_4, %c0_5] : memref<16x32x32xbf16, #tpu.memory_space<vmem>>, vector<1x32x32xbf16>
    %3 = vector.shape_cast %2 : vector<1x32x32xbf16> to vector<32x32xbf16>
    %c0_6 = arith.constant 0 : index
    %c0_7 = arith.constant 0 : index
    %c0_8 = arith.constant 0 : index
    %4 = vector.load %arg2[%c0_6, %c0_7, %c0_8] : memref<9x32x64xbf16, #tpu.memory_space<vmem>>, vector<1x32x64xbf16>
    %5 = vector.shape_cast %4 : vector<1x32x64xbf16> to vector<32x64xbf16>
    %cst = arith.constant dense<0.000000e+00> : vector<32x64xf32>
    %6 = tpu.matmul %3, %5, %cst {dimension_numbers = #tpu.dot_dimension_numbers<[1], [0], [0], [1], [0, 0, 1, 1], [], []>} : vector<32x32xbf16>, vector<32x64xbf16>, vector<32x64xf32> -> vector<32x64xf32>
    %c1 = arith.constant 1 : index
    %c0_9 = arith.constant 0 : index
    %c0_10 = arith.constant 0 : index
    %7 = vector.load %arg1[%c1, %c0_9, %c0_10] : memref<16x32x32xbf16, #tpu.memory_space<vmem>>, vector<1x32x32xbf16>
    %8 = vector.shape_cast %7 : vector<1x32x32xbf16> to vector<32x32xbf16>
    %c1_11 = arith.constant 1 : index
    %c0_12 = arith.constant 0 : index
    %c0_13 = arith.constant 0 : index
    %9 = vector.load %arg2[%c1_11, %c0_12, %c0_13] : memref<9x32x64xbf16, #tpu.memory_space<vmem>>, vector<1x32x64xbf16>
    %10 = vector.shape_cast %9 : vector<1x32x64xbf16> to vector<32x64xbf16>
    %cst_14 = arith.constant dense<0.000000e+00> : vector<32x64xf32>
    %11 = tpu.matmul %8, %10, %cst_14 {dimension_numbers = #tpu.dot_dimension_numbers<[1], [0], [0], [1], [0, 0, 1, 1], [], []>} : vector<32x32xbf16>, vector<32x64xbf16>, vector<32x64xf32> -> vector<32x64xf32>
    %12 = arith.addf %6, %11 : vector<32x64xf32>
    %c2 = arith.constant 2 : index
    %c0_15 = arith.constant 0 : index
    %c0_16 = arith.constant 0 : index
    %13 = vector.load %arg1[%c2, %c0_15, %c0_16] : memref<16x32x32xbf16, #tpu.memory_space<vmem>>, vector<1x32x32xbf16>
    %14 = vector.shape_cast %13 : vector<1x32x32xbf16> to vector<32x32xbf16>
    %c2_17 = arith.constant 2 : index
    %c0_18 = arith.constant 0 : index
    %c0_19 = arith.constant 0 : index
    %15 = vector.load %arg2[%c2_17, %c0_18, %c0_19] : memref<9x32x64xbf16, #tpu.memory_space<vmem>>, vector<1x32x64xbf16>
    %16 = vector.shape_cast %15 : vector<1x32x64xbf16> to vector<32x64xbf16>
    %cst_20 = arith.constant dense<0.000000e+00> : vector<32x64xf32>
    %17 = tpu.matmul %14, %16, %cst_20 {dimension_numbers = #tpu.dot_dimension_numbers<[1], [0], [0], [1], [0, 0, 1, 1], [], []>} : vector<32x32xbf16>, vector<32x64xbf16>, vector<32x64xf32> -> vector<32x64xf32>
    %18 = arith.addf %12, %17 : vector<32x64xf32>
    %c4 = arith.constant 4 : index
    %c0_21 = arith.constant 0 : index
    %c0_22 = arith.constant 0 : index
    %19 = vector.load %arg1[%c4, %c0_21, %c0_22] : memref<16x32x32xbf16, #tpu.memory_space<vmem>>, vector<1x32x32xbf16>
    %20 = vector.shape_cast %19 : vector<1x32x32xbf16> to vector<32x32xbf16>
    %c3 = arith.constant 3 : index
    %c0_23 = arith.constant 0 : index
    %c0_24 = arith.constant 0 : index
    %21 = vector.load %arg2[%c3, %c0_23, %c0_24] : memref<9x32x64xbf16, #tpu.memory_space<vmem>>, vector<1x32x64xbf16>
    %22 = vector.shape_cast %21 : vector<1x32x64xbf16> to vector<32x64xbf16>
    %cst_25 = arith.constant dense<0.000000e+00> : vector<32x64xf32>
    %23 = tpu.matmul %20, %22, %cst_25 {dimension_numbers = #tpu.dot_dimension_numbers<[1], [0], [0], [1], [0, 0, 1, 1], [], []>} : vector<32x32xbf16>, vector<32x64xbf16>, vector<32x64xf32> -> vector<32x64xf32>
    %24 = arith.addf %18, %23 : vector<32x64xf32>
    %c5 = arith.constant 5 : index
    %c0_26 = arith.constant 0 : index
    %c0_27 = arith.constant 0 : index
    %25 = vector.load %arg1[%c5, %c0_26, %c0_27] : memref<16x32x32xbf16, #tpu.memory_space<vmem>>, vector<1x32x32xbf16>
    %26 = vector.shape_cast %25 : vector<1x32x32xbf16> to vector<32x32xbf16>
    %c4_28 = arith.constant 4 : index
    %c0_29 = arith.constant 0 : index
    %c0_30 = arith.constant 0 : index
    %27 = vector.load %arg2[%c4_28, %c0_29, %c0_30] : memref<9x32x64xbf16, #tpu.memory_space<vmem>>, vector<1x32x64xbf16>
    %28 = vector.shape_cast %27 : vector<1x32x64xbf16> to vector<32x64xbf16>
    %cst_31 = arith.constant dense<0.000000e+00> : vector<32x64xf32>
    %29 = tpu.matmul %26, %28, %cst_31 {dimension_numbers = #tpu.dot_dimension_numbers<[1], [0], [0], [1], [0, 0, 1, 1], [], []>} : vector<32x32xbf16>, vector<32x64xbf16>, vector<32x64xf32> -> vector<32x64xf32>
    %30 = arith.addf %24, %29 : vector<32x64xf32>
    %c6 = arith.constant 6 : index
    %c0_32 = arith.constant 0 : index
    %c0_33 = arith.constant 0 : index
    %31 = vector.load %arg1[%c6, %c0_32, %c0_33] : memref<16x32x32xbf16, #tpu.memory_space<vmem>>, vector<1x32x32xbf16>
    %32 = vector.shape_cast %31 : vector<1x32x32xbf16> to vector<32x32xbf16>
    %c5_34 = arith.constant 5 : index
    %c0_35 = arith.constant 0 : index
    %c0_36 = arith.constant 0 : index
    %33 = vector.load %arg2[%c5_34, %c0_35, %c0_36] : memref<9x32x64xbf16, #tpu.memory_space<vmem>>, vector<1x32x64xbf16>
    %34 = vector.shape_cast %33 : vector<1x32x64xbf16> to vector<32x64xbf16>
    %cst_37 = arith.constant dense<0.000000e+00> : vector<32x64xf32>
    %35 = tpu.matmul %32, %34, %cst_37 {dimension_numbers = #tpu.dot_dimension_numbers<[1], [0], [0], [1], [0, 0, 1, 1], [], []>} : vector<32x32xbf16>, vector<32x64xbf16>, vector<32x64xf32> -> vector<32x64xf32>
    %36 = arith.addf %30, %35 : vector<32x64xf32>
    %c8 = arith.constant 8 : index
    %c0_38 = arith.constant 0 : index
    %c0_39 = arith.constant 0 : index
    %37 = vector.load %arg1[%c8, %c0_38, %c0_39] : memref<16x32x32xbf16, #tpu.memory_space<vmem>>, vector<1x32x32xbf16>
    %38 = vector.shape_cast %37 : vector<1x32x32xbf16> to vector<32x32xbf16>
    %c6_40 = arith.constant 6 : index
    %c0_41 = arith.constant 0 : index
    %c0_42 = arith.constant 0 : index
    %39 = vector.load %arg2[%c6_40, %c0_41, %c0_42] : memref<9x32x64xbf16, #tpu.memory_space<vmem>>, vector<1x32x64xbf16>
    %40 = vector.shape_cast %39 : vector<1x32x64xbf16> to vector<32x64xbf16>
    %cst_43 = arith.constant dense<0.000000e+00> : vector<32x64xf32>
    %41 = tpu.matmul %38, %40, %cst_43 {dimension_numbers = #tpu.dot_dimension_numbers<[1], [0], [0], [1], [0, 0, 1, 1], [], []>} : vector<32x32xbf16>, vector<32x64xbf16>, vector<32x64xf32> -> vector<32x64xf32>
    %42 = arith.addf %36, %41 : vector<32x64xf32>
    %c9 = arith.constant 9 : index
    %c0_44 = arith.constant 0 : index
    %c0_45 = arith.constant 0 : index
    %43 = vector.load %arg1[%c9, %c0_44, %c0_45] : memref<16x32x32xbf16, #tpu.memory_space<vmem>>, vector<1x32x32xbf16>
    %44 = vector.shape_cast %43 : vector<1x32x32xbf16> to vector<32x32xbf16>
    %c7 = arith.constant 7 : index
    %c0_46 = arith.constant 0 : index
    %c0_47 = arith.constant 0 : index
    %45 = vector.load %arg2[%c7, %c0_46, %c0_47] : memref<9x32x64xbf16, #tpu.memory_space<vmem>>, vector<1x32x64xbf16>
    %46 = vector.shape_cast %45 : vector<1x32x64xbf16> to vector<32x64xbf16>
    %cst_48 = arith.constant dense<0.000000e+00> : vector<32x64xf32>
    %47 = tpu.matmul %44, %46, %cst_48 {dimension_numbers = #tpu.dot_dimension_numbers<[1], [0], [0], [1], [0, 0, 1, 1], [], []>} : vector<32x32xbf16>, vector<32x64xbf16>, vector<32x64xf32> -> vector<32x64xf32>
    %48 = arith.addf %42, %47 : vector<32x64xf32>
    %c10 = arith.constant 10 : index
    %c0_49 = arith.constant 0 : index
    %c0_50 = arith.constant 0 : index
    %49 = vector.load %arg1[%c10, %c0_49, %c0_50] : memref<16x32x32xbf16, #tpu.memory_space<vmem>>, vector<1x32x32xbf16>
    %50 = vector.shape_cast %49 : vector<1x32x32xbf16> to vector<32x32xbf16>
    %c8_51 = arith.constant 8 : index
    %c0_52 = arith.constant 0 : index
    %c0_53 = arith.constant 0 : index
    %51 = vector.load %arg2[%c8_51, %c0_52, %c0_53] : memref<9x32x64xbf16, #tpu.memory_space<vmem>>, vector<1x32x64xbf16>
    %52 = vector.shape_cast %51 : vector<1x32x64xbf16> to vector<32x64xbf16>
    %cst_54 = arith.constant dense<0.000000e+00> : vector<32x64xf32>
    %53 = tpu.matmul %50, %52, %cst_54 {dimension_numbers = #tpu.dot_dimension_numbers<[1], [0], [0], [1], [0, 0, 1, 1], [], []>} : vector<32x32xbf16>, vector<32x64xbf16>, vector<32x64xf32> -> vector<32x64xf32>
    %54 = arith.addf %48, %53 : vector<32x64xf32>
    %55 = vector.broadcast %0 : vector<1x64xf32> to vector<32x64xf32>
    %56 = arith.mulf %54, %55 : vector<32x64xf32>
    %57 = vector.broadcast %1 : vector<1x64xf32> to vector<32x64xf32>
    %58 = arith.addf %56, %57 : vector<32x64xf32>
    %cst_55 = arith.constant 0.000000e+00 : f32
    %59 = vector.broadcast %cst_55 : f32 to vector<32x64xf32>
    %60 = arith.maximumf %58, %59 : vector<32x64xf32>
    %c1_56 = arith.constant 1 : index
    %c0_57 = arith.constant 0 : index
    %c0_58 = arith.constant 0 : index
    %61 = vector.load %arg1[%c1_56, %c0_57, %c0_58] : memref<16x32x32xbf16, #tpu.memory_space<vmem>>, vector<1x32x32xbf16>
    %62 = vector.shape_cast %61 : vector<1x32x32xbf16> to vector<32x32xbf16>
    %c0_59 = arith.constant 0 : index
    %c0_60 = arith.constant 0 : index
    %c0_61 = arith.constant 0 : index
    %63 = vector.load %arg2[%c0_59, %c0_60, %c0_61] : memref<9x32x64xbf16, #tpu.memory_space<vmem>>, vector<1x32x64xbf16>
    %64 = vector.shape_cast %63 : vector<1x32x64xbf16> to vector<32x64xbf16>
    %cst_62 = arith.constant dense<0.000000e+00> : vector<32x64xf32>
    %65 = tpu.matmul %62, %64, %cst_62 {dimension_numbers = #tpu.dot_dimension_numbers<[1], [0], [0], [1], [0, 0, 1, 1], [], []>} : vector<32x32xbf16>, vector<32x64xbf16>, vector<32x64xf32> -> vector<32x64xf32>
    %c2_63 = arith.constant 2 : index
    %c0_64 = arith.constant 0 : index
    %c0_65 = arith.constant 0 : index
    %66 = vector.load %arg1[%c2_63, %c0_64, %c0_65] : memref<16x32x32xbf16, #tpu.memory_space<vmem>>, vector<1x32x32xbf16>
    %67 = vector.shape_cast %66 : vector<1x32x32xbf16> to vector<32x32xbf16>
    %c1_66 = arith.constant 1 : index
    %c0_67 = arith.constant 0 : index
    %c0_68 = arith.constant 0 : index
    %68 = vector.load %arg2[%c1_66, %c0_67, %c0_68] : memref<9x32x64xbf16, #tpu.memory_space<vmem>>, vector<1x32x64xbf16>
    %69 = vector.shape_cast %68 : vector<1x32x64xbf16> to vector<32x64xbf16>
    %cst_69 = arith.constant dense<0.000000e+00> : vector<32x64xf32>
    %70 = tpu.matmul %67, %69, %cst_69 {dimension_numbers = #tpu.dot_dimension_numbers<[1], [0], [0], [1], [0, 0, 1, 1], [], []>} : vector<32x32xbf16>, vector<32x64xbf16>, vector<32x64xf32> -> vector<32x64xf32>
    %71 = arith.addf %65, %70 : vector<32x64xf32>
    %c3_70 = arith.constant 3 : index
    %c0_71 = arith.constant 0 : index
    %c0_72 = arith.constant 0 : index
    %72 = vector.load %arg1[%c3_70, %c0_71, %c0_72] : memref<16x32x32xbf16, #tpu.memory_space<vmem>>, vector<1x32x32xbf16>
    %73 = vector.shape_cast %72 : vector<1x32x32xbf16> to vector<32x32xbf16>
    %c2_73 = arith.constant 2 : index
    %c0_74 = arith.constant 0 : index
    %c0_75 = arith.constant 0 : index
    %74 = vector.load %arg2[%c2_73, %c0_74, %c0_75] : memref<9x32x64xbf16, #tpu.memory_space<vmem>>, vector<1x32x64xbf16>
    %75 = vector.shape_cast %74 : vector<1x32x64xbf16> to vector<32x64xbf16>
    %cst_76 = arith.constant dense<0.000000e+00> : vector<32x64xf32>
    %76 = tpu.matmul %73, %75, %cst_76 {dimension_numbers = #tpu.dot_dimension_numbers<[1], [0], [0], [1], [0, 0, 1, 1], [], []>} : vector<32x32xbf16>, vector<32x64xbf16>, vector<32x64xf32> -> vector<32x64xf32>
    %77 = arith.addf %71, %76 : vector<32x64xf32>
    %c5_77 = arith.constant 5 : index
    %c0_78 = arith.constant 0 : index
    %c0_79 = arith.constant 0 : index
    %78 = vector.load %arg1[%c5_77, %c0_78, %c0_79] : memref<16x32x32xbf16, #tpu.memory_space<vmem>>, vector<1x32x32xbf16>
    %79 = vector.shape_cast %78 : vector<1x32x32xbf16> to vector<32x32xbf16>
    %c3_80 = arith.constant 3 : index
    %c0_81 = arith.constant 0 : index
    %c0_82 = arith.constant 0 : index
    %80 = vector.load %arg2[%c3_80, %c0_81, %c0_82] : memref<9x32x64xbf16, #tpu.memory_space<vmem>>, vector<1x32x64xbf16>
    %81 = vector.shape_cast %80 : vector<1x32x64xbf16> to vector<32x64xbf16>
    %cst_83 = arith.constant dense<0.000000e+00> : vector<32x64xf32>
    %82 = tpu.matmul %79, %81, %cst_83 {dimension_numbers = #tpu.dot_dimension_numbers<[1], [0], [0], [1], [0, 0, 1, 1], [], []>} : vector<32x32xbf16>, vector<32x64xbf16>, vector<32x64xf32> -> vector<32x64xf32>
    %83 = arith.addf %77, %82 : vector<32x64xf32>
    %c6_84 = arith.constant 6 : index
    %c0_85 = arith.constant 0 : index
    %c0_86 = arith.constant 0 : index
    %84 = vector.load %arg1[%c6_84, %c0_85, %c0_86] : memref<16x32x32xbf16, #tpu.memory_space<vmem>>, vector<1x32x32xbf16>
    %85 = vector.shape_cast %84 : vector<1x32x32xbf16> to vector<32x32xbf16>
    %c4_87 = arith.constant 4 : index
    %c0_88 = arith.constant 0 : index
    %c0_89 = arith.constant 0 : index
    %86 = vector.load %arg2[%c4_87, %c0_88, %c0_89] : memref<9x32x64xbf16, #tpu.memory_space<vmem>>, vector<1x32x64xbf16>
    %87 = vector.shape_cast %86 : vector<1x32x64xbf16> to vector<32x64xbf16>
    %cst_90 = arith.constant dense<0.000000e+00> : vector<32x64xf32>
    %88 = tpu.matmul %85, %87, %cst_90 {dimension_numbers = #tpu.dot_dimension_numbers<[1], [0], [0], [1], [0, 0, 1, 1], [], []>} : vector<32x32xbf16>, vector<32x64xbf16>, vector<32x64xf32> -> vector<32x64xf32>
    %89 = arith.addf %83, %88 : vector<32x64xf32>
    %c7_91 = arith.constant 7 : index
    %c0_92 = arith.constant 0 : index
    %c0_93 = arith.constant 0 : index
    %90 = vector.load %arg1[%c7_91, %c0_92, %c0_93] : memref<16x32x32xbf16, #tpu.memory_space<vmem>>, vector<1x32x32xbf16>
    %91 = vector.shape_cast %90 : vector<1x32x32xbf16> to vector<32x32xbf16>
    %c5_94 = arith.constant 5 : index
    %c0_95 = arith.constant 0 : index
    %c0_96 = arith.constant 0 : index
    %92 = vector.load %arg2[%c5_94, %c0_95, %c0_96] : memref<9x32x64xbf16, #tpu.memory_space<vmem>>, vector<1x32x64xbf16>
    %93 = vector.shape_cast %92 : vector<1x32x64xbf16> to vector<32x64xbf16>
    %cst_97 = arith.constant dense<0.000000e+00> : vector<32x64xf32>
    %94 = tpu.matmul %91, %93, %cst_97 {dimension_numbers = #tpu.dot_dimension_numbers<[1], [0], [0], [1], [0, 0, 1, 1], [], []>} : vector<32x32xbf16>, vector<32x64xbf16>, vector<32x64xf32> -> vector<32x64xf32>
    %95 = arith.addf %89, %94 : vector<32x64xf32>
    %c9_98 = arith.constant 9 : index
    %c0_99 = arith.constant 0 : index
    %c0_100 = arith.constant 0 : index
    %96 = vector.load %arg1[%c9_98, %c0_99, %c0_100] : memref<16x32x32xbf16, #tpu.memory_space<vmem>>, vector<1x32x32xbf16>
    %97 = vector.shape_cast %96 : vector<1x32x32xbf16> to vector<32x32xbf16>
    %c6_101 = arith.constant 6 : index
    %c0_102 = arith.constant 0 : index
    %c0_103 = arith.constant 0 : index
    %98 = vector.load %arg2[%c6_101, %c0_102, %c0_103] : memref<9x32x64xbf16, #tpu.memory_space<vmem>>, vector<1x32x64xbf16>
    %99 = vector.shape_cast %98 : vector<1x32x64xbf16> to vector<32x64xbf16>
    %cst_104 = arith.constant dense<0.000000e+00> : vector<32x64xf32>
    %100 = tpu.matmul %97, %99, %cst_104 {dimension_numbers = #tpu.dot_dimension_numbers<[1], [0], [0], [1], [0, 0, 1, 1], [], []>} : vector<32x32xbf16>, vector<32x64xbf16>, vector<32x64xf32> -> vector<32x64xf32>
    %101 = arith.addf %95, %100 : vector<32x64xf32>
    %c10_105 = arith.constant 10 : index
    %c0_106 = arith.constant 0 : index
    %c0_107 = arith.constant 0 : index
    %102 = vector.load %arg1[%c10_105, %c0_106, %c0_107] : memref<16x32x32xbf16, #tpu.memory_space<vmem>>, vector<1x32x32xbf16>
    %103 = vector.shape_cast %102 : vector<1x32x32xbf16> to vector<32x32xbf16>
    %c7_108 = arith.constant 7 : index
    %c0_109 = arith.constant 0 : index
    %c0_110 = arith.constant 0 : index
    %104 = vector.load %arg2[%c7_108, %c0_109, %c0_110] : memref<9x32x64xbf16, #tpu.memory_space<vmem>>, vector<1x32x64xbf16>
    %105 = vector.shape_cast %104 : vector<1x32x64xbf16> to vector<32x64xbf16>
    %cst_111 = arith.constant dense<0.000000e+00> : vector<32x64xf32>
    %106 = tpu.matmul %103, %105, %cst_111 {dimension_numbers = #tpu.dot_dimension_numbers<[1], [0], [0], [1], [0, 0, 1, 1], [], []>} : vector<32x32xbf16>, vector<32x64xbf16>, vector<32x64xf32> -> vector<32x64xf32>
    %107 = arith.addf %101, %106 : vector<32x64xf32>
    %c11 = arith.constant 11 : index
    %c0_112 = arith.constant 0 : index
    %c0_113 = arith.constant 0 : index
    %108 = vector.load %arg1[%c11, %c0_112, %c0_113] : memref<16x32x32xbf16, #tpu.memory_space<vmem>>, vector<1x32x32xbf16>
    %109 = vector.shape_cast %108 : vector<1x32x32xbf16> to vector<32x32xbf16>
    %c8_114 = arith.constant 8 : index
    %c0_115 = arith.constant 0 : index
    %c0_116 = arith.constant 0 : index
    %110 = vector.load %arg2[%c8_114, %c0_115, %c0_116] : memref<9x32x64xbf16, #tpu.memory_space<vmem>>, vector<1x32x64xbf16>
    %111 = vector.shape_cast %110 : vector<1x32x64xbf16> to vector<32x64xbf16>
    %cst_117 = arith.constant dense<0.000000e+00> : vector<32x64xf32>
    %112 = tpu.matmul %109, %111, %cst_117 {dimension_numbers = #tpu.dot_dimension_numbers<[1], [0], [0], [1], [0, 0, 1, 1], [], []>} : vector<32x32xbf16>, vector<32x64xbf16>, vector<32x64xf32> -> vector<32x64xf32>
    %113 = arith.addf %107, %112 : vector<32x64xf32>
    %114 = vector.broadcast %0 : vector<1x64xf32> to vector<32x64xf32>
    %115 = arith.mulf %113, %114 : vector<32x64xf32>
    %116 = vector.broadcast %1 : vector<1x64xf32> to vector<32x64xf32>
    %117 = arith.addf %115, %116 : vector<32x64xf32>
    %cst_118 = arith.constant 0.000000e+00 : f32
    %118 = vector.broadcast %cst_118 : f32 to vector<32x64xf32>
    %119 = arith.maximumf %117, %118 : vector<32x64xf32>
    %120 = arith.maximumf %60, %119 : vector<32x64xf32>
    %c4_119 = arith.constant 4 : index
    %c0_120 = arith.constant 0 : index
    %c0_121 = arith.constant 0 : index
    %121 = vector.load %arg1[%c4_119, %c0_120, %c0_121] : memref<16x32x32xbf16, #tpu.memory_space<vmem>>, vector<1x32x32xbf16>
    %122 = vector.shape_cast %121 : vector<1x32x32xbf16> to vector<32x32xbf16>
    %c0_122 = arith.constant 0 : index
    %c0_123 = arith.constant 0 : index
    %c0_124 = arith.constant 0 : index
    %123 = vector.load %arg2[%c0_122, %c0_123, %c0_124] : memref<9x32x64xbf16, #tpu.memory_space<vmem>>, vector<1x32x64xbf16>
    %124 = vector.shape_cast %123 : vector<1x32x64xbf16> to vector<32x64xbf16>
    %cst_125 = arith.constant dense<0.000000e+00> : vector<32x64xf32>
    %125 = tpu.matmul %122, %124, %cst_125 {dimension_numbers = #tpu.dot_dimension_numbers<[1], [0], [0], [1], [0, 0, 1, 1], [], []>} : vector<32x32xbf16>, vector<32x64xbf16>, vector<32x64xf32> -> vector<32x64xf32>
    %c5_126 = arith.constant 5 : index
    %c0_127 = arith.constant 0 : index
    %c0_128 = arith.constant 0 : index
    %126 = vector.load %arg1[%c5_126, %c0_127, %c0_128] : memref<16x32x32xbf16, #tpu.memory_space<vmem>>, vector<1x32x32xbf16>
    %127 = vector.shape_cast %126 : vector<1x32x32xbf16> to vector<32x32xbf16>
    %c1_129 = arith.constant 1 : index
    %c0_130 = arith.constant 0 : index
    %c0_131 = arith.constant 0 : index
    %128 = vector.load %arg2[%c1_129, %c0_130, %c0_131] : memref<9x32x64xbf16, #tpu.memory_space<vmem>>, vector<1x32x64xbf16>
    %129 = vector.shape_cast %128 : vector<1x32x64xbf16> to vector<32x64xbf16>
    %cst_132 = arith.constant dense<0.000000e+00> : vector<32x64xf32>
    %130 = tpu.matmul %127, %129, %cst_132 {dimension_numbers = #tpu.dot_dimension_numbers<[1], [0], [0], [1], [0, 0, 1, 1], [], []>} : vector<32x32xbf16>, vector<32x64xbf16>, vector<32x64xf32> -> vector<32x64xf32>
    %131 = arith.addf %125, %130 : vector<32x64xf32>
    %c6_133 = arith.constant 6 : index
    %c0_134 = arith.constant 0 : index
    %c0_135 = arith.constant 0 : index
    %132 = vector.load %arg1[%c6_133, %c0_134, %c0_135] : memref<16x32x32xbf16, #tpu.memory_space<vmem>>, vector<1x32x32xbf16>
    %133 = vector.shape_cast %132 : vector<1x32x32xbf16> to vector<32x32xbf16>
    %c2_136 = arith.constant 2 : index
    %c0_137 = arith.constant 0 : index
    %c0_138 = arith.constant 0 : index
    %134 = vector.load %arg2[%c2_136, %c0_137, %c0_138] : memref<9x32x64xbf16, #tpu.memory_space<vmem>>, vector<1x32x64xbf16>
    %135 = vector.shape_cast %134 : vector<1x32x64xbf16> to vector<32x64xbf16>
    %cst_139 = arith.constant dense<0.000000e+00> : vector<32x64xf32>
    %136 = tpu.matmul %133, %135, %cst_139 {dimension_numbers = #tpu.dot_dimension_numbers<[1], [0], [0], [1], [0, 0, 1, 1], [], []>} : vector<32x32xbf16>, vector<32x64xbf16>, vector<32x64xf32> -> vector<32x64xf32>
    %137 = arith.addf %131, %136 : vector<32x64xf32>
    %c8_140 = arith.constant 8 : index
    %c0_141 = arith.constant 0 : index
    %c0_142 = arith.constant 0 : index
    %138 = vector.load %arg1[%c8_140, %c0_141, %c0_142] : memref<16x32x32xbf16, #tpu.memory_space<vmem>>, vector<1x32x32xbf16>
    %139 = vector.shape_cast %138 : vector<1x32x32xbf16> to vector<32x32xbf16>
    %c3_143 = arith.constant 3 : index
    %c0_144 = arith.constant 0 : index
    %c0_145 = arith.constant 0 : index
    %140 = vector.load %arg2[%c3_143, %c0_144, %c0_145] : memref<9x32x64xbf16, #tpu.memory_space<vmem>>, vector<1x32x64xbf16>
    %141 = vector.shape_cast %140 : vector<1x32x64xbf16> to vector<32x64xbf16>
    %cst_146 = arith.constant dense<0.000000e+00> : vector<32x64xf32>
    %142 = tpu.matmul %139, %141, %cst_146 {dimension_numbers = #tpu.dot_dimension_numbers<[1], [0], [0], [1], [0, 0, 1, 1], [], []>} : vector<32x32xbf16>, vector<32x64xbf16>, vector<32x64xf32> -> vector<32x64xf32>
    %143 = arith.addf %137, %142 : vector<32x64xf32>
    %c9_147 = arith.constant 9 : index
    %c0_148 = arith.constant 0 : index
    %c0_149 = arith.constant 0 : index
    %144 = vector.load %arg1[%c9_147, %c0_148, %c0_149] : memref<16x32x32xbf16, #tpu.memory_space<vmem>>, vector<1x32x32xbf16>
    %145 = vector.shape_cast %144 : vector<1x32x32xbf16> to vector<32x32xbf16>
    %c4_150 = arith.constant 4 : index
    %c0_151 = arith.constant 0 : index
    %c0_152 = arith.constant 0 : index
    %146 = vector.load %arg2[%c4_150, %c0_151, %c0_152] : memref<9x32x64xbf16, #tpu.memory_space<vmem>>, vector<1x32x64xbf16>
    %147 = vector.shape_cast %146 : vector<1x32x64xbf16> to vector<32x64xbf16>
    %cst_153 = arith.constant dense<0.000000e+00> : vector<32x64xf32>
    %148 = tpu.matmul %145, %147, %cst_153 {dimension_numbers = #tpu.dot_dimension_numbers<[1], [0], [0], [1], [0, 0, 1, 1], [], []>} : vector<32x32xbf16>, vector<32x64xbf16>, vector<32x64xf32> -> vector<32x64xf32>
    %149 = arith.addf %143, %148 : vector<32x64xf32>
    %c10_154 = arith.constant 10 : index
    %c0_155 = arith.constant 0 : index
    %c0_156 = arith.constant 0 : index
    %150 = vector.load %arg1[%c10_154, %c0_155, %c0_156] : memref<16x32x32xbf16, #tpu.memory_space<vmem>>, vector<1x32x32xbf16>
    %151 = vector.shape_cast %150 : vector<1x32x32xbf16> to vector<32x32xbf16>
    %c5_157 = arith.constant 5 : index
    %c0_158 = arith.constant 0 : index
    %c0_159 = arith.constant 0 : index
    %152 = vector.load %arg2[%c5_157, %c0_158, %c0_159] : memref<9x32x64xbf16, #tpu.memory_space<vmem>>, vector<1x32x64xbf16>
    %153 = vector.shape_cast %152 : vector<1x32x64xbf16> to vector<32x64xbf16>
    %cst_160 = arith.constant dense<0.000000e+00> : vector<32x64xf32>
    %154 = tpu.matmul %151, %153, %cst_160 {dimension_numbers = #tpu.dot_dimension_numbers<[1], [0], [0], [1], [0, 0, 1, 1], [], []>} : vector<32x32xbf16>, vector<32x64xbf16>, vector<32x64xf32> -> vector<32x64xf32>
    %155 = arith.addf %149, %154 : vector<32x64xf32>
    %c12 = arith.constant 12 : index
    %c0_161 = arith.constant 0 : index
    %c0_162 = arith.constant 0 : index
    %156 = vector.load %arg1[%c12, %c0_161, %c0_162] : memref<16x32x32xbf16, #tpu.memory_space<vmem>>, vector<1x32x32xbf16>
    %157 = vector.shape_cast %156 : vector<1x32x32xbf16> to vector<32x32xbf16>
    %c6_163 = arith.constant 6 : index
    %c0_164 = arith.constant 0 : index
    %c0_165 = arith.constant 0 : index
    %158 = vector.load %arg2[%c6_163, %c0_164, %c0_165] : memref<9x32x64xbf16, #tpu.memory_space<vmem>>, vector<1x32x64xbf16>
    %159 = vector.shape_cast %158 : vector<1x32x64xbf16> to vector<32x64xbf16>
    %cst_166 = arith.constant dense<0.000000e+00> : vector<32x64xf32>
    %160 = tpu.matmul %157, %159, %cst_166 {dimension_numbers = #tpu.dot_dimension_numbers<[1], [0], [0], [1], [0, 0, 1, 1], [], []>} : vector<32x32xbf16>, vector<32x64xbf16>, vector<32x64xf32> -> vector<32x64xf32>
    %161 = arith.addf %155, %160 : vector<32x64xf32>
    %c13 = arith.constant 13 : index
    %c0_167 = arith.constant 0 : index
    %c0_168 = arith.constant 0 : index
    %162 = vector.load %arg1[%c13, %c0_167, %c0_168] : memref<16x32x32xbf16, #tpu.memory_space<vmem>>, vector<1x32x32xbf16>
    %163 = vector.shape_cast %162 : vector<1x32x32xbf16> to vector<32x32xbf16>
    %c7_169 = arith.constant 7 : index
    %c0_170 = arith.constant 0 : index
    %c0_171 = arith.constant 0 : index
    %164 = vector.load %arg2[%c7_169, %c0_170, %c0_171] : memref<9x32x64xbf16, #tpu.memory_space<vmem>>, vector<1x32x64xbf16>
    %165 = vector.shape_cast %164 : vector<1x32x64xbf16> to vector<32x64xbf16>
    %cst_172 = arith.constant dense<0.000000e+00> : vector<32x64xf32>
    %166 = tpu.matmul %163, %165, %cst_172 {dimension_numbers = #tpu.dot_dimension_numbers<[1], [0], [0], [1], [0, 0, 1, 1], [], []>} : vector<32x32xbf16>, vector<32x64xbf16>, vector<32x64xf32> -> vector<32x64xf32>
    %167 = arith.addf %161, %166 : vector<32x64xf32>
    %c14 = arith.constant 14 : index
    %c0_173 = arith.constant 0 : index
    %c0_174 = arith.constant 0 : index
    %168 = vector.load %arg1[%c14, %c0_173, %c0_174] : memref<16x32x32xbf16, #tpu.memory_space<vmem>>, vector<1x32x32xbf16>
    %169 = vector.shape_cast %168 : vector<1x32x32xbf16> to vector<32x32xbf16>
    %c8_175 = arith.constant 8 : index
    %c0_176 = arith.constant 0 : index
    %c0_177 = arith.constant 0 : index
    %170 = vector.load %arg2[%c8_175, %c0_176, %c0_177] : memref<9x32x64xbf16, #tpu.memory_space<vmem>>, vector<1x32x64xbf16>
    %171 = vector.shape_cast %170 : vector<1x32x64xbf16> to vector<32x64xbf16>
    %cst_178 = arith.constant dense<0.000000e+00> : vector<32x64xf32>
    %172 = tpu.matmul %169, %171, %cst_178 {dimension_numbers = #tpu.dot_dimension_numbers<[1], [0], [0], [1], [0, 0, 1, 1], [], []>} : vector<32x32xbf16>, vector<32x64xbf16>, vector<32x64xf32> -> vector<32x64xf32>
    %173 = arith.addf %167, %172 : vector<32x64xf32>
    %174 = vector.broadcast %0 : vector<1x64xf32> to vector<32x64xf32>
    %175 = arith.mulf %173, %174 : vector<32x64xf32>
    %176 = vector.broadcast %1 : vector<1x64xf32> to vector<32x64xf32>
    %177 = arith.addf %175, %176 : vector<32x64xf32>
    %cst_179 = arith.constant 0.000000e+00 : f32
    %178 = vector.broadcast %cst_179 : f32 to vector<32x64xf32>
    %179 = arith.maximumf %177, %178 : vector<32x64xf32>
    %180 = arith.maximumf %120, %179 : vector<32x64xf32>
    %c5_180 = arith.constant 5 : index
    %c0_181 = arith.constant 0 : index
    %c0_182 = arith.constant 0 : index
    %181 = vector.load %arg1[%c5_180, %c0_181, %c0_182] : memref<16x32x32xbf16, #tpu.memory_space<vmem>>, vector<1x32x32xbf16>
    %182 = vector.shape_cast %181 : vector<1x32x32xbf16> to vector<32x32xbf16>
    %c0_183 = arith.constant 0 : index
    %c0_184 = arith.constant 0 : index
    %c0_185 = arith.constant 0 : index
    %183 = vector.load %arg2[%c0_183, %c0_184, %c0_185] : memref<9x32x64xbf16, #tpu.memory_space<vmem>>, vector<1x32x64xbf16>
    %184 = vector.shape_cast %183 : vector<1x32x64xbf16> to vector<32x64xbf16>
    %cst_186 = arith.constant dense<0.000000e+00> : vector<32x64xf32>
    %185 = tpu.matmul %182, %184, %cst_186 {dimension_numbers = #tpu.dot_dimension_numbers<[1], [0], [0], [1], [0, 0, 1, 1], [], []>} : vector<32x32xbf16>, vector<32x64xbf16>, vector<32x64xf32> -> vector<32x64xf32>
    %c6_187 = arith.constant 6 : index
    %c0_188 = arith.constant 0 : index
    %c0_189 = arith.constant 0 : index
    %186 = vector.load %arg1[%c6_187, %c0_188, %c0_189] : memref<16x32x32xbf16, #tpu.memory_space<vmem>>, vector<1x32x32xbf16>
    %187 = vector.shape_cast %186 : vector<1x32x32xbf16> to vector<32x32xbf16>
    %c1_190 = arith.constant 1 : index
    %c0_191 = arith.constant 0 : index
    %c0_192 = arith.constant 0 : index
    %188 = vector.load %arg2[%c1_190, %c0_191, %c0_192] : memref<9x32x64xbf16, #tpu.memory_space<vmem>>, vector<1x32x64xbf16>
    %189 = vector.shape_cast %188 : vector<1x32x64xbf16> to vector<32x64xbf16>
    %cst_193 = arith.constant dense<0.000000e+00> : vector<32x64xf32>
    %190 = tpu.matmul %187, %189, %cst_193 {dimension_numbers = #tpu.dot_dimension_numbers<[1], [0], [0], [1], [0, 0, 1, 1], [], []>} : vector<32x32xbf16>, vector<32x64xbf16>, vector<32x64xf32> -> vector<32x64xf32>
    %191 = arith.addf %185, %190 : vector<32x64xf32>
    %c7_194 = arith.constant 7 : index
    %c0_195 = arith.constant 0 : index
    %c0_196 = arith.constant 0 : index
    %192 = vector.load %arg1[%c7_194, %c0_195, %c0_196] : memref<16x32x32xbf16, #tpu.memory_space<vmem>>, vector<1x32x32xbf16>
    %193 = vector.shape_cast %192 : vector<1x32x32xbf16> to vector<32x32xbf16>
    %c2_197 = arith.constant 2 : index
    %c0_198 = arith.constant 0 : index
    %c0_199 = arith.constant 0 : index
    %194 = vector.load %arg2[%c2_197, %c0_198, %c0_199] : memref<9x32x64xbf16, #tpu.memory_space<vmem>>, vector<1x32x64xbf16>
    %195 = vector.shape_cast %194 : vector<1x32x64xbf16> to vector<32x64xbf16>
    %cst_200 = arith.constant dense<0.000000e+00> : vector<32x64xf32>
    %196 = tpu.matmul %193, %195, %cst_200 {dimension_numbers = #tpu.dot_dimension_numbers<[1], [0], [0], [1], [0, 0, 1, 1], [], []>} : vector<32x32xbf16>, vector<32x64xbf16>, vector<32x64xf32> -> vector<32x64xf32>
    %197 = arith.addf %191, %196 : vector<32x64xf32>
    %c9_201 = arith.constant 9 : index
    %c0_202 = arith.constant 0 : index
    %c0_203 = arith.constant 0 : index
    %198 = vector.load %arg1[%c9_201, %c0_202, %c0_203] : memref<16x32x32xbf16, #tpu.memory_space<vmem>>, vector<1x32x32xbf16>
    %199 = vector.shape_cast %198 : vector<1x32x32xbf16> to vector<32x32xbf16>
    %c3_204 = arith.constant 3 : index
    %c0_205 = arith.constant 0 : index
    %c0_206 = arith.constant 0 : index
    %200 = vector.load %arg2[%c3_204, %c0_205, %c0_206] : memref<9x32x64xbf16, #tpu.memory_space<vmem>>, vector<1x32x64xbf16>
    %201 = vector.shape_cast %200 : vector<1x32x64xbf16> to vector<32x64xbf16>
    %cst_207 = arith.constant dense<0.000000e+00> : vector<32x64xf32>
    %202 = tpu.matmul %199, %201, %cst_207 {dimension_numbers = #tpu.dot_dimension_numbers<[1], [0], [0], [1], [0, 0, 1, 1], [], []>} : vector<32x32xbf16>, vector<32x64xbf16>, vector<32x64xf32> -> vector<32x64xf32>
    %203 = arith.addf %197, %202 : vector<32x64xf32>
    %c10_208 = arith.constant 10 : index
    %c0_209 = arith.constant 0 : index
    %c0_210 = arith.constant 0 : index
    %204 = vector.load %arg1[%c10_208, %c0_209, %c0_210] : memref<16x32x32xbf16, #tpu.memory_space<vmem>>, vector<1x32x32xbf16>
    %205 = vector.shape_cast %204 : vector<1x32x32xbf16> to vector<32x32xbf16>
    %c4_211 = arith.constant 4 : index
    %c0_212 = arith.constant 0 : index
    %c0_213 = arith.constant 0 : index
    %206 = vector.load %arg2[%c4_211, %c0_212, %c0_213] : memref<9x32x64xbf16, #tpu.memory_space<vmem>>, vector<1x32x64xbf16>
    %207 = vector.shape_cast %206 : vector<1x32x64xbf16> to vector<32x64xbf16>
    %cst_214 = arith.constant dense<0.000000e+00> : vector<32x64xf32>
    %208 = tpu.matmul %205, %207, %cst_214 {dimension_numbers = #tpu.dot_dimension_numbers<[1], [0], [0], [1], [0, 0, 1, 1], [], []>} : vector<32x32xbf16>, vector<32x64xbf16>, vector<32x64xf32> -> vector<32x64xf32>
    %209 = arith.addf %203, %208 : vector<32x64xf32>
    %c11_215 = arith.constant 11 : index
    %c0_216 = arith.constant 0 : index
    %c0_217 = arith.constant 0 : index
    %210 = vector.load %arg1[%c11_215, %c0_216, %c0_217] : memref<16x32x32xbf16, #tpu.memory_space<vmem>>, vector<1x32x32xbf16>
    %211 = vector.shape_cast %210 : vector<1x32x32xbf16> to vector<32x32xbf16>
    %c5_218 = arith.constant 5 : index
    %c0_219 = arith.constant 0 : index
    %c0_220 = arith.constant 0 : index
    %212 = vector.load %arg2[%c5_218, %c0_219, %c0_220] : memref<9x32x64xbf16, #tpu.memory_space<vmem>>, vector<1x32x64xbf16>
    %213 = vector.shape_cast %212 : vector<1x32x64xbf16> to vector<32x64xbf16>
    %cst_221 = arith.constant dense<0.000000e+00> : vector<32x64xf32>
    %214 = tpu.matmul %211, %213, %cst_221 {dimension_numbers = #tpu.dot_dimension_numbers<[1], [0], [0], [1], [0, 0, 1, 1], [], []>} : vector<32x32xbf16>, vector<32x64xbf16>, vector<32x64xf32> -> vector<32x64xf32>
    %215 = arith.addf %209, %214 : vector<32x64xf32>
    %c13_222 = arith.constant 13 : index
    %c0_223 = arith.constant 0 : index
    %c0_224 = arith.constant 0 : index
    %216 = vector.load %arg1[%c13_222, %c0_223, %c0_224] : memref<16x32x32xbf16, #tpu.memory_space<vmem>>, vector<1x32x32xbf16>
    %217 = vector.shape_cast %216 : vector<1x32x32xbf16> to vector<32x32xbf16>
    %c6_225 = arith.constant 6 : index
    %c0_226 = arith.constant 0 : index
    %c0_227 = arith.constant 0 : index
    %218 = vector.load %arg2[%c6_225, %c0_226, %c0_227] : memref<9x32x64xbf16, #tpu.memory_space<vmem>>, vector<1x32x64xbf16>
    %219 = vector.shape_cast %218 : vector<1x32x64xbf16> to vector<32x64xbf16>
    %cst_228 = arith.constant dense<0.000000e+00> : vector<32x64xf32>
    %220 = tpu.matmul %217, %219, %cst_228 {dimension_numbers = #tpu.dot_dimension_numbers<[1], [0], [0], [1], [0, 0, 1, 1], [], []>} : vector<32x32xbf16>, vector<32x64xbf16>, vector<32x64xf32> -> vector<32x64xf32>
    %221 = arith.addf %215, %220 : vector<32x64xf32>
    %c14_229 = arith.constant 14 : index
    %c0_230 = arith.constant 0 : index
    %c0_231 = arith.constant 0 : index
    %222 = vector.load %arg1[%c14_229, %c0_230, %c0_231] : memref<16x32x32xbf16, #tpu.memory_space<vmem>>, vector<1x32x32xbf16>
    %223 = vector.shape_cast %222 : vector<1x32x32xbf16> to vector<32x32xbf16>
    %c7_232 = arith.constant 7 : index
    %c0_233 = arith.constant 0 : index
    %c0_234 = arith.constant 0 : index
    %224 = vector.load %arg2[%c7_232, %c0_233, %c0_234] : memref<9x32x64xbf16, #tpu.memory_space<vmem>>, vector<1x32x64xbf16>
    %225 = vector.shape_cast %224 : vector<1x32x64xbf16> to vector<32x64xbf16>
    %cst_235 = arith.constant dense<0.000000e+00> : vector<32x64xf32>
    %226 = tpu.matmul %223, %225, %cst_235 {dimension_numbers = #tpu.dot_dimension_numbers<[1], [0], [0], [1], [0, 0, 1, 1], [], []>} : vector<32x32xbf16>, vector<32x64xbf16>, vector<32x64xf32> -> vector<32x64xf32>
    %227 = arith.addf %221, %226 : vector<32x64xf32>
    %c15 = arith.constant 15 : index
    %c0_236 = arith.constant 0 : index
    %c0_237 = arith.constant 0 : index
    %228 = vector.load %arg1[%c15, %c0_236, %c0_237] : memref<16x32x32xbf16, #tpu.memory_space<vmem>>, vector<1x32x32xbf16>
    %229 = vector.shape_cast %228 : vector<1x32x32xbf16> to vector<32x32xbf16>
    %c8_238 = arith.constant 8 : index
    %c0_239 = arith.constant 0 : index
    %c0_240 = arith.constant 0 : index
    %230 = vector.load %arg2[%c8_238, %c0_239, %c0_240] : memref<9x32x64xbf16, #tpu.memory_space<vmem>>, vector<1x32x64xbf16>
    %231 = vector.shape_cast %230 : vector<1x32x64xbf16> to vector<32x64xbf16>
    %cst_241 = arith.constant dense<0.000000e+00> : vector<32x64xf32>
    %232 = tpu.matmul %229, %231, %cst_241 {dimension_numbers = #tpu.dot_dimension_numbers<[1], [0], [0], [1], [0, 0, 1, 1], [], []>} : vector<32x32xbf16>, vector<32x64xbf16>, vector<32x64xf32> -> vector<32x64xf32>
    %233 = arith.addf %227, %232 : vector<32x64xf32>
    %234 = vector.broadcast %0 : vector<1x64xf32> to vector<32x64xf32>
    %235 = arith.mulf %233, %234 : vector<32x64xf32>
    %236 = vector.broadcast %1 : vector<1x64xf32> to vector<32x64xf32>
    %237 = arith.addf %235, %236 : vector<32x64xf32>
    %cst_242 = arith.constant 0.000000e+00 : f32
    %238 = vector.broadcast %cst_242 : f32 to vector<32x64xf32>
    %239 = arith.maximumf %237, %238 : vector<32x64xf32>
    %240 = arith.maximumf %180, %239 : vector<32x64xf32>
    %241 = arith.truncf %240 : vector<32x64xf32> to vector<32x64xbf16>
    %c0_243 = arith.constant 0 : index
    %c0_244 = arith.constant 0 : index
    %242 = vector.load %arg5[%c0_243, %c0_244] : memref<32x64xbf16, #tpu.memory_space<vmem>>, vector<32x64xbf16>
    tpu.vector_store %arg5[%c0_243, %c0_244], %241 {strides = array<i32>} : memref<32x64xbf16, #tpu.memory_space<vmem>>, vector<32x64xbf16>,
    return
  }
  func.func @transform_0(%arg0: i32) -> (i32, i32, i32) {
    %c0_i32 = arith.constant 0 : i32
    %c0_i32_0 = arith.constant 0 : i32
    %c0_i32_1 = arith.constant 0 : i32
    return %c0_i32, %arg0, %c0_i32_0 : i32, i32, i32
  }
  func.func @transform_1(%arg0: i32) -> (i32, i32, i32) {
    %c0_i32 = arith.constant 0 : i32
    %c0_i32_0 = arith.constant 0 : i32
    %c0_i32_1 = arith.constant 0 : i32
    %c0_i32_2 = arith.constant 0 : i32
    return %c0_i32, %c0_i32_0, %c0_i32_1 : i32, i32, i32
  }
  func.func @transform_2(%arg0: i32) -> (i32, i32) {
    %c0_i32 = arith.constant 0 : i32
    %c0_i32_0 = arith.constant 0 : i32
    %c0_i32_1 = arith.constant 0 : i32
    return %c0_i32, %c0_i32_0 : i32, i32
  }
  func.func @transform_3(%arg0: i32) -> (i32, i32) {
    %c0_i32 = arith.constant 0 : i32
    %c0_i32_0 = arith.constant 0 : i32
    %c0_i32_1 = arith.constant 0 : i32
    return %c0_i32, %c0_i32_0 : i32, i32
  }
  func.func @transform_4(%arg0: i32) -> (i32, i32) {
    %c0_i32 = arith.constant 0 : i32
    %c0_i32_0 = arith.constant 0 : i32
    return %arg0, %c0_i32 : i32, i32
  }
}

module attributes {stable_mosaic.version = 11 : i64} {
  func.func @_gap_fc_kernel(%arg0: i32, %arg1: i32, %arg2: memref<16x1x4x64xbf16, #tpu.memory_space<vmem>>, %arg3: memref<9x64x128xbf16, #tpu.memory_space<vmem>>, %arg4: memref<1x128xf32, #tpu.memory_space<vmem>>, %arg5: memref<1x128xf32, #tpu.memory_space<vmem>>, %arg6: memref<128x2xf32, #tpu.memory_space<vmem>>, %arg7: memref<1x2xf32, #tpu.memory_space<vmem>>, %arg8: memref<1x1x2xf32, #tpu.memory_space<vmem>>, %arg9: memref<1x128xf32, #tpu.memory_space<vmem>>) attributes {dimension_semantics = [#tpu.dimension_semantics<parallel>, #tpu.dimension_semantics<arbitrary>], iteration_bounds = array<i64: 2, 1>, scalar_prefetch = 0 : i64, scratch_operands = 1 : i64, tpu.core_type = #tpu.core_type<tc>, window_params = [{transform_indices = @transform_0, window_bounds = array<i64: 16, 1, 4, 64>}, {pipeline_mode = #tpu.pipeline_mode<synchronous>, transform_indices = @transform_1, window_bounds = array<i64: 9, 64, 128>}, {pipeline_mode = #tpu.pipeline_mode<synchronous>, transform_indices = @transform_2, window_bounds = array<i64: 1, 128>}, {pipeline_mode = #tpu.pipeline_mode<synchronous>, transform_indices = @transform_3, window_bounds = array<i64: 1, 128>}, {pipeline_mode = #tpu.pipeline_mode<synchronous>, transform_indices = @transform_4, window_bounds = array<i64: 128, 2>}, {pipeline_mode = #tpu.pipeline_mode<synchronous>, transform_indices = @transform_5, window_bounds = array<i64: 1, 2>}, {transform_indices = @transform_6, window_bounds = array<i64: 1, 1, 2>}]} {
    %c0_i32 = arith.constant 0 : i32
    %0 = arith.cmpi eq, %arg1, %c0_i32 : i32
    %1 = arith.extui %0 : i1 to i32
    %c0_i32_0 = arith.constant 0 : i32
    %2 = arith.cmpi ne, %1, %c0_i32_0 : i32
    scf.if %2 {
      %cst_287 = arith.constant 0.000000e+00 : f32
      %252 = vector.broadcast %cst_287 : f32 to vector<1x128xf32>
      %c0_288 = arith.constant 0 : index
      %c0_289 = arith.constant 0 : index
      %253 = vector.load %arg9[%c0_288, %c0_289] : memref<1x128xf32, #tpu.memory_space<vmem>>, vector<1x128xf32>
      tpu.vector_store %arg9[%c0_288, %c0_289], %252 {strides = array<i32>} : memref<1x128xf32, #tpu.memory_space<vmem>>, vector<1x128xf32>,
    } else {
    }
    %c0 = arith.constant 0 : index
    %c0_1 = arith.constant 0 : index
    %3 = vector.load %arg4[%c0, %c0_1] : memref<1x128xf32, #tpu.memory_space<vmem>>, vector<1x128xf32>
    %c0_2 = arith.constant 0 : index
    %c0_3 = arith.constant 0 : index
    %4 = vector.load %arg5[%c0_2, %c0_3] : memref<1x128xf32, #tpu.memory_space<vmem>>, vector<1x128xf32>
    %c0_4 = arith.constant 0 : index
    %c0_5 = arith.constant 0 : index
    %c0_6 = arith.constant 0 : index
    %c0_7 = arith.constant 0 : index
    %5 = vector.load %arg2[%c0_4, %c0_5, %c0_6, %c0_7] : memref<16x1x4x64xbf16, #tpu.memory_space<vmem>>, vector<1x1x4x64xbf16>
    %6 = vector.shape_cast %5 : vector<1x1x4x64xbf16> to vector<4x64xbf16>
    %c0_8 = arith.constant 0 : index
    %c0_9 = arith.constant 0 : index
    %c0_10 = arith.constant 0 : index
    %7 = vector.load %arg3[%c0_8, %c0_9, %c0_10] : memref<9x64x128xbf16, #tpu.memory_space<vmem>>, vector<1x64x128xbf16>
    %8 = vector.shape_cast %7 : vector<1x64x128xbf16> to vector<64x128xbf16>
    %cst = arith.constant dense<0.000000e+00> : vector<4x128xf32>
    %9 = tpu.matmul %6, %8, %cst {dimension_numbers = #tpu.dot_dimension_numbers<[1], [0], [0], [1], [0, 0, 1, 1], [], []>} : vector<4x64xbf16>, vector<64x128xbf16>, vector<4x128xf32> -> vector<4x128xf32>
    %c1 = arith.constant 1 : index
    %c0_11 = arith.constant 0 : index
    %c0_12 = arith.constant 0 : index
    %c0_13 = arith.constant 0 : index
    %10 = vector.load %arg2[%c1, %c0_11, %c0_12, %c0_13] : memref<16x1x4x64xbf16, #tpu.memory_space<vmem>>, vector<1x1x4x64xbf16>
    %11 = vector.shape_cast %10 : vector<1x1x4x64xbf16> to vector<4x64xbf16>
    %c1_14 = arith.constant 1 : index
    %c0_15 = arith.constant 0 : index
    %c0_16 = arith.constant 0 : index
    %12 = vector.load %arg3[%c1_14, %c0_15, %c0_16] : memref<9x64x128xbf16, #tpu.memory_space<vmem>>, vector<1x64x128xbf16>
    %13 = vector.shape_cast %12 : vector<1x64x128xbf16> to vector<64x128xbf16>
    %cst_17 = arith.constant dense<0.000000e+00> : vector<4x128xf32>
    %14 = tpu.matmul %11, %13, %cst_17 {dimension_numbers = #tpu.dot_dimension_numbers<[1], [0], [0], [1], [0, 0, 1, 1], [], []>} : vector<4x64xbf16>, vector<64x128xbf16>, vector<4x128xf32> -> vector<4x128xf32>
    %15 = arith.addf %9, %14 : vector<4x128xf32>
    %c2 = arith.constant 2 : index
    %c0_18 = arith.constant 0 : index
    %c0_19 = arith.constant 0 : index
    %c0_20 = arith.constant 0 : index
    %16 = vector.load %arg2[%c2, %c0_18, %c0_19, %c0_20] : memref<16x1x4x64xbf16, #tpu.memory_space<vmem>>, vector<1x1x4x64xbf16>
    %17 = vector.shape_cast %16 : vector<1x1x4x64xbf16> to vector<4x64xbf16>
    %c2_21 = arith.constant 2 : index
    %c0_22 = arith.constant 0 : index
    %c0_23 = arith.constant 0 : index
    %18 = vector.load %arg3[%c2_21, %c0_22, %c0_23] : memref<9x64x128xbf16, #tpu.memory_space<vmem>>, vector<1x64x128xbf16>
    %19 = vector.shape_cast %18 : vector<1x64x128xbf16> to vector<64x128xbf16>
    %cst_24 = arith.constant dense<0.000000e+00> : vector<4x128xf32>
    %20 = tpu.matmul %17, %19, %cst_24 {dimension_numbers = #tpu.dot_dimension_numbers<[1], [0], [0], [1], [0, 0, 1, 1], [], []>} : vector<4x64xbf16>, vector<64x128xbf16>, vector<4x128xf32> -> vector<4x128xf32>
    %21 = arith.addf %15, %20 : vector<4x128xf32>
    %c4 = arith.constant 4 : index
    %c0_25 = arith.constant 0 : index
    %c0_26 = arith.constant 0 : index
    %c0_27 = arith.constant 0 : index
    %22 = vector.load %arg2[%c4, %c0_25, %c0_26, %c0_27] : memref<16x1x4x64xbf16, #tpu.memory_space<vmem>>, vector<1x1x4x64xbf16>
    %23 = vector.shape_cast %22 : vector<1x1x4x64xbf16> to vector<4x64xbf16>
    %c3 = arith.constant 3 : index
    %c0_28 = arith.constant 0 : index
    %c0_29 = arith.constant 0 : index
    %24 = vector.load %arg3[%c3, %c0_28, %c0_29] : memref<9x64x128xbf16, #tpu.memory_space<vmem>>, vector<1x64x128xbf16>
    %25 = vector.shape_cast %24 : vector<1x64x128xbf16> to vector<64x128xbf16>
    %cst_30 = arith.constant dense<0.000000e+00> : vector<4x128xf32>
    %26 = tpu.matmul %23, %25, %cst_30 {dimension_numbers = #tpu.dot_dimension_numbers<[1], [0], [0], [1], [0, 0, 1, 1], [], []>} : vector<4x64xbf16>, vector<64x128xbf16>, vector<4x128xf32> -> vector<4x128xf32>
    %27 = arith.addf %21, %26 : vector<4x128xf32>
    %c5 = arith.constant 5 : index
    %c0_31 = arith.constant 0 : index
    %c0_32 = arith.constant 0 : index
    %c0_33 = arith.constant 0 : index
    %28 = vector.load %arg2[%c5, %c0_31, %c0_32, %c0_33] : memref<16x1x4x64xbf16, #tpu.memory_space<vmem>>, vector<1x1x4x64xbf16>
    %29 = vector.shape_cast %28 : vector<1x1x4x64xbf16> to vector<4x64xbf16>
    %c4_34 = arith.constant 4 : index
    %c0_35 = arith.constant 0 : index
    %c0_36 = arith.constant 0 : index
    %30 = vector.load %arg3[%c4_34, %c0_35, %c0_36] : memref<9x64x128xbf16, #tpu.memory_space<vmem>>, vector<1x64x128xbf16>
    %31 = vector.shape_cast %30 : vector<1x64x128xbf16> to vector<64x128xbf16>
    %cst_37 = arith.constant dense<0.000000e+00> : vector<4x128xf32>
    %32 = tpu.matmul %29, %31, %cst_37 {dimension_numbers = #tpu.dot_dimension_numbers<[1], [0], [0], [1], [0, 0, 1, 1], [], []>} : vector<4x64xbf16>, vector<64x128xbf16>, vector<4x128xf32> -> vector<4x128xf32>
    %33 = arith.addf %27, %32 : vector<4x128xf32>
    %c6 = arith.constant 6 : index
    %c0_38 = arith.constant 0 : index
    %c0_39 = arith.constant 0 : index
    %c0_40 = arith.constant 0 : index
    %34 = vector.load %arg2[%c6, %c0_38, %c0_39, %c0_40] : memref<16x1x4x64xbf16, #tpu.memory_space<vmem>>, vector<1x1x4x64xbf16>
    %35 = vector.shape_cast %34 : vector<1x1x4x64xbf16> to vector<4x64xbf16>
    %c5_41 = arith.constant 5 : index
    %c0_42 = arith.constant 0 : index
    %c0_43 = arith.constant 0 : index
    %36 = vector.load %arg3[%c5_41, %c0_42, %c0_43] : memref<9x64x128xbf16, #tpu.memory_space<vmem>>, vector<1x64x128xbf16>
    %37 = vector.shape_cast %36 : vector<1x64x128xbf16> to vector<64x128xbf16>
    %cst_44 = arith.constant dense<0.000000e+00> : vector<4x128xf32>
    %38 = tpu.matmul %35, %37, %cst_44 {dimension_numbers = #tpu.dot_dimension_numbers<[1], [0], [0], [1], [0, 0, 1, 1], [], []>} : vector<4x64xbf16>, vector<64x128xbf16>, vector<4x128xf32> -> vector<4x128xf32>
    %39 = arith.addf %33, %38 : vector<4x128xf32>
    %c8 = arith.constant 8 : index
    %c0_45 = arith.constant 0 : index
    %c0_46 = arith.constant 0 : index
    %c0_47 = arith.constant 0 : index
    %40 = vector.load %arg2[%c8, %c0_45, %c0_46, %c0_47] : memref<16x1x4x64xbf16, #tpu.memory_space<vmem>>, vector<1x1x4x64xbf16>
    %41 = vector.shape_cast %40 : vector<1x1x4x64xbf16> to vector<4x64xbf16>
    %c6_48 = arith.constant 6 : index
    %c0_49 = arith.constant 0 : index
    %c0_50 = arith.constant 0 : index
    %42 = vector.load %arg3[%c6_48, %c0_49, %c0_50] : memref<9x64x128xbf16, #tpu.memory_space<vmem>>, vector<1x64x128xbf16>
    %43 = vector.shape_cast %42 : vector<1x64x128xbf16> to vector<64x128xbf16>
    %cst_51 = arith.constant dense<0.000000e+00> : vector<4x128xf32>
    %44 = tpu.matmul %41, %43, %cst_51 {dimension_numbers = #tpu.dot_dimension_numbers<[1], [0], [0], [1], [0, 0, 1, 1], [], []>} : vector<4x64xbf16>, vector<64x128xbf16>, vector<4x128xf32> -> vector<4x128xf32>
    %45 = arith.addf %39, %44 : vector<4x128xf32>
    %c9 = arith.constant 9 : index
    %c0_52 = arith.constant 0 : index
    %c0_53 = arith.constant 0 : index
    %c0_54 = arith.constant 0 : index
    %46 = vector.load %arg2[%c9, %c0_52, %c0_53, %c0_54] : memref<16x1x4x64xbf16, #tpu.memory_space<vmem>>, vector<1x1x4x64xbf16>
    %47 = vector.shape_cast %46 : vector<1x1x4x64xbf16> to vector<4x64xbf16>
    %c7 = arith.constant 7 : index
    %c0_55 = arith.constant 0 : index
    %c0_56 = arith.constant 0 : index
    %48 = vector.load %arg3[%c7, %c0_55, %c0_56] : memref<9x64x128xbf16, #tpu.memory_space<vmem>>, vector<1x64x128xbf16>
    %49 = vector.shape_cast %48 : vector<1x64x128xbf16> to vector<64x128xbf16>
    %cst_57 = arith.constant dense<0.000000e+00> : vector<4x128xf32>
    %50 = tpu.matmul %47, %49, %cst_57 {dimension_numbers = #tpu.dot_dimension_numbers<[1], [0], [0], [1], [0, 0, 1, 1], [], []>} : vector<4x64xbf16>, vector<64x128xbf16>, vector<4x128xf32> -> vector<4x128xf32>
    %51 = arith.addf %45, %50 : vector<4x128xf32>
    %c10 = arith.constant 10 : index
    %c0_58 = arith.constant 0 : index
    %c0_59 = arith.constant 0 : index
    %c0_60 = arith.constant 0 : index
    %52 = vector.load %arg2[%c10, %c0_58, %c0_59, %c0_60] : memref<16x1x4x64xbf16, #tpu.memory_space<vmem>>, vector<1x1x4x64xbf16>
    %53 = vector.shape_cast %52 : vector<1x1x4x64xbf16> to vector<4x64xbf16>
    %c8_61 = arith.constant 8 : index
    %c0_62 = arith.constant 0 : index
    %c0_63 = arith.constant 0 : index
    %54 = vector.load %arg3[%c8_61, %c0_62, %c0_63] : memref<9x64x128xbf16, #tpu.memory_space<vmem>>, vector<1x64x128xbf16>
    %55 = vector.shape_cast %54 : vector<1x64x128xbf16> to vector<64x128xbf16>
    %cst_64 = arith.constant dense<0.000000e+00> : vector<4x128xf32>
    %56 = tpu.matmul %53, %55, %cst_64 {dimension_numbers = #tpu.dot_dimension_numbers<[1], [0], [0], [1], [0, 0, 1, 1], [], []>} : vector<4x64xbf16>, vector<64x128xbf16>, vector<4x128xf32> -> vector<4x128xf32>
    %57 = arith.addf %51, %56 : vector<4x128xf32>
    %58 = vector.broadcast %3 : vector<1x128xf32> to vector<4x128xf32>
    %59 = arith.mulf %57, %58 : vector<4x128xf32>
    %60 = vector.broadcast %4 : vector<1x128xf32> to vector<4x128xf32>
    %61 = arith.addf %59, %60 : vector<4x128xf32>
    %cst_65 = arith.constant 0.000000e+00 : f32
    %62 = vector.broadcast %cst_65 : f32 to vector<4x128xf32>
    %63 = arith.maximumf %61, %62 : vector<4x128xf32>
    %c1_66 = arith.constant 1 : index
    %c0_67 = arith.constant 0 : index
    %c0_68 = arith.constant 0 : index
    %c0_69 = arith.constant 0 : index
    %64 = vector.load %arg2[%c1_66, %c0_67, %c0_68, %c0_69] : memref<16x1x4x64xbf16, #tpu.memory_space<vmem>>, vector<1x1x4x64xbf16>
    %65 = vector.shape_cast %64 : vector<1x1x4x64xbf16> to vector<4x64xbf16>
    %c0_70 = arith.constant 0 : index
    %c0_71 = arith.constant 0 : index
    %c0_72 = arith.constant 0 : index
    %66 = vector.load %arg3[%c0_70, %c0_71, %c0_72] : memref<9x64x128xbf16, #tpu.memory_space<vmem>>, vector<1x64x128xbf16>
    %67 = vector.shape_cast %66 : vector<1x64x128xbf16> to vector<64x128xbf16>
    %cst_73 = arith.constant dense<0.000000e+00> : vector<4x128xf32>
    %68 = tpu.matmul %65, %67, %cst_73 {dimension_numbers = #tpu.dot_dimension_numbers<[1], [0], [0], [1], [0, 0, 1, 1], [], []>} : vector<4x64xbf16>, vector<64x128xbf16>, vector<4x128xf32> -> vector<4x128xf32>
    %c2_74 = arith.constant 2 : index
    %c0_75 = arith.constant 0 : index
    %c0_76 = arith.constant 0 : index
    %c0_77 = arith.constant 0 : index
    %69 = vector.load %arg2[%c2_74, %c0_75, %c0_76, %c0_77] : memref<16x1x4x64xbf16, #tpu.memory_space<vmem>>, vector<1x1x4x64xbf16>
    %70 = vector.shape_cast %69 : vector<1x1x4x64xbf16> to vector<4x64xbf16>
    %c1_78 = arith.constant 1 : index
    %c0_79 = arith.constant 0 : index
    %c0_80 = arith.constant 0 : index
    %71 = vector.load %arg3[%c1_78, %c0_79, %c0_80] : memref<9x64x128xbf16, #tpu.memory_space<vmem>>, vector<1x64x128xbf16>
    %72 = vector.shape_cast %71 : vector<1x64x128xbf16> to vector<64x128xbf16>
    %cst_81 = arith.constant dense<0.000000e+00> : vector<4x128xf32>
    %73 = tpu.matmul %70, %72, %cst_81 {dimension_numbers = #tpu.dot_dimension_numbers<[1], [0], [0], [1], [0, 0, 1, 1], [], []>} : vector<4x64xbf16>, vector<64x128xbf16>, vector<4x128xf32> -> vector<4x128xf32>
    %74 = arith.addf %68, %73 : vector<4x128xf32>
    %c3_82 = arith.constant 3 : index
    %c0_83 = arith.constant 0 : index
    %c0_84 = arith.constant 0 : index
    %c0_85 = arith.constant 0 : index
    %75 = vector.load %arg2[%c3_82, %c0_83, %c0_84, %c0_85] : memref<16x1x4x64xbf16, #tpu.memory_space<vmem>>, vector<1x1x4x64xbf16>
    %76 = vector.shape_cast %75 : vector<1x1x4x64xbf16> to vector<4x64xbf16>
    %c2_86 = arith.constant 2 : index
    %c0_87 = arith.constant 0 : index
    %c0_88 = arith.constant 0 : index
    %77 = vector.load %arg3[%c2_86, %c0_87, %c0_88] : memref<9x64x128xbf16, #tpu.memory_space<vmem>>, vector<1x64x128xbf16>
    %78 = vector.shape_cast %77 : vector<1x64x128xbf16> to vector<64x128xbf16>
    %cst_89 = arith.constant dense<0.000000e+00> : vector<4x128xf32>
    %79 = tpu.matmul %76, %78, %cst_89 {dimension_numbers = #tpu.dot_dimension_numbers<[1], [0], [0], [1], [0, 0, 1, 1], [], []>} : vector<4x64xbf16>, vector<64x128xbf16>, vector<4x128xf32> -> vector<4x128xf32>
    %80 = arith.addf %74, %79 : vector<4x128xf32>
    %c5_90 = arith.constant 5 : index
    %c0_91 = arith.constant 0 : index
    %c0_92 = arith.constant 0 : index
    %c0_93 = arith.constant 0 : index
    %81 = vector.load %arg2[%c5_90, %c0_91, %c0_92, %c0_93] : memref<16x1x4x64xbf16, #tpu.memory_space<vmem>>, vector<1x1x4x64xbf16>
    %82 = vector.shape_cast %81 : vector<1x1x4x64xbf16> to vector<4x64xbf16>
    %c3_94 = arith.constant 3 : index
    %c0_95 = arith.constant 0 : index
    %c0_96 = arith.constant 0 : index
    %83 = vector.load %arg3[%c3_94, %c0_95, %c0_96] : memref<9x64x128xbf16, #tpu.memory_space<vmem>>, vector<1x64x128xbf16>
    %84 = vector.shape_cast %83 : vector<1x64x128xbf16> to vector<64x128xbf16>
    %cst_97 = arith.constant dense<0.000000e+00> : vector<4x128xf32>
    %85 = tpu.matmul %82, %84, %cst_97 {dimension_numbers = #tpu.dot_dimension_numbers<[1], [0], [0], [1], [0, 0, 1, 1], [], []>} : vector<4x64xbf16>, vector<64x128xbf16>, vector<4x128xf32> -> vector<4x128xf32>
    %86 = arith.addf %80, %85 : vector<4x128xf32>
    %c6_98 = arith.constant 6 : index
    %c0_99 = arith.constant 0 : index
    %c0_100 = arith.constant 0 : index
    %c0_101 = arith.constant 0 : index
    %87 = vector.load %arg2[%c6_98, %c0_99, %c0_100, %c0_101] : memref<16x1x4x64xbf16, #tpu.memory_space<vmem>>, vector<1x1x4x64xbf16>
    %88 = vector.shape_cast %87 : vector<1x1x4x64xbf16> to vector<4x64xbf16>
    %c4_102 = arith.constant 4 : index
    %c0_103 = arith.constant 0 : index
    %c0_104 = arith.constant 0 : index
    %89 = vector.load %arg3[%c4_102, %c0_103, %c0_104] : memref<9x64x128xbf16, #tpu.memory_space<vmem>>, vector<1x64x128xbf16>
    %90 = vector.shape_cast %89 : vector<1x64x128xbf16> to vector<64x128xbf16>
    %cst_105 = arith.constant dense<0.000000e+00> : vector<4x128xf32>
    %91 = tpu.matmul %88, %90, %cst_105 {dimension_numbers = #tpu.dot_dimension_numbers<[1], [0], [0], [1], [0, 0, 1, 1], [], []>} : vector<4x64xbf16>, vector<64x128xbf16>, vector<4x128xf32> -> vector<4x128xf32>
    %92 = arith.addf %86, %91 : vector<4x128xf32>
    %c7_106 = arith.constant 7 : index
    %c0_107 = arith.constant 0 : index
    %c0_108 = arith.constant 0 : index
    %c0_109 = arith.constant 0 : index
    %93 = vector.load %arg2[%c7_106, %c0_107, %c0_108, %c0_109] : memref<16x1x4x64xbf16, #tpu.memory_space<vmem>>, vector<1x1x4x64xbf16>
    %94 = vector.shape_cast %93 : vector<1x1x4x64xbf16> to vector<4x64xbf16>
    %c5_110 = arith.constant 5 : index
    %c0_111 = arith.constant 0 : index
    %c0_112 = arith.constant 0 : index
    %95 = vector.load %arg3[%c5_110, %c0_111, %c0_112] : memref<9x64x128xbf16, #tpu.memory_space<vmem>>, vector<1x64x128xbf16>
    %96 = vector.shape_cast %95 : vector<1x64x128xbf16> to vector<64x128xbf16>
    %cst_113 = arith.constant dense<0.000000e+00> : vector<4x128xf32>
    %97 = tpu.matmul %94, %96, %cst_113 {dimension_numbers = #tpu.dot_dimension_numbers<[1], [0], [0], [1], [0, 0, 1, 1], [], []>} : vector<4x64xbf16>, vector<64x128xbf16>, vector<4x128xf32> -> vector<4x128xf32>
    %98 = arith.addf %92, %97 : vector<4x128xf32>
    %c9_114 = arith.constant 9 : index
    %c0_115 = arith.constant 0 : index
    %c0_116 = arith.constant 0 : index
    %c0_117 = arith.constant 0 : index
    %99 = vector.load %arg2[%c9_114, %c0_115, %c0_116, %c0_117] : memref<16x1x4x64xbf16, #tpu.memory_space<vmem>>, vector<1x1x4x64xbf16>
    %100 = vector.shape_cast %99 : vector<1x1x4x64xbf16> to vector<4x64xbf16>
    %c6_118 = arith.constant 6 : index
    %c0_119 = arith.constant 0 : index
    %c0_120 = arith.constant 0 : index
    %101 = vector.load %arg3[%c6_118, %c0_119, %c0_120] : memref<9x64x128xbf16, #tpu.memory_space<vmem>>, vector<1x64x128xbf16>
    %102 = vector.shape_cast %101 : vector<1x64x128xbf16> to vector<64x128xbf16>
    %cst_121 = arith.constant dense<0.000000e+00> : vector<4x128xf32>
    %103 = tpu.matmul %100, %102, %cst_121 {dimension_numbers = #tpu.dot_dimension_numbers<[1], [0], [0], [1], [0, 0, 1, 1], [], []>} : vector<4x64xbf16>, vector<64x128xbf16>, vector<4x128xf32> -> vector<4x128xf32>
    %104 = arith.addf %98, %103 : vector<4x128xf32>
    %c10_122 = arith.constant 10 : index
    %c0_123 = arith.constant 0 : index
    %c0_124 = arith.constant 0 : index
    %c0_125 = arith.constant 0 : index
    %105 = vector.load %arg2[%c10_122, %c0_123, %c0_124, %c0_125] : memref<16x1x4x64xbf16, #tpu.memory_space<vmem>>, vector<1x1x4x64xbf16>
    %106 = vector.shape_cast %105 : vector<1x1x4x64xbf16> to vector<4x64xbf16>
    %c7_126 = arith.constant 7 : index
    %c0_127 = arith.constant 0 : index
    %c0_128 = arith.constant 0 : index
    %107 = vector.load %arg3[%c7_126, %c0_127, %c0_128] : memref<9x64x128xbf16, #tpu.memory_space<vmem>>, vector<1x64x128xbf16>
    %108 = vector.shape_cast %107 : vector<1x64x128xbf16> to vector<64x128xbf16>
    %cst_129 = arith.constant dense<0.000000e+00> : vector<4x128xf32>
    %109 = tpu.matmul %106, %108, %cst_129 {dimension_numbers = #tpu.dot_dimension_numbers<[1], [0], [0], [1], [0, 0, 1, 1], [], []>} : vector<4x64xbf16>, vector<64x128xbf16>, vector<4x128xf32> -> vector<4x128xf32>
    %110 = arith.addf %104, %109 : vector<4x128xf32>
    %c11 = arith.constant 11 : index
    %c0_130 = arith.constant 0 : index
    %c0_131 = arith.constant 0 : index
    %c0_132 = arith.constant 0 : index
    %111 = vector.load %arg2[%c11, %c0_130, %c0_131, %c0_132] : memref<16x1x4x64xbf16, #tpu.memory_space<vmem>>, vector<1x1x4x64xbf16>
    %112 = vector.shape_cast %111 : vector<1x1x4x64xbf16> to vector<4x64xbf16>
    %c8_133 = arith.constant 8 : index
    %c0_134 = arith.constant 0 : index
    %c0_135 = arith.constant 0 : index
    %113 = vector.load %arg3[%c8_133, %c0_134, %c0_135] : memref<9x64x128xbf16, #tpu.memory_space<vmem>>, vector<1x64x128xbf16>
    %114 = vector.shape_cast %113 : vector<1x64x128xbf16> to vector<64x128xbf16>
    %cst_136 = arith.constant dense<0.000000e+00> : vector<4x128xf32>
    %115 = tpu.matmul %112, %114, %cst_136 {dimension_numbers = #tpu.dot_dimension_numbers<[1], [0], [0], [1], [0, 0, 1, 1], [], []>} : vector<4x64xbf16>, vector<64x128xbf16>, vector<4x128xf32> -> vector<4x128xf32>
    %116 = arith.addf %110, %115 : vector<4x128xf32>
    %117 = vector.broadcast %3 : vector<1x128xf32> to vector<4x128xf32>
    %118 = arith.mulf %116, %117 : vector<4x128xf32>
    %119 = vector.broadcast %4 : vector<1x128xf32> to vector<4x128xf32>
    %120 = arith.addf %118, %119 : vector<4x128xf32>
    %cst_137 = arith.constant 0.000000e+00 : f32
    %121 = vector.broadcast %cst_137 : f32 to vector<4x128xf32>
    %122 = arith.maximumf %120, %121 : vector<4x128xf32>
    %123 = arith.maximumf %63, %122 : vector<4x128xf32>
    %c4_138 = arith.constant 4 : index
    %c0_139 = arith.constant 0 : index
    %c0_140 = arith.constant 0 : index
    %c0_141 = arith.constant 0 : index
    %124 = vector.load %arg2[%c4_138, %c0_139, %c0_140, %c0_141] : memref<16x1x4x64xbf16, #tpu.memory_space<vmem>>, vector<1x1x4x64xbf16>
    %125 = vector.shape_cast %124 : vector<1x1x4x64xbf16> to vector<4x64xbf16>
    %c0_142 = arith.constant 0 : index
    %c0_143 = arith.constant 0 : index
    %c0_144 = arith.constant 0 : index
    %126 = vector.load %arg3[%c0_142, %c0_143, %c0_144] : memref<9x64x128xbf16, #tpu.memory_space<vmem>>, vector<1x64x128xbf16>
    %127 = vector.shape_cast %126 : vector<1x64x128xbf16> to vector<64x128xbf16>
    %cst_145 = arith.constant dense<0.000000e+00> : vector<4x128xf32>
    %128 = tpu.matmul %125, %127, %cst_145 {dimension_numbers = #tpu.dot_dimension_numbers<[1], [0], [0], [1], [0, 0, 1, 1], [], []>} : vector<4x64xbf16>, vector<64x128xbf16>, vector<4x128xf32> -> vector<4x128xf32>
    %c5_146 = arith.constant 5 : index
    %c0_147 = arith.constant 0 : index
    %c0_148 = arith.constant 0 : index
    %c0_149 = arith.constant 0 : index
    %129 = vector.load %arg2[%c5_146, %c0_147, %c0_148, %c0_149] : memref<16x1x4x64xbf16, #tpu.memory_space<vmem>>, vector<1x1x4x64xbf16>
    %130 = vector.shape_cast %129 : vector<1x1x4x64xbf16> to vector<4x64xbf16>
    %c1_150 = arith.constant 1 : index
    %c0_151 = arith.constant 0 : index
    %c0_152 = arith.constant 0 : index
    %131 = vector.load %arg3[%c1_150, %c0_151, %c0_152] : memref<9x64x128xbf16, #tpu.memory_space<vmem>>, vector<1x64x128xbf16>
    %132 = vector.shape_cast %131 : vector<1x64x128xbf16> to vector<64x128xbf16>
    %cst_153 = arith.constant dense<0.000000e+00> : vector<4x128xf32>
    %133 = tpu.matmul %130, %132, %cst_153 {dimension_numbers = #tpu.dot_dimension_numbers<[1], [0], [0], [1], [0, 0, 1, 1], [], []>} : vector<4x64xbf16>, vector<64x128xbf16>, vector<4x128xf32> -> vector<4x128xf32>
    %134 = arith.addf %128, %133 : vector<4x128xf32>
    %c6_154 = arith.constant 6 : index
    %c0_155 = arith.constant 0 : index
    %c0_156 = arith.constant 0 : index
    %c0_157 = arith.constant 0 : index
    %135 = vector.load %arg2[%c6_154, %c0_155, %c0_156, %c0_157] : memref<16x1x4x64xbf16, #tpu.memory_space<vmem>>, vector<1x1x4x64xbf16>
    %136 = vector.shape_cast %135 : vector<1x1x4x64xbf16> to vector<4x64xbf16>
    %c2_158 = arith.constant 2 : index
    %c0_159 = arith.constant 0 : index
    %c0_160 = arith.constant 0 : index
    %137 = vector.load %arg3[%c2_158, %c0_159, %c0_160] : memref<9x64x128xbf16, #tpu.memory_space<vmem>>, vector<1x64x128xbf16>
    %138 = vector.shape_cast %137 : vector<1x64x128xbf16> to vector<64x128xbf16>
    %cst_161 = arith.constant dense<0.000000e+00> : vector<4x128xf32>
    %139 = tpu.matmul %136, %138, %cst_161 {dimension_numbers = #tpu.dot_dimension_numbers<[1], [0], [0], [1], [0, 0, 1, 1], [], []>} : vector<4x64xbf16>, vector<64x128xbf16>, vector<4x128xf32> -> vector<4x128xf32>
    %140 = arith.addf %134, %139 : vector<4x128xf32>
    %c8_162 = arith.constant 8 : index
    %c0_163 = arith.constant 0 : index
    %c0_164 = arith.constant 0 : index
    %c0_165 = arith.constant 0 : index
    %141 = vector.load %arg2[%c8_162, %c0_163, %c0_164, %c0_165] : memref<16x1x4x64xbf16, #tpu.memory_space<vmem>>, vector<1x1x4x64xbf16>
    %142 = vector.shape_cast %141 : vector<1x1x4x64xbf16> to vector<4x64xbf16>
    %c3_166 = arith.constant 3 : index
    %c0_167 = arith.constant 0 : index
    %c0_168 = arith.constant 0 : index
    %143 = vector.load %arg3[%c3_166, %c0_167, %c0_168] : memref<9x64x128xbf16, #tpu.memory_space<vmem>>, vector<1x64x128xbf16>
    %144 = vector.shape_cast %143 : vector<1x64x128xbf16> to vector<64x128xbf16>
    %cst_169 = arith.constant dense<0.000000e+00> : vector<4x128xf32>
    %145 = tpu.matmul %142, %144, %cst_169 {dimension_numbers = #tpu.dot_dimension_numbers<[1], [0], [0], [1], [0, 0, 1, 1], [], []>} : vector<4x64xbf16>, vector<64x128xbf16>, vector<4x128xf32> -> vector<4x128xf32>
    %146 = arith.addf %140, %145 : vector<4x128xf32>
    %c9_170 = arith.constant 9 : index
    %c0_171 = arith.constant 0 : index
    %c0_172 = arith.constant 0 : index
    %c0_173 = arith.constant 0 : index
    %147 = vector.load %arg2[%c9_170, %c0_171, %c0_172, %c0_173] : memref<16x1x4x64xbf16, #tpu.memory_space<vmem>>, vector<1x1x4x64xbf16>
    %148 = vector.shape_cast %147 : vector<1x1x4x64xbf16> to vector<4x64xbf16>
    %c4_174 = arith.constant 4 : index
    %c0_175 = arith.constant 0 : index
    %c0_176 = arith.constant 0 : index
    %149 = vector.load %arg3[%c4_174, %c0_175, %c0_176] : memref<9x64x128xbf16, #tpu.memory_space<vmem>>, vector<1x64x128xbf16>
    %150 = vector.shape_cast %149 : vector<1x64x128xbf16> to vector<64x128xbf16>
    %cst_177 = arith.constant dense<0.000000e+00> : vector<4x128xf32>
    %151 = tpu.matmul %148, %150, %cst_177 {dimension_numbers = #tpu.dot_dimension_numbers<[1], [0], [0], [1], [0, 0, 1, 1], [], []>} : vector<4x64xbf16>, vector<64x128xbf16>, vector<4x128xf32> -> vector<4x128xf32>
    %152 = arith.addf %146, %151 : vector<4x128xf32>
    %c10_178 = arith.constant 10 : index
    %c0_179 = arith.constant 0 : index
    %c0_180 = arith.constant 0 : index
    %c0_181 = arith.constant 0 : index
    %153 = vector.load %arg2[%c10_178, %c0_179, %c0_180, %c0_181] : memref<16x1x4x64xbf16, #tpu.memory_space<vmem>>, vector<1x1x4x64xbf16>
    %154 = vector.shape_cast %153 : vector<1x1x4x64xbf16> to vector<4x64xbf16>
    %c5_182 = arith.constant 5 : index
    %c0_183 = arith.constant 0 : index
    %c0_184 = arith.constant 0 : index
    %155 = vector.load %arg3[%c5_182, %c0_183, %c0_184] : memref<9x64x128xbf16, #tpu.memory_space<vmem>>, vector<1x64x128xbf16>
    %156 = vector.shape_cast %155 : vector<1x64x128xbf16> to vector<64x128xbf16>
    %cst_185 = arith.constant dense<0.000000e+00> : vector<4x128xf32>
    %157 = tpu.matmul %154, %156, %cst_185 {dimension_numbers = #tpu.dot_dimension_numbers<[1], [0], [0], [1], [0, 0, 1, 1], [], []>} : vector<4x64xbf16>, vector<64x128xbf16>, vector<4x128xf32> -> vector<4x128xf32>
    %158 = arith.addf %152, %157 : vector<4x128xf32>
    %c12 = arith.constant 12 : index
    %c0_186 = arith.constant 0 : index
    %c0_187 = arith.constant 0 : index
    %c0_188 = arith.constant 0 : index
    %159 = vector.load %arg2[%c12, %c0_186, %c0_187, %c0_188] : memref<16x1x4x64xbf16, #tpu.memory_space<vmem>>, vector<1x1x4x64xbf16>
    %160 = vector.shape_cast %159 : vector<1x1x4x64xbf16> to vector<4x64xbf16>
    %c6_189 = arith.constant 6 : index
    %c0_190 = arith.constant 0 : index
    %c0_191 = arith.constant 0 : index
    %161 = vector.load %arg3[%c6_189, %c0_190, %c0_191] : memref<9x64x128xbf16, #tpu.memory_space<vmem>>, vector<1x64x128xbf16>
    %162 = vector.shape_cast %161 : vector<1x64x128xbf16> to vector<64x128xbf16>
    %cst_192 = arith.constant dense<0.000000e+00> : vector<4x128xf32>
    %163 = tpu.matmul %160, %162, %cst_192 {dimension_numbers = #tpu.dot_dimension_numbers<[1], [0], [0], [1], [0, 0, 1, 1], [], []>} : vector<4x64xbf16>, vector<64x128xbf16>, vector<4x128xf32> -> vector<4x128xf32>
    %164 = arith.addf %158, %163 : vector<4x128xf32>
    %c13 = arith.constant 13 : index
    %c0_193 = arith.constant 0 : index
    %c0_194 = arith.constant 0 : index
    %c0_195 = arith.constant 0 : index
    %165 = vector.load %arg2[%c13, %c0_193, %c0_194, %c0_195] : memref<16x1x4x64xbf16, #tpu.memory_space<vmem>>, vector<1x1x4x64xbf16>
    %166 = vector.shape_cast %165 : vector<1x1x4x64xbf16> to vector<4x64xbf16>
    %c7_196 = arith.constant 7 : index
    %c0_197 = arith.constant 0 : index
    %c0_198 = arith.constant 0 : index
    %167 = vector.load %arg3[%c7_196, %c0_197, %c0_198] : memref<9x64x128xbf16, #tpu.memory_space<vmem>>, vector<1x64x128xbf16>
    %168 = vector.shape_cast %167 : vector<1x64x128xbf16> to vector<64x128xbf16>
    %cst_199 = arith.constant dense<0.000000e+00> : vector<4x128xf32>
    %169 = tpu.matmul %166, %168, %cst_199 {dimension_numbers = #tpu.dot_dimension_numbers<[1], [0], [0], [1], [0, 0, 1, 1], [], []>} : vector<4x64xbf16>, vector<64x128xbf16>, vector<4x128xf32> -> vector<4x128xf32>
    %170 = arith.addf %164, %169 : vector<4x128xf32>
    %c14 = arith.constant 14 : index
    %c0_200 = arith.constant 0 : index
    %c0_201 = arith.constant 0 : index
    %c0_202 = arith.constant 0 : index
    %171 = vector.load %arg2[%c14, %c0_200, %c0_201, %c0_202] : memref<16x1x4x64xbf16, #tpu.memory_space<vmem>>, vector<1x1x4x64xbf16>
    %172 = vector.shape_cast %171 : vector<1x1x4x64xbf16> to vector<4x64xbf16>
    %c8_203 = arith.constant 8 : index
    %c0_204 = arith.constant 0 : index
    %c0_205 = arith.constant 0 : index
    %173 = vector.load %arg3[%c8_203, %c0_204, %c0_205] : memref<9x64x128xbf16, #tpu.memory_space<vmem>>, vector<1x64x128xbf16>
    %174 = vector.shape_cast %173 : vector<1x64x128xbf16> to vector<64x128xbf16>
    %cst_206 = arith.constant dense<0.000000e+00> : vector<4x128xf32>
    %175 = tpu.matmul %172, %174, %cst_206 {dimension_numbers = #tpu.dot_dimension_numbers<[1], [0], [0], [1], [0, 0, 1, 1], [], []>} : vector<4x64xbf16>, vector<64x128xbf16>, vector<4x128xf32> -> vector<4x128xf32>
    %176 = arith.addf %170, %175 : vector<4x128xf32>
    %177 = vector.broadcast %3 : vector<1x128xf32> to vector<4x128xf32>
    %178 = arith.mulf %176, %177 : vector<4x128xf32>
    %179 = vector.broadcast %4 : vector<1x128xf32> to vector<4x128xf32>
    %180 = arith.addf %178, %179 : vector<4x128xf32>
    %cst_207 = arith.constant 0.000000e+00 : f32
    %181 = vector.broadcast %cst_207 : f32 to vector<4x128xf32>
    %182 = arith.maximumf %180, %181 : vector<4x128xf32>
    %183 = arith.maximumf %123, %182 : vector<4x128xf32>
    %c5_208 = arith.constant 5 : index
    %c0_209 = arith.constant 0 : index
    %c0_210 = arith.constant 0 : index
    %c0_211 = arith.constant 0 : index
    %184 = vector.load %arg2[%c5_208, %c0_209, %c0_210, %c0_211] : memref<16x1x4x64xbf16, #tpu.memory_space<vmem>>, vector<1x1x4x64xbf16>
    %185 = vector.shape_cast %184 : vector<1x1x4x64xbf16> to vector<4x64xbf16>
    %c0_212 = arith.constant 0 : index
    %c0_213 = arith.constant 0 : index
    %c0_214 = arith.constant 0 : index
    %186 = vector.load %arg3[%c0_212, %c0_213, %c0_214] : memref<9x64x128xbf16, #tpu.memory_space<vmem>>, vector<1x64x128xbf16>
    %187 = vector.shape_cast %186 : vector<1x64x128xbf16> to vector<64x128xbf16>
    %cst_215 = arith.constant dense<0.000000e+00> : vector<4x128xf32>
    %188 = tpu.matmul %185, %187, %cst_215 {dimension_numbers = #tpu.dot_dimension_numbers<[1], [0], [0], [1], [0, 0, 1, 1], [], []>} : vector<4x64xbf16>, vector<64x128xbf16>, vector<4x128xf32> -> vector<4x128xf32>
    %c6_216 = arith.constant 6 : index
    %c0_217 = arith.constant 0 : index
    %c0_218 = arith.constant 0 : index
    %c0_219 = arith.constant 0 : index
    %189 = vector.load %arg2[%c6_216, %c0_217, %c0_218, %c0_219] : memref<16x1x4x64xbf16, #tpu.memory_space<vmem>>, vector<1x1x4x64xbf16>
    %190 = vector.shape_cast %189 : vector<1x1x4x64xbf16> to vector<4x64xbf16>
    %c1_220 = arith.constant 1 : index
    %c0_221 = arith.constant 0 : index
    %c0_222 = arith.constant 0 : index
    %191 = vector.load %arg3[%c1_220, %c0_221, %c0_222] : memref<9x64x128xbf16, #tpu.memory_space<vmem>>, vector<1x64x128xbf16>
    %192 = vector.shape_cast %191 : vector<1x64x128xbf16> to vector<64x128xbf16>
    %cst_223 = arith.constant dense<0.000000e+00> : vector<4x128xf32>
    %193 = tpu.matmul %190, %192, %cst_223 {dimension_numbers = #tpu.dot_dimension_numbers<[1], [0], [0], [1], [0, 0, 1, 1], [], []>} : vector<4x64xbf16>, vector<64x128xbf16>, vector<4x128xf32> -> vector<4x128xf32>
    %194 = arith.addf %188, %193 : vector<4x128xf32>
    %c7_224 = arith.constant 7 : index
    %c0_225 = arith.constant 0 : index
    %c0_226 = arith.constant 0 : index
    %c0_227 = arith.constant 0 : index
    %195 = vector.load %arg2[%c7_224, %c0_225, %c0_226, %c0_227] : memref<16x1x4x64xbf16, #tpu.memory_space<vmem>>, vector<1x1x4x64xbf16>
    %196 = vector.shape_cast %195 : vector<1x1x4x64xbf16> to vector<4x64xbf16>
    %c2_228 = arith.constant 2 : index
    %c0_229 = arith.constant 0 : index
    %c0_230 = arith.constant 0 : index
    %197 = vector.load %arg3[%c2_228, %c0_229, %c0_230] : memref<9x64x128xbf16, #tpu.memory_space<vmem>>, vector<1x64x128xbf16>
    %198 = vector.shape_cast %197 : vector<1x64x128xbf16> to vector<64x128xbf16>
    %cst_231 = arith.constant dense<0.000000e+00> : vector<4x128xf32>
    %199 = tpu.matmul %196, %198, %cst_231 {dimension_numbers = #tpu.dot_dimension_numbers<[1], [0], [0], [1], [0, 0, 1, 1], [], []>} : vector<4x64xbf16>, vector<64x128xbf16>, vector<4x128xf32> -> vector<4x128xf32>
    %200 = arith.addf %194, %199 : vector<4x128xf32>
    %c9_232 = arith.constant 9 : index
    %c0_233 = arith.constant 0 : index
    %c0_234 = arith.constant 0 : index
    %c0_235 = arith.constant 0 : index
    %201 = vector.load %arg2[%c9_232, %c0_233, %c0_234, %c0_235] : memref<16x1x4x64xbf16, #tpu.memory_space<vmem>>, vector<1x1x4x64xbf16>
    %202 = vector.shape_cast %201 : vector<1x1x4x64xbf16> to vector<4x64xbf16>
    %c3_236 = arith.constant 3 : index
    %c0_237 = arith.constant 0 : index
    %c0_238 = arith.constant 0 : index
    %203 = vector.load %arg3[%c3_236, %c0_237, %c0_238] : memref<9x64x128xbf16, #tpu.memory_space<vmem>>, vector<1x64x128xbf16>
    %204 = vector.shape_cast %203 : vector<1x64x128xbf16> to vector<64x128xbf16>
    %cst_239 = arith.constant dense<0.000000e+00> : vector<4x128xf32>
    %205 = tpu.matmul %202, %204, %cst_239 {dimension_numbers = #tpu.dot_dimension_numbers<[1], [0], [0], [1], [0, 0, 1, 1], [], []>} : vector<4x64xbf16>, vector<64x128xbf16>, vector<4x128xf32> -> vector<4x128xf32>
    %206 = arith.addf %200, %205 : vector<4x128xf32>
    %c10_240 = arith.constant 10 : index
    %c0_241 = arith.constant 0 : index
    %c0_242 = arith.constant 0 : index
    %c0_243 = arith.constant 0 : index
    %207 = vector.load %arg2[%c10_240, %c0_241, %c0_242, %c0_243] : memref<16x1x4x64xbf16, #tpu.memory_space<vmem>>, vector<1x1x4x64xbf16>
    %208 = vector.shape_cast %207 : vector<1x1x4x64xbf16> to vector<4x64xbf16>
    %c4_244 = arith.constant 4 : index
    %c0_245 = arith.constant 0 : index
    %c0_246 = arith.constant 0 : index
    %209 = vector.load %arg3[%c4_244, %c0_245, %c0_246] : memref<9x64x128xbf16, #tpu.memory_space<vmem>>, vector<1x64x128xbf16>
    %210 = vector.shape_cast %209 : vector<1x64x128xbf16> to vector<64x128xbf16>
    %cst_247 = arith.constant dense<0.000000e+00> : vector<4x128xf32>
    %211 = tpu.matmul %208, %210, %cst_247 {dimension_numbers = #tpu.dot_dimension_numbers<[1], [0], [0], [1], [0, 0, 1, 1], [], []>} : vector<4x64xbf16>, vector<64x128xbf16>, vector<4x128xf32> -> vector<4x128xf32>
    %212 = arith.addf %206, %211 : vector<4x128xf32>
    %c11_248 = arith.constant 11 : index
    %c0_249 = arith.constant 0 : index
    %c0_250 = arith.constant 0 : index
    %c0_251 = arith.constant 0 : index
    %213 = vector.load %arg2[%c11_248, %c0_249, %c0_250, %c0_251] : memref<16x1x4x64xbf16, #tpu.memory_space<vmem>>, vector<1x1x4x64xbf16>
    %214 = vector.shape_cast %213 : vector<1x1x4x64xbf16> to vector<4x64xbf16>
    %c5_252 = arith.constant 5 : index
    %c0_253 = arith.constant 0 : index
    %c0_254 = arith.constant 0 : index
    %215 = vector.load %arg3[%c5_252, %c0_253, %c0_254] : memref<9x64x128xbf16, #tpu.memory_space<vmem>>, vector<1x64x128xbf16>
    %216 = vector.shape_cast %215 : vector<1x64x128xbf16> to vector<64x128xbf16>
    %cst_255 = arith.constant dense<0.000000e+00> : vector<4x128xf32>
    %217 = tpu.matmul %214, %216, %cst_255 {dimension_numbers = #tpu.dot_dimension_numbers<[1], [0], [0], [1], [0, 0, 1, 1], [], []>} : vector<4x64xbf16>, vector<64x128xbf16>, vector<4x128xf32> -> vector<4x128xf32>
    %218 = arith.addf %212, %217 : vector<4x128xf32>
    %c13_256 = arith.constant 13 : index
    %c0_257 = arith.constant 0 : index
    %c0_258 = arith.constant 0 : index
    %c0_259 = arith.constant 0 : index
    %219 = vector.load %arg2[%c13_256, %c0_257, %c0_258, %c0_259] : memref<16x1x4x64xbf16, #tpu.memory_space<vmem>>, vector<1x1x4x64xbf16>
    %220 = vector.shape_cast %219 : vector<1x1x4x64xbf16> to vector<4x64xbf16>
    %c6_260 = arith.constant 6 : index
    %c0_261 = arith.constant 0 : index
    %c0_262 = arith.constant 0 : index
    %221 = vector.load %arg3[%c6_260, %c0_261, %c0_262] : memref<9x64x128xbf16, #tpu.memory_space<vmem>>, vector<1x64x128xbf16>
    %222 = vector.shape_cast %221 : vector<1x64x128xbf16> to vector<64x128xbf16>
    %cst_263 = arith.constant dense<0.000000e+00> : vector<4x128xf32>
    %223 = tpu.matmul %220, %222, %cst_263 {dimension_numbers = #tpu.dot_dimension_numbers<[1], [0], [0], [1], [0, 0, 1, 1], [], []>} : vector<4x64xbf16>, vector<64x128xbf16>, vector<4x128xf32> -> vector<4x128xf32>
    %224 = arith.addf %218, %223 : vector<4x128xf32>
    %c14_264 = arith.constant 14 : index
    %c0_265 = arith.constant 0 : index
    %c0_266 = arith.constant 0 : index
    %c0_267 = arith.constant 0 : index
    %225 = vector.load %arg2[%c14_264, %c0_265, %c0_266, %c0_267] : memref<16x1x4x64xbf16, #tpu.memory_space<vmem>>, vector<1x1x4x64xbf16>
    %226 = vector.shape_cast %225 : vector<1x1x4x64xbf16> to vector<4x64xbf16>
    %c7_268 = arith.constant 7 : index
    %c0_269 = arith.constant 0 : index
    %c0_270 = arith.constant 0 : index
    %227 = vector.load %arg3[%c7_268, %c0_269, %c0_270] : memref<9x64x128xbf16, #tpu.memory_space<vmem>>, vector<1x64x128xbf16>
    %228 = vector.shape_cast %227 : vector<1x64x128xbf16> to vector<64x128xbf16>
    %cst_271 = arith.constant dense<0.000000e+00> : vector<4x128xf32>
    %229 = tpu.matmul %226, %228, %cst_271 {dimension_numbers = #tpu.dot_dimension_numbers<[1], [0], [0], [1], [0, 0, 1, 1], [], []>} : vector<4x64xbf16>, vector<64x128xbf16>, vector<4x128xf32> -> vector<4x128xf32>
    %230 = arith.addf %224, %229 : vector<4x128xf32>
    %c15 = arith.constant 15 : index
    %c0_272 = arith.constant 0 : index
    %c0_273 = arith.constant 0 : index
    %c0_274 = arith.constant 0 : index
    %231 = vector.load %arg2[%c15, %c0_272, %c0_273, %c0_274] : memref<16x1x4x64xbf16, #tpu.memory_space<vmem>>, vector<1x1x4x64xbf16>
    %232 = vector.shape_cast %231 : vector<1x1x4x64xbf16> to vector<4x64xbf16>
    %c8_275 = arith.constant 8 : index
    %c0_276 = arith.constant 0 : index
    %c0_277 = arith.constant 0 : index
    %233 = vector.load %arg3[%c8_275, %c0_276, %c0_277] : memref<9x64x128xbf16, #tpu.memory_space<vmem>>, vector<1x64x128xbf16>
    %234 = vector.shape_cast %233 : vector<1x64x128xbf16> to vector<64x128xbf16>
    %cst_278 = arith.constant dense<0.000000e+00> : vector<4x128xf32>
    %235 = tpu.matmul %232, %234, %cst_278 {dimension_numbers = #tpu.dot_dimension_numbers<[1], [0], [0], [1], [0, 0, 1, 1], [], []>} : vector<4x64xbf16>, vector<64x128xbf16>, vector<4x128xf32> -> vector<4x128xf32>
    %236 = arith.addf %230, %235 : vector<4x128xf32>
    %237 = vector.broadcast %3 : vector<1x128xf32> to vector<4x128xf32>
    %238 = arith.mulf %236, %237 : vector<4x128xf32>
    %239 = vector.broadcast %4 : vector<1x128xf32> to vector<4x128xf32>
    %240 = arith.addf %238, %239 : vector<4x128xf32>
    %cst_279 = arith.constant 0.000000e+00 : f32
    %241 = vector.broadcast %cst_279 : f32 to vector<4x128xf32>
    %242 = arith.maximumf %240, %241 : vector<4x128xf32>
    %243 = arith.maximumf %183, %242 : vector<4x128xf32>
    %c0_280 = arith.constant 0 : index
    %c0_281 = arith.constant 0 : index
    %244 = vector.load %arg9[%c0_280, %c0_281] : memref<1x128xf32, #tpu.memory_space<vmem>>, vector<1x128xf32>
    %cst_282 = arith.constant dense<0.000000e+00> : vector<128xf32>
    %245 = vector.multi_reduction <add>, %243, %cst_282 [0] : vector<4x128xf32> to vector<128xf32>
    %246 = vector.shape_cast %245 : vector<128xf32> to vector<1x128xf32>
    %247 = arith.addf %244, %246 : vector<1x128xf32>
    %c0_283 = arith.constant 0 : index
    %c0_284 = arith.constant 0 : index
    %248 = vector.load %arg9[%c0_283, %c0_284] : memref<1x128xf32, #tpu.memory_space<vmem>>, vector<1x128xf32>
    tpu.vector_store %arg9[%c0_283, %c0_284], %247 {strides = array<i32>} : memref<1x128xf32, #tpu.memory_space<vmem>>, vector<1x128xf32>,
    %c0_i32_285 = arith.constant 0 : i32
    %249 = arith.cmpi eq, %arg1, %c0_i32_285 : i32
    %250 = arith.extui %249 : i1 to i32
    %c0_i32_286 = arith.constant 0 : i32
    %251 = arith.cmpi ne, %250, %c0_i32_286 : i32
    scf.if %251 {
      %c0_287 = arith.constant 0 : index
      %c0_288 = arith.constant 0 : index
      %252 = vector.load %arg9[%c0_287, %c0_288] : memref<1x128xf32, #tpu.memory_space<vmem>>, vector<1x128xf32>
      %cst_289 = arith.constant 2.500000e-01 : f32
      %253 = vector.broadcast %cst_289 : f32 to vector<1x128xf32>
      %254 = arith.mulf %252, %253 : vector<1x128xf32>
      %c0_290 = arith.constant 0 : index
      %c0_291 = arith.constant 0 : index
      %255 = vector.load %arg6[%c0_290, %c0_291] : memref<128x2xf32, #tpu.memory_space<vmem>>, vector<128x2xf32>
      %cst_292 = arith.constant dense<0.000000e+00> : vector<1x2xf32>
      %256 = tpu.matmul %254, %255, %cst_292 {dimension_numbers = #tpu.dot_dimension_numbers<[1], [0], [0], [1], [0, 0, 1, 1], [], []>} : vector<1x128xf32>, vector<128x2xf32>, vector<1x2xf32> -> vector<1x2xf32>
      %c0_293 = arith.constant 0 : index
      %c0_294 = arith.constant 0 : index
      %257 = vector.load %arg7[%c0_293, %c0_294] : memref<1x2xf32, #tpu.memory_space<vmem>>, vector<1x2xf32>
      %258 = arith.addf %256, %257 : vector<1x2xf32>
      %259 = vector.shape_cast %258 : vector<1x2xf32> to vector<1x1x2xf32>
      %c0_295 = arith.constant 0 : index
      %c0_296 = arith.constant 0 : index
      %c0_297 = arith.constant 0 : index
      %260 = vector.load %arg8[%c0_295, %c0_296, %c0_297] : memref<1x1x2xf32, #tpu.memory_space<vmem>>, vector<1x1x2xf32>
      tpu.vector_store %arg8[%c0_295, %c0_296, %c0_297], %259 {strides = array<i32>} : memref<1x1x2xf32, #tpu.memory_space<vmem>>, vector<1x1x2xf32>,
    } else {
    }
    return
  }
  func.func @transform_0(%arg0: i32, %arg1: i32) -> (i32, i32, i32, i32) {
    %c0_i32 = arith.constant 0 : i32
    %c0_i32_0 = arith.constant 0 : i32
    %c0_i32_1 = arith.constant 0 : i32
    return %c0_i32, %arg0, %arg1, %c0_i32_0 : i32, i32, i32, i32
  }
  func.func @transform_1(%arg0: i32, %arg1: i32) -> (i32, i32, i32) {
    %c0_i32 = arith.constant 0 : i32
    %c0_i32_0 = arith.constant 0 : i32
    %c0_i32_1 = arith.constant 0 : i32
    %c0_i32_2 = arith.constant 0 : i32
    return %c0_i32, %c0_i32_0, %c0_i32_1 : i32, i32, i32
  }
  func.func @transform_2(%arg0: i32, %arg1: i32) -> (i32, i32) {
    %c0_i32 = arith.constant 0 : i32
    %c0_i32_0 = arith.constant 0 : i32
    %c0_i32_1 = arith.constant 0 : i32
    return %c0_i32, %c0_i32_0 : i32, i32
  }
  func.func @transform_3(%arg0: i32, %arg1: i32) -> (i32, i32) {
    %c0_i32 = arith.constant 0 : i32
    %c0_i32_0 = arith.constant 0 : i32
    %c0_i32_1 = arith.constant 0 : i32
    return %c0_i32, %c0_i32_0 : i32, i32
  }
  func.func @transform_4(%arg0: i32, %arg1: i32) -> (i32, i32) {
    %c0_i32 = arith.constant 0 : i32
    %c0_i32_0 = arith.constant 0 : i32
    %c0_i32_1 = arith.constant 0 : i32
    return %c0_i32, %c0_i32_0 : i32, i32
  }
  func.func @transform_5(%arg0: i32, %arg1: i32) -> (i32, i32) {
    %c0_i32 = arith.constant 0 : i32
    %c0_i32_0 = arith.constant 0 : i32
    %c0_i32_1 = arith.constant 0 : i32
    return %c0_i32, %c0_i32_0 : i32, i32
  }
  func.func @transform_6(%arg0: i32, %arg1: i32) -> (i32, i32, i32) {
    %c0_i32 = arith.constant 0 : i32
    %c0_i32_0 = arith.constant 0 : i32
    %c0_i32_1 = arith.constant 0 : i32
    return %arg0, %c0_i32, %c0_i32_0 : i32, i32, i32
  }
}

</mosaic_0001>

<llo_original>
// kernel: simple_cnn_gray_forward.3
$region0: #{simple_cnn_gray_forward.3}
  #allocation0 [shape = 'u32[]', space=smem, size = 0x4, offset = 0x4, fixed_abs, tag = 'smem constant byte address 0x4 - core index']
  #allocation1 [shape = 'u32[144,128]{1,0:T(1,128)}', space=vmem, size = 0x12000, scoped, tag = 'internal scratch']
  %s0 = inlined_call_operand.vmem [shape: bf16[4,128,16], index: 0, kind: input, shape index: {}]
  %s1 = inlined_call_operand.vmem [shape: bf16[16,32], index: 1, kind: input, shape index: {}]
  %s2 = inlined_call_operand.vmem [shape: f32[1,32], index: 2, kind: input, shape index: {}]
  %s3 = inlined_call_operand.vmem [shape: f32[1,32], index: 3, kind: input, shape index: {}]
  %s4 = inlined_call_operand.vmem [shape: bf16[128,32], index: 4, kind: output, shape index: {}]
  %s5 = sld [smem:[#allocation0]]
  $region90: #{simple_cnn_gray_forward.3} parent=0
    _
  %s7 = ssub.s32 1, %s5
  %s8 = scalar_select 0, %s7, %s5
  $region1: #{simple_cnn_gray_forward.3} parent=0
    #allocation2 [shape = 'u8[131072]{0}', space=vmem, size = 0x20000, scoped, tag = 'input window, operand 0']
    loop: start=0, step=1, limit=4
    $region2: #{simple_cnn_gray_forward.3} parent=1 // loop_pre_header
      _
    $region3: #{simple_cnn_gray_forward.3} parent=1 // loop_header
      %s10 = sphi 0, %s14
      %p11 = scmp.ge.s32.totalorder %s10, 4
      %s20 = sphi 0, %s22
      %s23 = sphi 0, %s20
      %s24 = sphi 0, %s23
      %s40 = sphi 0, %s24
      %s44 = sphi 0, %s44
      %s46 = sphi 0, %s44
      %s47 = sphi 0, %s46
      %s61 = sphi 0, %s47
      %s65 = sphi 0, %s65
      %s67 = sphi 0, %s65
      %s68 = sphi 0, %s67
      %s82 = sphi 0, %s68
      %s86 = sphi 0, %s86
      %s88 = sphi 0, %s86
      %s89 = sphi 0, %s88
      %s103 = sphi 0, %s89
      %s109 = sphi 0, %s111
      %s112 = sphi 0, %s109
      %s113 = sphi 0, %s112
      %s129 = sphi 0, %s113
    $region4: #{simple_cnn_gray_forward.3} parent=1 // loop_header_branch
      %13 = sbr.rel (%p11) target = $region8
    $region5: #{simple_cnn_gray_forward.3} parent=1 // loop_body
      %s15 = ssub.s32 %s10, 1
      %s16 = ssub.s32 %s10, 2
      %s17 = sadd.s32 %s10, 1
      %s18 = ssub.s32 %s10, %s17
      %p19 = scmp.eq.s32.totalorder %s18, 0
      %s21 = sadd.s32 %s20, 1
      %s22 = scalar_select %p19, %s20, %s21
      %p25 = pneg %p19
      %p26 = scmp.eq.s32.totalorder %s10, 1
      %p27 = por %p25, %p26
      %p28 = scmp.ne.s32.totalorder %s20, %s23
      %p29 = scmp.eq.s32.totalorder %s10, 0
      %p30 = por %p28, %p29
      %p31 = scmp.ne.s32.totalorder %s20, %s23
      %p32 = scmp.eq.s32.totalorder %s15, 1
      %p33 = por %p31, %p32
      %p34 = scmp.ne.s32.totalorder %s23, %s24
      %p35 = scmp.eq.s32.totalorder %s15, 0
      %p36 = por %p34, %p35
      %p37 = scmp.ne.s32.totalorder %s23, %s24
      %p38 = scmp.eq.s32.totalorder %s16, 1
      %p39 = por %p37, %p38
      %p41 = scmp.ne.s32.totalorder %s24, %s40
      %p42 = scmp.eq.s32.totalorder %s16, 0
      %p43 = por %p41, %p42
      %s45 = sadd.s32 %s44, 1
      %p48 = scmp.eq.s32.totalorder %s10, 1
      %p49 = scmp.ne.s32.totalorder %s44, %s46
      %p50 = scmp.eq.s32.totalorder %s10, 0
      %p51 = por %p49, %p50
      %p52 = scmp.ne.s32.totalorder %s44, %s46
      %p53 = scmp.eq.s32.totalorder %s15, 1
      %p54 = por %p52, %p53
      %p55 = scmp.ne.s32.totalorder %s46, %s47
      %p56 = scmp.eq.s32.totalorder %s15, 0
      %p57 = por %p55, %p56
      %p58 = scmp.ne.s32.totalorder %s46, %s47
      %p59 = scmp.eq.s32.totalorder %s16, 1
      %p60 = por %p58, %p59
      %p62 = scmp.ne.s32.totalorder %s47, %s61
      %p63 = scmp.eq.s32.totalorder %s16, 0
      %p64 = por %p62, %p63
      %s66 = sadd.s32 %s65, 1
      %p69 = scmp.eq.s32.totalorder %s10, 1
      %p70 = scmp.ne.s32.totalorder %s65, %s67
      %p71 = scmp.eq.s32.totalorder %s10, 0
      %p72 = por %p70, %p71
      %p73 = scmp.ne.s32.totalorder %s65, %s67
      %p74 = scmp.eq.s32.totalorder %s15, 1
      %p75 = por %p73, %p74
      %p76 = scmp.ne.s32.totalorder %s67, %s68
      %p77 = scmp.eq.s32.totalorder %s15, 0
      %p78 = por %p76, %p77
      %p79 = scmp.ne.s32.totalorder %s67, %s68
      %p80 = scmp.eq.s32.totalorder %s16, 1
      %p81 = por %p79, %p80
      %p83 = scmp.ne.s32.totalorder %s68, %s82
      %p84 = scmp.eq.s32.totalorder %s16, 0
      %p85 = por %p83, %p84
      %s87 = sadd.s32 %s86, 1
      %p90 = scmp.eq.s32.totalorder %s10, 1
      %p91 = scmp.ne.s32.totalorder %s86, %s88
      %p92 = scmp.eq.s32.totalorder %s10, 0
      %p93 = por %p91, %p92
      %p94 = scmp.ne.s32.totalorder %s86, %s88
      %p95 = scmp.eq.s32.totalorder %s15, 1
      %p96 = por %p94, %p95
      %p97 = scmp.ne.s32.totalorder %s88, %s89
      %p98 = scmp.eq.s32.totalorder %s15, 0
      %p99 = por %p97, %p98
      %p100 = scmp.ne.s32.totalorder %s88, %s89
      %p101 = scmp.eq.s32.totalorder %s16, 1
      %p102 = por %p100, %p101
      %p104 = scmp.ne.s32.totalorder %s89, %s103
      %p105 = scmp.eq.s32.totalorder %s16, 0
      %p106 = por %p104, %p105
      %s107 = ssub.s32 %s10, %s17
      %p108 = scmp.eq.s32.totalorder %s107, 0
      %s110 = sadd.s32 %s109, 1
      %s111 = scalar_select %p108, %s109, %s110
      %p114 = pneg %p108
      %p115 = scmp.eq.s32.totalorder %s10, 1
      %p116 = por %p114, %p115
      %p117 = scmp.ne.s32.totalorder %s109, %s112
      %p118 = scmp.eq.s32.totalorder %s10, 0
      %p119 = por %p117, %p118
      %p120 = scmp.ne.s32.totalorder %s109, %s112
      %p121 = scmp.eq.s32.totalorder %s15, 1
      %p122 = por %p120, %p121
      %p123 = scmp.ne.s32.totalorder %s112, %s113
      %p124 = scmp.eq.s32.totalorder %s15, 0
      %p125 = por %p123, %p124
      %p126 = scmp.ne.s32.totalorder %s112, %s113
      %p127 = scmp.eq.s32.totalorder %s16, 1
      %p128 = por %p126, %p127
      %p130 = scmp.ne.s32.totalorder %s113, %s129
      %p131 = scmp.eq.s32.totalorder %s16, 0
      %p132 = por %p130, %p131
      %p133 = scmp.le.s32.totalorder 1, %s10
      %p134 = scmp.lt.s32.totalorder %s10, 3
      %p135 = pnand %p133, %p134
      %p136 = pneg %p135
      // Predicated region
      $region9: #{simple_cnn_gray_forward.3} parent=5 // pred_check
        _
      $region10: #{simple_cnn_gray_forward.3} parent=5 // pred_check_branch
        %138 = sbr.rel (%p135) target = $region12
      $region11: #{simple_cnn_gray_forward.3} parent=5 // pred_region
        %s139 = ssub.s32 %s10, 1
        // Predicated region
        $region13: #{simple_cnn_gray_forward.3} parent=11 // pred_check
          %p140 = pneg %p57
        $region14: #{simple_cnn_gray_forward.3} parent=11 // pred_check_branch
          %142 = sbr.rel (%p140) target = $region16
        $region15: #{simple_cnn_gray_forward.3} parent=11 // pred_region
          _
        $region16: #{simple_cnn_gray_forward.3} parent=11 // pred_fallthru
          _
        // Predicated region
        $region17: #{simple_cnn_gray_forward.3} parent=11 // pred_check
          %p143 = pneg %p78
        $region18: #{simple_cnn_gray_forward.3} parent=11 // pred_check_branch
          %145 = sbr.rel (%p143) target = $region20
        $region19: #{simple_cnn_gray_forward.3} parent=11 // pred_region
          _
        $region20: #{simple_cnn_gray_forward.3} parent=11 // pred_fallthru
          _
        // Predicated region
        $region21: #{simple_cnn_gray_forward.3} parent=11 // pred_check
          %p146 = pneg %p99
        $region22: #{simple_cnn_gray_forward.3} parent=11 // pred_check_branch
          %148 = sbr.rel (%p146) target = $region24
        $region23: #{simple_cnn_gray_forward.3} parent=11 // pred_region
          _
        $region24: #{simple_cnn_gray_forward.3} parent=11 // pred_fallthru
          _
      $region12: #{simple_cnn_gray_forward.3} parent=5 // pred_fallthru
        _
      %p149 = scmp.lt.s32.totalorder %s10, 2
      // Predicated region
      $region25: #{simple_cnn_gray_forward.3} parent=5 // pred_check
        %p150 = pneg %p149
      $region26: #{simple_cnn_gray_forward.3} parent=5 // pred_check_branch
        %152 = sbr.rel (%p150) target = $region28
      $region27: #{simple_cnn_gray_forward.3} parent=5 // pred_region
        // Predicated region
        $region29: #{simple_cnn_gray_forward.3} parent=27 // pred_check
          %p153 = pneg %p30
        $region30: #{simple_cnn_gray_forward.3} parent=27 // pred_check_branch
          %155 = sbr.rel (%p153) target = $region32
        $region31: #{simple_cnn_gray_forward.3} parent=27 // pred_region
          %s156 = sand.u32 %s20, 1
          %s157 = sand.u32 %s20, 1
          %s158 = smul.addr %s157, 128
          %s159 = scalar_lea.vmem [#allocation2], %s158
          %s160 = smul.u32 8, %s10
          %s161 = smul.addr %s160, 4
          %s162 = scalar_lea.vmem %s0, %s161
          // Predicated region
          $region33: #{simple_cnn_gray_forward.3} parent=31 // pred_check
            _
          $region34: #{simple_cnn_gray_forward.3} parent=31 // pred_check_branch
            %164 = sbr.rel (0) target = $region36
          $region35: #{simple_cnn_gray_forward.3} parent=31 // pred_region
            // Predicated region
            $region37: #{simple_cnn_gray_forward.3} parent=35 // pred_check
              _
            $region38: #{simple_cnn_gray_forward.3} parent=35 // pred_check_branch
              %166 = sbr.rel target = $region40
            $region39: #{simple_cnn_gray_forward.3} parent=35 // pred_region
              // Predicated region
              $region52: #{simple_cnn_gray_forward.3} parent=39 // pred_check
                _
              $region53: #{simple_cnn_gray_forward.3} parent=39 // pred_check_branch
                %244 = sbr.rel (0) target = $region55
              $region54: #{simple_cnn_gray_forward.3} parent=39 // pred_region
                loop: start=0, step=1, limit=1
                $region56: #{simple_cnn_gray_forward.3} parent=54 // loop_pre_header
                  _
                $region57: #{simple_cnn_gray_forward.3} parent=54 // loop_header
                  %s246 = sphi 0, %s250
                  %p247 = scmp.ge.s32.totalorder %s246, 1
                  %s251 = sphi %s162, %s162
                  %s252 = sphi %s159, %s159
                $region58: #{simple_cnn_gray_forward.3} parent=54 // loop_header_branch
                  %249 = sbr.rel (%p247) target = $region62
                $region59: #{simple_cnn_gray_forward.3} parent=54 // loop_body
                  _
                $region60: #{simple_cnn_gray_forward.3} parent=54 // loop_footer
                  %s250 = sadd.s32 1, %s246
                $region61: #{simple_cnn_gray_forward.3} parent=54 // loop_footer_branch
                  %245 = sbr.rel target = $region57
                $region62: #{simple_cnn_gray_forward.3} parent=54 // loop_exit
                  _
                %s254 = ssub.s32 16, 1
                loop: start=0, step=1, limit=1
                $region63: #{simple_cnn_gray_forward.3} parent=54 // loop_pre_header
                  _
                $region64: #{simple_cnn_gray_forward.3} parent=54 // loop_header
                  %s256 = sphi 0, %s260
                  %p257 = scmp.ge.s32.totalorder %s256, 1
                  %s261 = sphi %s162, %s162
                  %s262 = sphi %s159, %s159
                $region65: #{simple_cnn_gray_forward.3} parent=54 // loop_header_branch
                  %259 = sbr.rel (%p257) target = $region69
                $region66: #{simple_cnn_gray_forward.3} parent=54 // loop_body
                  %v263 = vld [vmem:[%s261] sm:%s254]
                  %264 = vst [vmem:[%s262] sm:%s254] %v263
                  %v265 = vld [vmem:[%s261 + $0x4] sm:%s254]
                  %266 = vst [vmem:[%s262 + $0x4] sm:%s254] %v265
                  %v267 = vld [vmem:[%s261 + $0x8] sm:%s254]
                  %268 = vst [vmem:[%s262 + $0x8] sm:%s254] %v267
                  %v269 = vld [vmem:[%s261 + $0xc] sm:%s254]
                  %270 = vst [vmem:[%s262 + $0xc] sm:%s254] %v269
                  %v271 = vld [vmem:[%s261 + $0x10] sm:%s254]
                  %272 = vst [vmem:[%s262 + $0x10] sm:%s254] %v271
                  %v273 = vld [vmem:[%s261 + $0x14] sm:%s254]
                  %274 = vst [vmem:[%s262 + $0x14] sm:%s254] %v273
                  %v275 = vld [vmem:[%s261 + $0x18] sm:%s254]
                  %276 = vst [vmem:[%s262 + $0x18] sm:%s254] %v275
                  %v277 = vld [vmem:[%s261 + $0x1c] sm:%s254]
                  %278 = vst [vmem:[%s262 + $0x1c] sm:%s254] %v277
                  %v279 = vld [vmem:[%s261 + $0x40] sm:%s254]
                  %280 = vst [vmem:[%s262 + $0x20] sm:%s254] %v279
                  %v281 = vld [vmem:[%s261 + $0x44] sm:%s254]
                  %282 = vst [vmem:[%s262 + $0x24] sm:%s254] %v281
                  %v283 = vld [vmem:[%s261 + $0x48] sm:%s254]
                  %284 = vst [vmem:[%s262 + $0x28] sm:%s254] %v283
                  %v285 = vld [vmem:[%s261 + $0x4c] sm:%s254]
                  %286 = vst [vmem:[%s262 + $0x2c] sm:%s254] %v285
                  %v287 = vld [vmem:[%s261 + $0x50] sm:%s254]
                  %288 = vst [vmem:[%s262 + $0x30] sm:%s254] %v287
                  %v289 = vld [vmem:[%s261 + $0x54] sm:%s254]
                  %290 = vst [vmem:[%s262 + $0x34] sm:%s254] %v289
                  %v291 = vld [vmem:[%s261 + $0x58] sm:%s254]
                  %292 = vst [vmem:[%s262 + $0x38] sm:%s254] %v291
                  %v293 = vld [vmem:[%s261 + $0x5c] sm:%s254]
                  %294 = vst [vmem:[%s262 + $0x3c] sm:%s254] %v293
                  %v295 = vld [vmem:[%s261 + $0x80] sm:%s254]
                  %296 = vst [vmem:[%s262 + $0x40] sm:%s254] %v295
                  %v297 = vld [vmem:[%s261 + $0x84] sm:%s254]
                  %298 = vst [vmem:[%s262 + $0x44] sm:%s254] %v297
                  %v299 = vld [vmem:[%s261 + $0x88] sm:%s254]
                  %300 = vst [vmem:[%s262 + $0x48] sm:%s254] %v299
                  %v301 = vld [vmem:[%s261 + $0x8c] sm:%s254]
                  %302 = vst [vmem:[%s262 + $0x4c] sm:%s254] %v301
                  %v303 = vld [vmem:[%s261 + $0x90] sm:%s254]
                  %304 = vst [vmem:[%s262 + $0x50] sm:%s254] %v303
                  %v305 = vld [vmem:[%s261 + $0x94] sm:%s254]
                  %306 = vst [vmem:[%s262 + $0x54] sm:%s254] %v305
                  %v307 = vld [vmem:[%s261 + $0x98] sm:%s254]
                  %308 = vst [vmem:[%s262 + $0x58] sm:%s254] %v307
                  %v309 = vld [vmem:[%s261 + $0x9c] sm:%s254]
                  %310 = vst [vmem:[%s262 + $0x5c] sm:%s254] %v309
                  %v311 = vld [vmem:[%s261 + $0xc0] sm:%s254]
                  %312 = vst [vmem:[%s262 + $0x60] sm:%s254] %v311
                  %v313 = vld [vmem:[%s261 + $0xc4] sm:%s254]
                  %314 = vst [vmem:[%s262 + $0x64] sm:%s254] %v313
                  %v315 = vld [vmem:[%s261 + $0xc8] sm:%s254]
                  %316 = vst [vmem:[%s262 + $0x68] sm:%s254] %v315
                  %v317 = vld [vmem:[%s261 + $0xcc] sm:%s254]
                  %318 = vst [vmem:[%s262 + $0x6c] sm:%s254] %v317
                  %v319 = vld [vmem:[%s261 + $0xd0] sm:%s254]
                  %320 = vst [vmem:[%s262 + $0x70] sm:%s254] %v319
                  %v321 = vld [vmem:[%s261 + $0xd4] sm:%s254]
                  %322 = vst [vmem:[%s262 + $0x74] sm:%s254] %v321
                  %v323 = vld [vmem:[%s261 + $0xd8] sm:%s254]
                  %324 = vst [vmem:[%s262 + $0x78] sm:%s254] %v323
                  %v325 = vld [vmem:[%s261 + $0xdc] sm:%s254]
                  %326 = vst [vmem:[%s262 + $0x7c] sm:%s254] %v325
                $region67: #{simple_cnn_gray_forward.3} parent=54 // loop_footer
                  %s260 = sadd.s32 1, %s256
                $region68: #{simple_cnn_gray_forward.3} parent=54 // loop_footer_branch
                  %255 = sbr.rel target = $region64
                $region69: #{simple_cnn_gray_forward.3} parent=54 // loop_exit
                  _
              $region55: #{simple_cnn_gray_forward.3} parent=39 // pred_fallthru
                _
            $region40: #{simple_cnn_gray_forward.3} parent=35 // pred_fallthru
              _
            // Predicated region
            $region41: #{simple_cnn_gray_forward.3} parent=35 // pred_check
              _
            $region42: #{simple_cnn_gray_forward.3} parent=35 // pred_check_branch
              %168 = sbr.rel (0) target = $region44
            $region43: #{simple_cnn_gray_forward.3} parent=35 // pred_region
              %s170 = ssub.s32 16, 1
              loop: start=0, step=1, limit=1
              $region45: #{simple_cnn_gray_forward.3} parent=43 // loop_pre_header
                _
              $region46: #{simple_cnn_gray_forward.3} parent=43 // loop_header
                %s172 = sphi 0, %s176
                %p173 = scmp.ge.s32.totalorder %s172, 1
                %s177 = sphi %s162, %s162
                %s178 = sphi %s159, %s159
              $region47: #{simple_cnn_gray_forward.3} parent=43 // loop_header_branch
                %175 = sbr.rel (%p173) target = $region51
              $region48: #{simple_cnn_gray_forward.3} parent=43 // loop_body
                %v179 = vld [vmem:[%s177] sm:%s170]
                %180 = vst [vmem:[%s178] sm:%s170] %v179
                %v181 = vld [vmem:[%s177 + $0x4] sm:%s170]
                %182 = vst [vmem:[%s178 + $0x4] sm:%s170] %v181
                %v183 = vld [vmem:[%s177 + $0x8] sm:%s170]
                %184 = vst [vmem:[%s178 + $0x8] sm:%s170] %v183
                %v185 = vld [vmem:[%s177 + $0xc] sm:%s170]
                %186 = vst [vmem:[%s178 + $0xc] sm:%s170] %v185
                %v187 = vld [vmem:[%s177 + $0x10] sm:%s170]
                %188 = vst [vmem:[%s178 + $0x10] sm:%s170] %v187
                %v189 = vld [vmem:[%s177 + $0x14] sm:%s170]
                %190 = vst [vmem:[%s178 + $0x14] sm:%s170] %v189
                %v191 = vld [vmem:[%s177 + $0x18] sm:%s170]
                %192 = vst [vmem:[%s178 + $0x18] sm:%s170] %v191
                %v193 = vld [vmem:[%s177 + $0x1c] sm:%s170]
                %194 = vst [vmem:[%s178 + $0x1c] sm:%s170] %v193
                %v195 = vld [vmem:[%s177 + $0x40] sm:%s170]
                %196 = vst [vmem:[%s178 + $0x20] sm:%s170] %v195
                %v197 = vld [vmem:[%s177 + $0x44] sm:%s170]
                %198 = vst [vmem:[%s178 + $0x24] sm:%s170] %v197
                %v199 = vld [vmem:[%s177 + $0x48] sm:%s170]
                %200 = vst [vmem:[%s178 + $0x28] sm:%s170] %v199
                %v201 = vld [vmem:[%s177 + $0x4c] sm:%s170]
                %202 = vst [vmem:[%s178 + $0x2c] sm:%s170] %v201
                %v203 = vld [vmem:[%s177 + $0x50] sm:%s170]
                %204 = vst [vmem:[%s178 + $0x30] sm:%s170] %v203
                %v205 = vld [vmem:[%s177 + $0x54] sm:%s170]
                %206 = vst [vmem:[%s178 + $0x34] sm:%s170] %v205
                %v207 = vld [vmem:[%s177 + $0x58] sm:%s170]
                %208 = vst [vmem:[%s178 + $0x38] sm:%s170] %v207
                %v209 = vld [vmem:[%s177 + $0x5c] sm:%s170]
                %210 = vst [vmem:[%s178 + $0x3c] sm:%s170] %v209
                %v211 = vld [vmem:[%s177 + $0x80] sm:%s170]
                %212 = vst [vmem:[%s178 + $0x40] sm:%s170] %v211
                %v213 = vld [vmem:[%s177 + $0x84] sm:%s170]
                %214 = vst [vmem:[%s178 + $0x44] sm:%s170] %v213
                %v215 = vld [vmem:[%s177 + $0x88] sm:%s170]
                %216 = vst [vmem:[%s178 + $0x48] sm:%s170] %v215
                %v217 = vld [vmem:[%s177 + $0x8c] sm:%s170]
                %218 = vst [vmem:[%s178 + $0x4c] sm:%s170] %v217
                %v219 = vld [vmem:[%s177 + $0x90] sm:%s170]
                %220 = vst [vmem:[%s178 + $0x50] sm:%s170] %v219
                %v221 = vld [vmem:[%s177 + $0x94] sm:%s170]
                %222 = vst [vmem:[%s178 + $0x54] sm:%s170] %v221
                %v223 = vld [vmem:[%s177 + $0x98] sm:%s170]
                %224 = vst [vmem:[%s178 + $0x58] sm:%s170] %v223
                %v225 = vld [vmem:[%s177 + $0x9c] sm:%s170]
                %226 = vst [vmem:[%s178 + $0x5c] sm:%s170] %v225
                %v227 = vld [vmem:[%s177 + $0xc0] sm:%s170]
                %228 = vst [vmem:[%s178 + $0x60] sm:%s170] %v227
                %v229 = vld [vmem:[%s177 + $0xc4] sm:%s170]
                %230 = vst [vmem:[%s178 + $0x64] sm:%s170] %v229
                %v231 = vld [vmem:[%s177 + $0xc8] sm:%s170]
                %232 = vst [vmem:[%s178 + $0x68] sm:%s170] %v231
                %v233 = vld [vmem:[%s177 + $0xcc] sm:%s170]
                %234 = vst [vmem:[%s178 + $0x6c] sm:%s170] %v233
                %v235 = vld [vmem:[%s177 + $0xd0] sm:%s170]
                %236 = vst [vmem:[%s178 + $0x70] sm:%s170] %v235
                %v237 = vld [vmem:[%s177 + $0xd4] sm:%s170]
                %238 = vst [vmem:[%s178 + $0x74] sm:%s170] %v237
                %v239 = vld [vmem:[%s177 + $0xd8] sm:%s170]
                %240 = vst [vmem:[%s178 + $0x78] sm:%s170] %v239
                %v241 = vld [vmem:[%s177 + $0xdc] sm:%s170]
                %242 = vst [vmem:[%s178 + $0x7c] sm:%s170] %v241
              $region49: #{simple_cnn_gray_forward.3} parent=43 // loop_footer
                %s176 = sadd.s32 1, %s172
              $region50: #{simple_cnn_gray_forward.3} parent=43 // loop_footer_branch
                %171 = sbr.rel target = $region46
              $region51: #{simple_cnn_gray_forward.3} parent=43 // loop_exit
                _
            $region44: #{simple_cnn_gray_forward.3} parent=35 // pred_fallthru
              _
          $region36: #{simple_cnn_gray_forward.3} parent=31 // pred_fallthru
            _
          %327 = vnop
        $region32: #{simple_cnn_gray_forward.3} parent=27 // pred_fallthru
          _
      $region28: #{simple_cnn_gray_forward.3} parent=5 // pred_fallthru
        _
      %p328 = scmp.le.s32.totalorder 1, %s10
      %p329 = scmp.lt.s32.totalorder %s10, 3
      %p330 = pnand %p328, %p329
      %p331 = pneg %p330
      // Predicated region
      $region70: #{simple_cnn_gray_forward.3} parent=5 // pred_check
        _
      $region71: #{simple_cnn_gray_forward.3} parent=5 // pred_check_branch
        %333 = sbr.rel (%p330) target = $region73
      $region72: #{simple_cnn_gray_forward.3} parent=5 // pred_region
        %s334 = ssub.s32 %s10, 1
        %s335 = sand.u32 %s23, 1
        %s336 = sand.u32 %s23, 1
        %s337 = smul.addr %s336, 128
        %s338 = scalar_lea.vmem [#allocation2], %s337
        // Predicated region
        $region74: #{simple_cnn_gray_forward.3} parent=72 // pred_check
          %p339 = pneg %p36
        $region75: #{simple_cnn_gray_forward.3} parent=72 // pred_check_branch
          %341 = sbr.rel (%p339) target = $region77
        $region76: #{simple_cnn_gray_forward.3} parent=72 // pred_region
          _
        $region77: #{simple_cnn_gray_forward.3} parent=72 // pred_fallthru
          _
        %s342 = sand.u32 %s23, 1
        %s343 = sand.u32 %s23, 1
        %s344 = smul.addr %s343, 128
        %s345 = scalar_lea.vmem [#allocation2], %s344
        %p346 = pneg %p36
        %p347 = pneg %p33
        %p348 = pneg %p57
        %p349 = pneg %p54
        %p350 = pneg %p78
        %p351 = pneg %p75
        %p352 = pneg %p99
        %p353 = pneg %p96
        %p354 = pneg %p125
        %p355 = pneg %p122
        %s356 = smul.u32 8, %s15
        %p357 = scmp.lt.s32.totalorder %s356, 15
        %s358 = scalar_select %p357, %s356, 15
        %s359 = smul.addr %s358, 4
        %s360 = scalar_lea.vmem %s4, %s359
        %s361 = smul.u32 8, %s15
        %s362 = smul.u32 8, %s15
        %p363 = scmp.lt.s32.totalorder %s362, 15
        %s364 = scalar_select %p363, %s362, 15
        %s365 = smul.addr %s364, 4
        %s366 = scalar_lea.vmem %s4, %s365
        %s367 = smul.u32 8, %s15
        %v369 = vld [vmem:[%s2] sm:$0x1]
        %v370 = vld [vmem:[%s3] sm:$0x1]
        %v371 = vld [vmem:[%s1] sm:$0xf]
        %v372 = vld [vmem:[%s1 + $0x4] sm:$0xf]
        %v373 = vld [vmem:[%s338] sm:$0xf]
        %v374 = vld [vmem:[%s338 + $0x4] sm:$0xf]
        %v375 = vld [vmem:[%s338 + $0x8] sm:$0xf]
        %v376 = vld [vmem:[%s338 + $0xc] sm:$0xf]
        %v377 = vld [vmem:[%s338 + $0x10] sm:$0xf]
        %v378 = vld [vmem:[%s338 + $0x14] sm:$0xf]
        %v379 = vld [vmem:[%s338 + $0x18] sm:$0xf]
        %v380 = vld [vmem:[%s338 + $0x1c] sm:$0xf]
        %v389 = vunpack.c.l.b16 %v373
        %v390 = vunpack.c.l.b16 %v374
        %v391 = vunpack.c.l.b16 %v375
        %v392 = vunpack.c.l.b16 %v376
        %v393 = vunpack.c.l.b16 %v377
        %v394 = vunpack.c.l.b16 %v378
        %v395 = vunpack.c.l.b16 %v379
        %v396 = vunpack.c.l.b16 %v380
        %v397 = vpack.c.b16 %v390, %v389
        %v398 = vpack.c.b16 %v392, %v391
        %v399 = vpack.c.b16 %v394, %v393
        %v400 = vpack.c.b16 %v396, %v395
        %v403 = vunpack.c.l.b16 %v371
        %v404 = vunpack.c.l.b16 %v372
        %v405 = vpack.c.b16 %v404, %v403
        %vm407 = vcmask 130048
        %v409 = vsel %vm407, %v397, 0
        %v412 = vsel %vm407, %v398, 0
        %v415 = vsel %vm407, %v399, 0
        %v418 = vsel %vm407, %v400, 0
        %420 = vmatprep.subr.bf16.mxu0 0
        %421 = vmatpush1.bf16.msra.mxu0 0
        %422 = vmatprep.subr.bf16.mxu0 0
        %423 = vmatpush1.bf16.msra.mxu0 0
        %424 = vmatprep.subr.bf16.mxu0 0
        %425 = vmatpush1.bf16.msra.mxu0 0
        %426 = vmatprep.subr.bf16.mxu0 0
        %427 = vmatpush1.bf16.msra.mxu0 0
        %428 = vmatprep.subr.bf16.mxu0 0
        %429 = vmatpush1.bf16.msra.mxu0 0
        %430 = vmatprep.subr.bf16.mxu0 0
        %431 = vmatpush1.bf16.msra.mxu0 0
        %432 = vmatprep.subr.bf16.mxu0 0
        %433 = vmatpush1.bf16.msra.mxu0 0
        %434 = vmatprep.subr.bf16.mxu0 0
        %435 = vmatpush1.bf16.msra.mxu0 %v405
        %436 = vmatprep.subr.bf16.mxu0 0
        %437 = vmatpush2.bf16.msra.mxu0 0
        %438 = vmatprep.subr.bf16.mxu0 0
        %439 = vmatpush2.bf16.msra.mxu0 0
        %440 = vmatprep.subr.bf16.mxu0 0
        %441 = vmatpush2.bf16.msra.mxu0 0
        %442 = vmatprep.subr.bf16.mxu0 0
        %443 = vmatpush2.bf16.msra.mxu0 0
        %444 = vmatprep.subr.bf16.mxu0 0
        %445 = vmatpush2.bf16.msra.mxu0 0
        %446 = vmatprep.subr.bf16.mxu0 0
        %447 = vmatpush2.bf16.msra.mxu0 0
        %448 = vmatprep.subr.bf16.mxu0 0
        %449 = vmatpush2.bf16.msra.mxu0 0
        %450 = vmatprep.subr.bf16.mxu0 0
        %451 = vmatpush2.bf16.msra.mxu0 0
        %452 = vmatprep.mubr.bf16.mxu0 0
        %453 = vmatmul.mubr.bf16.gmra.mxu0 %v409
        %v454 = vpop.f32.mrf.mxu0
        %v455 = vadd.f32 0.0, %v454
        %v456 = vpop.f32.mrf.mxu0
        %v457 = vpop.f32.mrf.mxu0
        %v458 = vadd.f32 0.0, %v457
        %v459 = vpop.f32.mrf.mxu0
        %460 = vmatprep.mubr.bf16.mxu0 0
        %461 = vmatmul.mubr.bf16.gmra.mxu0 %v412
        %v462 = vpop.f32.mrf.mxu0
        %v463 = vadd.f32 0.0, %v462
        %v464 = vpop.f32.mrf.mxu0
        %v465 = vpop.f32.mrf.mxu0
        %v466 = vadd.f32 0.0, %v465
        %v467 = vpop.f32.mrf.mxu0
        %468 = vmatprep.mubr.bf16.mxu0 0
        %469 = vmatmul.mubr.bf16.gmra.mxu0 %v415
        %v470 = vpop.f32.mrf.mxu0
        %v471 = vadd.f32 0.0, %v470
        %v472 = vpop.f32.mrf.mxu0
        %v473 = vpop.f32.mrf.mxu0
        %v474 = vadd.f32 0.0, %v473
        %v475 = vpop.f32.mrf.mxu0
        %476 = vmatprep.mubr.bf16.mxu0 0
        %477 = vmatmul.mubr.bf16.gmra.mxu0 %v418
        %v478 = vpop.f32.mrf.mxu0
        %v479 = vadd.f32 0.0, %v478
        %v480 = vpop.f32.mrf.mxu0
        %v481 = vpop.f32.mrf.mxu0
        %v482 = vadd.f32 0.0, %v481
        %v483 = vpop.f32.mrf.mxu0
        %484 = vdwg.mxu0
        %v486 = vlaneseq
        %v487 = vshrl.u32 %v486, 7
        %v488 = vsub.s32 0, %v487
        %v489 = vrot.slane %v369, %v488
        %v491 = vmul.f32 %v455, %v489
        %v492 = vmul.f32 %v458, %v489
        %v493 = vmul.f32 %v463, %v489
        %v494 = vmul.f32 %v466, %v489
        %v495 = vmul.f32 %v471, %v489
        %v496 = vmul.f32 %v474, %v489
        %v497 = vmul.f32 %v479, %v489
        %v498 = vmul.f32 %v482, %v489
        %v500 = vlaneseq
        %v501 = vshrl.u32 %v500, 7
        %v502 = vsub.s32 0, %v501
        %v503 = vrot.slane %v370, %v502
        %v505 = vadd.f32 %v491, %v503
        %v506 = vadd.f32 %v492, %v503
        %v507 = vadd.f32 %v493, %v503
        %v508 = vadd.f32 %v494, %v503
        %v509 = vadd.f32 %v495, %v503
        %v510 = vadd.f32 %v496, %v503
        %v511 = vadd.f32 %v497, %v503
        %v512 = vadd.f32 %v498, %v503
        %v513 = vmax.f32 %v505, 0.0
        %v514 = vmax.f32 %v506, 0.0
        %v515 = vmax.f32 %v507, 0.0
        %v516 = vmax.f32 %v508, 0.0
        %v517 = vmax.f32 %v509, 0.0
        %v518 = vmax.f32 %v510, 0.0
        %v519 = vmax.f32 %v511, 0.0
        %v520 = vmax.f32 %v512, 0.0
        %s521 = scalar_lea.vmem %s338, 32 [#allocation2]
        %v522 = vld [vmem:[%s521] sm:$0xf]
        %v523 = vld [vmem:[%s521 + $0x4] sm:$0xf]
        %v524 = vld [vmem:[%s521 + $0x8] sm:$0xf]
        %v525 = vld [vmem:[%s521 + $0xc] sm:$0xf]
        %v526 = vld [vmem:[%s521 + $0x10] sm:$0xf]
        %v527 = vld [vmem:[%s521 + $0x14] sm:$0xf]
        %v528 = vld [vmem:[%s521 + $0x18] sm:$0xf]
        %v529 = vld [vmem:[%s521 + $0x1c] sm:$0xf]
        %v538 = vunpack.c.l.b16 %v522
        %v539 = vunpack.c.l.b16 %v523
        %v540 = vunpack.c.l.b16 %v524
        %v541 = vunpack.c.l.b16 %v525
        %v542 = vunpack.c.l.b16 %v526
        %v543 = vunpack.c.l.b16 %v527
        %v544 = vunpack.c.l.b16 %v528
        %v545 = vunpack.c.l.b16 %v529
        %v546 = vpack.c.b16 %v539, %v538
        %v547 = vpack.c.b16 %v541, %v540
        %v548 = vpack.c.b16 %v543, %v542
        %v549 = vpack.c.b16 %v545, %v544
        %v551 = vsel %vm407, %v546, 0
        %v554 = vsel %vm407, %v547, 0
        %v557 = vsel %vm407, %v548, 0
        %v560 = vsel %vm407, %v549, 0
        %562 = vmatprep.subr.bf16.mxu0 0
        %563 = vmatpush1.bf16.msra.mxu0 0
        %564 = vmatprep.subr.bf16.mxu0 0
        %565 = vmatpush1.bf16.msra.mxu0 0
        %566 = vmatprep.subr.bf16.mxu0 0
        %567 = vmatpush1.bf16.msra.mxu0 0
        %568 = vmatprep.subr.bf16.mxu0 0
        %569 = vmatpush1.bf16.msra.mxu0 0
        %570 = vmatprep.subr.bf16.mxu0 0
        %571 = vmatpush1.bf16.msra.mxu0 0
        %572 = vmatprep.subr.bf16.mxu0 0
        %573 = vmatpush1.bf16.msra.mxu0 0
        %574 = vmatprep.subr.bf16.mxu0 0
        %575 = vmatpush1.bf16.msra.mxu0 0
        %576 = vmatprep.subr.bf16.mxu0 0
        %577 = vmatpush1.bf16.msra.mxu0 %v405
        %578 = vmatprep.subr.bf16.mxu0 0
        %579 = vmatpush2.bf16.msra.mxu0 0
        %580 = vmatprep.subr.bf16.mxu0 0
        %581 = vmatpush2.bf16.msra.mxu0 0
        %582 = vmatprep.subr.bf16.mxu0 0
        %583 = vmatpush2.bf16.msra.mxu0 0
        %584 = vmatprep.subr.bf16.mxu0 0
        %585 = vmatpush2.bf16.msra.mxu0 0
        %586 = vmatprep.subr.bf16.mxu0 0
        %587 = vmatpush2.bf16.msra.mxu0 0
        %588 = vmatprep.subr.bf16.mxu0 0
        %589 = vmatpush2.bf16.msra.mxu0 0
        %590 = vmatprep.subr.bf16.mxu0 0
        %591 = vmatpush2.bf16.msra.mxu0 0
        %592 = vmatprep.subr.bf16.mxu0 0
        %593 = vmatpush2.bf16.msra.mxu0 0
        %594 = vmatprep.mubr.bf16.mxu0 0
        %595 = vmatmul.mubr.bf16.gmra.mxu0 %v551
        %v596 = vpop.f32.mrf.mxu0
        %v597 = vadd.f32 0.0, %v596
        %v598 = vpop.f32.mrf.mxu0
        %v599 = vpop.f32.mrf.mxu0
        %v600 = vadd.f32 0.0, %v599
        %v601 = vpop.f32.mrf.mxu0
        %602 = vmatprep.mubr.bf16.mxu0 0
        %603 = vmatmul.mubr.bf16.gmra.mxu0 %v554
        %v604 = vpop.f32.mrf.mxu0
        %v605 = vadd.f32 0.0, %v604
        %v606 = vpop.f32.mrf.mxu0
        %v607 = vpop.f32.mrf.mxu0
        %v608 = vadd.f32 0.0, %v607
        %v609 = vpop.f32.mrf.mxu0
        %610 = vmatprep.mubr.bf16.mxu0 0
        %611 = vmatmul.mubr.bf16.gmra.mxu0 %v557
        %v612 = vpop.f32.mrf.mxu0
        %v613 = vadd.f32 0.0, %v612
        %v614 = vpop.f32.mrf.mxu0
        %v615 = vpop.f32.mrf.mxu0
        %v616 = vadd.f32 0.0, %v615
        %v617 = vpop.f32.mrf.mxu0
        %618 = vmatprep.mubr.bf16.mxu0 0
        %619 = vmatmul.mubr.bf16.gmra.mxu0 %v560
        %v620 = vpop.f32.mrf.mxu0
        %v621 = vadd.f32 0.0, %v620
        %v622 = vpop.f32.mrf.mxu0
        %v623 = vpop.f32.mrf.mxu0
        %v624 = vadd.f32 0.0, %v623
        %v625 = vpop.f32.mrf.mxu0
        %626 = vdwg.mxu0
        %v627 = vmul.f32 %v597, %v489
        %v628 = vmul.f32 %v600, %v489
        %v629 = vmul.f32 %v605, %v489
        %v630 = vmul.f32 %v608, %v489
        %v631 = vmul.f32 %v613, %v489
        %v632 = vmul.f32 %v616, %v489
        %v633 = vmul.f32 %v621, %v489
        %v634 = vmul.f32 %v624, %v489
        %v635 = vadd.f32 %v627, %v503
        %v636 = vadd.f32 %v628, %v503
        %v637 = vadd.f32 %v629, %v503
        %v638 = vadd.f32 %v630, %v503
        %v639 = vadd.f32 %v631, %v503
        %v640 = vadd.f32 %v632, %v503
        %v641 = vadd.f32 %v633, %v503
        %v642 = vadd.f32 %v634, %v503
        %v643 = vmax.f32 %v635, 0.0
        %v644 = vmax.f32 %v636, 0.0
        %v645 = vmax.f32 %v637, 0.0
        %v646 = vmax.f32 %v638, 0.0
        %v647 = vmax.f32 %v639, 0.0
        %v648 = vmax.f32 %v640, 0.0
        %v649 = vmax.f32 %v641, 0.0
        %v650 = vmax.f32 %v642, 0.0
        %v651 = vmax.f32 %v513, %v643
        %v652 = vmax.f32 %v514, %v644
        %v653 = vmax.f32 %v515, %v645
        %v654 = vmax.f32 %v516, %v646
        %v655 = vmax.f32 %v517, %v647
        %v656 = vmax.f32 %v518, %v648
        %v657 = vmax.f32 %v519, %v649
        %v658 = vmax.f32 %v520, %v650
        %s659 = scalar_lea.vmem %s338, 64 [#allocation2]
        %v660 = vld [vmem:[%s659] sm:$0xf]
        %v661 = vld [vmem:[%s659 + $0x4] sm:$0xf]
        %v662 = vld [vmem:[%s659 + $0x8] sm:$0xf]
        %v663 = vld [vmem:[%s659 + $0xc] sm:$0xf]
        %v664 = vld [vmem:[%s659 + $0x10] sm:$0xf]
        %v665 = vld [vmem:[%s659 + $0x14] sm:$0xf]
        %v666 = vld [vmem:[%s659 + $0x18] sm:$0xf]
        %v667 = vld [vmem:[%s659 + $0x1c] sm:$0xf]
        %v676 = vunpack.c.l.b16 %v660
        %v677 = vunpack.c.l.b16 %v661
        %v678 = vunpack.c.l.b16 %v662
        %v679 = vunpack.c.l.b16 %v663
        %v680 = vunpack.c.l.b16 %v664
        %v681 = vunpack.c.l.b16 %v665
        %v682 = vunpack.c.l.b16 %v666
        %v683 = vunpack.c.l.b16 %v667
        %v684 = vpack.c.b16 %v677, %v676
        %v685 = vpack.c.b16 %v679, %v678
        %v686 = vpack.c.b16 %v681, %v680
        %v687 = vpack.c.b16 %v683, %v682
        %v689 = vsel %vm407, %v684, 0
        %v692 = vsel %vm407, %v685, 0
        %v695 = vsel %vm407, %v686, 0
        %v698 = vsel %vm407, %v687, 0
        %700 = vmatprep.subr.bf16.mxu0 0
        %701 = vmatpush1.bf16.msra.mxu0 0
        %702 = vmatprep.subr.bf16.mxu0 0
        %703 = vmatpush1.bf16.msra.mxu0 0
        %704 = vmatprep.subr.bf16.mxu0 0
        %705 = vmatpush1.bf16.msra.mxu0 0
        %706 = vmatprep.subr.bf16.mxu0 0
        %707 = vmatpush1.bf16.msra.mxu0 0
        %708 = vmatprep.subr.bf16.mxu0 0
        %709 = vmatpush1.bf16.msra.mxu0 0
        %710 = vmatprep.subr.bf16.mxu0 0
        %711 = vmatpush1.bf16.msra.mxu0 0
        %712 = vmatprep.subr.bf16.mxu0 0
        %713 = vmatpush1.bf16.msra.mxu0 0
        %714 = vmatprep.subr.bf16.mxu0 0
        %715 = vmatpush1.bf16.msra.mxu0 %v405
        %716 = vmatprep.subr.bf16.mxu0 0
        %717 = vmatpush2.bf16.msra.mxu0 0
        %718 = vmatprep.subr.bf16.mxu0 0
        %719 = vmatpush2.bf16.msra.mxu0 0
        %720 = vmatprep.subr.bf16.mxu0 0
        %721 = vmatpush2.bf16.msra.mxu0 0
        %722 = vmatprep.subr.bf16.mxu0 0
        %723 = vmatpush2.bf16.msra.mxu0 0
        %724 = vmatprep.subr.bf16.mxu0 0
        %725 = vmatpush2.bf16.msra.mxu0 0
        %726 = vmatprep.subr.bf16.mxu0 0
        %727 = vmatpush2.bf16.msra.mxu0 0
        %728 = vmatprep.subr.bf16.mxu0 0
        %729 = vmatpush2.bf16.msra.mxu0 0
        %730 = vmatprep.subr.bf16.mxu0 0
        %731 = vmatpush2.bf16.msra.mxu0 0
        %732 = vmatprep.mubr.bf16.mxu0 0
        %733 = vmatmul.mubr.bf16.gmra.mxu0 %v689
        %v734 = vpop.f32.mrf.mxu0
        %v735 = vadd.f32 0.0, %v734
        %v736 = vpop.f32.mrf.mxu0
        %v737 = vpop.f32.mrf.mxu0
        %v738 = vadd.f32 0.0, %v737
        %v739 = vpop.f32.mrf.mxu0
        %740 = vmatprep.mubr.bf16.mxu0 0
        %741 = vmatmul.mubr.bf16.gmra.mxu0 %v692
        %v742 = vpop.f32.mrf.mxu0
        %v743 = vadd.f32 0.0, %v742
        %v744 = vpop.f32.mrf.mxu0
        %v745 = vpop.f32.mrf.mxu0
        %v746 = vadd.f32 0.0, %v745
        %v747 = vpop.f32.mrf.mxu0
        %748 = vmatprep.mubr.bf16.mxu0 0
        %749 = vmatmul.mubr.bf16.gmra.mxu0 %v695
        %v750 = vpop.f32.mrf.mxu0
        %v751 = vadd.f32 0.0, %v750
        %v752 = vpop.f32.mrf.mxu0
        %v753 = vpop.f32.mrf.mxu0
        %v754 = vadd.f32 0.0, %v753
        %v755 = vpop.f32.mrf.mxu0
        %756 = vmatprep.mubr.bf16.mxu0 0
        %757 = vmatmul.mubr.bf16.gmra.mxu0 %v698
        %v758 = vpop.f32.mrf.mxu0
        %v759 = vadd.f32 0.0, %v758
        %v760 = vpop.f32.mrf.mxu0
        %v761 = vpop.f32.mrf.mxu0
        %v762 = vadd.f32 0.0, %v761
        %v763 = vpop.f32.mrf.mxu0
        %764 = vdwg.mxu0
        %v765 = vmul.f32 %v735, %v489
        %v766 = vmul.f32 %v738, %v489
        %v767 = vmul.f32 %v743, %v489
        %v768 = vmul.f32 %v746, %v489
        %v769 = vmul.f32 %v751, %v489
        %v770 = vmul.f32 %v754, %v489
        %v771 = vmul.f32 %v759, %v489
        %v772 = vmul.f32 %v762, %v489
        %v773 = vadd.f32 %v765, %v503
        %v774 = vadd.f32 %v766, %v503
        %v775 = vadd.f32 %v767, %v503
        %v776 = vadd.f32 %v768, %v503
        %v777 = vadd.f32 %v769, %v503
        %v778 = vadd.f32 %v770, %v503
        %v779 = vadd.f32 %v771, %v503
        %v780 = vadd.f32 %v772, %v503
        %v781 = vmax.f32 %v773, 0.0
        %v782 = vmax.f32 %v774, 0.0
        %v783 = vmax.f32 %v775, 0.0
        %v784 = vmax.f32 %v776, 0.0
        %v785 = vmax.f32 %v777, 0.0
        %v786 = vmax.f32 %v778, 0.0
        %v787 = vmax.f32 %v779, 0.0
        %v788 = vmax.f32 %v780, 0.0
        %v789 = vmax.f32 %v651, %v781
        %v790 = vmax.f32 %v652, %v782
        %v791 = vmax.f32 %v653, %v783
        %v792 = vmax.f32 %v654, %v784
        %v793 = vmax.f32 %v655, %v785
        %v794 = vmax.f32 %v656, %v786
        %v795 = vmax.f32 %v657, %v787
        %v796 = vmax.f32 %v658, %v788
        %s797 = scalar_lea.vmem %s338, 96 [#allocation2]
        %v798 = vld [vmem:[%s797] sm:$0xf]
        %v799 = vld [vmem:[%s797 + $0x4] sm:$0xf]
        %v800 = vld [vmem:[%s797 + $0x8] sm:$0xf]
        %v801 = vld [vmem:[%s797 + $0xc] sm:$0xf]
        %v802 = vld [vmem:[%s797 + $0x10] sm:$0xf]
        %v803 = vld [vmem:[%s797 + $0x14] sm:$0xf]
        %v804 = vld [vmem:[%s797 + $0x18] sm:$0xf]
        %v805 = vld [vmem:[%s797 + $0x1c] sm:$0xf]
        %v814 = vunpack.c.l.b16 %v798
        %v815 = vunpack.c.l.b16 %v799
        %v816 = vunpack.c.l.b16 %v800
        %v817 = vunpack.c.l.b16 %v801
        %v818 = vunpack.c.l.b16 %v802
        %v819 = vunpack.c.l.b16 %v803
        %v820 = vunpack.c.l.b16 %v804
        %v821 = vunpack.c.l.b16 %v805
        %v822 = vpack.c.b16 %v815, %v814
        %v823 = vpack.c.b16 %v817, %v816
        %v824 = vpack.c.b16 %v819, %v818
        %v825 = vpack.c.b16 %v821, %v820
        %v827 = vsel %vm407, %v822, 0
        %v830 = vsel %vm407, %v823, 0
        %v833 = vsel %vm407, %v824, 0
        %v836 = vsel %vm407, %v825, 0
        %838 = vmatprep.subr.bf16.mxu0 0
        %839 = vmatpush1.bf16.msra.mxu0 0
        %840 = vmatprep.subr.bf16.mxu0 0
        %841 = vmatpush1.bf16.msra.mxu0 0
        %842 = vmatprep.subr.bf16.mxu0 0
        %843 = vmatpush1.bf16.msra.mxu0 0
        %844 = vmatprep.subr.bf16.mxu0 0
        %845 = vmatpush1.bf16.msra.mxu0 0
        %846 = vmatprep.subr.bf16.mxu0 0
        %847 = vmatpush1.bf16.msra.mxu0 0
        %848 = vmatprep.subr.bf16.mxu0 0
        %849 = vmatpush1.bf16.msra.mxu0 0
        %850 = vmatprep.subr.bf16.mxu0 0
        %851 = vmatpush1.bf16.msra.mxu0 0
        %852 = vmatprep.subr.bf16.mxu0 0
        %853 = vmatpush1.bf16.msra.mxu0 %v405
        %854 = vmatprep.subr.bf16.mxu0 0
        %855 = vmatpush2.bf16.msra.mxu0 0
        %856 = vmatprep.subr.bf16.mxu0 0
        %857 = vmatpush2.bf16.msra.mxu0 0
        %858 = vmatprep.subr.bf16.mxu0 0
        %859 = vmatpush2.bf16.msra.mxu0 0
        %860 = vmatprep.subr.bf16.mxu0 0
        %861 = vmatpush2.bf16.msra.mxu0 0
        %862 = vmatprep.subr.bf16.mxu0 0
        %863 = vmatpush2.bf16.msra.mxu0 0
        %864 = vmatprep.subr.bf16.mxu0 0
        %865 = vmatpush2.bf16.msra.mxu0 0
        %866 = vmatprep.subr.bf16.mxu0 0
        %867 = vmatpush2.bf16.msra.mxu0 0
        %868 = vmatprep.subr.bf16.mxu0 0
        %869 = vmatpush2.bf16.msra.mxu0 0
        %870 = vmatprep.mubr.bf16.mxu0 0
        %871 = vmatmul.mubr.bf16.gmra.mxu0 %v827
        %v872 = vpop.f32.mrf.mxu0
        %v873 = vadd.f32 0.0, %v872
        %v874 = vpop.f32.mrf.mxu0
        %v875 = vpop.f32.mrf.mxu0
        %v876 = vadd.f32 0.0, %v875
        %v877 = vpop.f32.mrf.mxu0
        %878 = vmatprep.mubr.bf16.mxu0 0
        %879 = vmatmul.mubr.bf16.gmra.mxu0 %v830
        %v880 = vpop.f32.mrf.mxu0
        %v881 = vadd.f32 0.0, %v880
        %v882 = vpop.f32.mrf.mxu0
        %v883 = vpop.f32.mrf.mxu0
        %v884 = vadd.f32 0.0, %v883
        %v885 = vpop.f32.mrf.mxu0
        %886 = vmatprep.mubr.bf16.mxu0 0
        %887 = vmatmul.mubr.bf16.gmra.mxu0 %v833
        %v888 = vpop.f32.mrf.mxu0
        %v889 = vadd.f32 0.0, %v888
        %v890 = vpop.f32.mrf.mxu0
        %v891 = vpop.f32.mrf.mxu0
        %v892 = vadd.f32 0.0, %v891
        %v893 = vpop.f32.mrf.mxu0
        %894 = vmatprep.mubr.bf16.mxu0 0
        %895 = vmatmul.mubr.bf16.gmra.mxu0 %v836
        %v896 = vpop.f32.mrf.mxu0
        %v897 = vadd.f32 0.0, %v896
        %v898 = vpop.f32.mrf.mxu0
        %v899 = vpop.f32.mrf.mxu0
        %v900 = vadd.f32 0.0, %v899
        %v901 = vpop.f32.mrf.mxu0
        %902 = vdwg.mxu0
        %v903 = vmul.f32 %v873, %v489
        %v904 = vmul.f32 %v876, %v489
        %v905 = vmul.f32 %v881, %v489
        %v906 = vmul.f32 %v884, %v489
        %v907 = vmul.f32 %v889, %v489
        %v908 = vmul.f32 %v892, %v489
        %v909 = vmul.f32 %v897, %v489
        %v910 = vmul.f32 %v900, %v489
        %v911 = vadd.f32 %v903, %v503
        %v912 = vadd.f32 %v904, %v503
        %v913 = vadd.f32 %v905, %v503
        %v914 = vadd.f32 %v906, %v503
        %v915 = vadd.f32 %v907, %v503
        %v916 = vadd.f32 %v908, %v503
        %v917 = vadd.f32 %v909, %v503
        %v918 = vadd.f32 %v910, %v503
        %v919 = vmax.f32 %v911, 0.0
        %v920 = vmax.f32 %v912, 0.0
        %v921 = vmax.f32 %v913, 0.0
        %v922 = vmax.f32 %v914, 0.0
        %v923 = vmax.f32 %v915, 0.0
        %v924 = vmax.f32 %v916, 0.0
        %v925 = vmax.f32 %v917, 0.0
        %v926 = vmax.f32 %v918, 0.0
        %v927 = vmax.f32 %v789, %v919
        %v928 = vmax.f32 %v790, %v920
        %v929 = vmax.f32 %v791, %v921
        %v930 = vmax.f32 %v792, %v922
        %v931 = vmax.f32 %v793, %v923
        %v932 = vmax.f32 %v794, %v924
        %v933 = vmax.f32 %v795, %v925
        %v934 = vmax.f32 %v796, %v926
        %v935 = vpack.c.bf16 %v928, %v927
        %v936 = vpack.c.bf16 %v930, %v929
        %v937 = vpack.c.bf16 %v932, %v931
        %v938 = vpack.c.bf16 %v934, %v933
        %v943 = vunpack.c.l.b16 %v935
        %v944 = vunpack.c.h.b16 %v935
        %v945 = vunpack.c.l.b16 %v936
        %v946 = vunpack.c.h.b16 %v936
        %v947 = vunpack.c.l.b16 %v937
        %v948 = vunpack.c.h.b16 %v937
        %v949 = vunpack.c.l.b16 %v938
        %v950 = vunpack.c.h.b16 %v938
        %v951 = vpack.c.b16 %v943, %v943
        %v952 = vpack.c.b16 %v944, %v944
        %v953 = vpack.c.b16 %v945, %v945
        %v954 = vpack.c.b16 %v946, %v946
        %v955 = vpack.c.b16 %v947, %v947
        %v956 = vpack.c.b16 %v948, %v948
        %v957 = vpack.c.b16 %v949, %v949
        %v958 = vpack.c.b16 %v950, %v950
        %vm967 = vcmask 257024
        %968 = vst.msk [vmem:[%s366] sm:$0xf] %vm967, %v951
        %969 = vst.msk [vmem:[%s366 + $0x4] sm:$0xf] %vm967, %v952
        %970 = vst.msk [vmem:[%s366 + $0x8] sm:$0xf] %vm967, %v953
        %971 = vst.msk [vmem:[%s366 + $0xc] sm:$0xf] %vm967, %v954
        %972 = vst.msk [vmem:[%s366 + $0x10] sm:$0xf] %vm967, %v955
        %973 = vst.msk [vmem:[%s366 + $0x14] sm:$0xf] %vm967, %v956
        %974 = vst.msk [vmem:[%s366 + $0x18] sm:$0xf] %vm967, %v957
        %975 = vst.msk [vmem:[%s366 + $0x1c] sm:$0xf] %vm967, %v958
        %s976 = smul.u32 8, %s15
        %p977 = scmp.lt.s32.totalorder %s976, 15
        %s978 = scalar_select %p977, %s976, 15
        %s979 = smul.addr %s978, 4
        %s980 = scalar_lea.vmem %s4, %s979
        // Predicated region
        $region78: #{simple_cnn_gray_forward.3} parent=72 // pred_check
          %p981 = pneg %p122
        $region79: #{simple_cnn_gray_forward.3} parent=72 // pred_check_branch
          %983 = sbr.rel (%p981) target = $region81
        $region80: #{simple_cnn_gray_forward.3} parent=72 // pred_region
          %s984 = smul.u32 8, %s15
        $region81: #{simple_cnn_gray_forward.3} parent=72 // pred_fallthru
          _
      $region73: #{simple_cnn_gray_forward.3} parent=5 // pred_fallthru
        _
      %p985 = scmp.le.s32.totalorder 2, %s10
      // Predicated region
      $region82: #{simple_cnn_gray_forward.3} parent=5 // pred_check
        %p986 = pneg %p985
      $region83: #{simple_cnn_gray_forward.3} parent=5 // pred_check_branch
        %988 = sbr.rel (%p986) target = $region85
      $region84: #{simple_cnn_gray_forward.3} parent=5 // pred_region
        %s989 = ssub.s32 %s10, 2
        // Predicated region
        $region86: #{simple_cnn_gray_forward.3} parent=84 // pred_check
          %p990 = pneg %p128
        $region87: #{simple_cnn_gray_forward.3} parent=84 // pred_check_branch
          %992 = sbr.rel (%p990) target = $region89
        $region88: #{simple_cnn_gray_forward.3} parent=84 // pred_region
          %s993 = smul.u32 8, %s16
          %p994 = scmp.lt.s32.totalorder %s993, 15
          %s995 = scalar_select %p994, %s993, 15
          %s996 = smul.addr %s995, 4
          %s997 = scalar_lea.vmem %s4, %s996
        $region89: #{simple_cnn_gray_forward.3} parent=84 // pred_fallthru
          _
      $region85: #{simple_cnn_gray_forward.3} parent=5 // pred_fallthru
        _
    $region6: #{simple_cnn_gray_forward.3} parent=1 // loop_footer
      %s14 = sadd.s32 1, %s10
    $region7: #{simple_cnn_gray_forward.3} parent=1 // loop_footer_branch
      %9 = sbr.rel target = $region3
    $region8: #{simple_cnn_gray_forward.3} parent=1 // loop_exit
      _

// kernel: simple_cnn_gray_forward.4
$region0: #{simple_cnn_gray_forward.4}
  #allocation0 [shape = 'u32[]', space=smem, size = 0x4, offset = 0x4, fixed_abs, tag = 'smem constant byte address 0x4 - core index']
  #allocation1 [shape = 'u32[144,128]{1,0:T(1,128)}', space=vmem, size = 0x12000, scoped, tag = 'internal scratch']
  %s0 = inlined_call_operand.vmem [shape: bf16[16,32,32], index: 0, kind: input, shape index: {}]
  %s1 = inlined_call_operand.vmem [shape: bf16[9,32,64], index: 1, kind: input, shape index: {}]
  %s2 = inlined_call_operand.vmem [shape: f32[1,64], index: 2, kind: input, shape index: {}]
  %s3 = inlined_call_operand.vmem [shape: f32[1,64], index: 3, kind: input, shape index: {}]
  %s4 = inlined_call_operand.vmem [shape: bf16[32,64], index: 4, kind: output, shape index: {}]
  %s5 = sld [smem:[#allocation0]]
  $region26: #{simple_cnn_gray_forward.4} parent=0
    _
  %s7 = ssub.s32 1, %s5
  %s8 = scalar_select 0, %s7, %s5
  // Predicated region
  $region2: #{simple_cnn_gray_forward.4} parent=0 // pred_check
    _
  $region3: #{simple_cnn_gray_forward.4} parent=0 // pred_check_branch
    %10 = sbr.rel (0) target = $region5
  $region4: #{simple_cnn_gray_forward.4} parent=0 // pred_region
    _
  $region5: #{simple_cnn_gray_forward.4} parent=0 // pred_fallthru
    _
  // Predicated region
  $region6: #{simple_cnn_gray_forward.4} parent=0 // pred_check
    _
  $region7: #{simple_cnn_gray_forward.4} parent=0 // pred_check_branch
    %12 = sbr.rel (0) target = $region9
  $region8: #{simple_cnn_gray_forward.4} parent=0 // pred_region
    _
  $region9: #{simple_cnn_gray_forward.4} parent=0 // pred_fallthru
    _
  // Predicated region
  $region10: #{simple_cnn_gray_forward.4} parent=0 // pred_check
    _
  $region11: #{simple_cnn_gray_forward.4} parent=0 // pred_check_branch
    %14 = sbr.rel (0) target = $region13
  $region12: #{simple_cnn_gray_forward.4} parent=0 // pred_region
    _
  $region13: #{simple_cnn_gray_forward.4} parent=0 // pred_fallthru
    _
  // Predicated region
  $region14: #{simple_cnn_gray_forward.4} parent=0 // pred_check
    _
  $region15: #{simple_cnn_gray_forward.4} parent=0 // pred_check_branch
    %16 = sbr.rel (0) target = $region17
  $region16: #{simple_cnn_gray_forward.4} parent=0 // pred_region
    _
  $region17: #{simple_cnn_gray_forward.4} parent=0 // pred_fallthru
    _
  %v18 = vld [vmem:[%s2] sm:$0x1]
  %v19 = vld [vmem:[%s3] sm:$0x1]
  %v20 = vld [vmem:[%s0] sm:$0xf]
  %v21 = vld [vmem:[%s0 + $0x4] sm:$0xf]
  %v22 = vld [vmem:[%s0 + $0x8] sm:$0xf]
  %v23 = vld [vmem:[%s0 + $0xc] sm:$0xf]
  %v24 = vld [vmem:[%s1] sm:$0xf]
  %v25 = vld [vmem:[%s1 + $0x4] sm:$0xf]
  %v26 = vld [vmem:[%s1 + $0x8] sm:$0xf]
  %v27 = vld [vmem:[%s1 + $0xc] sm:$0xf]
  %s28 = scalar_lea.vmem %s0, 16
  %v29 = vld [vmem:[%s28] sm:$0xf]
  %v30 = vld [vmem:[%s28 + $0x4] sm:$0xf]
  %v31 = vld [vmem:[%s28 + $0x8] sm:$0xf]
  %v32 = vld [vmem:[%s28 + $0xc] sm:$0xf]
  %s33 = scalar_lea.vmem %s1, 16
  %v34 = vld [vmem:[%s33] sm:$0xf]
  %v35 = vld [vmem:[%s33 + $0x4] sm:$0xf]
  %v36 = vld [vmem:[%s33 + $0x8] sm:$0xf]
  %v37 = vld [vmem:[%s33 + $0xc] sm:$0xf]
  %v42 = vunpack.c.l.b16 %v29
  %v43 = vunpack.c.l.b16 %v30
  %v44 = vunpack.c.l.b16 %v31
  %v45 = vunpack.c.l.b16 %v32
  %v46 = vpack.c.b16 %v43, %v42
  %v47 = vpack.c.b16 %v45, %v44
  %v52 = vunpack.c.l.b16 %v34
  %v53 = vunpack.c.l.b16 %v35
  %v54 = vunpack.c.l.b16 %v36
  %v55 = vunpack.c.l.b16 %v37
  %v56 = vpack.c.b16 %v53, %v52
  %v57 = vpack.c.b16 %v55, %v54
  %vm60 = vcmask 261120
  %v62 = vsel %vm60, %v46, 0
  %v65 = vsel %vm60, %v47, 0
  %67 = vmatprep.subr.bf16.mxu0 0
  %68 = vmatpush1.bf16.msra.mxu0 0
  %69 = vmatprep.subr.bf16.mxu0 0
  %70 = vmatpush1.bf16.msra.mxu0 0
  %71 = vmatprep.subr.bf16.mxu0 0
  %72 = vmatpush1.bf16.msra.mxu0 0
  %73 = vmatprep.subr.bf16.mxu0 0
  %74 = vmatpush1.bf16.msra.mxu0 0
  %75 = vmatprep.subr.bf16.mxu0 0
  %76 = vmatpush1.bf16.msra.mxu0 0
  %77 = vmatprep.subr.bf16.mxu0 0
  %78 = vmatpush1.bf16.msra.mxu0 0
  %79 = vmatprep.subr.bf16.mxu0 0
  %80 = vmatpush1.bf16.msra.mxu0 %v57
  %81 = vmatprep.subr.bf16.mxu0 0
  %82 = vmatpush1.bf16.msra.mxu0 %v56
  %83 = vmatprep.subr.bf16.mxu0 0
  %84 = vmatpush2.bf16.msra.mxu0 0
  %85 = vmatprep.subr.bf16.mxu0 0
  %86 = vmatpush2.bf16.msra.mxu0 0
  %87 = vmatprep.subr.bf16.mxu0 0
  %88 = vmatpush2.bf16.msra.mxu0 0
  %89 = vmatprep.subr.bf16.mxu0 0
  %90 = vmatpush2.bf16.msra.mxu0 0
  %91 = vmatprep.subr.bf16.mxu0 0
  %92 = vmatpush2.bf16.msra.mxu0 0
  %93 = vmatprep.subr.bf16.mxu0 0
  %94 = vmatpush2.bf16.msra.mxu0 0
  %95 = vmatprep.subr.bf16.mxu0 0
  %96 = vmatpush2.bf16.msra.mxu0 0
  %97 = vmatprep.subr.bf16.mxu0 0
  %98 = vmatpush2.bf16.msra.mxu0 0
  %99 = vmatprep.mubr.bf16.mxu0 0
  %100 = vmatmul.mubr.bf16.gmra.mxu0 %v62
  %v101 = vpop.f32.mrf.mxu0
  %v102 = vadd.f32 0.0, %v101
  %v103 = vpop.f32.mrf.mxu0
  %v104 = vpop.f32.mrf.mxu0
  %v105 = vadd.f32 0.0, %v104
  %v106 = vpop.f32.mrf.mxu0
  %107 = vmatprep.mubr.bf16.mxu0 0
  %108 = vmatmul.mubr.bf16.gmra.mxu0 %v65
  %v109 = vpop.f32.mrf.mxu0
  %v110 = vadd.f32 0.0, %v109
  %v111 = vpop.f32.mrf.mxu0
  %v112 = vpop.f32.mrf.mxu0
  %v113 = vadd.f32 0.0, %v112
  %v114 = vpop.f32.mrf.mxu0
  %115 = vdwg.mxu0
  %v120 = vunpack.c.l.b16 %v20
  %v121 = vunpack.c.l.b16 %v21
  %v122 = vunpack.c.l.b16 %v22
  %v123 = vunpack.c.l.b16 %v23
  %v124 = vpack.c.b16 %v121, %v120
  %v125 = vpack.c.b16 %v123, %v122
  %v130 = vunpack.c.l.b16 %v24
  %v131 = vunpack.c.l.b16 %v25
  %v132 = vunpack.c.l.b16 %v26
  %v133 = vunpack.c.l.b16 %v27
  %v134 = vpack.c.b16 %v131, %v130
  %v135 = vpack.c.b16 %v133, %v132
  %v139 = vsel %vm60, %v124, 0
  %v142 = vsel %vm60, %v125, 0
  %144 = vmatprep.subr.bf16.mxu0 0
  %145 = vmatpush1.bf16.msra.mxu0 0
  %146 = vmatprep.subr.bf16.mxu0 0
  %147 = vmatpush1.bf16.msra.mxu0 0
  %148 = vmatprep.subr.bf16.mxu0 0
  %149 = vmatpush1.bf16.msra.mxu0 0
  %150 = vmatprep.subr.bf16.mxu0 0
  %151 = vmatpush1.bf16.msra.mxu0 0
  %152 = vmatprep.subr.bf16.mxu0 0
  %153 = vmatpush1.bf16.msra.mxu0 0
  %154 = vmatprep.subr.bf16.mxu0 0
  %155 = vmatpush1.bf16.msra.mxu0 0
  %156 = vmatprep.subr.bf16.mxu0 0
  %157 = vmatpush1.bf16.msra.mxu0 %v135
  %158 = vmatprep.subr.bf16.mxu0 0
  %159 = vmatpush1.bf16.msra.mxu0 %v134
  %160 = vmatprep.subr.bf16.mxu0 0
  %161 = vmatpush2.bf16.msra.mxu0 0
  %162 = vmatprep.subr.bf16.mxu0 0
  %163 = vmatpush2.bf16.msra.mxu0 0
  %164 = vmatprep.subr.bf16.mxu0 0
  %165 = vmatpush2.bf16.msra.mxu0 0
  %166 = vmatprep.subr.bf16.mxu0 0
  %167 = vmatpush2.bf16.msra.mxu0 0
  %168 = vmatprep.subr.bf16.mxu0 0
  %169 = vmatpush2.bf16.msra.mxu0 0
  %170 = vmatprep.subr.bf16.mxu0 0
  %171 = vmatpush2.bf16.msra.mxu0 0
  %172 = vmatprep.subr.bf16.mxu0 0
  %173 = vmatpush2.bf16.msra.mxu0 0
  %174 = vmatprep.subr.bf16.mxu0 0
  %175 = vmatpush2.bf16.msra.mxu0 0
  %176 = vmatprep.mubr.bf16.mxu0 0
  %177 = vmatmul.mubr.bf16.gmra.mxu0 %v139
  %v178 = vpop.f32.mrf.mxu0
  %v179 = vadd.f32 %v102, %v178
  %v180 = vpop.f32.mrf.mxu0
  %v181 = vpop.f32.mrf.mxu0
  %v182 = vadd.f32 %v105, %v181
  %v183 = vpop.f32.mrf.mxu0
  %184 = vmatprep.mubr.bf16.mxu0 0
  %185 = vmatmul.mubr.bf16.gmra.mxu0 %v142
  %v186 = vpop.f32.mrf.mxu0
  %v187 = vadd.f32 %v110, %v186
  %v188 = vpop.f32.mrf.mxu0
  %v189 = vpop.f32.mrf.mxu0
  %v190 = vadd.f32 %v113, %v189
  %v191 = vpop.f32.mrf.mxu0
  %192 = vdwg.mxu0
  %s193 = scalar_lea.vmem %s0, 32
  %v194 = vld [vmem:[%s193] sm:$0xf]
  %v195 = vld [vmem:[%s193 + $0x4] sm:$0xf]
  %v196 = vld [vmem:[%s193 + $0x8] sm:$0xf]
  %v197 = vld [vmem:[%s193 + $0xc] sm:$0xf]
  %s198 = scalar_lea.vmem %s1, 32
  %v199 = vld [vmem:[%s198] sm:$0xf]
  %v200 = vld [vmem:[%s198 + $0x4] sm:$0xf]
  %v201 = vld [vmem:[%s198 + $0x8] sm:$0xf]
  %v202 = vld [vmem:[%s198 + $0xc] sm:$0xf]
  %v207 = vunpack.c.l.b16 %v194
  %v208 = vunpack.c.l.b16 %v195
  %v209 = vunpack.c.l.b16 %v196
  %v210 = vunpack.c.l.b16 %v197
  %v211 = vpack.c.b16 %v208, %v207
  %v212 = vpack.c.b16 %v210, %v209
  %v217 = vunpack.c.l.b16 %v199
  %v218 = vunpack.c.l.b16 %v200
  %v219 = vunpack.c.l.b16 %v201
  %v220 = vunpack.c.l.b16 %v202
  %v221 = vpack.c.b16 %v218, %v217
  %v222 = vpack.c.b16 %v220, %v219
  %v226 = vsel %vm60, %v211, 0
  %v229 = vsel %vm60, %v212, 0
  %231 = vmatprep.subr.bf16.mxu0 0
  %232 = vmatpush1.bf16.msra.mxu0 0
  %233 = vmatprep.subr.bf16.mxu0 0
  %234 = vmatpush1.bf16.msra.mxu0 0
  %235 = vmatprep.subr.bf16.mxu0 0
  %236 = vmatpush1.bf16.msra.mxu0 0
  %237 = vmatprep.subr.bf16.mxu0 0
  %238 = vmatpush1.bf16.msra.mxu0 0
  %239 = vmatprep.subr.bf16.mxu0 0
  %240 = vmatpush1.bf16.msra.mxu0 0
  %241 = vmatprep.subr.bf16.mxu0 0
  %242 = vmatpush1.bf16.msra.mxu0 0
  %243 = vmatprep.subr.bf16.mxu0 0
  %244 = vmatpush1.bf16.msra.mxu0 %v222
  %245 = vmatprep.subr.bf16.mxu0 0
  %246 = vmatpush1.bf16.msra.mxu0 %v221
  %247 = vmatprep.subr.bf16.mxu0 0
  %248 = vmatpush2.bf16.msra.mxu0 0
  %249 = vmatprep.subr.bf16.mxu0 0
  %250 = vmatpush2.bf16.msra.mxu0 0
  %251 = vmatprep.subr.bf16.mxu0 0
  %252 = vmatpush2.bf16.msra.mxu0 0
  %253 = vmatprep.subr.bf16.mxu0 0
  %254 = vmatpush2.bf16.msra.mxu0 0
  %255 = vmatprep.subr.bf16.mxu0 0
  %256 = vmatpush2.bf16.msra.mxu0 0
  %257 = vmatprep.subr.bf16.mxu0 0
  %258 = vmatpush2.bf16.msra.mxu0 0
  %259 = vmatprep.subr.bf16.mxu0 0
  %260 = vmatpush2.bf16.msra.mxu0 0
  %261 = vmatprep.subr.bf16.mxu0 0
  %262 = vmatpush2.bf16.msra.mxu0 0
  %263 = vmatprep.mubr.bf16.mxu0 0
  %264 = vmatmul.mubr.bf16.gmra.mxu0 %v226
  %v265 = vpop.f32.mrf.mxu0
  %v266 = vadd.f32 0.0, %v265
  %v267 = vpop.f32.mrf.mxu0
  %v268 = vpop.f32.mrf.mxu0
  %v269 = vadd.f32 0.0, %v268
  %v270 = vpop.f32.mrf.mxu0
  %271 = vmatprep.mubr.bf16.mxu0 0
  %272 = vmatmul.mubr.bf16.gmra.mxu0 %v229
  %v273 = vpop.f32.mrf.mxu0
  %v274 = vadd.f32 0.0, %v273
  %v275 = vpop.f32.mrf.mxu0
  %v276 = vpop.f32.mrf.mxu0
  %v277 = vadd.f32 0.0, %v276
  %v278 = vpop.f32.mrf.mxu0
  %279 = vdwg.mxu0
  %v280 = vadd.f32 %v179, %v266
  %v281 = vadd.f32 %v182, %v269
  %v282 = vadd.f32 %v187, %v274
  %v283 = vadd.f32 %v190, %v277
  %s284 = scalar_lea.vmem %s0, 64
  %v285 = vld [vmem:[%s284] sm:$0xf]
  %v286 = vld [vmem:[%s284 + $0x4] sm:$0xf]
  %v287 = vld [vmem:[%s284 + $0x8] sm:$0xf]
  %v288 = vld [vmem:[%s284 + $0xc] sm:$0xf]
  %s289 = scalar_lea.vmem %s1, 48
  %v290 = vld [vmem:[%s289] sm:$0xf]
  %v291 = vld [vmem:[%s289 + $0x4] sm:$0xf]
  %v292 = vld [vmem:[%s289 + $0x8] sm:$0xf]
  %v293 = vld [vmem:[%s289 + $0xc] sm:$0xf]
  %v298 = vunpack.c.l.b16 %v285
  %v299 = vunpack.c.l.b16 %v286
  %v300 = vunpack.c.l.b16 %v287
  %v301 = vunpack.c.l.b16 %v288
  %v302 = vpack.c.b16 %v299, %v298
  %v303 = vpack.c.b16 %v301, %v300
  %v308 = vunpack.c.l.b16 %v290
  %v309 = vunpack.c.l.b16 %v291
  %v310 = vunpack.c.l.b16 %v292
  %v311 = vunpack.c.l.b16 %v293
  %v312 = vpack.c.b16 %v309, %v308
  %v313 = vpack.c.b16 %v311, %v310
  %v317 = vsel %vm60, %v302, 0
  %v320 = vsel %vm60, %v303, 0
  %322 = vmatprep.subr.bf16.mxu0 0
  %323 = vmatpush1.bf16.msra.mxu0 0
  %324 = vmatprep.subr.bf16.mxu0 0
  %325 = vmatpush1.bf16.msra.mxu0 0
  %326 = vmatprep.subr.bf16.mxu0 0
  %327 = vmatpush1.bf16.msra.mxu0 0
  %328 = vmatprep.subr.bf16.mxu0 0
  %329 = vmatpush1.bf16.msra.mxu0 0
  %330 = vmatprep.subr.bf16.mxu0 0
  %331 = vmatpush1.bf16.msra.mxu0 0
  %332 = vmatprep.subr.bf16.mxu0 0
  %333 = vmatpush1.bf16.msra.mxu0 0
  %334 = vmatprep.subr.bf16.mxu0 0
  %335 = vmatpush1.bf16.msra.mxu0 %v313
  %336 = vmatprep.subr.bf16.mxu0 0
  %337 = vmatpush1.bf16.msra.mxu0 %v312
  %338 = vmatprep.subr.bf16.mxu0 0
  %339 = vmatpush2.bf16.msra.mxu0 0
  %340 = vmatprep.subr.bf16.mxu0 0
  %341 = vmatpush2.bf16.msra.mxu0 0
  %342 = vmatprep.subr.bf16.mxu0 0
  %343 = vmatpush2.bf16.msra.mxu0 0
  %344 = vmatprep.subr.bf16.mxu0 0
  %345 = vmatpush2.bf16.msra.mxu0 0
  %346 = vmatprep.subr.bf16.mxu0 0
  %347 = vmatpush2.bf16.msra.mxu0 0
  %348 = vmatprep.subr.bf16.mxu0 0
  %349 = vmatpush2.bf16.msra.mxu0 0
  %350 = vmatprep.subr.bf16.mxu0 0
  %351 = vmatpush2.bf16.msra.mxu0 0
  %352 = vmatprep.subr.bf16.mxu0 0
  %353 = vmatpush2.bf16.msra.mxu0 0
  %354 = vmatprep.mubr.bf16.mxu0 0
  %355 = vmatmul.mubr.bf16.gmra.mxu0 %v317
  %v356 = vpop.f32.mrf.mxu0
  %v357 = vadd.f32 0.0, %v356
  %v358 = vpop.f32.mrf.mxu0
  %v359 = vpop.f32.mrf.mxu0
  %v360 = vadd.f32 0.0, %v359
  %v361 = vpop.f32.mrf.mxu0
  %362 = vmatprep.mubr.bf16.mxu0 0
  %363 = vmatmul.mubr.bf16.gmra.mxu0 %v320
  %v364 = vpop.f32.mrf.mxu0
  %v365 = vadd.f32 0.0, %v364
  %v366 = vpop.f32.mrf.mxu0
  %v367 = vpop.f32.mrf.mxu0
  %v368 = vadd.f32 0.0, %v367
  %v369 = vpop.f32.mrf.mxu0
  %370 = vdwg.mxu0
  %v371 = vadd.f32 %v280, %v357
  %v372 = vadd.f32 %v281, %v360
  %v373 = vadd.f32 %v282, %v365
  %v374 = vadd.f32 %v283, %v368
  %s375 = scalar_lea.vmem %s0, 80
  %v376 = vld [vmem:[%s375] sm:$0xf]
  %v377 = vld [vmem:[%s375 + $0x4] sm:$0xf]
  %v378 = vld [vmem:[%s375 + $0x8] sm:$0xf]
  %v379 = vld [vmem:[%s375 + $0xc] sm:$0xf]
  %s380 = scalar_lea.vmem %s1, 64
  %v381 = vld [vmem:[%s380] sm:$0xf]
  %v382 = vld [vmem:[%s380 + $0x4] sm:$0xf]
  %v383 = vld [vmem:[%s380 + $0x8] sm:$0xf]
  %v384 = vld [vmem:[%s380 + $0xc] sm:$0xf]
  %v389 = vunpack.c.l.b16 %v376
  %v390 = vunpack.c.l.b16 %v377
  %v391 = vunpack.c.l.b16 %v378
  %v392 = vunpack.c.l.b16 %v379
  %v393 = vpack.c.b16 %v390, %v389
  %v394 = vpack.c.b16 %v392, %v391
  %v399 = vunpack.c.l.b16 %v381
  %v400 = vunpack.c.l.b16 %v382
  %v401 = vunpack.c.l.b16 %v383
  %v402 = vunpack.c.l.b16 %v384
  %v403 = vpack.c.b16 %v400, %v399
  %v404 = vpack.c.b16 %v402, %v401
  %v408 = vsel %vm60, %v393, 0
  %v411 = vsel %vm60, %v394, 0
  %413 = vmatprep.subr.bf16.mxu0 0
  %414 = vmatpush1.bf16.msra.mxu0 0
  %415 = vmatprep.subr.bf16.mxu0 0
  %416 = vmatpush1.bf16.msra.mxu0 0
  %417 = vmatprep.subr.bf16.mxu0 0
  %418 = vmatpush1.bf16.msra.mxu0 0
  %419 = vmatprep.subr.bf16.mxu0 0
  %420 = vmatpush1.bf16.msra.mxu0 0
  %421 = vmatprep.subr.bf16.mxu0 0
  %422 = vmatpush1.bf16.msra.mxu0 0
  %423 = vmatprep.subr.bf16.mxu0 0
  %424 = vmatpush1.bf16.msra.mxu0 0
  %425 = vmatprep.subr.bf16.mxu0 0
  %426 = vmatpush1.bf16.msra.mxu0 %v404
  %427 = vmatprep.subr.bf16.mxu0 0
  %428 = vmatpush1.bf16.msra.mxu0 %v403
  %429 = vmatprep.subr.bf16.mxu0 0
  %430 = vmatpush2.bf16.msra.mxu0 0
  %431 = vmatprep.subr.bf16.mxu0 0
  %432 = vmatpush2.bf16.msra.mxu0 0
  %433 = vmatprep.subr.bf16.mxu0 0
  %434 = vmatpush2.bf16.msra.mxu0 0
  %435 = vmatprep.subr.bf16.mxu0 0
  %436 = vmatpush2.bf16.msra.mxu0 0
  %437 = vmatprep.subr.bf16.mxu0 0
  %438 = vmatpush2.bf16.msra.mxu0 0
  %439 = vmatprep.subr.bf16.mxu0 0
  %440 = vmatpush2.bf16.msra.mxu0 0
  %441 = vmatprep.subr.bf16.mxu0 0
  %442 = vmatpush2.bf16.msra.mxu0 0
  %443 = vmatprep.subr.bf16.mxu0 0
  %444 = vmatpush2.bf16.msra.mxu0 0
  %445 = vmatprep.mubr.bf16.mxu0 0
  %446 = vmatmul.mubr.bf16.gmra.mxu0 %v408
  %v447 = vpop.f32.mrf.mxu0
  %v448 = vadd.f32 0.0, %v447
  %v449 = vpop.f32.mrf.mxu0
  %v450 = vpop.f32.mrf.mxu0
  %v451 = vadd.f32 0.0, %v450
  %v452 = vpop.f32.mrf.mxu0
  %453 = vmatprep.mubr.bf16.mxu0 0
  %454 = vmatmul.mubr.bf16.gmra.mxu0 %v411
  %v455 = vpop.f32.mrf.mxu0
  %v456 = vadd.f32 0.0, %v455
  %v457 = vpop.f32.mrf.mxu0
  %v458 = vpop.f32.mrf.mxu0
  %v459 = vadd.f32 0.0, %v458
  %v460 = vpop.f32.mrf.mxu0
  %461 = vdwg.mxu0
  %v462 = vadd.f32 %v371, %v448
  %v463 = vadd.f32 %v372, %v451
  %v464 = vadd.f32 %v373, %v456
  %v465 = vadd.f32 %v374, %v459
  %s466 = scalar_lea.vmem %s0, 96
  %v467 = vld [vmem:[%s466] sm:$0xf]
  %v468 = vld [vmem:[%s466 + $0x4] sm:$0xf]
  %v469 = vld [vmem:[%s466 + $0x8] sm:$0xf]
  %v470 = vld [vmem:[%s466 + $0xc] sm:$0xf]
  %s471 = scalar_lea.vmem %s1, 80
  %v472 = vld [vmem:[%s471] sm:$0xf]
  %v473 = vld [vmem:[%s471 + $0x4] sm:$0xf]
  %v474 = vld [vmem:[%s471 + $0x8] sm:$0xf]
  %v475 = vld [vmem:[%s471 + $0xc] sm:$0xf]
  %v480 = vunpack.c.l.b16 %v467
  %v481 = vunpack.c.l.b16 %v468
  %v482 = vunpack.c.l.b16 %v469
  %v483 = vunpack.c.l.b16 %v470
  %v484 = vpack.c.b16 %v481, %v480
  %v485 = vpack.c.b16 %v483, %v482
  %v490 = vunpack.c.l.b16 %v472
  %v491 = vunpack.c.l.b16 %v473
  %v492 = vunpack.c.l.b16 %v474
  %v493 = vunpack.c.l.b16 %v475
  %v494 = vpack.c.b16 %v491, %v490
  %v495 = vpack.c.b16 %v493, %v492
  %v499 = vsel %vm60, %v484, 0
  %v502 = vsel %vm60, %v485, 0
  %504 = vmatprep.subr.bf16.mxu0 0
  %505 = vmatpush1.bf16.msra.mxu0 0
  %506 = vmatprep.subr.bf16.mxu0 0
  %507 = vmatpush1.bf16.msra.mxu0 0
  %508 = vmatprep.subr.bf16.mxu0 0
  %509 = vmatpush1.bf16.msra.mxu0 0
  %510 = vmatprep.subr.bf16.mxu0 0
  %511 = vmatpush1.bf16.msra.mxu0 0
  %512 = vmatprep.subr.bf16.mxu0 0
  %513 = vmatpush1.bf16.msra.mxu0 0
  %514 = vmatprep.subr.bf16.mxu0 0
  %515 = vmatpush1.bf16.msra.mxu0 0
  %516 = vmatprep.subr.bf16.mxu0 0
  %517 = vmatpush1.bf16.msra.mxu0 %v495
  %518 = vmatprep.subr.bf16.mxu0 0
  %519 = vmatpush1.bf16.msra.mxu0 %v494
  %520 = vmatprep.subr.bf16.mxu0 0
  %521 = vmatpush2.bf16.msra.mxu0 0
  %522 = vmatprep.subr.bf16.mxu0 0
  %523 = vmatpush2.bf16.msra.mxu0 0
  %524 = vmatprep.subr.bf16.mxu0 0
  %525 = vmatpush2.bf16.msra.mxu0 0
  %526 = vmatprep.subr.bf16.mxu0 0
  %527 = vmatpush2.bf16.msra.mxu0 0
  %528 = vmatprep.subr.bf16.mxu0 0
  %529 = vmatpush2.bf16.msra.mxu0 0
  %530 = vmatprep.subr.bf16.mxu0 0
  %531 = vmatpush2.bf16.msra.mxu0 0
  %532 = vmatprep.subr.bf16.mxu0 0
  %533 = vmatpush2.bf16.msra.mxu0 0
  %534 = vmatprep.subr.bf16.mxu0 0
  %535 = vmatpush2.bf16.msra.mxu0 0
  %536 = vmatprep.mubr.bf16.mxu0 0
  %537 = vmatmul.mubr.bf16.gmra.mxu0 %v499
  %v538 = vpop.f32.mrf.mxu0
  %v539 = vadd.f32 0.0, %v538
  %v540 = vpop.f32.mrf.mxu0
  %v541 = vpop.f32.mrf.mxu0
  %v542 = vadd.f32 0.0, %v541
  %v543 = vpop.f32.mrf.mxu0
  %544 = vmatprep.mubr.bf16.mxu0 0
  %545 = vmatmul.mubr.bf16.gmra.mxu0 %v502
  %v546 = vpop.f32.mrf.mxu0
  %v547 = vadd.f32 0.0, %v546
  %v548 = vpop.f32.mrf.mxu0
  %v549 = vpop.f32.mrf.mxu0
  %v550 = vadd.f32 0.0, %v549
  %v551 = vpop.f32.mrf.mxu0
  %552 = vdwg.mxu0
  %v553 = vadd.f32 %v462, %v539
  %v554 = vadd.f32 %v463, %v542
  %v555 = vadd.f32 %v464, %v547
  %v556 = vadd.f32 %v465, %v550
  %s557 = scalar_lea.vmem %s0, 128
  %v558 = vld [vmem:[%s557] sm:$0xf]
  %v559 = vld [vmem:[%s557 + $0x4] sm:$0xf]
  %v560 = vld [vmem:[%s557 + $0x8] sm:$0xf]
  %v561 = vld [vmem:[%s557 + $0xc] sm:$0xf]
  %s562 = scalar_lea.vmem %s1, 96
  %v563 = vld [vmem:[%s562] sm:$0xf]
  %v564 = vld [vmem:[%s562 + $0x4] sm:$0xf]
  %v565 = vld [vmem:[%s562 + $0x8] sm:$0xf]
  %v566 = vld [vmem:[%s562 + $0xc] sm:$0xf]
  %v571 = vunpack.c.l.b16 %v558
  %v572 = vunpack.c.l.b16 %v559
  %v573 = vunpack.c.l.b16 %v560
  %v574 = vunpack.c.l.b16 %v561
  %v575 = vpack.c.b16 %v572, %v571
  %v576 = vpack.c.b16 %v574, %v573
  %v581 = vunpack.c.l.b16 %v563
  %v582 = vunpack.c.l.b16 %v564
  %v583 = vunpack.c.l.b16 %v565
  %v584 = vunpack.c.l.b16 %v566
  %v585 = vpack.c.b16 %v582, %v581
  %v586 = vpack.c.b16 %v584, %v583
  %v590 = vsel %vm60, %v575, 0
  %v593 = vsel %vm60, %v576, 0
  %595 = vmatprep.subr.bf16.mxu0 0
  %596 = vmatpush1.bf16.msra.mxu0 0
  %597 = vmatprep.subr.bf16.mxu0 0
  %598 = vmatpush1.bf16.msra.mxu0 0
  %599 = vmatprep.subr.bf16.mxu0 0
  %600 = vmatpush1.bf16.msra.mxu0 0
  %601 = vmatprep.subr.bf16.mxu0 0
  %602 = vmatpush1.bf16.msra.mxu0 0
  %603 = vmatprep.subr.bf16.mxu0 0
  %604 = vmatpush1.bf16.msra.mxu0 0
  %605 = vmatprep.subr.bf16.mxu0 0
  %606 = vmatpush1.bf16.msra.mxu0 0
  %607 = vmatprep.subr.bf16.mxu0 0
  %608 = vmatpush1.bf16.msra.mxu0 %v586
  %609 = vmatprep.subr.bf16.mxu0 0
  %610 = vmatpush1.bf16.msra.mxu0 %v585
  %611 = vmatprep.subr.bf16.mxu0 0
  %612 = vmatpush2.bf16.msra.mxu0 0
  %613 = vmatprep.subr.bf16.mxu0 0
  %614 = vmatpush2.bf16.msra.mxu0 0
  %615 = vmatprep.subr.bf16.mxu0 0
  %616 = vmatpush2.bf16.msra.mxu0 0
  %617 = vmatprep.subr.bf16.mxu0 0
  %618 = vmatpush2.bf16.msra.mxu0 0
  %619 = vmatprep.subr.bf16.mxu0 0
  %620 = vmatpush2.bf16.msra.mxu0 0
  %621 = vmatprep.subr.bf16.mxu0 0
  %622 = vmatpush2.bf16.msra.mxu0 0
  %623 = vmatprep.subr.bf16.mxu0 0
  %624 = vmatpush2.bf16.msra.mxu0 0
  %625 = vmatprep.subr.bf16.mxu0 0
  %626 = vmatpush2.bf16.msra.mxu0 0
  %627 = vmatprep.mubr.bf16.mxu0 0
  %628 = vmatmul.mubr.bf16.gmra.mxu0 %v590
  %v629 = vpop.f32.mrf.mxu0
  %v630 = vadd.f32 0.0, %v629
  %v631 = vpop.f32.mrf.mxu0
  %v632 = vpop.f32.mrf.mxu0
  %v633 = vadd.f32 0.0, %v632
  %v634 = vpop.f32.mrf.mxu0
  %635 = vmatprep.mubr.bf16.mxu0 0
  %636 = vmatmul.mubr.bf16.gmra.mxu0 %v593
  %v637 = vpop.f32.mrf.mxu0
  %v638 = vadd.f32 0.0, %v637
  %v639 = vpop.f32.mrf.mxu0
  %v640 = vpop.f32.mrf.mxu0
  %v641 = vadd.f32 0.0, %v640
  %v642 = vpop.f32.mrf.mxu0
  %643 = vdwg.mxu0
  %v644 = vadd.f32 %v553, %v630
  %v645 = vadd.f32 %v554, %v633
  %v646 = vadd.f32 %v555, %v638
  %v647 = vadd.f32 %v556, %v641
  %s648 = scalar_lea.vmem %s0, 144
  %v649 = vld [vmem:[%s648] sm:$0xf]
  %v650 = vld [vmem:[%s648 + $0x4] sm:$0xf]
  %v651 = vld [vmem:[%s648 + $0x8] sm:$0xf]
  %v652 = vld [vmem:[%s648 + $0xc] sm:$0xf]
  %s653 = scalar_lea.vmem %s1, 112
  %v654 = vld [vmem:[%s653] sm:$0xf]
  %v655 = vld [vmem:[%s653 + $0x4] sm:$0xf]
  %v656 = vld [vmem:[%s653 + $0x8] sm:$0xf]
  %v657 = vld [vmem:[%s653 + $0xc] sm:$0xf]
  %v662 = vunpack.c.l.b16 %v649
  %v663 = vunpack.c.l.b16 %v650
  %v664 = vunpack.c.l.b16 %v651
  %v665 = vunpack.c.l.b16 %v652
  %v666 = vpack.c.b16 %v663, %v662
  %v667 = vpack.c.b16 %v665, %v664
  %v672 = vunpack.c.l.b16 %v654
  %v673 = vunpack.c.l.b16 %v655
  %v674 = vunpack.c.l.b16 %v656
  %v675 = vunpack.c.l.b16 %v657
  %v676 = vpack.c.b16 %v673, %v672
  %v677 = vpack.c.b16 %v675, %v674
  %v681 = vsel %vm60, %v666, 0
  %v684 = vsel %vm60, %v667, 0
  %686 = vmatprep.subr.bf16.mxu0 0
  %687 = vmatpush1.bf16.msra.mxu0 0
  %688 = vmatprep.subr.bf16.mxu0 0
  %689 = vmatpush1.bf16.msra.mxu0 0
  %690 = vmatprep.subr.bf16.mxu0 0
  %691 = vmatpush1.bf16.msra.mxu0 0
  %692 = vmatprep.subr.bf16.mxu0 0
  %693 = vmatpush1.bf16.msra.mxu0 0
  %694 = vmatprep.subr.bf16.mxu0 0
  %695 = vmatpush1.bf16.msra.mxu0 0
  %696 = vmatprep.subr.bf16.mxu0 0
  %697 = vmatpush1.bf16.msra.mxu0 0
  %698 = vmatprep.subr.bf16.mxu0 0
  %699 = vmatpush1.bf16.msra.mxu0 %v677
  %700 = vmatprep.subr.bf16.mxu0 0
  %701 = vmatpush1.bf16.msra.mxu0 %v676
  %702 = vmatprep.subr.bf16.mxu0 0
  %703 = vmatpush2.bf16.msra.mxu0 0
  %704 = vmatprep.subr.bf16.mxu0 0
  %705 = vmatpush2.bf16.msra.mxu0 0
  %706 = vmatprep.subr.bf16.mxu0 0
  %707 = vmatpush2.bf16.msra.mxu0 0
  %708 = vmatprep.subr.bf16.mxu0 0
  %709 = vmatpush2.bf16.msra.mxu0 0
  %710 = vmatprep.subr.bf16.mxu0 0
  %711 = vmatpush2.bf16.msra.mxu0 0
  %712 = vmatprep.subr.bf16.mxu0 0
  %713 = vmatpush2.bf16.msra.mxu0 0
  %714 = vmatprep.subr.bf16.mxu0 0
  %715 = vmatpush2.bf16.msra.mxu0 0
  %716 = vmatprep.subr.bf16.mxu0 0
  %717 = vmatpush2.bf16.msra.mxu0 0
  %718 = vmatprep.mubr.bf16.mxu0 0
  %719 = vmatmul.mubr.bf16.gmra.mxu0 %v681
  %v720 = vpop.f32.mrf.mxu0
  %v721 = vadd.f32 0.0, %v720
  %v722 = vpop.f32.mrf.mxu0
  %v723 = vpop.f32.mrf.mxu0
  %v724 = vadd.f32 0.0, %v723
  %v725 = vpop.f32.mrf.mxu0
  %726 = vmatprep.mubr.bf16.mxu0 0
  %727 = vmatmul.mubr.bf16.gmra.mxu0 %v684
  %v728 = vpop.f32.mrf.mxu0
  %v729 = vadd.f32 0.0, %v728
  %v730 = vpop.f32.mrf.mxu0
  %v731 = vpop.f32.mrf.mxu0
  %v732 = vadd.f32 0.0, %v731
  %v733 = vpop.f32.mrf.mxu0
  %734 = vdwg.mxu0
  %v735 = vadd.f32 %v644, %v721
  %v736 = vadd.f32 %v645, %v724
  %v737 = vadd.f32 %v646, %v729
  %v738 = vadd.f32 %v647, %v732
  %s739 = scalar_lea.vmem %s0, 160
  %v740 = vld [vmem:[%s739] sm:$0xf]
  %v741 = vld [vmem:[%s739 + $0x4] sm:$0xf]
  %v742 = vld [vmem:[%s739 + $0x8] sm:$0xf]
  %v743 = vld [vmem:[%s739 + $0xc] sm:$0xf]
  %s744 = scalar_lea.vmem %s1, 128
  %v745 = vld [vmem:[%s744] sm:$0xf]
  %v746 = vld [vmem:[%s744 + $0x4] sm:$0xf]
  %v747 = vld [vmem:[%s744 + $0x8] sm:$0xf]
  %v748 = vld [vmem:[%s744 + $0xc] sm:$0xf]
  %v753 = vunpack.c.l.b16 %v740
  %v754 = vunpack.c.l.b16 %v741
  %v755 = vunpack.c.l.b16 %v742
  %v756 = vunpack.c.l.b16 %v743
  %v757 = vpack.c.b16 %v754, %v753
  %v758 = vpack.c.b16 %v756, %v755
  %v763 = vunpack.c.l.b16 %v745
  %v764 = vunpack.c.l.b16 %v746
  %v765 = vunpack.c.l.b16 %v747
  %v766 = vunpack.c.l.b16 %v748
  %v767 = vpack.c.b16 %v764, %v763
  %v768 = vpack.c.b16 %v766, %v765
  %v772 = vsel %vm60, %v757, 0
  %v775 = vsel %vm60, %v758, 0
  %777 = vmatprep.subr.bf16.mxu0 0
  %778 = vmatpush1.bf16.msra.mxu0 0
  %779 = vmatprep.subr.bf16.mxu0 0
  %780 = vmatpush1.bf16.msra.mxu0 0
  %781 = vmatprep.subr.bf16.mxu0 0
  %782 = vmatpush1.bf16.msra.mxu0 0
  %783 = vmatprep.subr.bf16.mxu0 0
  %784 = vmatpush1.bf16.msra.mxu0 0
  %785 = vmatprep.subr.bf16.mxu0 0
  %786 = vmatpush1.bf16.msra.mxu0 0
  %787 = vmatprep.subr.bf16.mxu0 0
  %788 = vmatpush1.bf16.msra.mxu0 0
  %789 = vmatprep.subr.bf16.mxu0 0
  %790 = vmatpush1.bf16.msra.mxu0 %v768
  %791 = vmatprep.subr.bf16.mxu0 0
  %792 = vmatpush1.bf16.msra.mxu0 %v767
  %793 = vmatprep.subr.bf16.mxu0 0
  %794 = vmatpush2.bf16.msra.mxu0 0
  %795 = vmatprep.subr.bf16.mxu0 0
  %796 = vmatpush2.bf16.msra.mxu0 0
  %797 = vmatprep.subr.bf16.mxu0 0
  %798 = vmatpush2.bf16.msra.mxu0 0
  %799 = vmatprep.subr.bf16.mxu0 0
  %800 = vmatpush2.bf16.msra.mxu0 0
  %801 = vmatprep.subr.bf16.mxu0 0
  %802 = vmatpush2.bf16.msra.mxu0 0
  %803 = vmatprep.subr.bf16.mxu0 0
  %804 = vmatpush2.bf16.msra.mxu0 0
  %805 = vmatprep.subr.bf16.mxu0 0
  %806 = vmatpush2.bf16.msra.mxu0 0
  %807 = vmatprep.subr.bf16.mxu0 0
  %808 = vmatpush2.bf16.msra.mxu0 0
  %809 = vmatprep.mubr.bf16.mxu0 0
  %810 = vmatmul.mubr.bf16.gmra.mxu0 %v772
  %v811 = vpop.f32.mrf.mxu0
  %v812 = vadd.f32 0.0, %v811
  %v813 = vpop.f32.mrf.mxu0
  %v814 = vpop.f32.mrf.mxu0
  %v815 = vadd.f32 0.0, %v814
  %v816 = vpop.f32.mrf.mxu0
  %817 = vmatprep.mubr.bf16.mxu0 0
  %818 = vmatmul.mubr.bf16.gmra.mxu0 %v775
  %v819 = vpop.f32.mrf.mxu0
  %v820 = vadd.f32 0.0, %v819
  %v821 = vpop.f32.mrf.mxu0
  %v822 = vpop.f32.mrf.mxu0
  %v823 = vadd.f32 0.0, %v822
  %v824 = vpop.f32.mrf.mxu0
  %825 = vdwg.mxu0
  %v826 = vadd.f32 %v735, %v812
  %v827 = vadd.f32 %v736, %v815
  %v828 = vadd.f32 %v737, %v820
  %v829 = vadd.f32 %v738, %v823
  %v831 = vlaneseq
  %v832 = vshrl.u32 %v831, 7
  %v833 = vsub.s32 0, %v832
  %v834 = vrot.slane %v18, %v833
  %v836 = vmul.f32 %v826, %v834
  %v837 = vmul.f32 %v827, %v834
  %v838 = vmul.f32 %v828, %v834
  %v839 = vmul.f32 %v829, %v834
  %v841 = vlaneseq
  %v842 = vshrl.u32 %v841, 7
  %v843 = vsub.s32 0, %v842
  %v844 = vrot.slane %v19, %v843
  %v846 = vadd.f32 %v836, %v844
  %v847 = vadd.f32 %v837, %v844
  %v848 = vadd.f32 %v838, %v844
  %v849 = vadd.f32 %v839, %v844
  %v850 = vmax.f32 %v846, 0.0
  %v851 = vmax.f32 %v847, 0.0
  %v852 = vmax.f32 %v848, 0.0
  %v853 = vmax.f32 %v849, 0.0
  %854 = vmatprep.subr.bf16.mxu0 0
  %855 = vmatpush1.bf16.msra.mxu0 0
  %856 = vmatprep.subr.bf16.mxu0 0
  %857 = vmatpush1.bf16.msra.mxu0 0
  %858 = vmatprep.subr.bf16.mxu0 0
  %859 = vmatpush1.bf16.msra.mxu0 0
  %860 = vmatprep.subr.bf16.mxu0 0
  %861 = vmatpush1.bf16.msra.mxu0 0
  %862 = vmatprep.subr.bf16.mxu0 0
  %863 = vmatpush1.bf16.msra.mxu0 0
  %864 = vmatprep.subr.bf16.mxu0 0
  %865 = vmatpush1.bf16.msra.mxu0 0
  %866 = vmatprep.subr.bf16.mxu0 0
  %867 = vmatpush1.bf16.msra.mxu0 %v57
  %868 = vmatprep.subr.bf16.mxu0 0
  %869 = vmatpush1.bf16.msra.mxu0 %v56
  %870 = vmatprep.subr.bf16.mxu0 0
  %871 = vmatpush2.bf16.msra.mxu0 0
  %872 = vmatprep.subr.bf16.mxu0 0
  %873 = vmatpush2.bf16.msra.mxu0 0
  %874 = vmatprep.subr.bf16.mxu0 0
  %875 = vmatpush2.bf16.msra.mxu0 0
  %876 = vmatprep.subr.bf16.mxu0 0
  %877 = vmatpush2.bf16.msra.mxu0 0
  %878 = vmatprep.subr.bf16.mxu0 0
  %879 = vmatpush2.bf16.msra.mxu0 0
  %880 = vmatprep.subr.bf16.mxu0 0
  %881 = vmatpush2.bf16.msra.mxu0 0
  %882 = vmatprep.subr.bf16.mxu0 0
  %883 = vmatpush2.bf16.msra.mxu0 0
  %884 = vmatprep.subr.bf16.mxu0 0
  %885 = vmatpush2.bf16.msra.mxu0 0
  %886 = vmatprep.mubr.bf16.mxu0 0
  %887 = vmatmul.mubr.bf16.gmra.mxu0 %v226
  %v888 = vpop.f32.mrf.mxu0
  %v889 = vadd.f32 0.0, %v888
  %v890 = vpop.f32.mrf.mxu0
  %v891 = vpop.f32.mrf.mxu0
  %v892 = vadd.f32 0.0, %v891
  %v893 = vpop.f32.mrf.mxu0
  %894 = vmatprep.mubr.bf16.mxu0 0
  %895 = vmatmul.mubr.bf16.gmra.mxu0 %v229
  %v896 = vpop.f32.mrf.mxu0
  %v897 = vadd.f32 0.0, %v896
  %v898 = vpop.f32.mrf.mxu0
  %v899 = vpop.f32.mrf.mxu0
  %v900 = vadd.f32 0.0, %v899
  %v901 = vpop.f32.mrf.mxu0
  %902 = vdwg.mxu0
  %903 = vmatprep.subr.bf16.mxu0 0
  %904 = vmatpush1.bf16.msra.mxu0 0
  %905 = vmatprep.subr.bf16.mxu0 0
  %906 = vmatpush1.bf16.msra.mxu0 0
  %907 = vmatprep.subr.bf16.mxu0 0
  %908 = vmatpush1.bf16.msra.mxu0 0
  %909 = vmatprep.subr.bf16.mxu0 0
  %910 = vmatpush1.bf16.msra.mxu0 0
  %911 = vmatprep.subr.bf16.mxu0 0
  %912 = vmatpush1.bf16.msra.mxu0 0
  %913 = vmatprep.subr.bf16.mxu0 0
  %914 = vmatpush1.bf16.msra.mxu0 0
  %915 = vmatprep.subr.bf16.mxu0 0
  %916 = vmatpush1.bf16.msra.mxu0 %v135
  %917 = vmatprep.subr.bf16.mxu0 0
  %918 = vmatpush1.bf16.msra.mxu0 %v134
  %919 = vmatprep.subr.bf16.mxu0 0
  %920 = vmatpush2.bf16.msra.mxu0 0
  %921 = vmatprep.subr.bf16.mxu0 0
  %922 = vmatpush2.bf16.msra.mxu0 0
  %923 = vmatprep.subr.bf16.mxu0 0
  %924 = vmatpush2.bf16.msra.mxu0 0
  %925 = vmatprep.subr.bf16.mxu0 0
  %926 = vmatpush2.bf16.msra.mxu0 0
  %927 = vmatprep.subr.bf16.mxu0 0
  %928 = vmatpush2.bf16.msra.mxu0 0
  %929 = vmatprep.subr.bf16.mxu0 0
  %930 = vmatpush2.bf16.msra.mxu0 0
  %931 = vmatprep.subr.bf16.mxu0 0
  %932 = vmatpush2.bf16.msra.mxu0 0
  %933 = vmatprep.subr.bf16.mxu0 0
  %934 = vmatpush2.bf16.msra.mxu0 0
  %935 = vmatprep.mubr.bf16.mxu0 0
  %936 = vmatmul.mubr.bf16.gmra.mxu0 %v62
  %v937 = vpop.f32.mrf.mxu0
  %v938 = vadd.f32 %v889, %v937
  %v939 = vpop.f32.mrf.mxu0
  %v940 = vpop.f32.mrf.mxu0
  %v941 = vadd.f32 %v892, %v940
  %v942 = vpop.f32.mrf.mxu0
  %943 = vmatprep.mubr.bf16.mxu0 0
  %944 = vmatmul.mubr.bf16.gmra.mxu0 %v65
  %v945 = vpop.f32.mrf.mxu0
  %v946 = vadd.f32 %v897, %v945
  %v947 = vpop.f32.mrf.mxu0
  %v948 = vpop.f32.mrf.mxu0
  %v949 = vadd.f32 %v900, %v948
  %v950 = vpop.f32.mrf.mxu0
  %951 = vdwg.mxu0
  %s952 = scalar_lea.vmem %s0, 48
  %v953 = vld [vmem:[%s952] sm:$0xf]
  %v954 = vld [vmem:[%s952 + $0x4] sm:$0xf]
  %v955 = vld [vmem:[%s952 + $0x8] sm:$0xf]
  %v956 = vld [vmem:[%s952 + $0xc] sm:$0xf]
  %v961 = vunpack.c.l.b16 %v953
  %v962 = vunpack.c.l.b16 %v954
  %v963 = vunpack.c.l.b16 %v955
  %v964 = vunpack.c.l.b16 %v956
  %v965 = vpack.c.b16 %v962, %v961
  %v966 = vpack.c.b16 %v964, %v963
  %v968 = vsel %vm60, %v965, 0
  %v971 = vsel %vm60, %v966, 0
  %973 = vmatprep.subr.bf16.mxu0 0
  %974 = vmatpush1.bf16.msra.mxu0 0
  %975 = vmatprep.subr.bf16.mxu0 0
  %976 = vmatpush1.bf16.msra.mxu0 0
  %977 = vmatprep.subr.bf16.mxu0 0
  %978 = vmatpush1.bf16.msra.mxu0 0
  %979 = vmatprep.subr.bf16.mxu0 0
  %980 = vmatpush1.bf16.msra.mxu0 0
  %981 = vmatprep.subr.bf16.mxu0 0
  %982 = vmatpush1.bf16.msra.mxu0 0
  %983 = vmatprep.subr.bf16.mxu0 0
  %984 = vmatpush1.bf16.msra.mxu0 0
  %985 = vmatprep.subr.bf16.mxu0 0
  %986 = vmatpush1.bf16.msra.mxu0 %v222
  %987 = vmatprep.subr.bf16.mxu0 0
  %988 = vmatpush1.bf16.msra.mxu0 %v221
  %989 = vmatprep.subr.bf16.mxu0 0
  %990 = vmatpush2.bf16.msra.mxu0 0
  %991 = vmatprep.subr.bf16.mxu0 0
  %992 = vmatpush2.bf16.msra.mxu0 0
  %993 = vmatprep.subr.bf16.mxu0 0
  %994 = vmatpush2.bf16.msra.mxu0 0
  %995 = vmatprep.subr.bf16.mxu0 0
  %996 = vmatpush2.bf16.msra.mxu0 0
  %997 = vmatprep.subr.bf16.mxu0 0
  %998 = vmatpush2.bf16.msra.mxu0 0
  %999 = vmatprep.subr.bf16.mxu0 0
  %1000 = vmatpush2.bf16.msra.mxu0 0
  %1001 = vmatprep.subr.bf16.mxu0 0
  %1002 = vmatpush2.bf16.msra.mxu0 0
  %1003 = vmatprep.subr.bf16.mxu0 0
  %1004 = vmatpush2.bf16.msra.mxu0 0
  %1005 = vmatprep.mubr.bf16.mxu0 0
  %1006 = vmatmul.mubr.bf16.gmra.mxu0 %v968
  %v1007 = vpop.f32.mrf.mxu0
  %v1008 = vadd.f32 0.0, %v1007
  %v1009 = vpop.f32.mrf.mxu0
  %v1010 = vpop.f32.mrf.mxu0
  %v1011 = vadd.f32 0.0, %v1010
  %v1012 = vpop.f32.mrf.mxu0
  %1013 = vmatprep.mubr.bf16.mxu0 0
  %1014 = vmatmul.mubr.bf16.gmra.mxu0 %v971
  %v1015 = vpop.f32.mrf.mxu0
  %v1016 = vadd.f32 0.0, %v1015
  %v1017 = vpop.f32.mrf.mxu0
  %v1018 = vpop.f32.mrf.mxu0
  %v1019 = vadd.f32 0.0, %v1018
  %v1020 = vpop.f32.mrf.mxu0
  %1021 = vdwg.mxu0
  %v1022 = vadd.f32 %v938, %v1008
  %v1023 = vadd.f32 %v941, %v1011
  %v1024 = vadd.f32 %v946, %v1016
  %v1025 = vadd.f32 %v949, %v1019
  %1026 = vmatprep.subr.bf16.mxu0 0
  %1027 = vmatpush1.bf16.msra.mxu0 0
  %1028 = vmatprep.subr.bf16.mxu0 0
  %1029 = vmatpush1.bf16.msra.mxu0 0
  %1030 = vmatprep.subr.bf16.mxu0 0
  %1031 = vmatpush1.bf16.msra.mxu0 0
  %1032 = vmatprep.subr.bf16.mxu0 0
  %1033 = vmatpush1.bf16.msra.mxu0 0
  %1034 = vmatprep.subr.bf16.mxu0 0
  %1035 = vmatpush1.bf16.msra.mxu0 0
  %1036 = vmatprep.subr.bf16.mxu0 0
  %1037 = vmatpush1.bf16.msra.mxu0 0
  %1038 = vmatprep.subr.bf16.mxu0 0
  %1039 = vmatpush1.bf16.msra.mxu0 %v313
  %1040 = vmatprep.subr.bf16.mxu0 0
  %1041 = vmatpush1.bf16.msra.mxu0 %v312
  %1042 = vmatprep.subr.bf16.mxu0 0
  %1043 = vmatpush2.bf16.msra.mxu0 0
  %1044 = vmatprep.subr.bf16.mxu0 0
  %1045 = vmatpush2.bf16.msra.mxu0 0
  %1046 = vmatprep.subr.bf16.mxu0 0
  %1047 = vmatpush2.bf16.msra.mxu0 0
  %1048 = vmatprep.subr.bf16.mxu0 0
  %1049 = vmatpush2.bf16.msra.mxu0 0
  %1050 = vmatprep.subr.bf16.mxu0 0
  %1051 = vmatpush2.bf16.msra.mxu0 0
  %1052 = vmatprep.subr.bf16.mxu0 0
  %1053 = vmatpush2.bf16.msra.mxu0 0
  %1054 = vmatprep.subr.bf16.mxu0 0
  %1055 = vmatpush2.bf16.msra.mxu0 0
  %1056 = vmatprep.subr.bf16.mxu0 0
  %1057 = vmatpush2.bf16.msra.mxu0 0
  %1058 = vmatprep.mubr.bf16.mxu0 0
  %1059 = vmatmul.mubr.bf16.gmra.mxu0 %v408
  %v1060 = vpop.f32.mrf.mxu0
  %v1061 = vadd.f32 0.0, %v1060
  %v1062 = vpop.f32.mrf.mxu0
  %v1063 = vpop.f32.mrf.mxu0
  %v1064 = vadd.f32 0.0, %v1063
  %v1065 = vpop.f32.mrf.mxu0
  %1066 = vmatprep.mubr.bf16.mxu0 0
  %1067 = vmatmul.mubr.bf16.gmra.mxu0 %v411
  %v1068 = vpop.f32.mrf.mxu0
  %v1069 = vadd.f32 0.0, %v1068
  %v1070 = vpop.f32.mrf.mxu0
  %v1071 = vpop.f32.mrf.mxu0
  %v1072 = vadd.f32 0.0, %v1071
  %v1073 = vpop.f32.mrf.mxu0
  %1074 = vdwg.mxu0
  %v1075 = vadd.f32 %v1022, %v1061
  %v1076 = vadd.f32 %v1023, %v1064
  %v1077 = vadd.f32 %v1024, %v1069
  %v1078 = vadd.f32 %v1025, %v1072
  %1079 = vmatprep.subr.bf16.mxu0 0
  %1080 = vmatpush1.bf16.msra.mxu0 0
  %1081 = vmatprep.subr.bf16.mxu0 0
  %1082 = vmatpush1.bf16.msra.mxu0 0
  %1083 = vmatprep.subr.bf16.mxu0 0
  %1084 = vmatpush1.bf16.msra.mxu0 0
  %1085 = vmatprep.subr.bf16.mxu0 0
  %1086 = vmatpush1.bf16.msra.mxu0 0
  %1087 = vmatprep.subr.bf16.mxu0 0
  %1088 = vmatpush1.bf16.msra.mxu0 0
  %1089 = vmatprep.subr.bf16.mxu0 0
  %1090 = vmatpush1.bf16.msra.mxu0 0
  %1091 = vmatprep.subr.bf16.mxu0 0
  %1092 = vmatpush1.bf16.msra.mxu0 %v404
  %1093 = vmatprep.subr.bf16.mxu0 0
  %1094 = vmatpush1.bf16.msra.mxu0 %v403
  %1095 = vmatprep.subr.bf16.mxu0 0
  %1096 = vmatpush2.bf16.msra.mxu0 0
  %1097 = vmatprep.subr.bf16.mxu0 0
  %1098 = vmatpush2.bf16.msra.mxu0 0
  %1099 = vmatprep.subr.bf16.mxu0 0
  %1100 = vmatpush2.bf16.msra.mxu0 0
  %1101 = vmatprep.subr.bf16.mxu0 0
  %1102 = vmatpush2.bf16.msra.mxu0 0
  %1103 = vmatprep.subr.bf16.mxu0 0
  %1104 = vmatpush2.bf16.msra.mxu0 0
  %1105 = vmatprep.subr.bf16.mxu0 0
  %1106 = vmatpush2.bf16.msra.mxu0 0
  %1107 = vmatprep.subr.bf16.mxu0 0
  %1108 = vmatpush2.bf16.msra.mxu0 0
  %1109 = vmatprep.subr.bf16.mxu0 0
  %1110 = vmatpush2.bf16.msra.mxu0 0
  %1111 = vmatprep.mubr.bf16.mxu0 0
  %1112 = vmatmul.mubr.bf16.gmra.mxu0 %v499
  %v1113 = vpop.f32.mrf.mxu0
  %v1114 = vadd.f32 0.0, %v1113
  %v1115 = vpop.f32.mrf.mxu0
  %v1116 = vpop.f32.mrf.mxu0
  %v1117 = vadd.f32 0.0, %v1116
  %v1118 = vpop.f32.mrf.mxu0
  %1119 = vmatprep.mubr.bf16.mxu0 0
  %1120 = vmatmul.mubr.bf16.gmra.mxu0 %v502
  %v1121 = vpop.f32.mrf.mxu0
  %v1122 = vadd.f32 0.0, %v1121
  %v1123 = vpop.f32.mrf.mxu0
  %v1124 = vpop.f32.mrf.mxu0
  %v1125 = vadd.f32 0.0, %v1124
  %v1126 = vpop.f32.mrf.mxu0
  %1127 = vdwg.mxu0
  %v1128 = vadd.f32 %v1075, %v1114
  %v1129 = vadd.f32 %v1076, %v1117
  %v1130 = vadd.f32 %v1077, %v1122
  %v1131 = vadd.f32 %v1078, %v1125
  %s1132 = scalar_lea.vmem %s0, 112
  %v1133 = vld [vmem:[%s1132] sm:$0xf]
  %v1134 = vld [vmem:[%s1132 + $0x4] sm:$0xf]
  %v1135 = vld [vmem:[%s1132 + $0x8] sm:$0xf]
  %v1136 = vld [vmem:[%s1132 + $0xc] sm:$0xf]
  %v1141 = vunpack.c.l.b16 %v1133
  %v1142 = vunpack.c.l.b16 %v1134
  %v1143 = vunpack.c.l.b16 %v1135
  %v1144 = vunpack.c.l.b16 %v1136
  %v1145 = vpack.c.b16 %v1142, %v1141
  %v1146 = vpack.c.b16 %v1144, %v1143
  %v1148 = vsel %vm60, %v1145, 0
  %v1151 = vsel %vm60, %v1146, 0
  %1153 = vmatprep.subr.bf16.mxu0 0
  %1154 = vmatpush1.bf16.msra.mxu0 0
  %1155 = vmatprep.subr.bf16.mxu0 0
  %1156 = vmatpush1.bf16.msra.mxu0 0
  %1157 = vmatprep.subr.bf16.mxu0 0
  %1158 = vmatpush1.bf16.msra.mxu0 0
  %1159 = vmatprep.subr.bf16.mxu0 0
  %1160 = vmatpush1.bf16.msra.mxu0 0
  %1161 = vmatprep.subr.bf16.mxu0 0
  %1162 = vmatpush1.bf16.msra.mxu0 0
  %1163 = vmatprep.subr.bf16.mxu0 0
  %1164 = vmatpush1.bf16.msra.mxu0 0
  %1165 = vmatprep.subr.bf16.mxu0 0
  %1166 = vmatpush1.bf16.msra.mxu0 %v495
  %1167 = vmatprep.subr.bf16.mxu0 0
  %1168 = vmatpush1.bf16.msra.mxu0 %v494
  %1169 = vmatprep.subr.bf16.mxu0 0
  %1170 = vmatpush2.bf16.msra.mxu0 0
  %1171 = vmatprep.subr.bf16.mxu0 0
  %1172 = vmatpush2.bf16.msra.mxu0 0
  %1173 = vmatprep.subr.bf16.mxu0 0
  %1174 = vmatpush2.bf16.msra.mxu0 0
  %1175 = vmatprep.subr.bf16.mxu0 0
  %1176 = vmatpush2.bf16.msra.mxu0 0
  %1177 = vmatprep.subr.bf16.mxu0 0
  %1178 = vmatpush2.bf16.msra.mxu0 0
  %1179 = vmatprep.subr.bf16.mxu0 0
  %1180 = vmatpush2.bf16.msra.mxu0 0
  %1181 = vmatprep.subr.bf16.mxu0 0
  %1182 = vmatpush2.bf16.msra.mxu0 0
  %1183 = vmatprep.subr.bf16.mxu0 0
  %1184 = vmatpush2.bf16.msra.mxu0 0
  %1185 = vmatprep.mubr.bf16.mxu0 0
  %1186 = vmatmul.mubr.bf16.gmra.mxu0 %v1148
  %v1187 = vpop.f32.mrf.mxu0
  %v1188 = vadd.f32 0.0, %v1187
  %v1189 = vpop.f32.mrf.mxu0
  %v1190 = vpop.f32.mrf.mxu0
  %v1191 = vadd.f32 0.0, %v1190
  %v1192 = vpop.f32.mrf.mxu0
  %1193 = vmatprep.mubr.bf16.mxu0 0
  %1194 = vmatmul.mubr.bf16.gmra.mxu0 %v1151
  %v1195 = vpop.f32.mrf.mxu0
  %v1196 = vadd.f32 0.0, %v1195
  %v1197 = vpop.f32.mrf.mxu0
  %v1198 = vpop.f32.mrf.mxu0
  %v1199 = vadd.f32 0.0, %v1198
  %v1200 = vpop.f32.mrf.mxu0
  %1201 = vdwg.mxu0
  %v1202 = vadd.f32 %v1128, %v1188
  %v1203 = vadd.f32 %v1129, %v1191
  %v1204 = vadd.f32 %v1130, %v1196
  %v1205 = vadd.f32 %v1131, %v1199
  %1206 = vmatprep.subr.bf16.mxu0 0
  %1207 = vmatpush1.bf16.msra.mxu0 0
  %1208 = vmatprep.subr.bf16.mxu0 0
  %1209 = vmatpush1.bf16.msra.mxu0 0
  %1210 = vmatprep.subr.bf16.mxu0 0
  %1211 = vmatpush1.bf16.msra.mxu0 0
  %1212 = vmatprep.subr.bf16.mxu0 0
  %1213 = vmatpush1.bf16.msra.mxu0 0
  %1214 = vmatprep.subr.bf16.mxu0 0
  %1215 = vmatpush1.bf16.msra.mxu0 0
  %1216 = vmatprep.subr.bf16.mxu0 0
  %1217 = vmatpush1.bf16.msra.mxu0 0
  %1218 = vmatprep.subr.bf16.mxu0 0
  %1219 = vmatpush1.bf16.msra.mxu0 %v586
  %1220 = vmatprep.subr.bf16.mxu0 0
  %1221 = vmatpush1.bf16.msra.mxu0 %v585
  %1222 = vmatprep.subr.bf16.mxu0 0
  %1223 = vmatpush2.bf16.msra.mxu0 0
  %1224 = vmatprep.subr.bf16.mxu0 0
  %1225 = vmatpush2.bf16.msra.mxu0 0
  %1226 = vmatprep.subr.bf16.mxu0 0
  %1227 = vmatpush2.bf16.msra.mxu0 0
  %1228 = vmatprep.subr.bf16.mxu0 0
  %1229 = vmatpush2.bf16.msra.mxu0 0
  %1230 = vmatprep.subr.bf16.mxu0 0
  %1231 = vmatpush2.bf16.msra.mxu0 0
  %1232 = vmatprep.subr.bf16.mxu0 0
  %1233 = vmatpush2.bf16.msra.mxu0 0
  %1234 = vmatprep.subr.bf16.mxu0 0
  %1235 = vmatpush2.bf16.msra.mxu0 0
  %1236 = vmatprep.subr.bf16.mxu0 0
  %1237 = vmatpush2.bf16.msra.mxu0 0
  %1238 = vmatprep.mubr.bf16.mxu0 0
  %1239 = vmatmul.mubr.bf16.gmra.mxu0 %v681
  %v1240 = vpop.f32.mrf.mxu0
  %v1241 = vadd.f32 0.0, %v1240
  %v1242 = vpop.f32.mrf.mxu0
  %v1243 = vpop.f32.mrf.mxu0
  %v1244 = vadd.f32 0.0, %v1243
  %v1245 = vpop.f32.mrf.mxu0
  %1246 = vmatprep.mubr.bf16.mxu0 0
  %1247 = vmatmul.mubr.bf16.gmra.mxu0 %v684
  %v1248 = vpop.f32.mrf.mxu0
  %v1249 = vadd.f32 0.0, %v1248
  %v1250 = vpop.f32.mrf.mxu0
  %v1251 = vpop.f32.mrf.mxu0
  %v1252 = vadd.f32 0.0, %v1251
  %v1253 = vpop.f32.mrf.mxu0
  %1254 = vdwg.mxu0
  %v1255 = vadd.f32 %v1202, %v1241
  %v1256 = vadd.f32 %v1203, %v1244
  %v1257 = vadd.f32 %v1204, %v1249
  %v1258 = vadd.f32 %v1205, %v1252
  %1259 = vmatprep.subr.bf16.mxu0 0
  %1260 = vmatpush1.bf16.msra.mxu0 0
  %1261 = vmatprep.subr.bf16.mxu0 0
  %1262 = vmatpush1.bf16.msra.mxu0 0
  %1263 = vmatprep.subr.bf16.mxu0 0
  %1264 = vmatpush1.bf16.msra.mxu0 0
  %1265 = vmatprep.subr.bf16.mxu0 0
  %1266 = vmatpush1.bf16.msra.mxu0 0
  %1267 = vmatprep.subr.bf16.mxu0 0
  %1268 = vmatpush1.bf16.msra.mxu0 0
  %1269 = vmatprep.subr.bf16.mxu0 0
  %1270 = vmatpush1.bf16.msra.mxu0 0
  %1271 = vmatprep.subr.bf16.mxu0 0
  %1272 = vmatpush1.bf16.msra.mxu0 %v677
  %1273 = vmatprep.subr.bf16.mxu0 0
  %1274 = vmatpush1.bf16.msra.mxu0 %v676
  %1275 = vmatprep.subr.bf16.mxu0 0
  %1276 = vmatpush2.bf16.msra.mxu0 0
  %1277 = vmatprep.subr.bf16.mxu0 0
  %1278 = vmatpush2.bf16.msra.mxu0 0
  %1279 = vmatprep.subr.bf16.mxu0 0
  %1280 = vmatpush2.bf16.msra.mxu0 0
  %1281 = vmatprep.subr.bf16.mxu0 0
  %1282 = vmatpush2.bf16.msra.mxu0 0
  %1283 = vmatprep.subr.bf16.mxu0 0
  %1284 = vmatpush2.bf16.msra.mxu0 0
  %1285 = vmatprep.subr.bf16.mxu0 0
  %1286 = vmatpush2.bf16.msra.mxu0 0
  %1287 = vmatprep.subr.bf16.mxu0 0
  %1288 = vmatpush2.bf16.msra.mxu0 0
  %1289 = vmatprep.subr.bf16.mxu0 0
  %1290 = vmatpush2.bf16.msra.mxu0 0
  %1291 = vmatprep.mubr.bf16.mxu0 0
  %1292 = vmatmul.mubr.bf16.gmra.mxu0 %v772
  %v1293 = vpop.f32.mrf.mxu0
  %v1294 = vadd.f32 0.0, %v1293
  %v1295 = vpop.f32.mrf.mxu0
  %v1296 = vpop.f32.mrf.mxu0
  %v1297 = vadd.f32 0.0, %v1296
  %v1298 = vpop.f32.mrf.mxu0
  %1299 = vmatprep.mubr.bf16.mxu0 0
  %1300 = vmatmul.mubr.bf16.gmra.mxu0 %v775
  %v1301 = vpop.f32.mrf.mxu0
  %v1302 = vadd.f32 0.0, %v1301
  %v1303 = vpop.f32.mrf.mxu0
  %v1304 = vpop.f32.mrf.mxu0
  %v1305 = vadd.f32 0.0, %v1304
  %v1306 = vpop.f32.mrf.mxu0
  %1307 = vdwg.mxu0
  %v1308 = vadd.f32 %v1255, %v1294
  %v1309 = vadd.f32 %v1256, %v1297
  %v1310 = vadd.f32 %v1257, %v1302
  %v1311 = vadd.f32 %v1258, %v1305
  %s1312 = scalar_lea.vmem %s0, 176
  %v1313 = vld [vmem:[%s1312] sm:$0xf]
  %v1314 = vld [vmem:[%s1312 + $0x4] sm:$0xf]
  %v1315 = vld [vmem:[%s1312 + $0x8] sm:$0xf]
  %v1316 = vld [vmem:[%s1312 + $0xc] sm:$0xf]
  %v1321 = vunpack.c.l.b16 %v1313
  %v1322 = vunpack.c.l.b16 %v1314
  %v1323 = vunpack.c.l.b16 %v1315
  %v1324 = vunpack.c.l.b16 %v1316
  %v1325 = vpack.c.b16 %v1322, %v1321
  %v1326 = vpack.c.b16 %v1324, %v1323
  %v1328 = vsel %vm60, %v1325, 0
  %v1331 = vsel %vm60, %v1326, 0
  %1333 = vmatprep.subr.bf16.mxu0 0
  %1334 = vmatpush1.bf16.msra.mxu0 0
  %1335 = vmatprep.subr.bf16.mxu0 0
  %1336 = vmatpush1.bf16.msra.mxu0 0
  %1337 = vmatprep.subr.bf16.mxu0 0
  %1338 = vmatpush1.bf16.msra.mxu0 0
  %1339 = vmatprep.subr.bf16.mxu0 0
  %1340 = vmatpush1.bf16.msra.mxu0 0
  %1341 = vmatprep.subr.bf16.mxu0 0
  %1342 = vmatpush1.bf16.msra.mxu0 0
  %1343 = vmatprep.subr.bf16.mxu0 0
  %1344 = vmatpush1.bf16.msra.mxu0 0
  %1345 = vmatprep.subr.bf16.mxu0 0
  %1346 = vmatpush1.bf16.msra.mxu0 %v768
  %1347 = vmatprep.subr.bf16.mxu0 0
  %1348 = vmatpush1.bf16.msra.mxu0 %v767
  %1349 = vmatprep.subr.bf16.mxu0 0
  %1350 = vmatpush2.bf16.msra.mxu0 0
  %1351 = vmatprep.subr.bf16.mxu0 0
  %1352 = vmatpush2.bf16.msra.mxu0 0
  %1353 = vmatprep.subr.bf16.mxu0 0
  %1354 = vmatpush2.bf16.msra.mxu0 0
  %1355 = vmatprep.subr.bf16.mxu0 0
  %1356 = vmatpush2.bf16.msra.mxu0 0
  %1357 = vmatprep.subr.bf16.mxu0 0
  %1358 = vmatpush2.bf16.msra.mxu0 0
  %1359 = vmatprep.subr.bf16.mxu0 0
  %1360 = vmatpush2.bf16.msra.mxu0 0
  %1361 = vmatprep.subr.bf16.mxu0 0
  %1362 = vmatpush2.bf16.msra.mxu0 0
  %1363 = vmatprep.subr.bf16.mxu0 0
  %1364 = vmatpush2.bf16.msra.mxu0 0
  %1365 = vmatprep.mubr.bf16.mxu0 0
  %1366 = vmatmul.mubr.bf16.gmra.mxu0 %v1328
  %v1367 = vpop.f32.mrf.mxu0
  %v1368 = vadd.f32 0.0, %v1367
  %v1369 = vpop.f32.mrf.mxu0
  %v1370 = vpop.f32.mrf.mxu0
  %v1371 = vadd.f32 0.0, %v1370
  %v1372 = vpop.f32.mrf.mxu0
  %1373 = vmatprep.mubr.bf16.mxu0 0
  %1374 = vmatmul.mubr.bf16.gmra.mxu0 %v1331
  %v1375 = vpop.f32.mrf.mxu0
  %v1376 = vadd.f32 0.0, %v1375
  %v1377 = vpop.f32.mrf.mxu0
  %v1378 = vpop.f32.mrf.mxu0
  %v1379 = vadd.f32 0.0, %v1378
  %v1380 = vpop.f32.mrf.mxu0
  %1381 = vdwg.mxu0
  %v1382 = vadd.f32 %v1308, %v1368
  %v1383 = vadd.f32 %v1309, %v1371
  %v1384 = vadd.f32 %v1310, %v1376
  %v1385 = vadd.f32 %v1311, %v1379
  %v1386 = vmul.f32 %v1382, %v834
  %v1387 = vmul.f32 %v1383, %v834
  %v1388 = vmul.f32 %v1384, %v834
  %v1389 = vmul.f32 %v1385, %v834
  %v1390 = vadd.f32 %v1386, %v844
  %v1391 = vadd.f32 %v1387, %v844
  %v1392 = vadd.f32 %v1388, %v844
  %v1393 = vadd.f32 %v1389, %v844
  %v1394 = vmax.f32 %v1390, 0.0
  %v1395 = vmax.f32 %v1391, 0.0
  %v1396 = vmax.f32 %v1392, 0.0
  %v1397 = vmax.f32 %v1393, 0.0
  %v1398 = vmax.f32 %v850, %v1394
  %v1399 = vmax.f32 %v851, %v1395
  %v1400 = vmax.f32 %v852, %v1396
  %v1401 = vmax.f32 %v853, %v1397
  %1402 = vmatprep.subr.bf16.mxu0 0
  %1403 = vmatpush1.bf16.msra.mxu0 0
  %1404 = vmatprep.subr.bf16.mxu0 0
  %1405 = vmatpush1.bf16.msra.mxu0 0
  %1406 = vmatprep.subr.bf16.mxu0 0
  %1407 = vmatpush1.bf16.msra.mxu0 0
  %1408 = vmatprep.subr.bf16.mxu0 0
  %1409 = vmatpush1.bf16.msra.mxu0 0
  %1410 = vmatprep.subr.bf16.mxu0 0
  %1411 = vmatpush1.bf16.msra.mxu0 0
  %1412 = vmatprep.subr.bf16.mxu0 0
  %1413 = vmatpush1.bf16.msra.mxu0 0
  %1414 = vmatprep.subr.bf16.mxu0 0
  %1415 = vmatpush1.bf16.msra.mxu0 %v57
  %1416 = vmatprep.subr.bf16.mxu0 0
  %1417 = vmatpush1.bf16.msra.mxu0 %v56
  %1418 = vmatprep.subr.bf16.mxu0 0
  %1419 = vmatpush2.bf16.msra.mxu0 0
  %1420 = vmatprep.subr.bf16.mxu0 0
  %1421 = vmatpush2.bf16.msra.mxu0 0
  %1422 = vmatprep.subr.bf16.mxu0 0
  %1423 = vmatpush2.bf16.msra.mxu0 0
  %1424 = vmatprep.subr.bf16.mxu0 0
  %1425 = vmatpush2.bf16.msra.mxu0 0
  %1426 = vmatprep.subr.bf16.mxu0 0
  %1427 = vmatpush2.bf16.msra.mxu0 0
  %1428 = vmatprep.subr.bf16.mxu0 0
  %1429 = vmatpush2.bf16.msra.mxu0 0
  %1430 = vmatprep.subr.bf16.mxu0 0
  %1431 = vmatpush2.bf16.msra.mxu0 0
  %1432 = vmatprep.subr.bf16.mxu0 0
  %1433 = vmatpush2.bf16.msra.mxu0 0
  %1434 = vmatprep.mubr.bf16.mxu0 0
  %1435 = vmatmul.mubr.bf16.gmra.mxu0 %v408
  %v1436 = vpop.f32.mrf.mxu0
  %v1437 = vadd.f32 0.0, %v1436
  %v1438 = vpop.f32.mrf.mxu0
  %v1439 = vpop.f32.mrf.mxu0
  %v1440 = vadd.f32 0.0, %v1439
  %v1441 = vpop.f32.mrf.mxu0
  %1442 = vmatprep.mubr.bf16.mxu0 0
  %1443 = vmatmul.mubr.bf16.gmra.mxu0 %v411
  %v1444 = vpop.f32.mrf.mxu0
  %v1445 = vadd.f32 0.0, %v1444
  %v1446 = vpop.f32.mrf.mxu0
  %v1447 = vpop.f32.mrf.mxu0
  %v1448 = vadd.f32 0.0, %v1447
  %v1449 = vpop.f32.mrf.mxu0
  %1450 = vdwg.mxu0
  %1451 = vmatprep.subr.bf16.mxu0 0
  %1452 = vmatpush1.bf16.msra.mxu0 0
  %1453 = vmatprep.subr.bf16.mxu0 0
  %1454 = vmatpush1.bf16.msra.mxu0 0
  %1455 = vmatprep.subr.bf16.mxu0 0
  %1456 = vmatpush1.bf16.msra.mxu0 0
  %1457 = vmatprep.subr.bf16.mxu0 0
  %1458 = vmatpush1.bf16.msra.mxu0 0
  %1459 = vmatprep.subr.bf16.mxu0 0
  %1460 = vmatpush1.bf16.msra.mxu0 0
  %1461 = vmatprep.subr.bf16.mxu0 0
  %1462 = vmatpush1.bf16.msra.mxu0 0
  %1463 = vmatprep.subr.bf16.mxu0 0
  %1464 = vmatpush1.bf16.msra.mxu0 %v135
  %1465 = vmatprep.subr.bf16.mxu0 0
  %1466 = vmatpush1.bf16.msra.mxu0 %v134
  %1467 = vmatprep.subr.bf16.mxu0 0
  %1468 = vmatpush2.bf16.msra.mxu0 0
  %1469 = vmatprep.subr.bf16.mxu0 0
  %1470 = vmatpush2.bf16.msra.mxu0 0
  %1471 = vmatprep.subr.bf16.mxu0 0
  %1472 = vmatpush2.bf16.msra.mxu0 0
  %1473 = vmatprep.subr.bf16.mxu0 0
  %1474 = vmatpush2.bf16.msra.mxu0 0
  %1475 = vmatprep.subr.bf16.mxu0 0
  %1476 = vmatpush2.bf16.msra.mxu0 0
  %1477 = vmatprep.subr.bf16.mxu0 0
  %1478 = vmatpush2.bf16.msra.mxu0 0
  %1479 = vmatprep.subr.bf16.mxu0 0
  %1480 = vmatpush2.bf16.msra.mxu0 0
  %1481 = vmatprep.subr.bf16.mxu0 0
  %1482 = vmatpush2.bf16.msra.mxu0 0
  %1483 = vmatprep.mubr.bf16.mxu0 0
  %1484 = vmatmul.mubr.bf16.gmra.mxu0 %v317
  %v1485 = vpop.f32.mrf.mxu0
  %v1486 = vadd.f32 %v1437, %v1485
  %v1487 = vpop.f32.mrf.mxu0
  %v1488 = vpop.f32.mrf.mxu0
  %v1489 = vadd.f32 %v1440, %v1488
  %v1490 = vpop.f32.mrf.mxu0
  %1491 = vmatprep.mubr.bf16.mxu0 0
  %1492 = vmatmul.mubr.bf16.gmra.mxu0 %v320
  %v1493 = vpop.f32.mrf.mxu0
  %v1494 = vadd.f32 %v1445, %v1493
  %v1495 = vpop.f32.mrf.mxu0
  %v1496 = vpop.f32.mrf.mxu0
  %v1497 = vadd.f32 %v1448, %v1496
  %v1498 = vpop.f32.mrf.mxu0
  %1499 = vdwg.mxu0
  %1500 = vmatprep.subr.bf16.mxu0 0
  %1501 = vmatpush1.bf16.msra.mxu0 0
  %1502 = vmatprep.subr.bf16.mxu0 0
  %1503 = vmatpush1.bf16.msra.mxu0 0
  %1504 = vmatprep.subr.bf16.mxu0 0
  %1505 = vmatpush1.bf16.msra.mxu0 0
  %1506 = vmatprep.subr.bf16.mxu0 0
  %1507 = vmatpush1.bf16.msra.mxu0 0
  %1508 = vmatprep.subr.bf16.mxu0 0
  %1509 = vmatpush1.bf16.msra.mxu0 0
  %1510 = vmatprep.subr.bf16.mxu0 0
  %1511 = vmatpush1.bf16.msra.mxu0 0
  %1512 = vmatprep.subr.bf16.mxu0 0
  %1513 = vmatpush1.bf16.msra.mxu0 %v222
  %1514 = vmatprep.subr.bf16.mxu0 0
  %1515 = vmatpush1.bf16.msra.mxu0 %v221
  %1516 = vmatprep.subr.bf16.mxu0 0
  %1517 = vmatpush2.bf16.msra.mxu0 0
  %1518 = vmatprep.subr.bf16.mxu0 0
  %1519 = vmatpush2.bf16.msra.mxu0 0
  %1520 = vmatprep.subr.bf16.mxu0 0
  %1521 = vmatpush2.bf16.msra.mxu0 0
  %1522 = vmatprep.subr.bf16.mxu0 0
  %1523 = vmatpush2.bf16.msra.mxu0 0
  %1524 = vmatprep.subr.bf16.mxu0 0
  %1525 = vmatpush2.bf16.msra.mxu0 0
  %1526 = vmatprep.subr.bf16.mxu0 0
  %1527 = vmatpush2.bf16.msra.mxu0 0
  %1528 = vmatprep.subr.bf16.mxu0 0
  %1529 = vmatpush2.bf16.msra.mxu0 0
  %1530 = vmatprep.subr.bf16.mxu0 0
  %1531 = vmatpush2.bf16.msra.mxu0 0
  %1532 = vmatprep.mubr.bf16.mxu0 0
  %1533 = vmatmul.mubr.bf16.gmra.mxu0 %v499
  %v1534 = vpop.f32.mrf.mxu0
  %v1535 = vadd.f32 0.0, %v1534
  %v1536 = vpop.f32.mrf.mxu0
  %v1537 = vpop.f32.mrf.mxu0
  %v1538 = vadd.f32 0.0, %v1537
  %v1539 = vpop.f32.mrf.mxu0
  %1540 = vmatprep.mubr.bf16.mxu0 0
  %1541 = vmatmul.mubr.bf16.gmra.mxu0 %v502
  %v1542 = vpop.f32.mrf.mxu0
  %v1543 = vadd.f32 0.0, %v1542
  %v1544 = vpop.f32.mrf.mxu0
  %v1545 = vpop.f32.mrf.mxu0
  %v1546 = vadd.f32 0.0, %v1545
  %v1547 = vpop.f32.mrf.mxu0
  %1548 = vdwg.mxu0
  %v1549 = vadd.f32 %v1486, %v1535
  %v1550 = vadd.f32 %v1489, %v1538
  %v1551 = vadd.f32 %v1494, %v1543
  %v1552 = vadd.f32 %v1497, %v1546
  %1553 = vmatprep.subr.bf16.mxu0 0
  %1554 = vmatpush1.bf16.msra.mxu0 0
  %1555 = vmatprep.subr.bf16.mxu0 0
  %1556 = vmatpush1.bf16.msra.mxu0 0
  %1557 = vmatprep.subr.bf16.mxu0 0
  %1558 = vmatpush1.bf16.msra.mxu0 0
  %1559 = vmatprep.subr.bf16.mxu0 0
  %1560 = vmatpush1.bf16.msra.mxu0 0
  %1561 = vmatprep.subr.bf16.mxu0 0
  %1562 = vmatpush1.bf16.msra.mxu0 0
  %1563 = vmatprep.subr.bf16.mxu0 0
  %1564 = vmatpush1.bf16.msra.mxu0 0
  %1565 = vmatprep.subr.bf16.mxu0 0
  %1566 = vmatpush1.bf16.msra.mxu0 %v313
  %1567 = vmatprep.subr.bf16.mxu0 0
  %1568 = vmatpush1.bf16.msra.mxu0 %v312
  %1569 = vmatprep.subr.bf16.mxu0 0
  %1570 = vmatpush2.bf16.msra.mxu0 0
  %1571 = vmatprep.subr.bf16.mxu0 0
  %1572 = vmatpush2.bf16.msra.mxu0 0
  %1573 = vmatprep.subr.bf16.mxu0 0
  %1574 = vmatpush2.bf16.msra.mxu0 0
  %1575 = vmatprep.subr.bf16.mxu0 0
  %1576 = vmatpush2.bf16.msra.mxu0 0
  %1577 = vmatprep.subr.bf16.mxu0 0
  %1578 = vmatpush2.bf16.msra.mxu0 0
  %1579 = vmatprep.subr.bf16.mxu0 0
  %1580 = vmatpush2.bf16.msra.mxu0 0
  %1581 = vmatprep.subr.bf16.mxu0 0
  %1582 = vmatpush2.bf16.msra.mxu0 0
  %1583 = vmatprep.subr.bf16.mxu0 0
  %1584 = vmatpush2.bf16.msra.mxu0 0
  %1585 = vmatprep.mubr.bf16.mxu0 0
  %1586 = vmatmul.mubr.bf16.gmra.mxu0 %v590
  %v1587 = vpop.f32.mrf.mxu0
  %v1588 = vadd.f32 0.0, %v1587
  %v1589 = vpop.f32.mrf.mxu0
  %v1590 = vpop.f32.mrf.mxu0
  %v1591 = vadd.f32 0.0, %v1590
  %v1592 = vpop.f32.mrf.mxu0
  %1593 = vmatprep.mubr.bf16.mxu0 0
  %1594 = vmatmul.mubr.bf16.gmra.mxu0 %v593
  %v1595 = vpop.f32.mrf.mxu0
  %v1596 = vadd.f32 0.0, %v1595
  %v1597 = vpop.f32.mrf.mxu0
  %v1598 = vpop.f32.mrf.mxu0
  %v1599 = vadd.f32 0.0, %v1598
  %v1600 = vpop.f32.mrf.mxu0
  %1601 = vdwg.mxu0
  %v1602 = vadd.f32 %v1549, %v1588
  %v1603 = vadd.f32 %v1550, %v1591
  %v1604 = vadd.f32 %v1551, %v1596
  %v1605 = vadd.f32 %v1552, %v1599
  %1606 = vmatprep.subr.bf16.mxu0 0
  %1607 = vmatpush1.bf16.msra.mxu0 0
  %1608 = vmatprep.subr.bf16.mxu0 0
  %1609 = vmatpush1.bf16.msra.mxu0 0
  %1610 = vmatprep.subr.bf16.mxu0 0
  %1611 = vmatpush1.bf16.msra.mxu0 0
  %1612 = vmatprep.subr.bf16.mxu0 0
  %1613 = vmatpush1.bf16.msra.mxu0 0
  %1614 = vmatprep.subr.bf16.mxu0 0
  %1615 = vmatpush1.bf16.msra.mxu0 0
  %1616 = vmatprep.subr.bf16.mxu0 0
  %1617 = vmatpush1.bf16.msra.mxu0 0
  %1618 = vmatprep.subr.bf16.mxu0 0
  %1619 = vmatpush1.bf16.msra.mxu0 %v404
  %1620 = vmatprep.subr.bf16.mxu0 0
  %1621 = vmatpush1.bf16.msra.mxu0 %v403
  %1622 = vmatprep.subr.bf16.mxu0 0
  %1623 = vmatpush2.bf16.msra.mxu0 0
  %1624 = vmatprep.subr.bf16.mxu0 0
  %1625 = vmatpush2.bf16.msra.mxu0 0
  %1626 = vmatprep.subr.bf16.mxu0 0
  %1627 = vmatpush2.bf16.msra.mxu0 0
  %1628 = vmatprep.subr.bf16.mxu0 0
  %1629 = vmatpush2.bf16.msra.mxu0 0
  %1630 = vmatprep.subr.bf16.mxu0 0
  %1631 = vmatpush2.bf16.msra.mxu0 0
  %1632 = vmatprep.subr.bf16.mxu0 0
  %1633 = vmatpush2.bf16.msra.mxu0 0
  %1634 = vmatprep.subr.bf16.mxu0 0
  %1635 = vmatpush2.bf16.msra.mxu0 0
  %1636 = vmatprep.subr.bf16.mxu0 0
  %1637 = vmatpush2.bf16.msra.mxu0 0
  %1638 = vmatprep.mubr.bf16.mxu0 0
  %1639 = vmatmul.mubr.bf16.gmra.mxu0 %v681
  %v1640 = vpop.f32.mrf.mxu0
  %v1641 = vadd.f32 0.0, %v1640
  %v1642 = vpop.f32.mrf.mxu0
  %v1643 = vpop.f32.mrf.mxu0
  %v1644 = vadd.f32 0.0, %v1643
  %v1645 = vpop.f32.mrf.mxu0
  %1646 = vmatprep.mubr.bf16.mxu0 0
  %1647 = vmatmul.mubr.bf16.gmra.mxu0 %v684
  %v1648 = vpop.f32.mrf.mxu0
  %v1649 = vadd.f32 0.0, %v1648
  %v1650 = vpop.f32.mrf.mxu0
  %v1651 = vpop.f32.mrf.mxu0
  %v1652 = vadd.f32 0.0, %v1651
  %v1653 = vpop.f32.mrf.mxu0
  %1654 = vdwg.mxu0
  %v1655 = vadd.f32 %v1602, %v1641
  %v1656 = vadd.f32 %v1603, %v1644
  %v1657 = vadd.f32 %v1604, %v1649
  %v1658 = vadd.f32 %v1605, %v1652
  %1659 = vmatprep.subr.bf16.mxu0 0
  %1660 = vmatpush1.bf16.msra.mxu0 0
  %1661 = vmatprep.subr.bf16.mxu0 0
  %1662 = vmatpush1.bf16.msra.mxu0 0
  %1663 = vmatprep.subr.bf16.mxu0 0
  %1664 = vmatpush1.bf16.msra.mxu0 0
  %1665 = vmatprep.subr.bf16.mxu0 0
  %1666 = vmatpush1.bf16.msra.mxu0 0
  %1667 = vmatprep.subr.bf16.mxu0 0
  %1668 = vmatpush1.bf16.msra.mxu0 0
  %1669 = vmatprep.subr.bf16.mxu0 0
  %1670 = vmatpush1.bf16.msra.mxu0 0
  %1671 = vmatprep.subr.bf16.mxu0 0
  %1672 = vmatpush1.bf16.msra.mxu0 %v495
  %1673 = vmatprep.subr.bf16.mxu0 0
  %1674 = vmatpush1.bf16.msra.mxu0 %v494
  %1675 = vmatprep.subr.bf16.mxu0 0
  %1676 = vmatpush2.bf16.msra.mxu0 0
  %1677 = vmatprep.subr.bf16.mxu0 0
  %1678 = vmatpush2.bf16.msra.mxu0 0
  %1679 = vmatprep.subr.bf16.mxu0 0
  %1680 = vmatpush2.bf16.msra.mxu0 0
  %1681 = vmatprep.subr.bf16.mxu0 0
  %1682 = vmatpush2.bf16.msra.mxu0 0
  %1683 = vmatprep.subr.bf16.mxu0 0
  %1684 = vmatpush2.bf16.msra.mxu0 0
  %1685 = vmatprep.subr.bf16.mxu0 0
  %1686 = vmatpush2.bf16.msra.mxu0 0
  %1687 = vmatprep.subr.bf16.mxu0 0
  %1688 = vmatpush2.bf16.msra.mxu0 0
  %1689 = vmatprep.subr.bf16.mxu0 0
  %1690 = vmatpush2.bf16.msra.mxu0 0
  %1691 = vmatprep.mubr.bf16.mxu0 0
  %1692 = vmatmul.mubr.bf16.gmra.mxu0 %v772
  %v1693 = vpop.f32.mrf.mxu0
  %v1694 = vadd.f32 0.0, %v1693
  %v1695 = vpop.f32.mrf.mxu0
  %v1696 = vpop.f32.mrf.mxu0
  %v1697 = vadd.f32 0.0, %v1696
  %v1698 = vpop.f32.mrf.mxu0
  %1699 = vmatprep.mubr.bf16.mxu0 0
  %1700 = vmatmul.mubr.bf16.gmra.mxu0 %v775
  %v1701 = vpop.f32.mrf.mxu0
  %v1702 = vadd.f32 0.0, %v1701
  %v1703 = vpop.f32.mrf.mxu0
  %v1704 = vpop.f32.mrf.mxu0
  %v1705 = vadd.f32 0.0, %v1704
  %v1706 = vpop.f32.mrf.mxu0
  %1707 = vdwg.mxu0
  %v1708 = vadd.f32 %v1655, %v1694
  %v1709 = vadd.f32 %v1656, %v1697
  %v1710 = vadd.f32 %v1657, %v1702
  %v1711 = vadd.f32 %v1658, %v1705
  %s1712 = scalar_lea.vmem %s0, 192
  %v1713 = vld [vmem:[%s1712] sm:$0xf]
  %v1714 = vld [vmem:[%s1712 + $0x4] sm:$0xf]
  %v1715 = vld [vmem:[%s1712 + $0x8] sm:$0xf]
  %v1716 = vld [vmem:[%s1712 + $0xc] sm:$0xf]
  %v1721 = vunpack.c.l.b16 %v1713
  %v1722 = vunpack.c.l.b16 %v1714
  %v1723 = vunpack.c.l.b16 %v1715
  %v1724 = vunpack.c.l.b16 %v1716
  %v1725 = vpack.c.b16 %v1722, %v1721
  %v1726 = vpack.c.b16 %v1724, %v1723
  %v1728 = vsel %vm60, %v1725, 0
  %v1731 = vsel %vm60, %v1726, 0
  %1733 = vmatprep.subr.bf16.mxu0 0
  %1734 = vmatpush1.bf16.msra.mxu0 0
  %1735 = vmatprep.subr.bf16.mxu0 0
  %1736 = vmatpush1.bf16.msra.mxu0 0
  %1737 = vmatprep.subr.bf16.mxu0 0
  %1738 = vmatpush1.bf16.msra.mxu0 0
  %1739 = vmatprep.subr.bf16.mxu0 0
  %1740 = vmatpush1.bf16.msra.mxu0 0
  %1741 = vmatprep.subr.bf16.mxu0 0
  %1742 = vmatpush1.bf16.msra.mxu0 0
  %1743 = vmatprep.subr.bf16.mxu0 0
  %1744 = vmatpush1.bf16.msra.mxu0 0
  %1745 = vmatprep.subr.bf16.mxu0 0
  %1746 = vmatpush1.bf16.msra.mxu0 %v586
  %1747 = vmatprep.subr.bf16.mxu0 0
  %1748 = vmatpush1.bf16.msra.mxu0 %v585
  %1749 = vmatprep.subr.bf16.mxu0 0
  %1750 = vmatpush2.bf16.msra.mxu0 0
  %1751 = vmatprep.subr.bf16.mxu0 0
  %1752 = vmatpush2.bf16.msra.mxu0 0
  %1753 = vmatprep.subr.bf16.mxu0 0
  %1754 = vmatpush2.bf16.msra.mxu0 0
  %1755 = vmatprep.subr.bf16.mxu0 0
  %1756 = vmatpush2.bf16.msra.mxu0 0
  %1757 = vmatprep.subr.bf16.mxu0 0
  %1758 = vmatpush2.bf16.msra.mxu0 0
  %1759 = vmatprep.subr.bf16.mxu0 0
  %1760 = vmatpush2.bf16.msra.mxu0 0
  %1761 = vmatprep.subr.bf16.mxu0 0
  %1762 = vmatpush2.bf16.msra.mxu0 0
  %1763 = vmatprep.subr.bf16.mxu0 0
  %1764 = vmatpush2.bf16.msra.mxu0 0
  %1765 = vmatprep.mubr.bf16.mxu0 0
  %1766 = vmatmul.mubr.bf16.gmra.mxu0 %v1728
  %v1767 = vpop.f32.mrf.mxu0
  %v1768 = vadd.f32 0.0, %v1767
  %v1769 = vpop.f32.mrf.mxu0
  %v1770 = vpop.f32.mrf.mxu0
  %v1771 = vadd.f32 0.0, %v1770
  %v1772 = vpop.f32.mrf.mxu0
  %1773 = vmatprep.mubr.bf16.mxu0 0
  %1774 = vmatmul.mubr.bf16.gmra.mxu0 %v1731
  %v1775 = vpop.f32.mrf.mxu0
  %v1776 = vadd.f32 0.0, %v1775
  %v1777 = vpop.f32.mrf.mxu0
  %v1778 = vpop.f32.mrf.mxu0
  %v1779 = vadd.f32 0.0, %v1778
  %v1780 = vpop.f32.mrf.mxu0
  %1781 = vdwg.mxu0
  %v1782 = vadd.f32 %v1708, %v1768
  %v1783 = vadd.f32 %v1709, %v1771
  %v1784 = vadd.f32 %v1710, %v1776
  %v1785 = vadd.f32 %v1711, %v1779
  %s1786 = scalar_lea.vmem %s0, 208
  %v1787 = vld [vmem:[%s1786] sm:$0xf]
  %v1788 = vld [vmem:[%s1786 + $0x4] sm:$0xf]
  %v1789 = vld [vmem:[%s1786 + $0x8] sm:$0xf]
  %v1790 = vld [vmem:[%s1786 + $0xc] sm:$0xf]
  %v1795 = vunpack.c.l.b16 %v1787
  %v1796 = vunpack.c.l.b16 %v1788
  %v1797 = vunpack.c.l.b16 %v1789
  %v1798 = vunpack.c.l.b16 %v1790
  %v1799 = vpack.c.b16 %v1796, %v1795
  %v1800 = vpack.c.b16 %v1798, %v1797
  %v1802 = vsel %vm60, %v1799, 0
  %v1805 = vsel %vm60, %v1800, 0
  %1807 = vmatprep.subr.bf16.mxu0 0
  %1808 = vmatpush1.bf16.msra.mxu0 0
  %1809 = vmatprep.subr.bf16.mxu0 0
  %1810 = vmatpush1.bf16.msra.mxu0 0
  %1811 = vmatprep.subr.bf16.mxu0 0
  %1812 = vmatpush1.bf16.msra.mxu0 0
  %1813 = vmatprep.subr.bf16.mxu0 0
  %1814 = vmatpush1.bf16.msra.mxu0 0
  %1815 = vmatprep.subr.bf16.mxu0 0
  %1816 = vmatpush1.bf16.msra.mxu0 0
  %1817 = vmatprep.subr.bf16.mxu0 0
  %1818 = vmatpush1.bf16.msra.mxu0 0
  %1819 = vmatprep.subr.bf16.mxu0 0
  %1820 = vmatpush1.bf16.msra.mxu0 %v677
  %1821 = vmatprep.subr.bf16.mxu0 0
  %1822 = vmatpush1.bf16.msra.mxu0 %v676
  %1823 = vmatprep.subr.bf16.mxu0 0
  %1824 = vmatpush2.bf16.msra.mxu0 0
  %1825 = vmatprep.subr.bf16.mxu0 0
  %1826 = vmatpush2.bf16.msra.mxu0 0
  %1827 = vmatprep.subr.bf16.mxu0 0
  %1828 = vmatpush2.bf16.msra.mxu0 0
  %1829 = vmatprep.subr.bf16.mxu0 0
  %1830 = vmatpush2.bf16.msra.mxu0 0
  %1831 = vmatprep.subr.bf16.mxu0 0
  %1832 = vmatpush2.bf16.msra.mxu0 0
  %1833 = vmatprep.subr.bf16.mxu0 0
  %1834 = vmatpush2.bf16.msra.mxu0 0
  %1835 = vmatprep.subr.bf16.mxu0 0
  %1836 = vmatpush2.bf16.msra.mxu0 0
  %1837 = vmatprep.subr.bf16.mxu0 0
  %1838 = vmatpush2.bf16.msra.mxu0 0
  %1839 = vmatprep.mubr.bf16.mxu0 0
  %1840 = vmatmul.mubr.bf16.gmra.mxu0 %v1802
  %v1841 = vpop.f32.mrf.mxu0
  %v1842 = vadd.f32 0.0, %v1841
  %v1843 = vpop.f32.mrf.mxu0
  %v1844 = vpop.f32.mrf.mxu0
  %v1845 = vadd.f32 0.0, %v1844
  %v1846 = vpop.f32.mrf.mxu0
  %1847 = vmatprep.mubr.bf16.mxu0 0
  %1848 = vmatmul.mubr.bf16.gmra.mxu0 %v1805
  %v1849 = vpop.f32.mrf.mxu0
  %v1850 = vadd.f32 0.0, %v1849
  %v1851 = vpop.f32.mrf.mxu0
  %v1852 = vpop.f32.mrf.mxu0
  %v1853 = vadd.f32 0.0, %v1852
  %v1854 = vpop.f32.mrf.mxu0
  %1855 = vdwg.mxu0
  %v1856 = vadd.f32 %v1782, %v1842
  %v1857 = vadd.f32 %v1783, %v1845
  %v1858 = vadd.f32 %v1784, %v1850
  %v1859 = vadd.f32 %v1785, %v1853
  %s1860 = scalar_lea.vmem %s0, 224
  %v1861 = vld [vmem:[%s1860] sm:$0xf]
  %v1862 = vld [vmem:[%s1860 + $0x4] sm:$0xf]
  %v1863 = vld [vmem:[%s1860 + $0x8] sm:$0xf]
  %v1864 = vld [vmem:[%s1860 + $0xc] sm:$0xf]
  %v1869 = vunpack.c.l.b16 %v1861
  %v1870 = vunpack.c.l.b16 %v1862
  %v1871 = vunpack.c.l.b16 %v1863
  %v1872 = vunpack.c.l.b16 %v1864
  %v1873 = vpack.c.b16 %v1870, %v1869
  %v1874 = vpack.c.b16 %v1872, %v1871
  %v1876 = vsel %vm60, %v1873, 0
  %v1879 = vsel %vm60, %v1874, 0
  %1881 = vmatprep.subr.bf16.mxu0 0
  %1882 = vmatpush1.bf16.msra.mxu0 0
  %1883 = vmatprep.subr.bf16.mxu0 0
  %1884 = vmatpush1.bf16.msra.mxu0 0
  %1885 = vmatprep.subr.bf16.mxu0 0
  %1886 = vmatpush1.bf16.msra.mxu0 0
  %1887 = vmatprep.subr.bf16.mxu0 0
  %1888 = vmatpush1.bf16.msra.mxu0 0
  %1889 = vmatprep.subr.bf16.mxu0 0
  %1890 = vmatpush1.bf16.msra.mxu0 0
  %1891 = vmatprep.subr.bf16.mxu0 0
  %1892 = vmatpush1.bf16.msra.mxu0 0
  %1893 = vmatprep.subr.bf16.mxu0 0
  %1894 = vmatpush1.bf16.msra.mxu0 %v768
  %1895 = vmatprep.subr.bf16.mxu0 0
  %1896 = vmatpush1.bf16.msra.mxu0 %v767
  %1897 = vmatprep.subr.bf16.mxu0 0
  %1898 = vmatpush2.bf16.msra.mxu0 0
  %1899 = vmatprep.subr.bf16.mxu0 0
  %1900 = vmatpush2.bf16.msra.mxu0 0
  %1901 = vmatprep.subr.bf16.mxu0 0
  %1902 = vmatpush2.bf16.msra.mxu0 0
  %1903 = vmatprep.subr.bf16.mxu0 0
  %1904 = vmatpush2.bf16.msra.mxu0 0
  %1905 = vmatprep.subr.bf16.mxu0 0
  %1906 = vmatpush2.bf16.msra.mxu0 0
  %1907 = vmatprep.subr.bf16.mxu0 0
  %1908 = vmatpush2.bf16.msra.mxu0 0
  %1909 = vmatprep.subr.bf16.mxu0 0
  %1910 = vmatpush2.bf16.msra.mxu0 0
  %1911 = vmatprep.subr.bf16.mxu0 0
  %1912 = vmatpush2.bf16.msra.mxu0 0
  %1913 = vmatprep.mubr.bf16.mxu0 0
  %1914 = vmatmul.mubr.bf16.gmra.mxu0 %v1876
  %v1915 = vpop.f32.mrf.mxu0
  %v1916 = vadd.f32 0.0, %v1915
  %v1917 = vpop.f32.mrf.mxu0
  %v1918 = vpop.f32.mrf.mxu0
  %v1919 = vadd.f32 0.0, %v1918
  %v1920 = vpop.f32.mrf.mxu0
  %1921 = vmatprep.mubr.bf16.mxu0 0
  %1922 = vmatmul.mubr.bf16.gmra.mxu0 %v1879
  %v1923 = vpop.f32.mrf.mxu0
  %v1924 = vadd.f32 0.0, %v1923
  %v1925 = vpop.f32.mrf.mxu0
  %v1926 = vpop.f32.mrf.mxu0
  %v1927 = vadd.f32 0.0, %v1926
  %v1928 = vpop.f32.mrf.mxu0
  %1929 = vdwg.mxu0
  %v1930 = vadd.f32 %v1856, %v1916
  %v1931 = vadd.f32 %v1857, %v1919
  %v1932 = vadd.f32 %v1858, %v1924
  %v1933 = vadd.f32 %v1859, %v1927
  %v1934 = vmul.f32 %v1930, %v834
  %v1935 = vmul.f32 %v1931, %v834
  %v1936 = vmul.f32 %v1932, %v834
  %v1937 = vmul.f32 %v1933, %v834
  %v1938 = vadd.f32 %v1934, %v844
  %v1939 = vadd.f32 %v1935, %v844
  %v1940 = vadd.f32 %v1936, %v844
  %v1941 = vadd.f32 %v1937, %v844
  %v1942 = vmax.f32 %v1938, 0.0
  %v1943 = vmax.f32 %v1939, 0.0
  %v1944 = vmax.f32 %v1940, 0.0
  %v1945 = vmax.f32 %v1941, 0.0
  %v1946 = vmax.f32 %v1398, %v1942
  %v1947 = vmax.f32 %v1399, %v1943
  %v1948 = vmax.f32 %v1400, %v1944
  %v1949 = vmax.f32 %v1401, %v1945
  %1950 = vmatprep.subr.bf16.mxu0 0
  %1951 = vmatpush1.bf16.msra.mxu0 0
  %1952 = vmatprep.subr.bf16.mxu0 0
  %1953 = vmatpush1.bf16.msra.mxu0 0
  %1954 = vmatprep.subr.bf16.mxu0 0
  %1955 = vmatpush1.bf16.msra.mxu0 0
  %1956 = vmatprep.subr.bf16.mxu0 0
  %1957 = vmatpush1.bf16.msra.mxu0 0
  %1958 = vmatprep.subr.bf16.mxu0 0
  %1959 = vmatpush1.bf16.msra.mxu0 0
  %1960 = vmatprep.subr.bf16.mxu0 0
  %1961 = vmatpush1.bf16.msra.mxu0 0
  %1962 = vmatprep.subr.bf16.mxu0 0
  %1963 = vmatpush1.bf16.msra.mxu0 %v57
  %1964 = vmatprep.subr.bf16.mxu0 0
  %1965 = vmatpush1.bf16.msra.mxu0 %v56
  %1966 = vmatprep.subr.bf16.mxu0 0
  %1967 = vmatpush2.bf16.msra.mxu0 0
  %1968 = vmatprep.subr.bf16.mxu0 0
  %1969 = vmatpush2.bf16.msra.mxu0 0
  %1970 = vmatprep.subr.bf16.mxu0 0
  %1971 = vmatpush2.bf16.msra.mxu0 0
  %1972 = vmatprep.subr.bf16.mxu0 0
  %1973 = vmatpush2.bf16.msra.mxu0 0
  %1974 = vmatprep.subr.bf16.mxu0 0
  %1975 = vmatpush2.bf16.msra.mxu0 0
  %1976 = vmatprep.subr.bf16.mxu0 0
  %1977 = vmatpush2.bf16.msra.mxu0 0
  %1978 = vmatprep.subr.bf16.mxu0 0
  %1979 = vmatpush2.bf16.msra.mxu0 0
  %1980 = vmatprep.subr.bf16.mxu0 0
  %1981 = vmatpush2.bf16.msra.mxu0 0
  %1982 = vmatprep.mubr.bf16.mxu0 0
  %1983 = vmatmul.mubr.bf16.gmra.mxu0 %v499
  %v1984 = vpop.f32.mrf.mxu0
  %v1985 = vadd.f32 0.0, %v1984
  %v1986 = vpop.f32.mrf.mxu0
  %v1987 = vpop.f32.mrf.mxu0
  %v1988 = vadd.f32 0.0, %v1987
  %v1989 = vpop.f32.mrf.mxu0
  %1990 = vmatprep.mubr.bf16.mxu0 0
  %1991 = vmatmul.mubr.bf16.gmra.mxu0 %v502
  %v1992 = vpop.f32.mrf.mxu0
  %v1993 = vadd.f32 0.0, %v1992
  %v1994 = vpop.f32.mrf.mxu0
  %v1995 = vpop.f32.mrf.mxu0
  %v1996 = vadd.f32 0.0, %v1995
  %v1997 = vpop.f32.mrf.mxu0
  %1998 = vdwg.mxu0
  %1999 = vmatprep.subr.bf16.mxu0 0
  %2000 = vmatpush1.bf16.msra.mxu0 0
  %2001 = vmatprep.subr.bf16.mxu0 0
  %2002 = vmatpush1.bf16.msra.mxu0 0
  %2003 = vmatprep.subr.bf16.mxu0 0
  %2004 = vmatpush1.bf16.msra.mxu0 0
  %2005 = vmatprep.subr.bf16.mxu0 0
  %2006 = vmatpush1.bf16.msra.mxu0 0
  %2007 = vmatprep.subr.bf16.mxu0 0
  %2008 = vmatpush1.bf16.msra.mxu0 0
  %2009 = vmatprep.subr.bf16.mxu0 0
  %2010 = vmatpush1.bf16.msra.mxu0 0
  %2011 = vmatprep.subr.bf16.mxu0 0
  %2012 = vmatpush1.bf16.msra.mxu0 %v135
  %2013 = vmatprep.subr.bf16.mxu0 0
  %2014 = vmatpush1.bf16.msra.mxu0 %v134
  %2015 = vmatprep.subr.bf16.mxu0 0
  %2016 = vmatpush2.bf16.msra.mxu0 0
  %2017 = vmatprep.subr.bf16.mxu0 0
  %2018 = vmatpush2.bf16.msra.mxu0 0
  %2019 = vmatprep.subr.bf16.mxu0 0
  %2020 = vmatpush2.bf16.msra.mxu0 0
  %2021 = vmatprep.subr.bf16.mxu0 0
  %2022 = vmatpush2.bf16.msra.mxu0 0
  %2023 = vmatprep.subr.bf16.mxu0 0
  %2024 = vmatpush2.bf16.msra.mxu0 0
  %2025 = vmatprep.subr.bf16.mxu0 0
  %2026 = vmatpush2.bf16.msra.mxu0 0
  %2027 = vmatprep.subr.bf16.mxu0 0
  %2028 = vmatpush2.bf16.msra.mxu0 0
  %2029 = vmatprep.subr.bf16.mxu0 0
  %2030 = vmatpush2.bf16.msra.mxu0 0
  %2031 = vmatprep.mubr.bf16.mxu0 0
  %2032 = vmatmul.mubr.bf16.gmra.mxu0 %v408
  %v2033 = vpop.f32.mrf.mxu0
  %v2034 = vadd.f32 %v1985, %v2033
  %v2035 = vpop.f32.mrf.mxu0
  %v2036 = vpop.f32.mrf.mxu0
  %v2037 = vadd.f32 %v1988, %v2036
  %v2038 = vpop.f32.mrf.mxu0
  %2039 = vmatprep.mubr.bf16.mxu0 0
  %2040 = vmatmul.mubr.bf16.gmra.mxu0 %v411
  %v2041 = vpop.f32.mrf.mxu0
  %v2042 = vadd.f32 %v1993, %v2041
  %v2043 = vpop.f32.mrf.mxu0
  %v2044 = vpop.f32.mrf.mxu0
  %v2045 = vadd.f32 %v1996, %v2044
  %v2046 = vpop.f32.mrf.mxu0
  %2047 = vdwg.mxu0
  %2048 = vmatprep.subr.bf16.mxu0 0
  %2049 = vmatpush1.bf16.msra.mxu0 0
  %2050 = vmatprep.subr.bf16.mxu0 0
  %2051 = vmatpush1.bf16.msra.mxu0 0
  %2052 = vmatprep.subr.bf16.mxu0 0
  %2053 = vmatpush1.bf16.msra.mxu0 0
  %2054 = vmatprep.subr.bf16.mxu0 0
  %2055 = vmatpush1.bf16.msra.mxu0 0
  %2056 = vmatprep.subr.bf16.mxu0 0
  %2057 = vmatpush1.bf16.msra.mxu0 0
  %2058 = vmatprep.subr.bf16.mxu0 0
  %2059 = vmatpush1.bf16.msra.mxu0 0
  %2060 = vmatprep.subr.bf16.mxu0 0
  %2061 = vmatpush1.bf16.msra.mxu0 %v222
  %2062 = vmatprep.subr.bf16.mxu0 0
  %2063 = vmatpush1.bf16.msra.mxu0 %v221
  %2064 = vmatprep.subr.bf16.mxu0 0
  %2065 = vmatpush2.bf16.msra.mxu0 0
  %2066 = vmatprep.subr.bf16.mxu0 0
  %2067 = vmatpush2.bf16.msra.mxu0 0
  %2068 = vmatprep.subr.bf16.mxu0 0
  %2069 = vmatpush2.bf16.msra.mxu0 0
  %2070 = vmatprep.subr.bf16.mxu0 0
  %2071 = vmatpush2.bf16.msra.mxu0 0
  %2072 = vmatprep.subr.bf16.mxu0 0
  %2073 = vmatpush2.bf16.msra.mxu0 0
  %2074 = vmatprep.subr.bf16.mxu0 0
  %2075 = vmatpush2.bf16.msra.mxu0 0
  %2076 = vmatprep.subr.bf16.mxu0 0
  %2077 = vmatpush2.bf16.msra.mxu0 0
  %2078 = vmatprep.subr.bf16.mxu0 0
  %2079 = vmatpush2.bf16.msra.mxu0 0
  %2080 = vmatprep.mubr.bf16.mxu0 0
  %2081 = vmatmul.mubr.bf16.gmra.mxu0 %v1148
  %v2082 = vpop.f32.mrf.mxu0
  %v2083 = vadd.f32 0.0, %v2082
  %v2084 = vpop.f32.mrf.mxu0
  %v2085 = vpop.f32.mrf.mxu0
  %v2086 = vadd.f32 0.0, %v2085
  %v2087 = vpop.f32.mrf.mxu0
  %2088 = vmatprep.mubr.bf16.mxu0 0
  %2089 = vmatmul.mubr.bf16.gmra.mxu0 %v1151
  %v2090 = vpop.f32.mrf.mxu0
  %v2091 = vadd.f32 0.0, %v2090
  %v2092 = vpop.f32.mrf.mxu0
  %v2093 = vpop.f32.mrf.mxu0
  %v2094 = vadd.f32 0.0, %v2093
  %v2095 = vpop.f32.mrf.mxu0
  %2096 = vdwg.mxu0
  %v2097 = vadd.f32 %v2034, %v2083
  %v2098 = vadd.f32 %v2037, %v2086
  %v2099 = vadd.f32 %v2042, %v2091
  %v2100 = vadd.f32 %v2045, %v2094
  %2101 = vmatprep.subr.bf16.mxu0 0
  %2102 = vmatpush1.bf16.msra.mxu0 0
  %2103 = vmatprep.subr.bf16.mxu0 0
  %2104 = vmatpush1.bf16.msra.mxu0 0
  %2105 = vmatprep.subr.bf16.mxu0 0
  %2106 = vmatpush1.bf16.msra.mxu0 0
  %2107 = vmatprep.subr.bf16.mxu0 0
  %2108 = vmatpush1.bf16.msra.mxu0 0
  %2109 = vmatprep.subr.bf16.mxu0 0
  %2110 = vmatpush1.bf16.msra.mxu0 0
  %2111 = vmatprep.subr.bf16.mxu0 0
  %2112 = vmatpush1.bf16.msra.mxu0 0
  %2113 = vmatprep.subr.bf16.mxu0 0
  %2114 = vmatpush1.bf16.msra.mxu0 %v313
  %2115 = vmatprep.subr.bf16.mxu0 0
  %2116 = vmatpush1.bf16.msra.mxu0 %v312
  %2117 = vmatprep.subr.bf16.mxu0 0
  %2118 = vmatpush2.bf16.msra.mxu0 0
  %2119 = vmatprep.subr.bf16.mxu0 0
  %2120 = vmatpush2.bf16.msra.mxu0 0
  %2121 = vmatprep.subr.bf16.mxu0 0
  %2122 = vmatpush2.bf16.msra.mxu0 0
  %2123 = vmatprep.subr.bf16.mxu0 0
  %2124 = vmatpush2.bf16.msra.mxu0 0
  %2125 = vmatprep.subr.bf16.mxu0 0
  %2126 = vmatpush2.bf16.msra.mxu0 0
  %2127 = vmatprep.subr.bf16.mxu0 0
  %2128 = vmatpush2.bf16.msra.mxu0 0
  %2129 = vmatprep.subr.bf16.mxu0 0
  %2130 = vmatpush2.bf16.msra.mxu0 0
  %2131 = vmatprep.subr.bf16.mxu0 0
  %2132 = vmatpush2.bf16.msra.mxu0 0
  %2133 = vmatprep.mubr.bf16.mxu0 0
  %2134 = vmatmul.mubr.bf16.gmra.mxu0 %v681
  %v2135 = vpop.f32.mrf.mxu0
  %v2136 = vadd.f32 0.0, %v2135
  %v2137 = vpop.f32.mrf.mxu0
  %v2138 = vpop.f32.mrf.mxu0
  %v2139 = vadd.f32 0.0, %v2138
  %v2140 = vpop.f32.mrf.mxu0
  %2141 = vmatprep.mubr.bf16.mxu0 0
  %2142 = vmatmul.mubr.bf16.gmra.mxu0 %v684
  %v2143 = vpop.f32.mrf.mxu0
  %v2144 = vadd.f32 0.0, %v2143
  %v2145 = vpop.f32.mrf.mxu0
  %v2146 = vpop.f32.mrf.mxu0
  %v2147 = vadd.f32 0.0, %v2146
  %v2148 = vpop.f32.mrf.mxu0
  %2149 = vdwg.mxu0
  %v2150 = vadd.f32 %v2097, %v2136
  %v2151 = vadd.f32 %v2098, %v2139
  %v2152 = vadd.f32 %v2099, %v2144
  %v2153 = vadd.f32 %v2100, %v2147
  %2154 = vmatprep.subr.bf16.mxu0 0
  %2155 = vmatpush1.bf16.msra.mxu0 0
  %2156 = vmatprep.subr.bf16.mxu0 0
  %2157 = vmatpush1.bf16.msra.mxu0 0
  %2158 = vmatprep.subr.bf16.mxu0 0
  %2159 = vmatpush1.bf16.msra.mxu0 0
  %2160 = vmatprep.subr.bf16.mxu0 0
  %2161 = vmatpush1.bf16.msra.mxu0 0
  %2162 = vmatprep.subr.bf16.mxu0 0
  %2163 = vmatpush1.bf16.msra.mxu0 0
  %2164 = vmatprep.subr.bf16.mxu0 0
  %2165 = vmatpush1.bf16.msra.mxu0 0
  %2166 = vmatprep.subr.bf16.mxu0 0
  %2167 = vmatpush1.bf16.msra.mxu0 %v404
  %2168 = vmatprep.subr.bf16.mxu0 0
  %2169 = vmatpush1.bf16.msra.mxu0 %v403
  %2170 = vmatprep.subr.bf16.mxu0 0
  %2171 = vmatpush2.bf16.msra.mxu0 0
  %2172 = vmatprep.subr.bf16.mxu0 0
  %2173 = vmatpush2.bf16.msra.mxu0 0
  %2174 = vmatprep.subr.bf16.mxu0 0
  %2175 = vmatpush2.bf16.msra.mxu0 0
  %2176 = vmatprep.subr.bf16.mxu0 0
  %2177 = vmatpush2.bf16.msra.mxu0 0
  %2178 = vmatprep.subr.bf16.mxu0 0
  %2179 = vmatpush2.bf16.msra.mxu0 0
  %2180 = vmatprep.subr.bf16.mxu0 0
  %2181 = vmatpush2.bf16.msra.mxu0 0
  %2182 = vmatprep.subr.bf16.mxu0 0
  %2183 = vmatpush2.bf16.msra.mxu0 0
  %2184 = vmatprep.subr.bf16.mxu0 0
  %2185 = vmatpush2.bf16.msra.mxu0 0
  %2186 = vmatprep.mubr.bf16.mxu0 0
  %2187 = vmatmul.mubr.bf16.gmra.mxu0 %v772
  %v2188 = vpop.f32.mrf.mxu0
  %v2189 = vadd.f32 0.0, %v2188
  %v2190 = vpop.f32.mrf.mxu0
  %v2191 = vpop.f32.mrf.mxu0
  %v2192 = vadd.f32 0.0, %v2191
  %v2193 = vpop.f32.mrf.mxu0
  %2194 = vmatprep.mubr.bf16.mxu0 0
  %2195 = vmatmul.mubr.bf16.gmra.mxu0 %v775
  %v2196 = vpop.f32.mrf.mxu0
  %v2197 = vadd.f32 0.0, %v2196
  %v2198 = vpop.f32.mrf.mxu0
  %v2199 = vpop.f32.mrf.mxu0
  %v2200 = vadd.f32 0.0, %v2199
  %v2201 = vpop.f32.mrf.mxu0
  %2202 = vdwg.mxu0
  %v2203 = vadd.f32 %v2150, %v2189
  %v2204 = vadd.f32 %v2151, %v2192
  %v2205 = vadd.f32 %v2152, %v2197
  %v2206 = vadd.f32 %v2153, %v2200
  %2207 = vmatprep.subr.bf16.mxu0 0
  %2208 = vmatpush1.bf16.msra.mxu0 0
  %2209 = vmatprep.subr.bf16.mxu0 0
  %2210 = vmatpush1.bf16.msra.mxu0 0
  %2211 = vmatprep.subr.bf16.mxu0 0
  %2212 = vmatpush1.bf16.msra.mxu0 0
  %2213 = vmatprep.subr.bf16.mxu0 0
  %2214 = vmatpush1.bf16.msra.mxu0 0
  %2215 = vmatprep.subr.bf16.mxu0 0
  %2216 = vmatpush1.bf16.msra.mxu0 0
  %2217 = vmatprep.subr.bf16.mxu0 0
  %2218 = vmatpush1.bf16.msra.mxu0 0
  %2219 = vmatprep.subr.bf16.mxu0 0
  %2220 = vmatpush1.bf16.msra.mxu0 %v495
  %2221 = vmatprep.subr.bf16.mxu0 0
  %2222 = vmatpush1.bf16.msra.mxu0 %v494
  %2223 = vmatprep.subr.bf16.mxu0 0
  %2224 = vmatpush2.bf16.msra.mxu0 0
  %2225 = vmatprep.subr.bf16.mxu0 0
  %2226 = vmatpush2.bf16.msra.mxu0 0
  %2227 = vmatprep.subr.bf16.mxu0 0
  %2228 = vmatpush2.bf16.msra.mxu0 0
  %2229 = vmatprep.subr.bf16.mxu0 0
  %2230 = vmatpush2.bf16.msra.mxu0 0
  %2231 = vmatprep.subr.bf16.mxu0 0
  %2232 = vmatpush2.bf16.msra.mxu0 0
  %2233 = vmatprep.subr.bf16.mxu0 0
  %2234 = vmatpush2.bf16.msra.mxu0 0
  %2235 = vmatprep.subr.bf16.mxu0 0
  %2236 = vmatpush2.bf16.msra.mxu0 0
  %2237 = vmatprep.subr.bf16.mxu0 0
  %2238 = vmatpush2.bf16.msra.mxu0 0
  %2239 = vmatprep.mubr.bf16.mxu0 0
  %2240 = vmatmul.mubr.bf16.gmra.mxu0 %v1328
  %v2241 = vpop.f32.mrf.mxu0
  %v2242 = vadd.f32 0.0, %v2241
  %v2243 = vpop.f32.mrf.mxu0
  %v2244 = vpop.f32.mrf.mxu0
  %v2245 = vadd.f32 0.0, %v2244
  %v2246 = vpop.f32.mrf.mxu0
  %2247 = vmatprep.mubr.bf16.mxu0 0
  %2248 = vmatmul.mubr.bf16.gmra.mxu0 %v1331
  %v2249 = vpop.f32.mrf.mxu0
  %v2250 = vadd.f32 0.0, %v2249
  %v2251 = vpop.f32.mrf.mxu0
  %v2252 = vpop.f32.mrf.mxu0
  %v2253 = vadd.f32 0.0, %v2252
  %v2254 = vpop.f32.mrf.mxu0
  %2255 = vdwg.mxu0
  %v2256 = vadd.f32 %v2203, %v2242
  %v2257 = vadd.f32 %v2204, %v2245
  %v2258 = vadd.f32 %v2205, %v2250
  %v2259 = vadd.f32 %v2206, %v2253
  %2260 = vmatprep.subr.bf16.mxu0 0
  %2261 = vmatpush1.bf16.msra.mxu0 0
  %2262 = vmatprep.subr.bf16.mxu0 0
  %2263 = vmatpush1.bf16.msra.mxu0 0
  %2264 = vmatprep.subr.bf16.mxu0 0
  %2265 = vmatpush1.bf16.msra.mxu0 0
  %2266 = vmatprep.subr.bf16.mxu0 0
  %2267 = vmatpush1.bf16.msra.mxu0 0
  %2268 = vmatprep.subr.bf16.mxu0 0
  %2269 = vmatpush1.bf16.msra.mxu0 0
  %2270 = vmatprep.subr.bf16.mxu0 0
  %2271 = vmatpush1.bf16.msra.mxu0 0
  %2272 = vmatprep.subr.bf16.mxu0 0
  %2273 = vmatpush1.bf16.msra.mxu0 %v586
  %2274 = vmatprep.subr.bf16.mxu0 0
  %2275 = vmatpush1.bf16.msra.mxu0 %v585
  %2276 = vmatprep.subr.bf16.mxu0 0
  %2277 = vmatpush2.bf16.msra.mxu0 0
  %2278 = vmatprep.subr.bf16.mxu0 0
  %2279 = vmatpush2.bf16.msra.mxu0 0
  %2280 = vmatprep.subr.bf16.mxu0 0
  %2281 = vmatpush2.bf16.msra.mxu0 0
  %2282 = vmatprep.subr.bf16.mxu0 0
  %2283 = vmatpush2.bf16.msra.mxu0 0
  %2284 = vmatprep.subr.bf16.mxu0 0
  %2285 = vmatpush2.bf16.msra.mxu0 0
  %2286 = vmatprep.subr.bf16.mxu0 0
  %2287 = vmatpush2.bf16.msra.mxu0 0
  %2288 = vmatprep.subr.bf16.mxu0 0
  %2289 = vmatpush2.bf16.msra.mxu0 0
  %2290 = vmatprep.subr.bf16.mxu0 0
  %2291 = vmatpush2.bf16.msra.mxu0 0
  %2292 = vmatprep.mubr.bf16.mxu0 0
  %2293 = vmatmul.mubr.bf16.gmra.mxu0 %v1802
  %v2294 = vpop.f32.mrf.mxu0
  %v2295 = vadd.f32 0.0, %v2294
  %v2296 = vpop.f32.mrf.mxu0
  %v2297 = vpop.f32.mrf.mxu0
  %v2298 = vadd.f32 0.0, %v2297
  %v2299 = vpop.f32.mrf.mxu0
  %2300 = vmatprep.mubr.bf16.mxu0 0
  %2301 = vmatmul.mubr.bf16.gmra.mxu0 %v1805
  %v2302 = vpop.f32.mrf.mxu0
  %v2303 = vadd.f32 0.0, %v2302
  %v2304 = vpop.f32.mrf.mxu0
  %v2305 = vpop.f32.mrf.mxu0
  %v2306 = vadd.f32 0.0, %v2305
  %v2307 = vpop.f32.mrf.mxu0
  %2308 = vdwg.mxu0
  %v2309 = vadd.f32 %v2256, %v2295
  %v2310 = vadd.f32 %v2257, %v2298
  %v2311 = vadd.f32 %v2258, %v2303
  %v2312 = vadd.f32 %v2259, %v2306
  %2313 = vmatprep.subr.bf16.mxu0 0
  %2314 = vmatpush1.bf16.msra.mxu0 0
  %2315 = vmatprep.subr.bf16.mxu0 0
  %2316 = vmatpush1.bf16.msra.mxu0 0
  %2317 = vmatprep.subr.bf16.mxu0 0
  %2318 = vmatpush1.bf16.msra.mxu0 0
  %2319 = vmatprep.subr.bf16.mxu0 0
  %2320 = vmatpush1.bf16.msra.mxu0 0
  %2321 = vmatprep.subr.bf16.mxu0 0
  %2322 = vmatpush1.bf16.msra.mxu0 0
  %2323 = vmatprep.subr.bf16.mxu0 0
  %2324 = vmatpush1.bf16.msra.mxu0 0
  %2325 = vmatprep.subr.bf16.mxu0 0
  %2326 = vmatpush1.bf16.msra.mxu0 %v677
  %2327 = vmatprep.subr.bf16.mxu0 0
  %2328 = vmatpush1.bf16.msra.mxu0 %v676
  %2329 = vmatprep.subr.bf16.mxu0 0
  %2330 = vmatpush2.bf16.msra.mxu0 0
  %2331 = vmatprep.subr.bf16.mxu0 0
  %2332 = vmatpush2.bf16.msra.mxu0 0
  %2333 = vmatprep.subr.bf16.mxu0 0
  %2334 = vmatpush2.bf16.msra.mxu0 0
  %2335 = vmatprep.subr.bf16.mxu0 0
  %2336 = vmatpush2.bf16.msra.mxu0 0
  %2337 = vmatprep.subr.bf16.mxu0 0
  %2338 = vmatpush2.bf16.msra.mxu0 0
  %2339 = vmatprep.subr.bf16.mxu0 0
  %2340 = vmatpush2.bf16.msra.mxu0 0
  %2341 = vmatprep.subr.bf16.mxu0 0
  %2342 = vmatpush2.bf16.msra.mxu0 0
  %2343 = vmatprep.subr.bf16.mxu0 0
  %2344 = vmatpush2.bf16.msra.mxu0 0
  %2345 = vmatprep.mubr.bf16.mxu0 0
  %2346 = vmatmul.mubr.bf16.gmra.mxu0 %v1876
  %v2347 = vpop.f32.mrf.mxu0
  %v2348 = vadd.f32 0.0, %v2347
  %v2349 = vpop.f32.mrf.mxu0
  %v2350 = vpop.f32.mrf.mxu0
  %v2351 = vadd.f32 0.0, %v2350
  %v2352 = vpop.f32.mrf.mxu0
  %2353 = vmatprep.mubr.bf16.mxu0 0
  %2354 = vmatmul.mubr.bf16.gmra.mxu0 %v1879
  %v2355 = vpop.f32.mrf.mxu0
  %v2356 = vadd.f32 0.0, %v2355
  %v2357 = vpop.f32.mrf.mxu0
  %v2358 = vpop.f32.mrf.mxu0
  %v2359 = vadd.f32 0.0, %v2358
  %v2360 = vpop.f32.mrf.mxu0
  %2361 = vdwg.mxu0
  %v2362 = vadd.f32 %v2309, %v2348
  %v2363 = vadd.f32 %v2310, %v2351
  %v2364 = vadd.f32 %v2311, %v2356
  %v2365 = vadd.f32 %v2312, %v2359
  %s2366 = scalar_lea.vmem %s0, 240
  %v2367 = vld [vmem:[%s2366] sm:$0xf]
  %v2368 = vld [vmem:[%s2366 + $0x4] sm:$0xf]
  %v2369 = vld [vmem:[%s2366 + $0x8] sm:$0xf]
  %v2370 = vld [vmem:[%s2366 + $0xc] sm:$0xf]
  %v2375 = vunpack.c.l.b16 %v2367
  %v2376 = vunpack.c.l.b16 %v2368
  %v2377 = vunpack.c.l.b16 %v2369
  %v2378 = vunpack.c.l.b16 %v2370
  %v2379 = vpack.c.b16 %v2376, %v2375
  %v2380 = vpack.c.b16 %v2378, %v2377
  %v2382 = vsel %vm60, %v2379, 0
  %v2385 = vsel %vm60, %v2380, 0
  %2387 = vmatprep.subr.bf16.mxu0 0
  %2388 = vmatpush1.bf16.msra.mxu0 0
  %2389 = vmatprep.subr.bf16.mxu0 0
  %2390 = vmatpush1.bf16.msra.mxu0 0
  %2391 = vmatprep.subr.bf16.mxu0 0
  %2392 = vmatpush1.bf16.msra.mxu0 0
  %2393 = vmatprep.subr.bf16.mxu0 0
  %2394 = vmatpush1.bf16.msra.mxu0 0
  %2395 = vmatprep.subr.bf16.mxu0 0
  %2396 = vmatpush1.bf16.msra.mxu0 0
  %2397 = vmatprep.subr.bf16.mxu0 0
  %2398 = vmatpush1.bf16.msra.mxu0 0
  %2399 = vmatprep.subr.bf16.mxu0 0
  %2400 = vmatpush1.bf16.msra.mxu0 %v768
  %2401 = vmatprep.subr.bf16.mxu0 0
  %2402 = vmatpush1.bf16.msra.mxu0 %v767
  %2403 = vmatprep.subr.bf16.mxu0 0
  %2404 = vmatpush2.bf16.msra.mxu0 0
  %2405 = vmatprep.subr.bf16.mxu0 0
  %2406 = vmatpush2.bf16.msra.mxu0 0
  %2407 = vmatprep.subr.bf16.mxu0 0
  %2408 = vmatpush2.bf16.msra.mxu0 0
  %2409 = vmatprep.subr.bf16.mxu0 0
  %2410 = vmatpush2.bf16.msra.mxu0 0
  %2411 = vmatprep.subr.bf16.mxu0 0
  %2412 = vmatpush2.bf16.msra.mxu0 0
  %2413 = vmatprep.subr.bf16.mxu0 0
  %2414 = vmatpush2.bf16.msra.mxu0 0
  %2415 = vmatprep.subr.bf16.mxu0 0
  %2416 = vmatpush2.bf16.msra.mxu0 0
  %2417 = vmatprep.subr.bf16.mxu0 0
  %2418 = vmatpush2.bf16.msra.mxu0 0
  %2419 = vmatprep.mubr.bf16.mxu0 0
  %2420 = vmatmul.mubr.bf16.gmra.mxu0 %v2382
  %v2421 = vpop.f32.mrf.mxu0
  %v2422 = vadd.f32 0.0, %v2421
  %v2423 = vpop.f32.mrf.mxu0
  %v2424 = vpop.f32.mrf.mxu0
  %v2425 = vadd.f32 0.0, %v2424
  %v2426 = vpop.f32.mrf.mxu0
  %2427 = vmatprep.mubr.bf16.mxu0 0
  %2428 = vmatmul.mubr.bf16.gmra.mxu0 %v2385
  %v2429 = vpop.f32.mrf.mxu0
  %v2430 = vadd.f32 0.0, %v2429
  %v2431 = vpop.f32.mrf.mxu0
  %v2432 = vpop.f32.mrf.mxu0
  %v2433 = vadd.f32 0.0, %v2432
  %v2434 = vpop.f32.mrf.mxu0
  %2435 = vdwg.mxu0
  %v2436 = vadd.f32 %v2362, %v2422
  %v2437 = vadd.f32 %v2363, %v2425
  %v2438 = vadd.f32 %v2364, %v2430
  %v2439 = vadd.f32 %v2365, %v2433
  %v2440 = vmul.f32 %v2436, %v834
  %v2441 = vmul.f32 %v2437, %v834
  %v2442 = vmul.f32 %v2438, %v834
  %v2443 = vmul.f32 %v2439, %v834
  %v2444 = vadd.f32 %v2440, %v844
  %v2445 = vadd.f32 %v2441, %v844
  %v2446 = vadd.f32 %v2442, %v844
  %v2447 = vadd.f32 %v2443, %v844
  %v2448 = vmax.f32 %v2444, 0.0
  %v2449 = vmax.f32 %v2445, 0.0
  %v2450 = vmax.f32 %v2446, 0.0
  %v2451 = vmax.f32 %v2447, 0.0
  %v2452 = vmax.f32 %v1946, %v2448
  %v2453 = vmax.f32 %v1947, %v2449
  %v2454 = vmax.f32 %v1948, %v2450
  %v2455 = vmax.f32 %v1949, %v2451
  %v2456 = vpack.c.bf16 %v2453, %v2452
  %v2457 = vpack.c.bf16 %v2455, %v2454
  %v2460 = vunpack.c.l.b16 %v2456
  %v2461 = vunpack.c.h.b16 %v2456
  %v2462 = vunpack.c.l.b16 %v2457
  %v2463 = vunpack.c.h.b16 %v2457
  %v2464 = vpack.c.b16 %v2460, %v2460
  %v2465 = vpack.c.b16 %v2461, %v2461
  %v2466 = vpack.c.b16 %v2462, %v2462
  %v2467 = vpack.c.b16 %v2463, %v2463
  %vm2472 = vcmask 519168
  %2473 = vst.msk [vmem:[%s4] sm:$0xf] %vm2472, %v2464
  %2474 = vst.msk [vmem:[%s4 + $0x4] sm:$0xf] %vm2472, %v2465
  %2475 = vst.msk [vmem:[%s4 + $0x8] sm:$0xf] %vm2472, %v2466
  %2476 = vst.msk [vmem:[%s4 + $0xc] sm:$0xf] %vm2472, %v2467
  // Predicated region
  $region18: #{simple_cnn_gray_forward.4} parent=0 // pred_check
    _
  $region19: #{simple_cnn_gray_forward.4} parent=0 // pred_check_branch
    %2478 = sbr.rel (0) target = $region21
  $region20: #{simple_cnn_gray_forward.4} parent=0 // pred_region
    _
  $region21: #{simple_cnn_gray_forward.4} parent=0 // pred_fallthru
    _
  // Predicated region
  $region22: #{simple_cnn_gray_forward.4} parent=0 // pred_check
    _
  $region23: #{simple_cnn_gray_forward.4} parent=0 // pred_check_branch
    %2480 = sbr.rel (0) target = $region25
  $region24: #{simple_cnn_gray_forward.4} parent=0 // pred_region
    _
  $region25: #{simple_cnn_gray_forward.4} parent=0 // pred_fallthru
    _

// kernel: simple_cnn_gray_forward.5
$region0: #{simple_cnn_gray_forward.5}
  #allocation0 [shape = 'u32[]', space=smem, size = 0x4, offset = 0x4, fixed_abs, tag = 'smem constant byte address 0x4 - core index']
  #allocation1 [shape = 'u32[144,128]{1,0:T(1,128)}', space=vmem, size = 0x12000, scoped, tag = 'internal scratch']
  #allocation2 [shape = 'f32[1,128]{1,0:T(1,128)}', space=vmem, size = 0x200, scoped, tag = 'scratch operand']
  %s0 = inlined_call_operand.vmem [shape: bf16[16,2,4,64], index: 0, kind: input, shape index: {}]
  %s1 = inlined_call_operand.vmem [shape: bf16[9,64,128], index: 1, kind: input, shape index: {}]
  %s2 = inlined_call_operand.vmem [shape: f32[1,128], index: 2, kind: input, shape index: {}]
  %s3 = inlined_call_operand.vmem [shape: f32[1,128], index: 3, kind: input, shape index: {}]
  %s4 = inlined_call_operand.vmem [shape: f32[128,2], index: 4, kind: input, shape index: {}]
  %s5 = inlined_call_operand.vmem [shape: f32[1,2], index: 5, kind: input, shape index: {}]
  %s6 = inlined_call_operand.hbm [shape: f32[2,1,2], index: 6, kind: output, shape index: {}]
  %s7 = sld [smem:[#allocation0]]
  $region106: #{simple_cnn_gray_forward.5} parent=0
    _
  %s9 = ssub.s32 1, %s7
  %s10 = scalar_select 0, %s9, %s7
  $region1: #{simple_cnn_gray_forward.5} parent=0
    #allocation3 [shape = 'u8[32768]{0}', space=vmem, size = 0x8000, scoped, tag = 'input window, operand 0']
    #allocation4 [shape = 'u8[1024]{0}', space=vmem, size = 0x400, scoped, tag = 'output window, operand 0']
    #allocation5 [shape = 's32[2]{0}', space=sflag, size = 0x8, scoped, tag = 'scoped memory for simple_cnn_gray_forward.5']
    %11 = vsyncpa [#allocation5], 0
    %s12 = scalar_lea.sflag [#allocation5], 1
    %13 = vsyncpa %s12, 0
    loop: start=0, step=1, limit=4
    $region2: #{simple_cnn_gray_forward.5} parent=1 // loop_pre_header
      _
    $region3: #{simple_cnn_gray_forward.5} parent=1 // loop_header
      %s15 = sphi 0, %s19
      %p16 = scmp.ge.s32.totalorder %s15, 4
      %s22 = sphi 0, %s34
      %s23 = sphi 0, %s30
      %s24 = sphi 0, %s22
      %s25 = sphi 0, %s23
      %s26 = sphi 0, %s24
      %s27 = sphi 0, %s25
      %s39 = sphi 0, %s41
      %s42 = sphi 0, %s39
      %s43 = sphi 0, %s42
      %s59 = sphi 0, %s43
      %s63 = sphi 0, %s63
      %s65 = sphi 0, %s63
      %s66 = sphi 0, %s65
      %s80 = sphi 0, %s66
      %s84 = sphi 0, %s84
      %s86 = sphi 0, %s84
      %s87 = sphi 0, %s86
      %s101 = sphi 0, %s87
      %s105 = sphi 0, %s105
      %s107 = sphi 0, %s105
      %s108 = sphi 0, %s107
      %s122 = sphi 0, %s108
      %s126 = sphi 0, %s126
      %s128 = sphi 0, %s126
      %s129 = sphi 0, %s128
      %s143 = sphi 0, %s129
      %s147 = sphi 0, %s147
      %s149 = sphi 0, %s147
      %s150 = sphi 0, %s149
      %s164 = sphi 0, %s150
      %s170 = sphi 0, %s172
      %s173 = sphi 0, %s170
      %s174 = sphi 0, %s173
      %s190 = sphi 0, %s174
    $region4: #{simple_cnn_gray_forward.5} parent=1 // loop_header_branch
      %18 = sbr.rel (%p16) target = $region8
    $region5: #{simple_cnn_gray_forward.5} parent=1 // loop_body
      %s20 = ssub.s32 %s15, 1
      %s21 = ssub.s32 %s15, 2
      %s28 = sadd.s32 1, %s23
      %p29 = scmp.ge.s32.totalorder %s28, 1
      %s30 = scalar_select %p29, 0, %s28
      %s31 = sadd.s32 1, %s22
      %s32 = scalar_select %p29, %s31, %s22
      %p33 = scmp.ge.s32.totalorder %s32, 2
      %s34 = scalar_select %p33, 0, %s32
      %s35 = ssub.s32 %s22, %s34
      %s36 = ssub.s32 %s23, %s30
      %s37 = sor.u32 %s35, %s36
      %p38 = scmp.eq.s32.totalorder %s37, 0
      %s40 = sadd.s32 %s39, 1
      %s41 = scalar_select %p38, %s39, %s40
      %p44 = pneg %p38
      %p45 = scmp.eq.s32.totalorder %s15, 1
      %p46 = por %p44, %p45
      %p47 = scmp.ne.s32.totalorder %s39, %s42
      %p48 = scmp.eq.s32.totalorder %s15, 0
      %p49 = por %p47, %p48
      %p50 = scmp.ne.s32.totalorder %s39, %s42
      %p51 = scmp.eq.s32.totalorder %s20, 1
      %p52 = por %p50, %p51
      %p53 = scmp.ne.s32.totalorder %s42, %s43
      %p54 = scmp.eq.s32.totalorder %s20, 0
      %p55 = por %p53, %p54
      %p56 = scmp.ne.s32.totalorder %s42, %s43
      %p57 = scmp.eq.s32.totalorder %s21, 1
      %p58 = por %p56, %p57
      %p60 = scmp.ne.s32.totalorder %s43, %s59
      %p61 = scmp.eq.s32.totalorder %s21, 0
      %p62 = por %p60, %p61
      %s64 = sadd.s32 %s63, 1
      %p67 = scmp.eq.s32.totalorder %s15, 1
      %p68 = scmp.ne.s32.totalorder %s63, %s65
      %p69 = scmp.eq.s32.totalorder %s15, 0
      %p70 = por %p68, %p69
      %p71 = scmp.ne.s32.totalorder %s63, %s65
      %p72 = scmp.eq.s32.totalorder %s20, 1
      %p73 = por %p71, %p72
      %p74 = scmp.ne.s32.totalorder %s65, %s66
      %p75 = scmp.eq.s32.totalorder %s20, 0
      %p76 = por %p74, %p75
      %p77 = scmp.ne.s32.totalorder %s65, %s66
      %p78 = scmp.eq.s32.totalorder %s21, 1
      %p79 = por %p77, %p78
      %p81 = scmp.ne.s32.totalorder %s66, %s80
      %p82 = scmp.eq.s32.totalorder %s21, 0
      %p83 = por %p81, %p82
      %s85 = sadd.s32 %s84, 1
      %p88 = scmp.eq.s32.totalorder %s15, 1
      %p89 = scmp.ne.s32.totalorder %s84, %s86
      %p90 = scmp.eq.s32.totalorder %s15, 0
      %p91 = por %p89, %p90
      %p92 = scmp.ne.s32.totalorder %s84, %s86
      %p93 = scmp.eq.s32.totalorder %s20, 1
      %p94 = por %p92, %p93
      %p95 = scmp.ne.s32.totalorder %s86, %s87
      %p96 = scmp.eq.s32.totalorder %s20, 0
      %p97 = por %p95, %p96
      %p98 = scmp.ne.s32.totalorder %s86, %s87
      %p99 = scmp.eq.s32.totalorder %s21, 1
      %p100 = por %p98, %p99
      %p102 = scmp.ne.s32.totalorder %s87, %s101
      %p103 = scmp.eq.s32.totalorder %s21, 0
      %p104 = por %p102, %p103
      %s106 = sadd.s32 %s105, 1
      %p109 = scmp.eq.s32.totalorder %s15, 1
      %p110 = scmp.ne.s32.totalorder %s105, %s107
      %p111 = scmp.eq.s32.totalorder %s15, 0
      %p112 = por %p110, %p111
      %p113 = scmp.ne.s32.totalorder %s105, %s107
      %p114 = scmp.eq.s32.totalorder %s20, 1
      %p115 = por %p113, %p114
      %p116 = scmp.ne.s32.totalorder %s107, %s108
      %p117 = scmp.eq.s32.totalorder %s20, 0
      %p118 = por %p116, %p117
      %p119 = scmp.ne.s32.totalorder %s107, %s108
      %p120 = scmp.eq.s32.totalorder %s21, 1
      %p121 = por %p119, %p120
      %p123 = scmp.ne.s32.totalorder %s108, %s122
      %p124 = scmp.eq.s32.totalorder %s21, 0
      %p125 = por %p123, %p124
      %s127 = sadd.s32 %s126, 1
      %p130 = scmp.eq.s32.totalorder %s15, 1
      %p131 = scmp.ne.s32.totalorder %s126, %s128
      %p132 = scmp.eq.s32.totalorder %s15, 0
      %p133 = por %p131, %p132
      %p134 = scmp.ne.s32.totalorder %s126, %s128
      %p135 = scmp.eq.s32.totalorder %s20, 1
      %p136 = por %p134, %p135
      %p137 = scmp.ne.s32.totalorder %s128, %s129
      %p138 = scmp.eq.s32.totalorder %s20, 0
      %p139 = por %p137, %p138
      %p140 = scmp.ne.s32.totalorder %s128, %s129
      %p141 = scmp.eq.s32.totalorder %s21, 1
      %p142 = por %p140, %p141
      %p144 = scmp.ne.s32.totalorder %s129, %s143
      %p145 = scmp.eq.s32.totalorder %s21, 0
      %p146 = por %p144, %p145
      %s148 = sadd.s32 %s147, 1
      %p151 = scmp.eq.s32.totalorder %s15, 1
      %p152 = scmp.ne.s32.totalorder %s147, %s149
      %p153 = scmp.eq.s32.totalorder %s15, 0
      %p154 = por %p152, %p153
      %p155 = scmp.ne.s32.totalorder %s147, %s149
      %p156 = scmp.eq.s32.totalorder %s20, 1
      %p157 = por %p155, %p156
      %p158 = scmp.ne.s32.totalorder %s149, %s150
      %p159 = scmp.eq.s32.totalorder %s20, 0
      %p160 = por %p158, %p159
      %p161 = scmp.ne.s32.totalorder %s149, %s150
      %p162 = scmp.eq.s32.totalorder %s21, 1
      %p163 = por %p161, %p162
      %p165 = scmp.ne.s32.totalorder %s150, %s164
      %p166 = scmp.eq.s32.totalorder %s21, 0
      %p167 = por %p165, %p166
      %s168 = ssub.s32 %s22, %s34
      %p169 = scmp.eq.s32.totalorder %s168, 0
      %s171 = sadd.s32 %s170, 1
      %s172 = scalar_select %p169, %s170, %s171
      %p175 = pneg %p169
      %p176 = scmp.eq.s32.totalorder %s15, 1
      %p177 = por %p175, %p176
      %p178 = scmp.ne.s32.totalorder %s170, %s173
      %p179 = scmp.eq.s32.totalorder %s15, 0
      %p180 = por %p178, %p179
      %p181 = scmp.ne.s32.totalorder %s170, %s173
      %p182 = scmp.eq.s32.totalorder %s20, 1
      %p183 = por %p181, %p182
      %p184 = scmp.ne.s32.totalorder %s173, %s174
      %p185 = scmp.eq.s32.totalorder %s20, 0
      %p186 = por %p184, %p185
      %p187 = scmp.ne.s32.totalorder %s173, %s174
      %p188 = scmp.eq.s32.totalorder %s21, 1
      %p189 = por %p187, %p188
      %p191 = scmp.ne.s32.totalorder %s174, %s190
      %p192 = scmp.eq.s32.totalorder %s21, 0
      %p193 = por %p191, %p192
      %p194 = scmp.le.s32.totalorder 1, %s15
      %p195 = scmp.lt.s32.totalorder %s15, 3
      %p196 = pnand %p194, %p195
      %p197 = pneg %p196
      // Predicated region
      $region9: #{simple_cnn_gray_forward.5} parent=5 // pred_check
        _
      $region10: #{simple_cnn_gray_forward.5} parent=5 // pred_check_branch
        %199 = sbr.rel (%p196) target = $region12
      $region11: #{simple_cnn_gray_forward.5} parent=5 // pred_region
        %s200 = ssub.s32 %s15, 1
        // Predicated region
        $region13: #{simple_cnn_gray_forward.5} parent=11 // pred_check
          %p201 = pneg %p76
        $region14: #{simple_cnn_gray_forward.5} parent=11 // pred_check_branch
          %203 = sbr.rel (%p201) target = $region16
        $region15: #{simple_cnn_gray_forward.5} parent=11 // pred_region
          _
        $region16: #{simple_cnn_gray_forward.5} parent=11 // pred_fallthru
          _
        // Predicated region
        $region17: #{simple_cnn_gray_forward.5} parent=11 // pred_check
          %p204 = pneg %p97
        $region18: #{simple_cnn_gray_forward.5} parent=11 // pred_check_branch
          %206 = sbr.rel (%p204) target = $region20
        $region19: #{simple_cnn_gray_forward.5} parent=11 // pred_region
          _
        $region20: #{simple_cnn_gray_forward.5} parent=11 // pred_fallthru
          _
        // Predicated region
        $region21: #{simple_cnn_gray_forward.5} parent=11 // pred_check
          %p207 = pneg %p118
        $region22: #{simple_cnn_gray_forward.5} parent=11 // pred_check_branch
          %209 = sbr.rel (%p207) target = $region24
        $region23: #{simple_cnn_gray_forward.5} parent=11 // pred_region
          _
        $region24: #{simple_cnn_gray_forward.5} parent=11 // pred_fallthru
          _
        // Predicated region
        $region25: #{simple_cnn_gray_forward.5} parent=11 // pred_check
          %p210 = pneg %p139
        $region26: #{simple_cnn_gray_forward.5} parent=11 // pred_check_branch
          %212 = sbr.rel (%p210) target = $region28
        $region27: #{simple_cnn_gray_forward.5} parent=11 // pred_region
          _
        $region28: #{simple_cnn_gray_forward.5} parent=11 // pred_fallthru
          _
        // Predicated region
        $region29: #{simple_cnn_gray_forward.5} parent=11 // pred_check
          %p213 = pneg %p160
        $region30: #{simple_cnn_gray_forward.5} parent=11 // pred_check_branch
          %215 = sbr.rel (%p213) target = $region32
        $region31: #{simple_cnn_gray_forward.5} parent=11 // pred_region
          _
        $region32: #{simple_cnn_gray_forward.5} parent=11 // pred_fallthru
          _
      $region12: #{simple_cnn_gray_forward.5} parent=5 // pred_fallthru
        _
      %p216 = scmp.lt.s32.totalorder %s15, 2
      // Predicated region
      $region33: #{simple_cnn_gray_forward.5} parent=5 // pred_check
        %p217 = pneg %p216
      $region34: #{simple_cnn_gray_forward.5} parent=5 // pred_check_branch
        %219 = sbr.rel (%p217) target = $region36
      $region35: #{simple_cnn_gray_forward.5} parent=5 // pred_region
        // Predicated region
        $region37: #{simple_cnn_gray_forward.5} parent=35 // pred_check
          %p220 = pneg %p49
        $region38: #{simple_cnn_gray_forward.5} parent=35 // pred_check_branch
          %222 = sbr.rel (%p220) target = $region40
        $region39: #{simple_cnn_gray_forward.5} parent=35 // pred_region
          %s223 = sand.u32 %s39, 1
          %s224 = sand.u32 %s39, 1
          %s225 = smul.addr %s224, 32
          %s226 = scalar_lea.vmem [#allocation3], %s225
          %s227 = sadd.s32 %s23, %s22
          %s228 = smul.addr %s227, 2
          %s229 = scalar_lea.vmem %s0, %s228
          // Predicated region
          $region41: #{simple_cnn_gray_forward.5} parent=39 // pred_check
            _
          $region42: #{simple_cnn_gray_forward.5} parent=39 // pred_check_branch
            %231 = sbr.rel (0) target = $region44
          $region43: #{simple_cnn_gray_forward.5} parent=39 // pred_region
            // Predicated region
            $region45: #{simple_cnn_gray_forward.5} parent=43 // pred_check
              _
            $region46: #{simple_cnn_gray_forward.5} parent=43 // pred_check_branch
              %233 = sbr.rel target = $region48
            $region47: #{simple_cnn_gray_forward.5} parent=43 // pred_region
              // Predicated region
              $region60: #{simple_cnn_gray_forward.5} parent=47 // pred_check
                _
              $region61: #{simple_cnn_gray_forward.5} parent=47 // pred_check_branch
                %279 = sbr.rel (0) target = $region63
              $region62: #{simple_cnn_gray_forward.5} parent=47 // pred_region
                loop: start=0, step=1, limit=1
                $region64: #{simple_cnn_gray_forward.5} parent=62 // loop_pre_header
                  _
                $region65: #{simple_cnn_gray_forward.5} parent=62 // loop_header
                  %s281 = sphi 0, %s285
                  %p282 = scmp.ge.s32.totalorder %s281, 1
                  %s286 = sphi %s229, %s229
                  %s287 = sphi %s226, %s226
                $region66: #{simple_cnn_gray_forward.5} parent=62 // loop_header_branch
                  %284 = sbr.rel (%p282) target = $region70
                $region67: #{simple_cnn_gray_forward.5} parent=62 // loop_body
                  _
                $region68: #{simple_cnn_gray_forward.5} parent=62 // loop_footer
                  %s285 = sadd.s32 1, %s281
                $region69: #{simple_cnn_gray_forward.5} parent=62 // loop_footer_branch
                  %280 = sbr.rel target = $region65
                $region70: #{simple_cnn_gray_forward.5} parent=62 // loop_exit
                  _
                %s289 = ssub.s32 4, 1
                loop: start=0, step=1, limit=1
                $region71: #{simple_cnn_gray_forward.5} parent=62 // loop_pre_header
                  _
                $region72: #{simple_cnn_gray_forward.5} parent=62 // loop_header
                  %s291 = sphi 0, %s295
                  %p292 = scmp.ge.s32.totalorder %s291, 1
                  %s296 = sphi %s229, %s229
                  %s297 = sphi %s226, %s226
                $region73: #{simple_cnn_gray_forward.5} parent=62 // loop_header_branch
                  %294 = sbr.rel (%p292) target = $region77
                $region74: #{simple_cnn_gray_forward.5} parent=62 // loop_body
                  %v298 = vld [vmem:[%s296] sm:%s289]
                  %299 = vst [vmem:[%s297] sm:%s289] %v298
                  %v300 = vld [vmem:[%s296 + $0x4] sm:%s289]
                  %301 = vst [vmem:[%s297 + $0x2] sm:%s289] %v300
                  %v302 = vld [vmem:[%s296 + $0x8] sm:%s289]
                  %303 = vst [vmem:[%s297 + $0x4] sm:%s289] %v302
                  %v304 = vld [vmem:[%s296 + $0xc] sm:%s289]
                  %305 = vst [vmem:[%s297 + $0x6] sm:%s289] %v304
                  %v306 = vld [vmem:[%s296 + $0x10] sm:%s289]
                  %307 = vst [vmem:[%s297 + $0x8] sm:%s289] %v306
                  %v308 = vld [vmem:[%s296 + $0x14] sm:%s289]
                  %309 = vst [vmem:[%s297 + $0xa] sm:%s289] %v308
                  %v310 = vld [vmem:[%s296 + $0x18] sm:%s289]
                  %311 = vst [vmem:[%s297 + $0xc] sm:%s289] %v310
                  %v312 = vld [vmem:[%s296 + $0x1c] sm:%s289]
                  %313 = vst [vmem:[%s297 + $0xe] sm:%s289] %v312
                  %v314 = vld [vmem:[%s296 + $0x20] sm:%s289]
                  %315 = vst [vmem:[%s297 + $0x10] sm:%s289] %v314
                  %v316 = vld [vmem:[%s296 + $0x24] sm:%s289]
                  %317 = vst [vmem:[%s297 + $0x12] sm:%s289] %v316
                  %v318 = vld [vmem:[%s296 + $0x28] sm:%s289]
                  %319 = vst [vmem:[%s297 + $0x14] sm:%s289] %v318
                  %v320 = vld [vmem:[%s296 + $0x2c] sm:%s289]
                  %321 = vst [vmem:[%s297 + $0x16] sm:%s289] %v320
                  %v322 = vld [vmem:[%s296 + $0x30] sm:%s289]
                  %323 = vst [vmem:[%s297 + $0x18] sm:%s289] %v322
                  %v324 = vld [vmem:[%s296 + $0x34] sm:%s289]
                  %325 = vst [vmem:[%s297 + $0x1a] sm:%s289] %v324
                  %v326 = vld [vmem:[%s296 + $0x38] sm:%s289]
                  %327 = vst [vmem:[%s297 + $0x1c] sm:%s289] %v326
                  %v328 = vld [vmem:[%s296 + $0x3c] sm:%s289]
                  %329 = vst [vmem:[%s297 + $0x1e] sm:%s289] %v328
                $region75: #{simple_cnn_gray_forward.5} parent=62 // loop_footer
                  %s295 = sadd.s32 1, %s291
                $region76: #{simple_cnn_gray_forward.5} parent=62 // loop_footer_branch
                  %290 = sbr.rel target = $region72
                $region77: #{simple_cnn_gray_forward.5} parent=62 // loop_exit
                  _
              $region63: #{simple_cnn_gray_forward.5} parent=47 // pred_fallthru
                _
            $region48: #{simple_cnn_gray_forward.5} parent=43 // pred_fallthru
              _
            // Predicated region
            $region49: #{simple_cnn_gray_forward.5} parent=43 // pred_check
              _
            $region50: #{simple_cnn_gray_forward.5} parent=43 // pred_check_branch
              %235 = sbr.rel (0) target = $region52
            $region51: #{simple_cnn_gray_forward.5} parent=43 // pred_region
              %s237 = ssub.s32 4, 1
              loop: start=0, step=1, limit=1
              $region53: #{simple_cnn_gray_forward.5} parent=51 // loop_pre_header
                _
              $region54: #{simple_cnn_gray_forward.5} parent=51 // loop_header
                %s239 = sphi 0, %s243
                %p240 = scmp.ge.s32.totalorder %s239, 1
                %s244 = sphi %s229, %s229
                %s245 = sphi %s226, %s226
              $region55: #{simple_cnn_gray_forward.5} parent=51 // loop_header_branch
                %242 = sbr.rel (%p240) target = $region59
              $region56: #{simple_cnn_gray_forward.5} parent=51 // loop_body
                %v246 = vld [vmem:[%s244] sm:%s237]
                %247 = vst [vmem:[%s245] sm:%s237] %v246
                %v248 = vld [vmem:[%s244 + $0x4] sm:%s237]
                %249 = vst [vmem:[%s245 + $0x2] sm:%s237] %v248
                %v250 = vld [vmem:[%s244 + $0x8] sm:%s237]
                %251 = vst [vmem:[%s245 + $0x4] sm:%s237] %v250
                %v252 = vld [vmem:[%s244 + $0xc] sm:%s237]
                %253 = vst [vmem:[%s245 + $0x6] sm:%s237] %v252
                %v254 = vld [vmem:[%s244 + $0x10] sm:%s237]
                %255 = vst [vmem:[%s245 + $0x8] sm:%s237] %v254
                %v256 = vld [vmem:[%s244 + $0x14] sm:%s237]
                %257 = vst [vmem:[%s245 + $0xa] sm:%s237] %v256
                %v258 = vld [vmem:[%s244 + $0x18] sm:%s237]
                %259 = vst [vmem:[%s245 + $0xc] sm:%s237] %v258
                %v260 = vld [vmem:[%s244 + $0x1c] sm:%s237]
                %261 = vst [vmem:[%s245 + $0xe] sm:%s237] %v260
                %v262 = vld [vmem:[%s244 + $0x20] sm:%s237]
                %263 = vst [vmem:[%s245 + $0x10] sm:%s237] %v262
                %v264 = vld [vmem:[%s244 + $0x24] sm:%s237]
                %265 = vst [vmem:[%s245 + $0x12] sm:%s237] %v264
                %v266 = vld [vmem:[%s244 + $0x28] sm:%s237]
                %267 = vst [vmem:[%s245 + $0x14] sm:%s237] %v266
                %v268 = vld [vmem:[%s244 + $0x2c] sm:%s237]
                %269 = vst [vmem:[%s245 + $0x16] sm:%s237] %v268
                %v270 = vld [vmem:[%s244 + $0x30] sm:%s237]
                %271 = vst [vmem:[%s245 + $0x18] sm:%s237] %v270
                %v272 = vld [vmem:[%s244 + $0x34] sm:%s237]
                %273 = vst [vmem:[%s245 + $0x1a] sm:%s237] %v272
                %v274 = vld [vmem:[%s244 + $0x38] sm:%s237]
                %275 = vst [vmem:[%s245 + $0x1c] sm:%s237] %v274
                %v276 = vld [vmem:[%s244 + $0x3c] sm:%s237]
                %277 = vst [vmem:[%s245 + $0x1e] sm:%s237] %v276
              $region57: #{simple_cnn_gray_forward.5} parent=51 // loop_footer
                %s243 = sadd.s32 1, %s239
              $region58: #{simple_cnn_gray_forward.5} parent=51 // loop_footer_branch
                %238 = sbr.rel target = $region54
              $region59: #{simple_cnn_gray_forward.5} parent=51 // loop_exit
                _
            $region52: #{simple_cnn_gray_forward.5} parent=43 // pred_fallthru
              _
          $region44: #{simple_cnn_gray_forward.5} parent=39 // pred_fallthru
            _
          %330 = vnop
        $region40: #{simple_cnn_gray_forward.5} parent=35 // pred_fallthru
          _
      $region36: #{simple_cnn_gray_forward.5} parent=5 // pred_fallthru
        _
      %p331 = scmp.le.s32.totalorder 1, %s15
      %p332 = scmp.lt.s32.totalorder %s15, 3
      %p333 = pnand %p331, %p332
      %p334 = pneg %p333
      // Predicated region
      $region78: #{simple_cnn_gray_forward.5} parent=5 // pred_check
        _
      $region79: #{simple_cnn_gray_forward.5} parent=5 // pred_check_branch
        %336 = sbr.rel (%p333) target = $region81
      $region80: #{simple_cnn_gray_forward.5} parent=5 // pred_region
        %s337 = ssub.s32 %s15, 1
        %s338 = sand.u32 %s42, 1
        %s339 = sand.u32 %s42, 1
        %s340 = smul.addr %s339, 32
        %s341 = scalar_lea.vmem [#allocation3], %s340
        // Predicated region
        $region82: #{simple_cnn_gray_forward.5} parent=80 // pred_check
          %p342 = pneg %p55
        $region83: #{simple_cnn_gray_forward.5} parent=80 // pred_check_branch
          %344 = sbr.rel (%p342) target = $region85
        $region84: #{simple_cnn_gray_forward.5} parent=80 // pred_region
          _
        $region85: #{simple_cnn_gray_forward.5} parent=80 // pred_fallthru
          _
        %s345 = sand.u32 %s42, 1
        %s346 = sand.u32 %s42, 1
        %s347 = smul.addr %s346, 32
        %s348 = scalar_lea.vmem [#allocation3], %s347
        %p349 = pneg %p55
        %p350 = pneg %p52
        %p351 = pneg %p76
        %p352 = pneg %p73
        %p353 = pneg %p97
        %p354 = pneg %p94
        %p355 = pneg %p118
        %p356 = pneg %p115
        %p357 = pneg %p139
        %p358 = pneg %p136
        %p359 = pneg %p160
        %p360 = pneg %p157
        %p361 = pneg %p186
        %p362 = pneg %p183
        %s363 = sand.u32 %s173, 1
        %s364 = scalar_lea.sflag [#allocation5], %s363
        %s365 = sand.u32 %s173, 1
        %s366 = scalar_lea.vmem [#allocation4], %s365
        %p368 = scmp.eq.s32.totalorder %s25, 0
        // Predicated region
        $region86: #{simple_cnn_gray_forward.5} parent=80 // pred_check
          %p369 = pneg %p368
        $region87: #{simple_cnn_gray_forward.5} parent=80 // pred_check_branch
          %371 = sbr.rel (%p369) target = $region89
        $region88: #{simple_cnn_gray_forward.5} parent=80 // pred_region
          %372 = vst [vmem:[#allocation2] sm:$0x1] 0.0
        $region89: #{simple_cnn_gray_forward.5} parent=80 // pred_fallthru
          _
        %v373 = vld [vmem:[%s2] sm:$0x1]
        %v374 = vld [vmem:[%s3] sm:$0x1]
        %v375 = vld [vmem:[%s341] sm:$0x3]
        %v376 = vld [vmem:[%s1] sm:$0xf]
        %v377 = vld [vmem:[%s1 + $0x4] sm:$0xf]
        %v378 = vld [vmem:[%s1 + $0x8] sm:$0xf]
        %v379 = vld [vmem:[%s1 + $0xc] sm:$0xf]
        %v380 = vld [vmem:[%s1 + $0x10] sm:$0xf]
        %v381 = vld [vmem:[%s1 + $0x14] sm:$0xf]
        %v382 = vld [vmem:[%s1 + $0x18] sm:$0xf]
        %v383 = vld [vmem:[%s1 + $0x1c] sm:$0xf]
        %s384 = scalar_lea.vmem %s341, 2 [#allocation3]
        %v385 = vld [vmem:[%s384] sm:$0x3]
        %s386 = scalar_lea.vmem %s1, 32
        %v387 = vld [vmem:[%s386] sm:$0xf]
        %v388 = vld [vmem:[%s386 + $0x4] sm:$0xf]
        %v389 = vld [vmem:[%s386 + $0x8] sm:$0xf]
        %v390 = vld [vmem:[%s386 + $0xc] sm:$0xf]
        %v391 = vld [vmem:[%s386 + $0x10] sm:$0xf]
        %v392 = vld [vmem:[%s386 + $0x14] sm:$0xf]
        %v393 = vld [vmem:[%s386 + $0x18] sm:$0xf]
        %v394 = vld [vmem:[%s386 + $0x1c] sm:$0xf]
        %v403 = vunpack.c.l.b16 %v387
        %v404 = vunpack.c.l.b16 %v388
        %v405 = vunpack.c.l.b16 %v389
        %v406 = vunpack.c.l.b16 %v390
        %v407 = vunpack.c.l.b16 %v391
        %v408 = vunpack.c.l.b16 %v392
        %v409 = vunpack.c.l.b16 %v393
        %v410 = vunpack.c.l.b16 %v394
        %v411 = vpack.c.b16 %v404, %v403
        %v412 = vpack.c.b16 %v406, %v405
        %v413 = vpack.c.b16 %v408, %v407
        %v414 = vpack.c.b16 %v410, %v409
        %vm419 = vcmask 523264
        %v421 = vsel %vm419, %v385, 0
        %423 = vmatprep.subr.bf16.mxu0 0
        %424 = vmatpush1.bf16.msra.mxu0 0
        %425 = vmatprep.subr.bf16.mxu0 0
        %426 = vmatpush1.bf16.msra.mxu0 0
        %427 = vmatprep.subr.bf16.mxu0 0
        %428 = vmatpush1.bf16.msra.mxu0 0
        %429 = vmatprep.subr.bf16.mxu0 0
        %430 = vmatpush1.bf16.msra.mxu0 0
        %431 = vmatprep.subr.bf16.mxu0 0
        %432 = vmatpush1.bf16.msra.mxu0 %v414
        %433 = vmatprep.subr.bf16.mxu0 0
        %434 = vmatpush1.bf16.msra.mxu0 %v413
        %435 = vmatprep.subr.bf16.mxu0 0
        %436 = vmatpush1.bf16.msra.mxu0 %v412
        %437 = vmatprep.subr.bf16.mxu0 0
        %438 = vmatpush1.bf16.msra.mxu0 %v411
        %439 = vmatprep.subr.bf16.mxu0 0
        %440 = vmatpush2.bf16.msra.mxu0 0
        %441 = vmatprep.subr.bf16.mxu0 0
        %442 = vmatpush2.bf16.msra.mxu0 0
        %443 = vmatprep.subr.bf16.mxu0 0
        %444 = vmatpush2.bf16.msra.mxu0 0
        %445 = vmatprep.subr.bf16.mxu0 0
        %446 = vmatpush2.bf16.msra.mxu0 0
        %447 = vmatprep.subr.bf16.mxu0 0
        %448 = vmatpush2.bf16.msra.mxu0 0
        %449 = vmatprep.subr.bf16.mxu0 0
        %450 = vmatpush2.bf16.msra.mxu0 0
        %451 = vmatprep.subr.bf16.mxu0 0
        %452 = vmatpush2.bf16.msra.mxu0 0
        %453 = vmatprep.subr.bf16.mxu0 0
        %454 = vmatpush2.bf16.msra.mxu0 0
        %455 = vmatprep.mubr.bf16.mxu0 0
        %456 = vmatmul.mubr.bf16.gmra.mxu0 %v421
        %v457 = vpop.f32.mrf.mxu0
        %v458 = vadd.f32 0.0, %v457
        %v459 = vpop.f32.mrf.mxu0
        %v460 = vpop.f32.mrf.mxu0
        %v461 = vpop.f32.mrf.mxu0
        %462 = vdwg.mxu0
        %v471 = vunpack.c.l.b16 %v376
        %v472 = vunpack.c.l.b16 %v377
        %v473 = vunpack.c.l.b16 %v378
        %v474 = vunpack.c.l.b16 %v379
        %v475 = vunpack.c.l.b16 %v380
        %v476 = vunpack.c.l.b16 %v381
        %v477 = vunpack.c.l.b16 %v382
        %v478 = vunpack.c.l.b16 %v383
        %v479 = vpack.c.b16 %v472, %v471
        %v480 = vpack.c.b16 %v474, %v473
        %v481 = vpack.c.b16 %v476, %v475
        %v482 = vpack.c.b16 %v478, %v477
        %v488 = vsel %vm419, %v375, 0
        %490 = vmatprep.subr.bf16.mxu0 0
        %491 = vmatpush1.bf16.msra.mxu0 0
        %492 = vmatprep.subr.bf16.mxu0 0
        %493 = vmatpush1.bf16.msra.mxu0 0
        %494 = vmatprep.subr.bf16.mxu0 0
        %495 = vmatpush1.bf16.msra.mxu0 0
        %496 = vmatprep.subr.bf16.mxu0 0
        %497 = vmatpush1.bf16.msra.mxu0 0
        %498 = vmatprep.subr.bf16.mxu0 0
        %499 = vmatpush1.bf16.msra.mxu0 %v482
        %500 = vmatprep.subr.bf16.mxu0 0
        %501 = vmatpush1.bf16.msra.mxu0 %v481
        %502 = vmatprep.subr.bf16.mxu0 0
        %503 = vmatpush1.bf16.msra.mxu0 %v480
        %504 = vmatprep.subr.bf16.mxu0 0
        %505 = vmatpush1.bf16.msra.mxu0 %v479
        %506 = vmatprep.subr.bf16.mxu0 0
        %507 = vmatpush2.bf16.msra.mxu0 0
        %508 = vmatprep.subr.bf16.mxu0 0
        %509 = vmatpush2.bf16.msra.mxu0 0
        %510 = vmatprep.subr.bf16.mxu0 0
        %511 = vmatpush2.bf16.msra.mxu0 0
        %512 = vmatprep.subr.bf16.mxu0 0
        %513 = vmatpush2.bf16.msra.mxu0 0
        %514 = vmatprep.subr.bf16.mxu0 0
        %515 = vmatpush2.bf16.msra.mxu0 0
        %516 = vmatprep.subr.bf16.mxu0 0
        %517 = vmatpush2.bf16.msra.mxu0 0
        %518 = vmatprep.subr.bf16.mxu0 0
        %519 = vmatpush2.bf16.msra.mxu0 0
        %520 = vmatprep.subr.bf16.mxu0 0
        %521 = vmatpush2.bf16.msra.mxu0 0
        %522 = vmatprep.mubr.bf16.mxu0 0
        %523 = vmatmul.mubr.bf16.gmra.mxu0 %v488
        %v524 = vpop.f32.mrf.mxu0
        %v525 = vadd.f32 %v458, %v524
        %v526 = vpop.f32.mrf.mxu0
        %v527 = vpop.f32.mrf.mxu0
        %v528 = vpop.f32.mrf.mxu0
        %529 = vdwg.mxu0
        %s530 = scalar_lea.vmem %s341, 4 [#allocation3]
        %v531 = vld [vmem:[%s530] sm:$0x3]
        %s532 = scalar_lea.vmem %s1, 64
        %v533 = vld [vmem:[%s532] sm:$0xf]
        %v534 = vld [vmem:[%s532 + $0x4] sm:$0xf]
        %v535 = vld [vmem:[%s532 + $0x8] sm:$0xf]
        %v536 = vld [vmem:[%s532 + $0xc] sm:$0xf]
        %v537 = vld [vmem:[%s532 + $0x10] sm:$0xf]
        %v538 = vld [vmem:[%s532 + $0x14] sm:$0xf]
        %v539 = vld [vmem:[%s532 + $0x18] sm:$0xf]
        %v540 = vld [vmem:[%s532 + $0x1c] sm:$0xf]
        %v549 = vunpack.c.l.b16 %v533
        %v550 = vunpack.c.l.b16 %v534
        %v551 = vunpack.c.l.b16 %v535
        %v552 = vunpack.c.l.b16 %v536
        %v553 = vunpack.c.l.b16 %v537
        %v554 = vunpack.c.l.b16 %v538
        %v555 = vunpack.c.l.b16 %v539
        %v556 = vunpack.c.l.b16 %v540
        %v557 = vpack.c.b16 %v550, %v549
        %v558 = vpack.c.b16 %v552, %v551
        %v559 = vpack.c.b16 %v554, %v553
        %v560 = vpack.c.b16 %v556, %v555
        %v566 = vsel %vm419, %v531, 0
        %568 = vmatprep.subr.bf16.mxu0 0
        %569 = vmatpush1.bf16.msra.mxu0 0
        %570 = vmatprep.subr.bf16.mxu0 0
        %571 = vmatpush1.bf16.msra.mxu0 0
        %572 = vmatprep.subr.bf16.mxu0 0
        %573 = vmatpush1.bf16.msra.mxu0 0
        %574 = vmatprep.subr.bf16.mxu0 0
        %575 = vmatpush1.bf16.msra.mxu0 0
        %576 = vmatprep.subr.bf16.mxu0 0
        %577 = vmatpush1.bf16.msra.mxu0 %v560
        %578 = vmatprep.subr.bf16.mxu0 0
        %579 = vmatpush1.bf16.msra.mxu0 %v559
        %580 = vmatprep.subr.bf16.mxu0 0
        %581 = vmatpush1.bf16.msra.mxu0 %v558
        %582 = vmatprep.subr.bf16.mxu0 0
        %583 = vmatpush1.bf16.msra.mxu0 %v557
        %584 = vmatprep.subr.bf16.mxu0 0
        %585 = vmatpush2.bf16.msra.mxu0 0
        %586 = vmatprep.subr.bf16.mxu0 0
        %587 = vmatpush2.bf16.msra.mxu0 0
        %588 = vmatprep.subr.bf16.mxu0 0
        %589 = vmatpush2.bf16.msra.mxu0 0
        %590 = vmatprep.subr.bf16.mxu0 0
        %591 = vmatpush2.bf16.msra.mxu0 0
        %592 = vmatprep.subr.bf16.mxu0 0
        %593 = vmatpush2.bf16.msra.mxu0 0
        %594 = vmatprep.subr.bf16.mxu0 0
        %595 = vmatpush2.bf16.msra.mxu0 0
        %596 = vmatprep.subr.bf16.mxu0 0
        %597 = vmatpush2.bf16.msra.mxu0 0
        %598 = vmatprep.subr.bf16.mxu0 0
        %599 = vmatpush2.bf16.msra.mxu0 0
        %600 = vmatprep.mubr.bf16.mxu0 0
        %601 = vmatmul.mubr.bf16.gmra.mxu0 %v566
        %v602 = vpop.f32.mrf.mxu0
        %v603 = vadd.f32 0.0, %v602
        %v604 = vpop.f32.mrf.mxu0
        %v605 = vpop.f32.mrf.mxu0
        %v606 = vpop.f32.mrf.mxu0
        %607 = vdwg.mxu0
        %v608 = vadd.f32 %v525, %v603
        %s609 = scalar_lea.vmem %s341, 8 [#allocation3]
        %v610 = vld [vmem:[%s609] sm:$0x3]
        %s611 = scalar_lea.vmem %s1, 96
        %v612 = vld [vmem:[%s611] sm:$0xf]
        %v613 = vld [vmem:[%s611 + $0x4] sm:$0xf]
        %v614 = vld [vmem:[%s611 + $0x8] sm:$0xf]
        %v615 = vld [vmem:[%s611 + $0xc] sm:$0xf]
        %v616 = vld [vmem:[%s611 + $0x10] sm:$0xf]
        %v617 = vld [vmem:[%s611 + $0x14] sm:$0xf]
        %v618 = vld [vmem:[%s611 + $0x18] sm:$0xf]
        %v619 = vld [vmem:[%s611 + $0x1c] sm:$0xf]
        %v628 = vunpack.c.l.b16 %v612
        %v629 = vunpack.c.l.b16 %v613
        %v630 = vunpack.c.l.b16 %v614
        %v631 = vunpack.c.l.b16 %v615
        %v632 = vunpack.c.l.b16 %v616
        %v633 = vunpack.c.l.b16 %v617
        %v634 = vunpack.c.l.b16 %v618
        %v635 = vunpack.c.l.b16 %v619
        %v636 = vpack.c.b16 %v629, %v628
        %v637 = vpack.c.b16 %v631, %v630
        %v638 = vpack.c.b16 %v633, %v632
        %v639 = vpack.c.b16 %v635, %v634
        %v645 = vsel %vm419, %v610, 0
        %647 = vmatprep.subr.bf16.mxu0 0
        %648 = vmatpush1.bf16.msra.mxu0 0
        %649 = vmatprep.subr.bf16.mxu0 0
        %650 = vmatpush1.bf16.msra.mxu0 0
        %651 = vmatprep.subr.bf16.mxu0 0
        %652 = vmatpush1.bf16.msra.mxu0 0
        %653 = vmatprep.subr.bf16.mxu0 0
        %654 = vmatpush1.bf16.msra.mxu0 0
        %655 = vmatprep.subr.bf16.mxu0 0
        %656 = vmatpush1.bf16.msra.mxu0 %v639
        %657 = vmatprep.subr.bf16.mxu0 0
        %658 = vmatpush1.bf16.msra.mxu0 %v638
        %659 = vmatprep.subr.bf16.mxu0 0
        %660 = vmatpush1.bf16.msra.mxu0 %v637
        %661 = vmatprep.subr.bf16.mxu0 0
        %662 = vmatpush1.bf16.msra.mxu0 %v636
        %663 = vmatprep.subr.bf16.mxu0 0
        %664 = vmatpush2.bf16.msra.mxu0 0
        %665 = vmatprep.subr.bf16.mxu0 0
        %666 = vmatpush2.bf16.msra.mxu0 0
        %667 = vmatprep.subr.bf16.mxu0 0
        %668 = vmatpush2.bf16.msra.mxu0 0
        %669 = vmatprep.subr.bf16.mxu0 0
        %670 = vmatpush2.bf16.msra.mxu0 0
        %671 = vmatprep.subr.bf16.mxu0 0
        %672 = vmatpush2.bf16.msra.mxu0 0
        %673 = vmatprep.subr.bf16.mxu0 0
        %674 = vmatpush2.bf16.msra.mxu0 0
        %675 = vmatprep.subr.bf16.mxu0 0
        %676 = vmatpush2.bf16.msra.mxu0 0
        %677 = vmatprep.subr.bf16.mxu0 0
        %678 = vmatpush2.bf16.msra.mxu0 0
        %679 = vmatprep.mubr.bf16.mxu0 0
        %680 = vmatmul.mubr.bf16.gmra.mxu0 %v645
        %v681 = vpop.f32.mrf.mxu0
        %v682 = vadd.f32 0.0, %v681
        %v683 = vpop.f32.mrf.mxu0
        %v684 = vpop.f32.mrf.mxu0
        %v685 = vpop.f32.mrf.mxu0
        %686 = vdwg.mxu0
        %v687 = vadd.f32 %v608, %v682
        %s688 = scalar_lea.vmem %s341, 10 [#allocation3]
        %v689 = vld [vmem:[%s688] sm:$0x3]
        %s690 = scalar_lea.vmem %s1, 128
        %v691 = vld [vmem:[%s690] sm:$0xf]
        %v692 = vld [vmem:[%s690 + $0x4] sm:$0xf]
        %v693 = vld [vmem:[%s690 + $0x8] sm:$0xf]
        %v694 = vld [vmem:[%s690 + $0xc] sm:$0xf]
        %v695 = vld [vmem:[%s690 + $0x10] sm:$0xf]
        %v696 = vld [vmem:[%s690 + $0x14] sm:$0xf]
        %v697 = vld [vmem:[%s690 + $0x18] sm:$0xf]
        %v698 = vld [vmem:[%s690 + $0x1c] sm:$0xf]
        %v707 = vunpack.c.l.b16 %v691
        %v708 = vunpack.c.l.b16 %v692
        %v709 = vunpack.c.l.b16 %v693
        %v710 = vunpack.c.l.b16 %v694
        %v711 = vunpack.c.l.b16 %v695
        %v712 = vunpack.c.l.b16 %v696
        %v713 = vunpack.c.l.b16 %v697
        %v714 = vunpack.c.l.b16 %v698
        %v715 = vpack.c.b16 %v708, %v707
        %v716 = vpack.c.b16 %v710, %v709
        %v717 = vpack.c.b16 %v712, %v711
        %v718 = vpack.c.b16 %v714, %v713
        %v724 = vsel %vm419, %v689, 0
        %726 = vmatprep.subr.bf16.mxu0 0
        %727 = vmatpush1.bf16.msra.mxu0 0
        %728 = vmatprep.subr.bf16.mxu0 0
        %729 = vmatpush1.bf16.msra.mxu0 0
        %730 = vmatprep.subr.bf16.mxu0 0
        %731 = vmatpush1.bf16.msra.mxu0 0
        %732 = vmatprep.subr.bf16.mxu0 0
        %733 = vmatpush1.bf16.msra.mxu0 0
        %734 = vmatprep.subr.bf16.mxu0 0
        %735 = vmatpush1.bf16.msra.mxu0 %v718
        %736 = vmatprep.subr.bf16.mxu0 0
        %737 = vmatpush1.bf16.msra.mxu0 %v717
        %738 = vmatprep.subr.bf16.mxu0 0
        %739 = vmatpush1.bf16.msra.mxu0 %v716
        %740 = vmatprep.subr.bf16.mxu0 0
        %741 = vmatpush1.bf16.msra.mxu0 %v715
        %742 = vmatprep.subr.bf16.mxu0 0
        %743 = vmatpush2.bf16.msra.mxu0 0
        %744 = vmatprep.subr.bf16.mxu0 0
        %745 = vmatpush2.bf16.msra.mxu0 0
        %746 = vmatprep.subr.bf16.mxu0 0
        %747 = vmatpush2.bf16.msra.mxu0 0
        %748 = vmatprep.subr.bf16.mxu0 0
        %749 = vmatpush2.bf16.msra.mxu0 0
        %750 = vmatprep.subr.bf16.mxu0 0
        %751 = vmatpush2.bf16.msra.mxu0 0
        %752 = vmatprep.subr.bf16.mxu0 0
        %753 = vmatpush2.bf16.msra.mxu0 0
        %754 = vmatprep.subr.bf16.mxu0 0
        %755 = vmatpush2.bf16.msra.mxu0 0
        %756 = vmatprep.subr.bf16.mxu0 0
        %757 = vmatpush2.bf16.msra.mxu0 0
        %758 = vmatprep.mubr.bf16.mxu0 0
        %759 = vmatmul.mubr.bf16.gmra.mxu0 %v724
        %v760 = vpop.f32.mrf.mxu0
        %v761 = vadd.f32 0.0, %v760
        %v762 = vpop.f32.mrf.mxu0
        %v763 = vpop.f32.mrf.mxu0
        %v764 = vpop.f32.mrf.mxu0
        %765 = vdwg.mxu0
        %v766 = vadd.f32 %v687, %v761
        %s767 = scalar_lea.vmem %s341, 12 [#allocation3]
        %v768 = vld [vmem:[%s767] sm:$0x3]
        %s769 = scalar_lea.vmem %s1, 160
        %v770 = vld [vmem:[%s769] sm:$0xf]
        %v771 = vld [vmem:[%s769 + $0x4] sm:$0xf]
        %v772 = vld [vmem:[%s769 + $0x8] sm:$0xf]
        %v773 = vld [vmem:[%s769 + $0xc] sm:$0xf]
        %v774 = vld [vmem:[%s769 + $0x10] sm:$0xf]
        %v775 = vld [vmem:[%s769 + $0x14] sm:$0xf]
        %v776 = vld [vmem:[%s769 + $0x18] sm:$0xf]
        %v777 = vld [vmem:[%s769 + $0x1c] sm:$0xf]
        %v786 = vunpack.c.l.b16 %v770
        %v787 = vunpack.c.l.b16 %v771
        %v788 = vunpack.c.l.b16 %v772
        %v789 = vunpack.c.l.b16 %v773
        %v790 = vunpack.c.l.b16 %v774
        %v791 = vunpack.c.l.b16 %v775
        %v792 = vunpack.c.l.b16 %v776
        %v793 = vunpack.c.l.b16 %v777
        %v794 = vpack.c.b16 %v787, %v786
        %v795 = vpack.c.b16 %v789, %v788
        %v796 = vpack.c.b16 %v791, %v790
        %v797 = vpack.c.b16 %v793, %v792
        %v803 = vsel %vm419, %v768, 0
        %805 = vmatprep.subr.bf16.mxu0 0
        %806 = vmatpush1.bf16.msra.mxu0 0
        %807 = vmatprep.subr.bf16.mxu0 0
        %808 = vmatpush1.bf16.msra.mxu0 0
        %809 = vmatprep.subr.bf16.mxu0 0
        %810 = vmatpush1.bf16.msra.mxu0 0
        %811 = vmatprep.subr.bf16.mxu0 0
        %812 = vmatpush1.bf16.msra.mxu0 0
        %813 = vmatprep.subr.bf16.mxu0 0
        %814 = vmatpush1.bf16.msra.mxu0 %v797
        %815 = vmatprep.subr.bf16.mxu0 0
        %816 = vmatpush1.bf16.msra.mxu0 %v796
        %817 = vmatprep.subr.bf16.mxu0 0
        %818 = vmatpush1.bf16.msra.mxu0 %v795
        %819 = vmatprep.subr.bf16.mxu0 0
        %820 = vmatpush1.bf16.msra.mxu0 %v794
        %821 = vmatprep.subr.bf16.mxu0 0
        %822 = vmatpush2.bf16.msra.mxu0 0
        %823 = vmatprep.subr.bf16.mxu0 0
        %824 = vmatpush2.bf16.msra.mxu0 0
        %825 = vmatprep.subr.bf16.mxu0 0
        %826 = vmatpush2.bf16.msra.mxu0 0
        %827 = vmatprep.subr.bf16.mxu0 0
        %828 = vmatpush2.bf16.msra.mxu0 0
        %829 = vmatprep.subr.bf16.mxu0 0
        %830 = vmatpush2.bf16.msra.mxu0 0
        %831 = vmatprep.subr.bf16.mxu0 0
        %832 = vmatpush2.bf16.msra.mxu0 0
        %833 = vmatprep.subr.bf16.mxu0 0
        %834 = vmatpush2.bf16.msra.mxu0 0
        %835 = vmatprep.subr.bf16.mxu0 0
        %836 = vmatpush2.bf16.msra.mxu0 0
        %837 = vmatprep.mubr.bf16.mxu0 0
        %838 = vmatmul.mubr.bf16.gmra.mxu0 %v803
        %v839 = vpop.f32.mrf.mxu0
        %v840 = vadd.f32 0.0, %v839
        %v841 = vpop.f32.mrf.mxu0
        %v842 = vpop.f32.mrf.mxu0
        %v843 = vpop.f32.mrf.mxu0
        %844 = vdwg.mxu0
        %v845 = vadd.f32 %v766, %v840
        %s846 = scalar_lea.vmem %s341, 16 [#allocation3]
        %v847 = vld [vmem:[%s846] sm:$0x3]
        %s848 = scalar_lea.vmem %s1, 192
        %v849 = vld [vmem:[%s848] sm:$0xf]
        %v850 = vld [vmem:[%s848 + $0x4] sm:$0xf]
        %v851 = vld [vmem:[%s848 + $0x8] sm:$0xf]
        %v852 = vld [vmem:[%s848 + $0xc] sm:$0xf]
        %v853 = vld [vmem:[%s848 + $0x10] sm:$0xf]
        %v854 = vld [vmem:[%s848 + $0x14] sm:$0xf]
        %v855 = vld [vmem:[%s848 + $0x18] sm:$0xf]
        %v856 = vld [vmem:[%s848 + $0x1c] sm:$0xf]
        %v865 = vunpack.c.l.b16 %v849
        %v866 = vunpack.c.l.b16 %v850
        %v867 = vunpack.c.l.b16 %v851
        %v868 = vunpack.c.l.b16 %v852
        %v869 = vunpack.c.l.b16 %v853
        %v870 = vunpack.c.l.b16 %v854
        %v871 = vunpack.c.l.b16 %v855
        %v872 = vunpack.c.l.b16 %v856
        %v873 = vpack.c.b16 %v866, %v865
        %v874 = vpack.c.b16 %v868, %v867
        %v875 = vpack.c.b16 %v870, %v869
        %v876 = vpack.c.b16 %v872, %v871
        %v882 = vsel %vm419, %v847, 0
        %884 = vmatprep.subr.bf16.mxu0 0
        %885 = vmatpush1.bf16.msra.mxu0 0
        %886 = vmatprep.subr.bf16.mxu0 0
        %887 = vmatpush1.bf16.msra.mxu0 0
        %888 = vmatprep.subr.bf16.mxu0 0
        %889 = vmatpush1.bf16.msra.mxu0 0
        %890 = vmatprep.subr.bf16.mxu0 0
        %891 = vmatpush1.bf16.msra.mxu0 0
        %892 = vmatprep.subr.bf16.mxu0 0
        %893 = vmatpush1.bf16.msra.mxu0 %v876
        %894 = vmatprep.subr.bf16.mxu0 0
        %895 = vmatpush1.bf16.msra.mxu0 %v875
        %896 = vmatprep.subr.bf16.mxu0 0
        %897 = vmatpush1.bf16.msra.mxu0 %v874
        %898 = vmatprep.subr.bf16.mxu0 0
        %899 = vmatpush1.bf16.msra.mxu0 %v873
        %900 = vmatprep.subr.bf16.mxu0 0
        %901 = vmatpush2.bf16.msra.mxu0 0
        %902 = vmatprep.subr.bf16.mxu0 0
        %903 = vmatpush2.bf16.msra.mxu0 0
        %904 = vmatprep.subr.bf16.mxu0 0
        %905 = vmatpush2.bf16.msra.mxu0 0
        %906 = vmatprep.subr.bf16.mxu0 0
        %907 = vmatpush2.bf16.msra.mxu0 0
        %908 = vmatprep.subr.bf16.mxu0 0
        %909 = vmatpush2.bf16.msra.mxu0 0
        %910 = vmatprep.subr.bf16.mxu0 0
        %911 = vmatpush2.bf16.msra.mxu0 0
        %912 = vmatprep.subr.bf16.mxu0 0
        %913 = vmatpush2.bf16.msra.mxu0 0
        %914 = vmatprep.subr.bf16.mxu0 0
        %915 = vmatpush2.bf16.msra.mxu0 0
        %916 = vmatprep.mubr.bf16.mxu0 0
        %917 = vmatmul.mubr.bf16.gmra.mxu0 %v882
        %v918 = vpop.f32.mrf.mxu0
        %v919 = vadd.f32 0.0, %v918
        %v920 = vpop.f32.mrf.mxu0
        %v921 = vpop.f32.mrf.mxu0
        %v922 = vpop.f32.mrf.mxu0
        %923 = vdwg.mxu0
        %v924 = vadd.f32 %v845, %v919
        %s925 = scalar_lea.vmem %s341, 18 [#allocation3]
        %v926 = vld [vmem:[%s925] sm:$0x3]
        %s927 = scalar_lea.vmem %s1, 224
        %v928 = vld [vmem:[%s927] sm:$0xf]
        %v929 = vld [vmem:[%s927 + $0x4] sm:$0xf]
        %v930 = vld [vmem:[%s927 + $0x8] sm:$0xf]
        %v931 = vld [vmem:[%s927 + $0xc] sm:$0xf]
        %v932 = vld [vmem:[%s927 + $0x10] sm:$0xf]
        %v933 = vld [vmem:[%s927 + $0x14] sm:$0xf]
        %v934 = vld [vmem:[%s927 + $0x18] sm:$0xf]
        %v935 = vld [vmem:[%s927 + $0x1c] sm:$0xf]
        %v944 = vunpack.c.l.b16 %v928
        %v945 = vunpack.c.l.b16 %v929
        %v946 = vunpack.c.l.b16 %v930
        %v947 = vunpack.c.l.b16 %v931
        %v948 = vunpack.c.l.b16 %v932
        %v949 = vunpack.c.l.b16 %v933
        %v950 = vunpack.c.l.b16 %v934
        %v951 = vunpack.c.l.b16 %v935
        %v952 = vpack.c.b16 %v945, %v944
        %v953 = vpack.c.b16 %v947, %v946
        %v954 = vpack.c.b16 %v949, %v948
        %v955 = vpack.c.b16 %v951, %v950
        %v961 = vsel %vm419, %v926, 0
        %963 = vmatprep.subr.bf16.mxu0 0
        %964 = vmatpush1.bf16.msra.mxu0 0
        %965 = vmatprep.subr.bf16.mxu0 0
        %966 = vmatpush1.bf16.msra.mxu0 0
        %967 = vmatprep.subr.bf16.mxu0 0
        %968 = vmatpush1.bf16.msra.mxu0 0
        %969 = vmatprep.subr.bf16.mxu0 0
        %970 = vmatpush1.bf16.msra.mxu0 0
        %971 = vmatprep.subr.bf16.mxu0 0
        %972 = vmatpush1.bf16.msra.mxu0 %v955
        %973 = vmatprep.subr.bf16.mxu0 0
        %974 = vmatpush1.bf16.msra.mxu0 %v954
        %975 = vmatprep.subr.bf16.mxu0 0
        %976 = vmatpush1.bf16.msra.mxu0 %v953
        %977 = vmatprep.subr.bf16.mxu0 0
        %978 = vmatpush1.bf16.msra.mxu0 %v952
        %979 = vmatprep.subr.bf16.mxu0 0
        %980 = vmatpush2.bf16.msra.mxu0 0
        %981 = vmatprep.subr.bf16.mxu0 0
        %982 = vmatpush2.bf16.msra.mxu0 0
        %983 = vmatprep.subr.bf16.mxu0 0
        %984 = vmatpush2.bf16.msra.mxu0 0
        %985 = vmatprep.subr.bf16.mxu0 0
        %986 = vmatpush2.bf16.msra.mxu0 0
        %987 = vmatprep.subr.bf16.mxu0 0
        %988 = vmatpush2.bf16.msra.mxu0 0
        %989 = vmatprep.subr.bf16.mxu0 0
        %990 = vmatpush2.bf16.msra.mxu0 0
        %991 = vmatprep.subr.bf16.mxu0 0
        %992 = vmatpush2.bf16.msra.mxu0 0
        %993 = vmatprep.subr.bf16.mxu0 0
        %994 = vmatpush2.bf16.msra.mxu0 0
        %995 = vmatprep.mubr.bf16.mxu0 0
        %996 = vmatmul.mubr.bf16.gmra.mxu0 %v961
        %v997 = vpop.f32.mrf.mxu0
        %v998 = vadd.f32 0.0, %v997
        %v999 = vpop.f32.mrf.mxu0
        %v1000 = vpop.f32.mrf.mxu0
        %v1001 = vpop.f32.mrf.mxu0
        %1002 = vdwg.mxu0
        %v1003 = vadd.f32 %v924, %v998
        %s1004 = scalar_lea.vmem %s341, 20 [#allocation3]
        %v1005 = vld [vmem:[%s1004] sm:$0x3]
        %s1006 = scalar_lea.vmem %s1, 256
        %v1007 = vld [vmem:[%s1006] sm:$0xf]
        %v1008 = vld [vmem:[%s1006 + $0x4] sm:$0xf]
        %v1009 = vld [vmem:[%s1006 + $0x8] sm:$0xf]
        %v1010 = vld [vmem:[%s1006 + $0xc] sm:$0xf]
        %v1011 = vld [vmem:[%s1006 + $0x10] sm:$0xf]
        %v1012 = vld [vmem:[%s1006 + $0x14] sm:$0xf]
        %v1013 = vld [vmem:[%s1006 + $0x18] sm:$0xf]
        %v1014 = vld [vmem:[%s1006 + $0x1c] sm:$0xf]
        %v1023 = vunpack.c.l.b16 %v1007
        %v1024 = vunpack.c.l.b16 %v1008
        %v1025 = vunpack.c.l.b16 %v1009
        %v1026 = vunpack.c.l.b16 %v1010
        %v1027 = vunpack.c.l.b16 %v1011
        %v1028 = vunpack.c.l.b16 %v1012
        %v1029 = vunpack.c.l.b16 %v1013
        %v1030 = vunpack.c.l.b16 %v1014
        %v1031 = vpack.c.b16 %v1024, %v1023
        %v1032 = vpack.c.b16 %v1026, %v1025
        %v1033 = vpack.c.b16 %v1028, %v1027
        %v1034 = vpack.c.b16 %v1030, %v1029
        %v1040 = vsel %vm419, %v1005, 0
        %1042 = vmatprep.subr.bf16.mxu0 0
        %1043 = vmatpush1.bf16.msra.mxu0 0
        %1044 = vmatprep.subr.bf16.mxu0 0
        %1045 = vmatpush1.bf16.msra.mxu0 0
        %1046 = vmatprep.subr.bf16.mxu0 0
        %1047 = vmatpush1.bf16.msra.mxu0 0
        %1048 = vmatprep.subr.bf16.mxu0 0
        %1049 = vmatpush1.bf16.msra.mxu0 0
        %1050 = vmatprep.subr.bf16.mxu0 0
        %1051 = vmatpush1.bf16.msra.mxu0 %v1034
        %1052 = vmatprep.subr.bf16.mxu0 0
        %1053 = vmatpush1.bf16.msra.mxu0 %v1033
        %1054 = vmatprep.subr.bf16.mxu0 0
        %1055 = vmatpush1.bf16.msra.mxu0 %v1032
        %1056 = vmatprep.subr.bf16.mxu0 0
        %1057 = vmatpush1.bf16.msra.mxu0 %v1031
        %1058 = vmatprep.subr.bf16.mxu0 0
        %1059 = vmatpush2.bf16.msra.mxu0 0
        %1060 = vmatprep.subr.bf16.mxu0 0
        %1061 = vmatpush2.bf16.msra.mxu0 0
        %1062 = vmatprep.subr.bf16.mxu0 0
        %1063 = vmatpush2.bf16.msra.mxu0 0
        %1064 = vmatprep.subr.bf16.mxu0 0
        %1065 = vmatpush2.bf16.msra.mxu0 0
        %1066 = vmatprep.subr.bf16.mxu0 0
        %1067 = vmatpush2.bf16.msra.mxu0 0
        %1068 = vmatprep.subr.bf16.mxu0 0
        %1069 = vmatpush2.bf16.msra.mxu0 0
        %1070 = vmatprep.subr.bf16.mxu0 0
        %1071 = vmatpush2.bf16.msra.mxu0 0
        %1072 = vmatprep.subr.bf16.mxu0 0
        %1073 = vmatpush2.bf16.msra.mxu0 0
        %1074 = vmatprep.mubr.bf16.mxu0 0
        %1075 = vmatmul.mubr.bf16.gmra.mxu0 %v1040
        %v1076 = vpop.f32.mrf.mxu0
        %v1077 = vadd.f32 0.0, %v1076
        %v1078 = vpop.f32.mrf.mxu0
        %v1079 = vpop.f32.mrf.mxu0
        %v1080 = vpop.f32.mrf.mxu0
        %1081 = vdwg.mxu0
        %v1082 = vadd.f32 %v1003, %v1077
        %v1084 = vlaneseq
        %v1085 = vshrl.u32 %v1084, 7
        %v1086 = vsub.s32 0, %v1085
        %v1087 = vrot.slane %v373, %v1086
        %v1089 = vmul.f32 %v1082, %v1087
        %v1091 = vlaneseq
        %v1092 = vshrl.u32 %v1091, 7
        %v1093 = vsub.s32 0, %v1092
        %v1094 = vrot.slane %v374, %v1093
        %v1096 = vadd.f32 %v1089, %v1094
        %v1097 = vmax.f32 %v1096, 0.0
        %1098 = vmatprep.subr.bf16.mxu0 0
        %1099 = vmatpush1.bf16.msra.mxu0 0
        %1100 = vmatprep.subr.bf16.mxu0 0
        %1101 = vmatpush1.bf16.msra.mxu0 0
        %1102 = vmatprep.subr.bf16.mxu0 0
        %1103 = vmatpush1.bf16.msra.mxu0 0
        %1104 = vmatprep.subr.bf16.mxu0 0
        %1105 = vmatpush1.bf16.msra.mxu0 0
        %1106 = vmatprep.subr.bf16.mxu0 0
        %1107 = vmatpush1.bf16.msra.mxu0 %v414
        %1108 = vmatprep.subr.bf16.mxu0 0
        %1109 = vmatpush1.bf16.msra.mxu0 %v413
        %1110 = vmatprep.subr.bf16.mxu0 0
        %1111 = vmatpush1.bf16.msra.mxu0 %v412
        %1112 = vmatprep.subr.bf16.mxu0 0
        %1113 = vmatpush1.bf16.msra.mxu0 %v411
        %1114 = vmatprep.subr.bf16.mxu0 0
        %1115 = vmatpush2.bf16.msra.mxu0 0
        %1116 = vmatprep.subr.bf16.mxu0 0
        %1117 = vmatpush2.bf16.msra.mxu0 0
        %1118 = vmatprep.subr.bf16.mxu0 0
        %1119 = vmatpush2.bf16.msra.mxu0 0
        %1120 = vmatprep.subr.bf16.mxu0 0
        %1121 = vmatpush2.bf16.msra.mxu0 0
        %1122 = vmatprep.subr.bf16.mxu0 0
        %1123 = vmatpush2.bf16.msra.mxu0 0
        %1124 = vmatprep.subr.bf16.mxu0 0
        %1125 = vmatpush2.bf16.msra.mxu0 0
        %1126 = vmatprep.subr.bf16.mxu0 0
        %1127 = vmatpush2.bf16.msra.mxu0 0
        %1128 = vmatprep.subr.bf16.mxu0 0
        %1129 = vmatpush2.bf16.msra.mxu0 0
        %1130 = vmatprep.mubr.bf16.mxu0 0
        %1131 = vmatmul.mubr.bf16.gmra.mxu0 %v566
        %v1132 = vpop.f32.mrf.mxu0
        %v1133 = vadd.f32 0.0, %v1132
        %v1134 = vpop.f32.mrf.mxu0
        %v1135 = vpop.f32.mrf.mxu0
        %v1136 = vpop.f32.mrf.mxu0
        %1137 = vdwg.mxu0
        %1138 = vmatprep.subr.bf16.mxu0 0
        %1139 = vmatpush1.bf16.msra.mxu0 0
        %1140 = vmatprep.subr.bf16.mxu0 0
        %1141 = vmatpush1.bf16.msra.mxu0 0
        %1142 = vmatprep.subr.bf16.mxu0 0
        %1143 = vmatpush1.bf16.msra.mxu0 0
        %1144 = vmatprep.subr.bf16.mxu0 0
        %1145 = vmatpush1.bf16.msra.mxu0 0
        %1146 = vmatprep.subr.bf16.mxu0 0
        %1147 = vmatpush1.bf16.msra.mxu0 %v482
        %1148 = vmatprep.subr.bf16.mxu0 0
        %1149 = vmatpush1.bf16.msra.mxu0 %v481
        %1150 = vmatprep.subr.bf16.mxu0 0
        %1151 = vmatpush1.bf16.msra.mxu0 %v480
        %1152 = vmatprep.subr.bf16.mxu0 0
        %1153 = vmatpush1.bf16.msra.mxu0 %v479
        %1154 = vmatprep.subr.bf16.mxu0 0
        %1155 = vmatpush2.bf16.msra.mxu0 0
        %1156 = vmatprep.subr.bf16.mxu0 0
        %1157 = vmatpush2.bf16.msra.mxu0 0
        %1158 = vmatprep.subr.bf16.mxu0 0
        %1159 = vmatpush2.bf16.msra.mxu0 0
        %1160 = vmatprep.subr.bf16.mxu0 0
        %1161 = vmatpush2.bf16.msra.mxu0 0
        %1162 = vmatprep.subr.bf16.mxu0 0
        %1163 = vmatpush2.bf16.msra.mxu0 0
        %1164 = vmatprep.subr.bf16.mxu0 0
        %1165 = vmatpush2.bf16.msra.mxu0 0
        %1166 = vmatprep.subr.bf16.mxu0 0
        %1167 = vmatpush2.bf16.msra.mxu0 0
        %1168 = vmatprep.subr.bf16.mxu0 0
        %1169 = vmatpush2.bf16.msra.mxu0 0
        %1170 = vmatprep.mubr.bf16.mxu0 0
        %1171 = vmatmul.mubr.bf16.gmra.mxu0 %v421
        %v1172 = vpop.f32.mrf.mxu0
        %v1173 = vadd.f32 %v1133, %v1172
        %v1174 = vpop.f32.mrf.mxu0
        %v1175 = vpop.f32.mrf.mxu0
        %v1176 = vpop.f32.mrf.mxu0
        %1177 = vdwg.mxu0
        %s1178 = scalar_lea.vmem %s341, 6 [#allocation3]
        %v1179 = vld [vmem:[%s1178] sm:$0x3]
        %v1181 = vsel %vm419, %v1179, 0
        %1183 = vmatprep.subr.bf16.mxu0 0
        %1184 = vmatpush1.bf16.msra.mxu0 0
        %1185 = vmatprep.subr.bf16.mxu0 0
        %1186 = vmatpush1.bf16.msra.mxu0 0
        %1187 = vmatprep.subr.bf16.mxu0 0
        %1188 = vmatpush1.bf16.msra.mxu0 0
        %1189 = vmatprep.subr.bf16.mxu0 0
        %1190 = vmatpush1.bf16.msra.mxu0 0
        %1191 = vmatprep.subr.bf16.mxu0 0
        %1192 = vmatpush1.bf16.msra.mxu0 %v560
        %1193 = vmatprep.subr.bf16.mxu0 0
        %1194 = vmatpush1.bf16.msra.mxu0 %v559
        %1195 = vmatprep.subr.bf16.mxu0 0
        %1196 = vmatpush1.bf16.msra.mxu0 %v558
        %1197 = vmatprep.subr.bf16.mxu0 0
        %1198 = vmatpush1.bf16.msra.mxu0 %v557
        %1199 = vmatprep.subr.bf16.mxu0 0
        %1200 = vmatpush2.bf16.msra.mxu0 0
        %1201 = vmatprep.subr.bf16.mxu0 0
        %1202 = vmatpush2.bf16.msra.mxu0 0
        %1203 = vmatprep.subr.bf16.mxu0 0
        %1204 = vmatpush2.bf16.msra.mxu0 0
        %1205 = vmatprep.subr.bf16.mxu0 0
        %1206 = vmatpush2.bf16.msra.mxu0 0
        %1207 = vmatprep.subr.bf16.mxu0 0
        %1208 = vmatpush2.bf16.msra.mxu0 0
        %1209 = vmatprep.subr.bf16.mxu0 0
        %1210 = vmatpush2.bf16.msra.mxu0 0
        %1211 = vmatprep.subr.bf16.mxu0 0
        %1212 = vmatpush2.bf16.msra.mxu0 0
        %1213 = vmatprep.subr.bf16.mxu0 0
        %1214 = vmatpush2.bf16.msra.mxu0 0
        %1215 = vmatprep.mubr.bf16.mxu0 0
        %1216 = vmatmul.mubr.bf16.gmra.mxu0 %v1181
        %v1217 = vpop.f32.mrf.mxu0
        %v1218 = vadd.f32 0.0, %v1217
        %v1219 = vpop.f32.mrf.mxu0
        %v1220 = vpop.f32.mrf.mxu0
        %v1221 = vpop.f32.mrf.mxu0
        %1222 = vdwg.mxu0
        %v1223 = vadd.f32 %v1173, %v1218
        %1224 = vmatprep.subr.bf16.mxu0 0
        %1225 = vmatpush1.bf16.msra.mxu0 0
        %1226 = vmatprep.subr.bf16.mxu0 0
        %1227 = vmatpush1.bf16.msra.mxu0 0
        %1228 = vmatprep.subr.bf16.mxu0 0
        %1229 = vmatpush1.bf16.msra.mxu0 0
        %1230 = vmatprep.subr.bf16.mxu0 0
        %1231 = vmatpush1.bf16.msra.mxu0 0
        %1232 = vmatprep.subr.bf16.mxu0 0
        %1233 = vmatpush1.bf16.msra.mxu0 %v639
        %1234 = vmatprep.subr.bf16.mxu0 0
        %1235 = vmatpush1.bf16.msra.mxu0 %v638
        %1236 = vmatprep.subr.bf16.mxu0 0
        %1237 = vmatpush1.bf16.msra.mxu0 %v637
        %1238 = vmatprep.subr.bf16.mxu0 0
        %1239 = vmatpush1.bf16.msra.mxu0 %v636
        %1240 = vmatprep.subr.bf16.mxu0 0
        %1241 = vmatpush2.bf16.msra.mxu0 0
        %1242 = vmatprep.subr.bf16.mxu0 0
        %1243 = vmatpush2.bf16.msra.mxu0 0
        %1244 = vmatprep.subr.bf16.mxu0 0
        %1245 = vmatpush2.bf16.msra.mxu0 0
        %1246 = vmatprep.subr.bf16.mxu0 0
        %1247 = vmatpush2.bf16.msra.mxu0 0
        %1248 = vmatprep.subr.bf16.mxu0 0
        %1249 = vmatpush2.bf16.msra.mxu0 0
        %1250 = vmatprep.subr.bf16.mxu0 0
        %1251 = vmatpush2.bf16.msra.mxu0 0
        %1252 = vmatprep.subr.bf16.mxu0 0
        %1253 = vmatpush2.bf16.msra.mxu0 0
        %1254 = vmatprep.subr.bf16.mxu0 0
        %1255 = vmatpush2.bf16.msra.mxu0 0
        %1256 = vmatprep.mubr.bf16.mxu0 0
        %1257 = vmatmul.mubr.bf16.gmra.mxu0 %v724
        %v1258 = vpop.f32.mrf.mxu0
        %v1259 = vadd.f32 0.0, %v1258
        %v1260 = vpop.f32.mrf.mxu0
        %v1261 = vpop.f32.mrf.mxu0
        %v1262 = vpop.f32.mrf.mxu0
        %1263 = vdwg.mxu0
        %v1264 = vadd.f32 %v1223, %v1259
        %1265 = vmatprep.subr.bf16.mxu0 0
        %1266 = vmatpush1.bf16.msra.mxu0 0
        %1267 = vmatprep.subr.bf16.mxu0 0
        %1268 = vmatpush1.bf16.msra.mxu0 0
        %1269 = vmatprep.subr.bf16.mxu0 0
        %1270 = vmatpush1.bf16.msra.mxu0 0
        %1271 = vmatprep.subr.bf16.mxu0 0
        %1272 = vmatpush1.bf16.msra.mxu0 0
        %1273 = vmatprep.subr.bf16.mxu0 0
        %1274 = vmatpush1.bf16.msra.mxu0 %v718
        %1275 = vmatprep.subr.bf16.mxu0 0
        %1276 = vmatpush1.bf16.msra.mxu0 %v717
        %1277 = vmatprep.subr.bf16.mxu0 0
        %1278 = vmatpush1.bf16.msra.mxu0 %v716
        %1279 = vmatprep.subr.bf16.mxu0 0
        %1280 = vmatpush1.bf16.msra.mxu0 %v715
        %1281 = vmatprep.subr.bf16.mxu0 0
        %1282 = vmatpush2.bf16.msra.mxu0 0
        %1283 = vmatprep.subr.bf16.mxu0 0
        %1284 = vmatpush2.bf16.msra.mxu0 0
        %1285 = vmatprep.subr.bf16.mxu0 0
        %1286 = vmatpush2.bf16.msra.mxu0 0
        %1287 = vmatprep.subr.bf16.mxu0 0
        %1288 = vmatpush2.bf16.msra.mxu0 0
        %1289 = vmatprep.subr.bf16.mxu0 0
        %1290 = vmatpush2.bf16.msra.mxu0 0
        %1291 = vmatprep.subr.bf16.mxu0 0
        %1292 = vmatpush2.bf16.msra.mxu0 0
        %1293 = vmatprep.subr.bf16.mxu0 0
        %1294 = vmatpush2.bf16.msra.mxu0 0
        %1295 = vmatprep.subr.bf16.mxu0 0
        %1296 = vmatpush2.bf16.msra.mxu0 0
        %1297 = vmatprep.mubr.bf16.mxu0 0
        %1298 = vmatmul.mubr.bf16.gmra.mxu0 %v803
        %v1299 = vpop.f32.mrf.mxu0
        %v1300 = vadd.f32 0.0, %v1299
        %v1301 = vpop.f32.mrf.mxu0
        %v1302 = vpop.f32.mrf.mxu0
        %v1303 = vpop.f32.mrf.mxu0
        %1304 = vdwg.mxu0
        %v1305 = vadd.f32 %v1264, %v1300
        %s1306 = scalar_lea.vmem %s341, 14 [#allocation3]
        %v1307 = vld [vmem:[%s1306] sm:$0x3]
        %v1309 = vsel %vm419, %v1307, 0
        %1311 = vmatprep.subr.bf16.mxu0 0
        %1312 = vmatpush1.bf16.msra.mxu0 0
        %1313 = vmatprep.subr.bf16.mxu0 0
        %1314 = vmatpush1.bf16.msra.mxu0 0
        %1315 = vmatprep.subr.bf16.mxu0 0
        %1316 = vmatpush1.bf16.msra.mxu0 0
        %1317 = vmatprep.subr.bf16.mxu0 0
        %1318 = vmatpush1.bf16.msra.mxu0 0
        %1319 = vmatprep.subr.bf16.mxu0 0
        %1320 = vmatpush1.bf16.msra.mxu0 %v797
        %1321 = vmatprep.subr.bf16.mxu0 0
        %1322 = vmatpush1.bf16.msra.mxu0 %v796
        %1323 = vmatprep.subr.bf16.mxu0 0
        %1324 = vmatpush1.bf16.msra.mxu0 %v795
        %1325 = vmatprep.subr.bf16.mxu0 0
        %1326 = vmatpush1.bf16.msra.mxu0 %v794
        %1327 = vmatprep.subr.bf16.mxu0 0
        %1328 = vmatpush2.bf16.msra.mxu0 0
        %1329 = vmatprep.subr.bf16.mxu0 0
        %1330 = vmatpush2.bf16.msra.mxu0 0
        %1331 = vmatprep.subr.bf16.mxu0 0
        %1332 = vmatpush2.bf16.msra.mxu0 0
        %1333 = vmatprep.subr.bf16.mxu0 0
        %1334 = vmatpush2.bf16.msra.mxu0 0
        %1335 = vmatprep.subr.bf16.mxu0 0
        %1336 = vmatpush2.bf16.msra.mxu0 0
        %1337 = vmatprep.subr.bf16.mxu0 0
        %1338 = vmatpush2.bf16.msra.mxu0 0
        %1339 = vmatprep.subr.bf16.mxu0 0
        %1340 = vmatpush2.bf16.msra.mxu0 0
        %1341 = vmatprep.subr.bf16.mxu0 0
        %1342 = vmatpush2.bf16.msra.mxu0 0
        %1343 = vmatprep.mubr.bf16.mxu0 0
        %1344 = vmatmul.mubr.bf16.gmra.mxu0 %v1309
        %v1345 = vpop.f32.mrf.mxu0
        %v1346 = vadd.f32 0.0, %v1345
        %v1347 = vpop.f32.mrf.mxu0
        %v1348 = vpop.f32.mrf.mxu0
        %v1349 = vpop.f32.mrf.mxu0
        %1350 = vdwg.mxu0
        %v1351 = vadd.f32 %v1305, %v1346
        %1352 = vmatprep.subr.bf16.mxu0 0
        %1353 = vmatpush1.bf16.msra.mxu0 0
        %1354 = vmatprep.subr.bf16.mxu0 0
        %1355 = vmatpush1.bf16.msra.mxu0 0
        %1356 = vmatprep.subr.bf16.mxu0 0
        %1357 = vmatpush1.bf16.msra.mxu0 0
        %1358 = vmatprep.subr.bf16.mxu0 0
        %1359 = vmatpush1.bf16.msra.mxu0 0
        %1360 = vmatprep.subr.bf16.mxu0 0
        %1361 = vmatpush1.bf16.msra.mxu0 %v876
        %1362 = vmatprep.subr.bf16.mxu0 0
        %1363 = vmatpush1.bf16.msra.mxu0 %v875
        %1364 = vmatprep.subr.bf16.mxu0 0
        %1365 = vmatpush1.bf16.msra.mxu0 %v874
        %1366 = vmatprep.subr.bf16.mxu0 0
        %1367 = vmatpush1.bf16.msra.mxu0 %v873
        %1368 = vmatprep.subr.bf16.mxu0 0
        %1369 = vmatpush2.bf16.msra.mxu0 0
        %1370 = vmatprep.subr.bf16.mxu0 0
        %1371 = vmatpush2.bf16.msra.mxu0 0
        %1372 = vmatprep.subr.bf16.mxu0 0
        %1373 = vmatpush2.bf16.msra.mxu0 0
        %1374 = vmatprep.subr.bf16.mxu0 0
        %1375 = vmatpush2.bf16.msra.mxu0 0
        %1376 = vmatprep.subr.bf16.mxu0 0
        %1377 = vmatpush2.bf16.msra.mxu0 0
        %1378 = vmatprep.subr.bf16.mxu0 0
        %1379 = vmatpush2.bf16.msra.mxu0 0
        %1380 = vmatprep.subr.bf16.mxu0 0
        %1381 = vmatpush2.bf16.msra.mxu0 0
        %1382 = vmatprep.subr.bf16.mxu0 0
        %1383 = vmatpush2.bf16.msra.mxu0 0
        %1384 = vmatprep.mubr.bf16.mxu0 0
        %1385 = vmatmul.mubr.bf16.gmra.mxu0 %v961
        %v1386 = vpop.f32.mrf.mxu0
        %v1387 = vadd.f32 0.0, %v1386
        %v1388 = vpop.f32.mrf.mxu0
        %v1389 = vpop.f32.mrf.mxu0
        %v1390 = vpop.f32.mrf.mxu0
        %1391 = vdwg.mxu0
        %v1392 = vadd.f32 %v1351, %v1387
        %1393 = vmatprep.subr.bf16.mxu0 0
        %1394 = vmatpush1.bf16.msra.mxu0 0
        %1395 = vmatprep.subr.bf16.mxu0 0
        %1396 = vmatpush1.bf16.msra.mxu0 0
        %1397 = vmatprep.subr.bf16.mxu0 0
        %1398 = vmatpush1.bf16.msra.mxu0 0
        %1399 = vmatprep.subr.bf16.mxu0 0
        %1400 = vmatpush1.bf16.msra.mxu0 0
        %1401 = vmatprep.subr.bf16.mxu0 0
        %1402 = vmatpush1.bf16.msra.mxu0 %v955
        %1403 = vmatprep.subr.bf16.mxu0 0
        %1404 = vmatpush1.bf16.msra.mxu0 %v954
        %1405 = vmatprep.subr.bf16.mxu0 0
        %1406 = vmatpush1.bf16.msra.mxu0 %v953
        %1407 = vmatprep.subr.bf16.mxu0 0
        %1408 = vmatpush1.bf16.msra.mxu0 %v952
        %1409 = vmatprep.subr.bf16.mxu0 0
        %1410 = vmatpush2.bf16.msra.mxu0 0
        %1411 = vmatprep.subr.bf16.mxu0 0
        %1412 = vmatpush2.bf16.msra.mxu0 0
        %1413 = vmatprep.subr.bf16.mxu0 0
        %1414 = vmatpush2.bf16.msra.mxu0 0
        %1415 = vmatprep.subr.bf16.mxu0 0
        %1416 = vmatpush2.bf16.msra.mxu0 0
        %1417 = vmatprep.subr.bf16.mxu0 0
        %1418 = vmatpush2.bf16.msra.mxu0 0
        %1419 = vmatprep.subr.bf16.mxu0 0
        %1420 = vmatpush2.bf16.msra.mxu0 0
        %1421 = vmatprep.subr.bf16.mxu0 0
        %1422 = vmatpush2.bf16.msra.mxu0 0
        %1423 = vmatprep.subr.bf16.mxu0 0
        %1424 = vmatpush2.bf16.msra.mxu0 0
        %1425 = vmatprep.mubr.bf16.mxu0 0
        %1426 = vmatmul.mubr.bf16.gmra.mxu0 %v1040
        %v1427 = vpop.f32.mrf.mxu0
        %v1428 = vadd.f32 0.0, %v1427
        %v1429 = vpop.f32.mrf.mxu0
        %v1430 = vpop.f32.mrf.mxu0
        %v1431 = vpop.f32.mrf.mxu0
        %1432 = vdwg.mxu0
        %v1433 = vadd.f32 %v1392, %v1428
        %s1434 = scalar_lea.vmem %s341, 22 [#allocation3]
        %v1435 = vld [vmem:[%s1434] sm:$0x3]
        %v1437 = vsel %vm419, %v1435, 0
        %1439 = vmatprep.subr.bf16.mxu0 0
        %1440 = vmatpush1.bf16.msra.mxu0 0
        %1441 = vmatprep.subr.bf16.mxu0 0
        %1442 = vmatpush1.bf16.msra.mxu0 0
        %1443 = vmatprep.subr.bf16.mxu0 0
        %1444 = vmatpush1.bf16.msra.mxu0 0
        %1445 = vmatprep.subr.bf16.mxu0 0
        %1446 = vmatpush1.bf16.msra.mxu0 0
        %1447 = vmatprep.subr.bf16.mxu0 0
        %1448 = vmatpush1.bf16.msra.mxu0 %v1034
        %1449 = vmatprep.subr.bf16.mxu0 0
        %1450 = vmatpush1.bf16.msra.mxu0 %v1033
        %1451 = vmatprep.subr.bf16.mxu0 0
        %1452 = vmatpush1.bf16.msra.mxu0 %v1032
        %1453 = vmatprep.subr.bf16.mxu0 0
        %1454 = vmatpush1.bf16.msra.mxu0 %v1031
        %1455 = vmatprep.subr.bf16.mxu0 0
        %1456 = vmatpush2.bf16.msra.mxu0 0
        %1457 = vmatprep.subr.bf16.mxu0 0
        %1458 = vmatpush2.bf16.msra.mxu0 0
        %1459 = vmatprep.subr.bf16.mxu0 0
        %1460 = vmatpush2.bf16.msra.mxu0 0
        %1461 = vmatprep.subr.bf16.mxu0 0
        %1462 = vmatpush2.bf16.msra.mxu0 0
        %1463 = vmatprep.subr.bf16.mxu0 0
        %1464 = vmatpush2.bf16.msra.mxu0 0
        %1465 = vmatprep.subr.bf16.mxu0 0
        %1466 = vmatpush2.bf16.msra.mxu0 0
        %1467 = vmatprep.subr.bf16.mxu0 0
        %1468 = vmatpush2.bf16.msra.mxu0 0
        %1469 = vmatprep.subr.bf16.mxu0 0
        %1470 = vmatpush2.bf16.msra.mxu0 0
        %1471 = vmatprep.mubr.bf16.mxu0 0
        %1472 = vmatmul.mubr.bf16.gmra.mxu0 %v1437
        %v1473 = vpop.f32.mrf.mxu0
        %v1474 = vadd.f32 0.0, %v1473
        %v1475 = vpop.f32.mrf.mxu0
        %v1476 = vpop.f32.mrf.mxu0
        %v1477 = vpop.f32.mrf.mxu0
        %1478 = vdwg.mxu0
        %v1479 = vadd.f32 %v1433, %v1474
        %v1480 = vmul.f32 %v1479, %v1087
        %v1481 = vadd.f32 %v1480, %v1094
        %v1482 = vmax.f32 %v1481, 0.0
        %v1483 = vmax.f32 %v1097, %v1482
        %1484 = vmatprep.subr.bf16.mxu0 0
        %1485 = vmatpush1.bf16.msra.mxu0 0
        %1486 = vmatprep.subr.bf16.mxu0 0
        %1487 = vmatpush1.bf16.msra.mxu0 0
        %1488 = vmatprep.subr.bf16.mxu0 0
        %1489 = vmatpush1.bf16.msra.mxu0 0
        %1490 = vmatprep.subr.bf16.mxu0 0
        %1491 = vmatpush1.bf16.msra.mxu0 0
        %1492 = vmatprep.subr.bf16.mxu0 0
        %1493 = vmatpush1.bf16.msra.mxu0 %v414
        %1494 = vmatprep.subr.bf16.mxu0 0
        %1495 = vmatpush1.bf16.msra.mxu0 %v413
        %1496 = vmatprep.subr.bf16.mxu0 0
        %1497 = vmatpush1.bf16.msra.mxu0 %v412
        %1498 = vmatprep.subr.bf16.mxu0 0
        %1499 = vmatpush1.bf16.msra.mxu0 %v411
        %1500 = vmatprep.subr.bf16.mxu0 0
        %1501 = vmatpush2.bf16.msra.mxu0 0
        %1502 = vmatprep.subr.bf16.mxu0 0
        %1503 = vmatpush2.bf16.msra.mxu0 0
        %1504 = vmatprep.subr.bf16.mxu0 0
        %1505 = vmatpush2.bf16.msra.mxu0 0
        %1506 = vmatprep.subr.bf16.mxu0 0
        %1507 = vmatpush2.bf16.msra.mxu0 0
        %1508 = vmatprep.subr.bf16.mxu0 0
        %1509 = vmatpush2.bf16.msra.mxu0 0
        %1510 = vmatprep.subr.bf16.mxu0 0
        %1511 = vmatpush2.bf16.msra.mxu0 0
        %1512 = vmatprep.subr.bf16.mxu0 0
        %1513 = vmatpush2.bf16.msra.mxu0 0
        %1514 = vmatprep.subr.bf16.mxu0 0
        %1515 = vmatpush2.bf16.msra.mxu0 0
        %1516 = vmatprep.mubr.bf16.mxu0 0
        %1517 = vmatmul.mubr.bf16.gmra.mxu0 %v724
        %v1518 = vpop.f32.mrf.mxu0
        %v1519 = vadd.f32 0.0, %v1518
        %v1520 = vpop.f32.mrf.mxu0
        %v1521 = vpop.f32.mrf.mxu0
        %v1522 = vpop.f32.mrf.mxu0
        %1523 = vdwg.mxu0
        %1524 = vmatprep.subr.bf16.mxu0 0
        %1525 = vmatpush1.bf16.msra.mxu0 0
        %1526 = vmatprep.subr.bf16.mxu0 0
        %1527 = vmatpush1.bf16.msra.mxu0 0
        %1528 = vmatprep.subr.bf16.mxu0 0
        %1529 = vmatpush1.bf16.msra.mxu0 0
        %1530 = vmatprep.subr.bf16.mxu0 0
        %1531 = vmatpush1.bf16.msra.mxu0 0
        %1532 = vmatprep.subr.bf16.mxu0 0
        %1533 = vmatpush1.bf16.msra.mxu0 %v482
        %1534 = vmatprep.subr.bf16.mxu0 0
        %1535 = vmatpush1.bf16.msra.mxu0 %v481
        %1536 = vmatprep.subr.bf16.mxu0 0
        %1537 = vmatpush1.bf16.msra.mxu0 %v480
        %1538 = vmatprep.subr.bf16.mxu0 0
        %1539 = vmatpush1.bf16.msra.mxu0 %v479
        %1540 = vmatprep.subr.bf16.mxu0 0
        %1541 = vmatpush2.bf16.msra.mxu0 0
        %1542 = vmatprep.subr.bf16.mxu0 0
        %1543 = vmatpush2.bf16.msra.mxu0 0
        %1544 = vmatprep.subr.bf16.mxu0 0
        %1545 = vmatpush2.bf16.msra.mxu0 0
        %1546 = vmatprep.subr.bf16.mxu0 0
        %1547 = vmatpush2.bf16.msra.mxu0 0
        %1548 = vmatprep.subr.bf16.mxu0 0
        %1549 = vmatpush2.bf16.msra.mxu0 0
        %1550 = vmatprep.subr.bf16.mxu0 0
        %1551 = vmatpush2.bf16.msra.mxu0 0
        %1552 = vmatprep.subr.bf16.mxu0 0
        %1553 = vmatpush2.bf16.msra.mxu0 0
        %1554 = vmatprep.subr.bf16.mxu0 0
        %1555 = vmatpush2.bf16.msra.mxu0 0
        %1556 = vmatprep.mubr.bf16.mxu0 0
        %1557 = vmatmul.mubr.bf16.gmra.mxu0 %v645
        %v1558 = vpop.f32.mrf.mxu0
        %v1559 = vadd.f32 %v1519, %v1558
        %v1560 = vpop.f32.mrf.mxu0
        %v1561 = vpop.f32.mrf.mxu0
        %v1562 = vpop.f32.mrf.mxu0
        %1563 = vdwg.mxu0
        %1564 = vmatprep.subr.bf16.mxu0 0
        %1565 = vmatpush1.bf16.msra.mxu0 0
        %1566 = vmatprep.subr.bf16.mxu0 0
        %1567 = vmatpush1.bf16.msra.mxu0 0
        %1568 = vmatprep.subr.bf16.mxu0 0
        %1569 = vmatpush1.bf16.msra.mxu0 0
        %1570 = vmatprep.subr.bf16.mxu0 0
        %1571 = vmatpush1.bf16.msra.mxu0 0
        %1572 = vmatprep.subr.bf16.mxu0 0
        %1573 = vmatpush1.bf16.msra.mxu0 %v560
        %1574 = vmatprep.subr.bf16.mxu0 0
        %1575 = vmatpush1.bf16.msra.mxu0 %v559
        %1576 = vmatprep.subr.bf16.mxu0 0
        %1577 = vmatpush1.bf16.msra.mxu0 %v558
        %1578 = vmatprep.subr.bf16.mxu0 0
        %1579 = vmatpush1.bf16.msra.mxu0 %v557
        %1580 = vmatprep.subr.bf16.mxu0 0
        %1581 = vmatpush2.bf16.msra.mxu0 0
        %1582 = vmatprep.subr.bf16.mxu0 0
        %1583 = vmatpush2.bf16.msra.mxu0 0
        %1584 = vmatprep.subr.bf16.mxu0 0
        %1585 = vmatpush2.bf16.msra.mxu0 0
        %1586 = vmatprep.subr.bf16.mxu0 0
        %1587 = vmatpush2.bf16.msra.mxu0 0
        %1588 = vmatprep.subr.bf16.mxu0 0
        %1589 = vmatpush2.bf16.msra.mxu0 0
        %1590 = vmatprep.subr.bf16.mxu0 0
        %1591 = vmatpush2.bf16.msra.mxu0 0
        %1592 = vmatprep.subr.bf16.mxu0 0
        %1593 = vmatpush2.bf16.msra.mxu0 0
        %1594 = vmatprep.subr.bf16.mxu0 0
        %1595 = vmatpush2.bf16.msra.mxu0 0
        %1596 = vmatprep.mubr.bf16.mxu0 0
        %1597 = vmatmul.mubr.bf16.gmra.mxu0 %v803
        %v1598 = vpop.f32.mrf.mxu0
        %v1599 = vadd.f32 0.0, %v1598
        %v1600 = vpop.f32.mrf.mxu0
        %v1601 = vpop.f32.mrf.mxu0
        %v1602 = vpop.f32.mrf.mxu0
        %1603 = vdwg.mxu0
        %v1604 = vadd.f32 %v1559, %v1599
        %1605 = vmatprep.subr.bf16.mxu0 0
        %1606 = vmatpush1.bf16.msra.mxu0 0
        %1607 = vmatprep.subr.bf16.mxu0 0
        %1608 = vmatpush1.bf16.msra.mxu0 0
        %1609 = vmatprep.subr.bf16.mxu0 0
        %1610 = vmatpush1.bf16.msra.mxu0 0
        %1611 = vmatprep.subr.bf16.mxu0 0
        %1612 = vmatpush1.bf16.msra.mxu0 0
        %1613 = vmatprep.subr.bf16.mxu0 0
        %1614 = vmatpush1.bf16.msra.mxu0 %v639
        %1615 = vmatprep.subr.bf16.mxu0 0
        %1616 = vmatpush1.bf16.msra.mxu0 %v638
        %1617 = vmatprep.subr.bf16.mxu0 0
        %1618 = vmatpush1.bf16.msra.mxu0 %v637
        %1619 = vmatprep.subr.bf16.mxu0 0
        %1620 = vmatpush1.bf16.msra.mxu0 %v636
        %1621 = vmatprep.subr.bf16.mxu0 0
        %1622 = vmatpush2.bf16.msra.mxu0 0
        %1623 = vmatprep.subr.bf16.mxu0 0
        %1624 = vmatpush2.bf16.msra.mxu0 0
        %1625 = vmatprep.subr.bf16.mxu0 0
        %1626 = vmatpush2.bf16.msra.mxu0 0
        %1627 = vmatprep.subr.bf16.mxu0 0
        %1628 = vmatpush2.bf16.msra.mxu0 0
        %1629 = vmatprep.subr.bf16.mxu0 0
        %1630 = vmatpush2.bf16.msra.mxu0 0
        %1631 = vmatprep.subr.bf16.mxu0 0
        %1632 = vmatpush2.bf16.msra.mxu0 0
        %1633 = vmatprep.subr.bf16.mxu0 0
        %1634 = vmatpush2.bf16.msra.mxu0 0
        %1635 = vmatprep.subr.bf16.mxu0 0
        %1636 = vmatpush2.bf16.msra.mxu0 0
        %1637 = vmatprep.mubr.bf16.mxu0 0
        %1638 = vmatmul.mubr.bf16.gmra.mxu0 %v882
        %v1639 = vpop.f32.mrf.mxu0
        %v1640 = vadd.f32 0.0, %v1639
        %v1641 = vpop.f32.mrf.mxu0
        %v1642 = vpop.f32.mrf.mxu0
        %v1643 = vpop.f32.mrf.mxu0
        %1644 = vdwg.mxu0
        %v1645 = vadd.f32 %v1604, %v1640
        %1646 = vmatprep.subr.bf16.mxu0 0
        %1647 = vmatpush1.bf16.msra.mxu0 0
        %1648 = vmatprep.subr.bf16.mxu0 0
        %1649 = vmatpush1.bf16.msra.mxu0 0
        %1650 = vmatprep.subr.bf16.mxu0 0
        %1651 = vmatpush1.bf16.msra.mxu0 0
        %1652 = vmatprep.subr.bf16.mxu0 0
        %1653 = vmatpush1.bf16.msra.mxu0 0
        %1654 = vmatprep.subr.bf16.mxu0 0
        %1655 = vmatpush1.bf16.msra.mxu0 %v718
        %1656 = vmatprep.subr.bf16.mxu0 0
        %1657 = vmatpush1.bf16.msra.mxu0 %v717
        %1658 = vmatprep.subr.bf16.mxu0 0
        %1659 = vmatpush1.bf16.msra.mxu0 %v716
        %1660 = vmatprep.subr.bf16.mxu0 0
        %1661 = vmatpush1.bf16.msra.mxu0 %v715
        %1662 = vmatprep.subr.bf16.mxu0 0
        %1663 = vmatpush2.bf16.msra.mxu0 0
        %1664 = vmatprep.subr.bf16.mxu0 0
        %1665 = vmatpush2.bf16.msra.mxu0 0
        %1666 = vmatprep.subr.bf16.mxu0 0
        %1667 = vmatpush2.bf16.msra.mxu0 0
        %1668 = vmatprep.subr.bf16.mxu0 0
        %1669 = vmatpush2.bf16.msra.mxu0 0
        %1670 = vmatprep.subr.bf16.mxu0 0
        %1671 = vmatpush2.bf16.msra.mxu0 0
        %1672 = vmatprep.subr.bf16.mxu0 0
        %1673 = vmatpush2.bf16.msra.mxu0 0
        %1674 = vmatprep.subr.bf16.mxu0 0
        %1675 = vmatpush2.bf16.msra.mxu0 0
        %1676 = vmatprep.subr.bf16.mxu0 0
        %1677 = vmatpush2.bf16.msra.mxu0 0
        %1678 = vmatprep.mubr.bf16.mxu0 0
        %1679 = vmatmul.mubr.bf16.gmra.mxu0 %v961
        %v1680 = vpop.f32.mrf.mxu0
        %v1681 = vadd.f32 0.0, %v1680
        %v1682 = vpop.f32.mrf.mxu0
        %v1683 = vpop.f32.mrf.mxu0
        %v1684 = vpop.f32.mrf.mxu0
        %1685 = vdwg.mxu0
        %v1686 = vadd.f32 %v1645, %v1681
        %1687 = vmatprep.subr.bf16.mxu0 0
        %1688 = vmatpush1.bf16.msra.mxu0 0
        %1689 = vmatprep.subr.bf16.mxu0 0
        %1690 = vmatpush1.bf16.msra.mxu0 0
        %1691 = vmatprep.subr.bf16.mxu0 0
        %1692 = vmatpush1.bf16.msra.mxu0 0
        %1693 = vmatprep.subr.bf16.mxu0 0
        %1694 = vmatpush1.bf16.msra.mxu0 0
        %1695 = vmatprep.subr.bf16.mxu0 0
        %1696 = vmatpush1.bf16.msra.mxu0 %v797
        %1697 = vmatprep.subr.bf16.mxu0 0
        %1698 = vmatpush1.bf16.msra.mxu0 %v796
        %1699 = vmatprep.subr.bf16.mxu0 0
        %1700 = vmatpush1.bf16.msra.mxu0 %v795
        %1701 = vmatprep.subr.bf16.mxu0 0
        %1702 = vmatpush1.bf16.msra.mxu0 %v794
        %1703 = vmatprep.subr.bf16.mxu0 0
        %1704 = vmatpush2.bf16.msra.mxu0 0
        %1705 = vmatprep.subr.bf16.mxu0 0
        %1706 = vmatpush2.bf16.msra.mxu0 0
        %1707 = vmatprep.subr.bf16.mxu0 0
        %1708 = vmatpush2.bf16.msra.mxu0 0
        %1709 = vmatprep.subr.bf16.mxu0 0
        %1710 = vmatpush2.bf16.msra.mxu0 0
        %1711 = vmatprep.subr.bf16.mxu0 0
        %1712 = vmatpush2.bf16.msra.mxu0 0
        %1713 = vmatprep.subr.bf16.mxu0 0
        %1714 = vmatpush2.bf16.msra.mxu0 0
        %1715 = vmatprep.subr.bf16.mxu0 0
        %1716 = vmatpush2.bf16.msra.mxu0 0
        %1717 = vmatprep.subr.bf16.mxu0 0
        %1718 = vmatpush2.bf16.msra.mxu0 0
        %1719 = vmatprep.mubr.bf16.mxu0 0
        %1720 = vmatmul.mubr.bf16.gmra.mxu0 %v1040
        %v1721 = vpop.f32.mrf.mxu0
        %v1722 = vadd.f32 0.0, %v1721
        %v1723 = vpop.f32.mrf.mxu0
        %v1724 = vpop.f32.mrf.mxu0
        %v1725 = vpop.f32.mrf.mxu0
        %1726 = vdwg.mxu0
        %v1727 = vadd.f32 %v1686, %v1722
        %s1728 = scalar_lea.vmem %s341, 24 [#allocation3]
        %v1729 = vld [vmem:[%s1728] sm:$0x3]
        %v1731 = vsel %vm419, %v1729, 0
        %1733 = vmatprep.subr.bf16.mxu0 0
        %1734 = vmatpush1.bf16.msra.mxu0 0
        %1735 = vmatprep.subr.bf16.mxu0 0
        %1736 = vmatpush1.bf16.msra.mxu0 0
        %1737 = vmatprep.subr.bf16.mxu0 0
        %1738 = vmatpush1.bf16.msra.mxu0 0
        %1739 = vmatprep.subr.bf16.mxu0 0
        %1740 = vmatpush1.bf16.msra.mxu0 0
        %1741 = vmatprep.subr.bf16.mxu0 0
        %1742 = vmatpush1.bf16.msra.mxu0 %v876
        %1743 = vmatprep.subr.bf16.mxu0 0
        %1744 = vmatpush1.bf16.msra.mxu0 %v875
        %1745 = vmatprep.subr.bf16.mxu0 0
        %1746 = vmatpush1.bf16.msra.mxu0 %v874
        %1747 = vmatprep.subr.bf16.mxu0 0
        %1748 = vmatpush1.bf16.msra.mxu0 %v873
        %1749 = vmatprep.subr.bf16.mxu0 0
        %1750 = vmatpush2.bf16.msra.mxu0 0
        %1751 = vmatprep.subr.bf16.mxu0 0
        %1752 = vmatpush2.bf16.msra.mxu0 0
        %1753 = vmatprep.subr.bf16.mxu0 0
        %1754 = vmatpush2.bf16.msra.mxu0 0
        %1755 = vmatprep.subr.bf16.mxu0 0
        %1756 = vmatpush2.bf16.msra.mxu0 0
        %1757 = vmatprep.subr.bf16.mxu0 0
        %1758 = vmatpush2.bf16.msra.mxu0 0
        %1759 = vmatprep.subr.bf16.mxu0 0
        %1760 = vmatpush2.bf16.msra.mxu0 0
        %1761 = vmatprep.subr.bf16.mxu0 0
        %1762 = vmatpush2.bf16.msra.mxu0 0
        %1763 = vmatprep.subr.bf16.mxu0 0
        %1764 = vmatpush2.bf16.msra.mxu0 0
        %1765 = vmatprep.mubr.bf16.mxu0 0
        %1766 = vmatmul.mubr.bf16.gmra.mxu0 %v1731
        %v1767 = vpop.f32.mrf.mxu0
        %v1768 = vadd.f32 0.0, %v1767
        %v1769 = vpop.f32.mrf.mxu0
        %v1770 = vpop.f32.mrf.mxu0
        %v1771 = vpop.f32.mrf.mxu0
        %1772 = vdwg.mxu0
        %v1773 = vadd.f32 %v1727, %v1768
        %s1774 = scalar_lea.vmem %s341, 26 [#allocation3]
        %v1775 = vld [vmem:[%s1774] sm:$0x3]
        %v1777 = vsel %vm419, %v1775, 0
        %1779 = vmatprep.subr.bf16.mxu0 0
        %1780 = vmatpush1.bf16.msra.mxu0 0
        %1781 = vmatprep.subr.bf16.mxu0 0
        %1782 = vmatpush1.bf16.msra.mxu0 0
        %1783 = vmatprep.subr.bf16.mxu0 0
        %1784 = vmatpush1.bf16.msra.mxu0 0
        %1785 = vmatprep.subr.bf16.mxu0 0
        %1786 = vmatpush1.bf16.msra.mxu0 0
        %1787 = vmatprep.subr.bf16.mxu0 0
        %1788 = vmatpush1.bf16.msra.mxu0 %v955
        %1789 = vmatprep.subr.bf16.mxu0 0
        %1790 = vmatpush1.bf16.msra.mxu0 %v954
        %1791 = vmatprep.subr.bf16.mxu0 0
        %1792 = vmatpush1.bf16.msra.mxu0 %v953
        %1793 = vmatprep.subr.bf16.mxu0 0
        %1794 = vmatpush1.bf16.msra.mxu0 %v952
        %1795 = vmatprep.subr.bf16.mxu0 0
        %1796 = vmatpush2.bf16.msra.mxu0 0
        %1797 = vmatprep.subr.bf16.mxu0 0
        %1798 = vmatpush2.bf16.msra.mxu0 0
        %1799 = vmatprep.subr.bf16.mxu0 0
        %1800 = vmatpush2.bf16.msra.mxu0 0
        %1801 = vmatprep.subr.bf16.mxu0 0
        %1802 = vmatpush2.bf16.msra.mxu0 0
        %1803 = vmatprep.subr.bf16.mxu0 0
        %1804 = vmatpush2.bf16.msra.mxu0 0
        %1805 = vmatprep.subr.bf16.mxu0 0
        %1806 = vmatpush2.bf16.msra.mxu0 0
        %1807 = vmatprep.subr.bf16.mxu0 0
        %1808 = vmatpush2.bf16.msra.mxu0 0
        %1809 = vmatprep.subr.bf16.mxu0 0
        %1810 = vmatpush2.bf16.msra.mxu0 0
        %1811 = vmatprep.mubr.bf16.mxu0 0
        %1812 = vmatmul.mubr.bf16.gmra.mxu0 %v1777
        %v1813 = vpop.f32.mrf.mxu0
        %v1814 = vadd.f32 0.0, %v1813
        %v1815 = vpop.f32.mrf.mxu0
        %v1816 = vpop.f32.mrf.mxu0
        %v1817 = vpop.f32.mrf.mxu0
        %1818 = vdwg.mxu0
        %v1819 = vadd.f32 %v1773, %v1814
        %s1820 = scalar_lea.vmem %s341, 28 [#allocation3]
        %v1821 = vld [vmem:[%s1820] sm:$0x3]
        %v1823 = vsel %vm419, %v1821, 0
        %1825 = vmatprep.subr.bf16.mxu0 0
        %1826 = vmatpush1.bf16.msra.mxu0 0
        %1827 = vmatprep.subr.bf16.mxu0 0
        %1828 = vmatpush1.bf16.msra.mxu0 0
        %1829 = vmatprep.subr.bf16.mxu0 0
        %1830 = vmatpush1.bf16.msra.mxu0 0
        %1831 = vmatprep.subr.bf16.mxu0 0
        %1832 = vmatpush1.bf16.msra.mxu0 0
        %1833 = vmatprep.subr.bf16.mxu0 0
        %1834 = vmatpush1.bf16.msra.mxu0 %v1034
        %1835 = vmatprep.subr.bf16.mxu0 0
        %1836 = vmatpush1.bf16.msra.mxu0 %v1033
        %1837 = vmatprep.subr.bf16.mxu0 0
        %1838 = vmatpush1.bf16.msra.mxu0 %v1032
        %1839 = vmatprep.subr.bf16.mxu0 0
        %1840 = vmatpush1.bf16.msra.mxu0 %v1031
        %1841 = vmatprep.subr.bf16.mxu0 0
        %1842 = vmatpush2.bf16.msra.mxu0 0
        %1843 = vmatprep.subr.bf16.mxu0 0
        %1844 = vmatpush2.bf16.msra.mxu0 0
        %1845 = vmatprep.subr.bf16.mxu0 0
        %1846 = vmatpush2.bf16.msra.mxu0 0
        %1847 = vmatprep.subr.bf16.mxu0 0
        %1848 = vmatpush2.bf16.msra.mxu0 0
        %1849 = vmatprep.subr.bf16.mxu0 0
        %1850 = vmatpush2.bf16.msra.mxu0 0
        %1851 = vmatprep.subr.bf16.mxu0 0
        %1852 = vmatpush2.bf16.msra.mxu0 0
        %1853 = vmatprep.subr.bf16.mxu0 0
        %1854 = vmatpush2.bf16.msra.mxu0 0
        %1855 = vmatprep.subr.bf16.mxu0 0
        %1856 = vmatpush2.bf16.msra.mxu0 0
        %1857 = vmatprep.mubr.bf16.mxu0 0
        %1858 = vmatmul.mubr.bf16.gmra.mxu0 %v1823
        %v1859 = vpop.f32.mrf.mxu0
        %v1860 = vadd.f32 0.0, %v1859
        %v1861 = vpop.f32.mrf.mxu0
        %v1862 = vpop.f32.mrf.mxu0
        %v1863 = vpop.f32.mrf.mxu0
        %1864 = vdwg.mxu0
        %v1865 = vadd.f32 %v1819, %v1860
        %v1866 = vmul.f32 %v1865, %v1087
        %v1867 = vadd.f32 %v1866, %v1094
        %v1868 = vmax.f32 %v1867, 0.0
        %v1869 = vmax.f32 %v1483, %v1868
        %1870 = vmatprep.subr.bf16.mxu0 0
        %1871 = vmatpush1.bf16.msra.mxu0 0
        %1872 = vmatprep.subr.bf16.mxu0 0
        %1873 = vmatpush1.bf16.msra.mxu0 0
        %1874 = vmatprep.subr.bf16.mxu0 0
        %1875 = vmatpush1.bf16.msra.mxu0 0
        %1876 = vmatprep.subr.bf16.mxu0 0
        %1877 = vmatpush1.bf16.msra.mxu0 0
        %1878 = vmatprep.subr.bf16.mxu0 0
        %1879 = vmatpush1.bf16.msra.mxu0 %v414
        %1880 = vmatprep.subr.bf16.mxu0 0
        %1881 = vmatpush1.bf16.msra.mxu0 %v413
        %1882 = vmatprep.subr.bf16.mxu0 0
        %1883 = vmatpush1.bf16.msra.mxu0 %v412
        %1884 = vmatprep.subr.bf16.mxu0 0
        %1885 = vmatpush1.bf16.msra.mxu0 %v411
        %1886 = vmatprep.subr.bf16.mxu0 0
        %1887 = vmatpush2.bf16.msra.mxu0 0
        %1888 = vmatprep.subr.bf16.mxu0 0
        %1889 = vmatpush2.bf16.msra.mxu0 0
        %1890 = vmatprep.subr.bf16.mxu0 0
        %1891 = vmatpush2.bf16.msra.mxu0 0
        %1892 = vmatprep.subr.bf16.mxu0 0
        %1893 = vmatpush2.bf16.msra.mxu0 0
        %1894 = vmatprep.subr.bf16.mxu0 0
        %1895 = vmatpush2.bf16.msra.mxu0 0
        %1896 = vmatprep.subr.bf16.mxu0 0
        %1897 = vmatpush2.bf16.msra.mxu0 0
        %1898 = vmatprep.subr.bf16.mxu0 0
        %1899 = vmatpush2.bf16.msra.mxu0 0
        %1900 = vmatprep.subr.bf16.mxu0 0
        %1901 = vmatpush2.bf16.msra.mxu0 0
        %1902 = vmatprep.mubr.bf16.mxu0 0
        %1903 = vmatmul.mubr.bf16.gmra.mxu0 %v803
        %v1904 = vpop.f32.mrf.mxu0
        %v1905 = vadd.f32 0.0, %v1904
        %v1906 = vpop.f32.mrf.mxu0
        %v1907 = vpop.f32.mrf.mxu0
        %v1908 = vpop.f32.mrf.mxu0
        %1909 = vdwg.mxu0
        %1910 = vmatprep.subr.bf16.mxu0 0
        %1911 = vmatpush1.bf16.msra.mxu0 0
        %1912 = vmatprep.subr.bf16.mxu0 0
        %1913 = vmatpush1.bf16.msra.mxu0 0
        %1914 = vmatprep.subr.bf16.mxu0 0
        %1915 = vmatpush1.bf16.msra.mxu0 0
        %1916 = vmatprep.subr.bf16.mxu0 0
        %1917 = vmatpush1.bf16.msra.mxu0 0
        %1918 = vmatprep.subr.bf16.mxu0 0
        %1919 = vmatpush1.bf16.msra.mxu0 %v482
        %1920 = vmatprep.subr.bf16.mxu0 0
        %1921 = vmatpush1.bf16.msra.mxu0 %v481
        %1922 = vmatprep.subr.bf16.mxu0 0
        %1923 = vmatpush1.bf16.msra.mxu0 %v480
        %1924 = vmatprep.subr.bf16.mxu0 0
        %1925 = vmatpush1.bf16.msra.mxu0 %v479
        %1926 = vmatprep.subr.bf16.mxu0 0
        %1927 = vmatpush2.bf16.msra.mxu0 0
        %1928 = vmatprep.subr.bf16.mxu0 0
        %1929 = vmatpush2.bf16.msra.mxu0 0
        %1930 = vmatprep.subr.bf16.mxu0 0
        %1931 = vmatpush2.bf16.msra.mxu0 0
        %1932 = vmatprep.subr.bf16.mxu0 0
        %1933 = vmatpush2.bf16.msra.mxu0 0
        %1934 = vmatprep.subr.bf16.mxu0 0
        %1935 = vmatpush2.bf16.msra.mxu0 0
        %1936 = vmatprep.subr.bf16.mxu0 0
        %1937 = vmatpush2.bf16.msra.mxu0 0
        %1938 = vmatprep.subr.bf16.mxu0 0
        %1939 = vmatpush2.bf16.msra.mxu0 0
        %1940 = vmatprep.subr.bf16.mxu0 0
        %1941 = vmatpush2.bf16.msra.mxu0 0
        %1942 = vmatprep.mubr.bf16.mxu0 0
        %1943 = vmatmul.mubr.bf16.gmra.mxu0 %v724
        %v1944 = vpop.f32.mrf.mxu0
        %v1945 = vadd.f32 %v1905, %v1944
        %v1946 = vpop.f32.mrf.mxu0
        %v1947 = vpop.f32.mrf.mxu0
        %v1948 = vpop.f32.mrf.mxu0
        %1949 = vdwg.mxu0
        %1950 = vmatprep.subr.bf16.mxu0 0
        %1951 = vmatpush1.bf16.msra.mxu0 0
        %1952 = vmatprep.subr.bf16.mxu0 0
        %1953 = vmatpush1.bf16.msra.mxu0 0
        %1954 = vmatprep.subr.bf16.mxu0 0
        %1955 = vmatpush1.bf16.msra.mxu0 0
        %1956 = vmatprep.subr.bf16.mxu0 0
        %1957 = vmatpush1.bf16.msra.mxu0 0
        %1958 = vmatprep.subr.bf16.mxu0 0
        %1959 = vmatpush1.bf16.msra.mxu0 %v560
        %1960 = vmatprep.subr.bf16.mxu0 0
        %1961 = vmatpush1.bf16.msra.mxu0 %v559
        %1962 = vmatprep.subr.bf16.mxu0 0
        %1963 = vmatpush1.bf16.msra.mxu0 %v558
        %1964 = vmatprep.subr.bf16.mxu0 0
        %1965 = vmatpush1.bf16.msra.mxu0 %v557
        %1966 = vmatprep.subr.bf16.mxu0 0
        %1967 = vmatpush2.bf16.msra.mxu0 0
        %1968 = vmatprep.subr.bf16.mxu0 0
        %1969 = vmatpush2.bf16.msra.mxu0 0
        %1970 = vmatprep.subr.bf16.mxu0 0
        %1971 = vmatpush2.bf16.msra.mxu0 0
        %1972 = vmatprep.subr.bf16.mxu0 0
        %1973 = vmatpush2.bf16.msra.mxu0 0
        %1974 = vmatprep.subr.bf16.mxu0 0
        %1975 = vmatpush2.bf16.msra.mxu0 0
        %1976 = vmatprep.subr.bf16.mxu0 0
        %1977 = vmatpush2.bf16.msra.mxu0 0
        %1978 = vmatprep.subr.bf16.mxu0 0
        %1979 = vmatpush2.bf16.msra.mxu0 0
        %1980 = vmatprep.subr.bf16.mxu0 0
        %1981 = vmatpush2.bf16.msra.mxu0 0
        %1982 = vmatprep.mubr.bf16.mxu0 0
        %1983 = vmatmul.mubr.bf16.gmra.mxu0 %v1309
        %v1984 = vpop.f32.mrf.mxu0
        %v1985 = vadd.f32 0.0, %v1984
        %v1986 = vpop.f32.mrf.mxu0
        %v1987 = vpop.f32.mrf.mxu0
        %v1988 = vpop.f32.mrf.mxu0
        %1989 = vdwg.mxu0
        %v1990 = vadd.f32 %v1945, %v1985
        %1991 = vmatprep.subr.bf16.mxu0 0
        %1992 = vmatpush1.bf16.msra.mxu0 0
        %1993 = vmatprep.subr.bf16.mxu0 0
        %1994 = vmatpush1.bf16.msra.mxu0 0
        %1995 = vmatprep.subr.bf16.mxu0 0
        %1996 = vmatpush1.bf16.msra.mxu0 0
        %1997 = vmatprep.subr.bf16.mxu0 0
        %1998 = vmatpush1.bf16.msra.mxu0 0
        %1999 = vmatprep.subr.bf16.mxu0 0
        %2000 = vmatpush1.bf16.msra.mxu0 %v639
        %2001 = vmatprep.subr.bf16.mxu0 0
        %2002 = vmatpush1.bf16.msra.mxu0 %v638
        %2003 = vmatprep.subr.bf16.mxu0 0
        %2004 = vmatpush1.bf16.msra.mxu0 %v637
        %2005 = vmatprep.subr.bf16.mxu0 0
        %2006 = vmatpush1.bf16.msra.mxu0 %v636
        %2007 = vmatprep.subr.bf16.mxu0 0
        %2008 = vmatpush2.bf16.msra.mxu0 0
        %2009 = vmatprep.subr.bf16.mxu0 0
        %2010 = vmatpush2.bf16.msra.mxu0 0
        %2011 = vmatprep.subr.bf16.mxu0 0
        %2012 = vmatpush2.bf16.msra.mxu0 0
        %2013 = vmatprep.subr.bf16.mxu0 0
        %2014 = vmatpush2.bf16.msra.mxu0 0
        %2015 = vmatprep.subr.bf16.mxu0 0
        %2016 = vmatpush2.bf16.msra.mxu0 0
        %2017 = vmatprep.subr.bf16.mxu0 0
        %2018 = vmatpush2.bf16.msra.mxu0 0
        %2019 = vmatprep.subr.bf16.mxu0 0
        %2020 = vmatpush2.bf16.msra.mxu0 0
        %2021 = vmatprep.subr.bf16.mxu0 0
        %2022 = vmatpush2.bf16.msra.mxu0 0
        %2023 = vmatprep.mubr.bf16.mxu0 0
        %2024 = vmatmul.mubr.bf16.gmra.mxu0 %v961
        %v2025 = vpop.f32.mrf.mxu0
        %v2026 = vadd.f32 0.0, %v2025
        %v2027 = vpop.f32.mrf.mxu0
        %v2028 = vpop.f32.mrf.mxu0
        %v2029 = vpop.f32.mrf.mxu0
        %2030 = vdwg.mxu0
        %v2031 = vadd.f32 %v1990, %v2026
        %2032 = vmatprep.subr.bf16.mxu0 0
        %2033 = vmatpush1.bf16.msra.mxu0 0
        %2034 = vmatprep.subr.bf16.mxu0 0
        %2035 = vmatpush1.bf16.msra.mxu0 0
        %2036 = vmatprep.subr.bf16.mxu0 0
        %2037 = vmatpush1.bf16.msra.mxu0 0
        %2038 = vmatprep.subr.bf16.mxu0 0
        %2039 = vmatpush1.bf16.msra.mxu0 0
        %2040 = vmatprep.subr.bf16.mxu0 0
        %2041 = vmatpush1.bf16.msra.mxu0 %v718
        %2042 = vmatprep.subr.bf16.mxu0 0
        %2043 = vmatpush1.bf16.msra.mxu0 %v717
        %2044 = vmatprep.subr.bf16.mxu0 0
        %2045 = vmatpush1.bf16.msra.mxu0 %v716
        %2046 = vmatprep.subr.bf16.mxu0 0
        %2047 = vmatpush1.bf16.msra.mxu0 %v715
        %2048 = vmatprep.subr.bf16.mxu0 0
        %2049 = vmatpush2.bf16.msra.mxu0 0
        %2050 = vmatprep.subr.bf16.mxu0 0
        %2051 = vmatpush2.bf16.msra.mxu0 0
        %2052 = vmatprep.subr.bf16.mxu0 0
        %2053 = vmatpush2.bf16.msra.mxu0 0
        %2054 = vmatprep.subr.bf16.mxu0 0
        %2055 = vmatpush2.bf16.msra.mxu0 0
        %2056 = vmatprep.subr.bf16.mxu0 0
        %2057 = vmatpush2.bf16.msra.mxu0 0
        %2058 = vmatprep.subr.bf16.mxu0 0
        %2059 = vmatpush2.bf16.msra.mxu0 0
        %2060 = vmatprep.subr.bf16.mxu0 0
        %2061 = vmatpush2.bf16.msra.mxu0 0
        %2062 = vmatprep.subr.bf16.mxu0 0
        %2063 = vmatpush2.bf16.msra.mxu0 0
        %2064 = vmatprep.mubr.bf16.mxu0 0
        %2065 = vmatmul.mubr.bf16.gmra.mxu0 %v1040
        %v2066 = vpop.f32.mrf.mxu0
        %v2067 = vadd.f32 0.0, %v2066
        %v2068 = vpop.f32.mrf.mxu0
        %v2069 = vpop.f32.mrf.mxu0
        %v2070 = vpop.f32.mrf.mxu0
        %2071 = vdwg.mxu0
        %v2072 = vadd.f32 %v2031, %v2067
        %2073 = vmatprep.subr.bf16.mxu0 0
        %2074 = vmatpush1.bf16.msra.mxu0 0
        %2075 = vmatprep.subr.bf16.mxu0 0
        %2076 = vmatpush1.bf16.msra.mxu0 0
        %2077 = vmatprep.subr.bf16.mxu0 0
        %2078 = vmatpush1.bf16.msra.mxu0 0
        %2079 = vmatprep.subr.bf16.mxu0 0
        %2080 = vmatpush1.bf16.msra.mxu0 0
        %2081 = vmatprep.subr.bf16.mxu0 0
        %2082 = vmatpush1.bf16.msra.mxu0 %v797
        %2083 = vmatprep.subr.bf16.mxu0 0
        %2084 = vmatpush1.bf16.msra.mxu0 %v796
        %2085 = vmatprep.subr.bf16.mxu0 0
        %2086 = vmatpush1.bf16.msra.mxu0 %v795
        %2087 = vmatprep.subr.bf16.mxu0 0
        %2088 = vmatpush1.bf16.msra.mxu0 %v794
        %2089 = vmatprep.subr.bf16.mxu0 0
        %2090 = vmatpush2.bf16.msra.mxu0 0
        %2091 = vmatprep.subr.bf16.mxu0 0
        %2092 = vmatpush2.bf16.msra.mxu0 0
        %2093 = vmatprep.subr.bf16.mxu0 0
        %2094 = vmatpush2.bf16.msra.mxu0 0
        %2095 = vmatprep.subr.bf16.mxu0 0
        %2096 = vmatpush2.bf16.msra.mxu0 0
        %2097 = vmatprep.subr.bf16.mxu0 0
        %2098 = vmatpush2.bf16.msra.mxu0 0
        %2099 = vmatprep.subr.bf16.mxu0 0
        %2100 = vmatpush2.bf16.msra.mxu0 0
        %2101 = vmatprep.subr.bf16.mxu0 0
        %2102 = vmatpush2.bf16.msra.mxu0 0
        %2103 = vmatprep.subr.bf16.mxu0 0
        %2104 = vmatpush2.bf16.msra.mxu0 0
        %2105 = vmatprep.mubr.bf16.mxu0 0
        %2106 = vmatmul.mubr.bf16.gmra.mxu0 %v1437
        %v2107 = vpop.f32.mrf.mxu0
        %v2108 = vadd.f32 0.0, %v2107
        %v2109 = vpop.f32.mrf.mxu0
        %v2110 = vpop.f32.mrf.mxu0
        %v2111 = vpop.f32.mrf.mxu0
        %2112 = vdwg.mxu0
        %v2113 = vadd.f32 %v2072, %v2108
        %2114 = vmatprep.subr.bf16.mxu0 0
        %2115 = vmatpush1.bf16.msra.mxu0 0
        %2116 = vmatprep.subr.bf16.mxu0 0
        %2117 = vmatpush1.bf16.msra.mxu0 0
        %2118 = vmatprep.subr.bf16.mxu0 0
        %2119 = vmatpush1.bf16.msra.mxu0 0
        %2120 = vmatprep.subr.bf16.mxu0 0
        %2121 = vmatpush1.bf16.msra.mxu0 0
        %2122 = vmatprep.subr.bf16.mxu0 0
        %2123 = vmatpush1.bf16.msra.mxu0 %v876
        %2124 = vmatprep.subr.bf16.mxu0 0
        %2125 = vmatpush1.bf16.msra.mxu0 %v875
        %2126 = vmatprep.subr.bf16.mxu0 0
        %2127 = vmatpush1.bf16.msra.mxu0 %v874
        %2128 = vmatprep.subr.bf16.mxu0 0
        %2129 = vmatpush1.bf16.msra.mxu0 %v873
        %2130 = vmatprep.subr.bf16.mxu0 0
        %2131 = vmatpush2.bf16.msra.mxu0 0
        %2132 = vmatprep.subr.bf16.mxu0 0
        %2133 = vmatpush2.bf16.msra.mxu0 0
        %2134 = vmatprep.subr.bf16.mxu0 0
        %2135 = vmatpush2.bf16.msra.mxu0 0
        %2136 = vmatprep.subr.bf16.mxu0 0
        %2137 = vmatpush2.bf16.msra.mxu0 0
        %2138 = vmatprep.subr.bf16.mxu0 0
        %2139 = vmatpush2.bf16.msra.mxu0 0
        %2140 = vmatprep.subr.bf16.mxu0 0
        %2141 = vmatpush2.bf16.msra.mxu0 0
        %2142 = vmatprep.subr.bf16.mxu0 0
        %2143 = vmatpush2.bf16.msra.mxu0 0
        %2144 = vmatprep.subr.bf16.mxu0 0
        %2145 = vmatpush2.bf16.msra.mxu0 0
        %2146 = vmatprep.mubr.bf16.mxu0 0
        %2147 = vmatmul.mubr.bf16.gmra.mxu0 %v1777
        %v2148 = vpop.f32.mrf.mxu0
        %v2149 = vadd.f32 0.0, %v2148
        %v2150 = vpop.f32.mrf.mxu0
        %v2151 = vpop.f32.mrf.mxu0
        %v2152 = vpop.f32.mrf.mxu0
        %2153 = vdwg.mxu0
        %v2154 = vadd.f32 %v2113, %v2149
        %2155 = vmatprep.subr.bf16.mxu0 0
        %2156 = vmatpush1.bf16.msra.mxu0 0
        %2157 = vmatprep.subr.bf16.mxu0 0
        %2158 = vmatpush1.bf16.msra.mxu0 0
        %2159 = vmatprep.subr.bf16.mxu0 0
        %2160 = vmatpush1.bf16.msra.mxu0 0
        %2161 = vmatprep.subr.bf16.mxu0 0
        %2162 = vmatpush1.bf16.msra.mxu0 0
        %2163 = vmatprep.subr.bf16.mxu0 0
        %2164 = vmatpush1.bf16.msra.mxu0 %v955
        %2165 = vmatprep.subr.bf16.mxu0 0
        %2166 = vmatpush1.bf16.msra.mxu0 %v954
        %2167 = vmatprep.subr.bf16.mxu0 0
        %2168 = vmatpush1.bf16.msra.mxu0 %v953
        %2169 = vmatprep.subr.bf16.mxu0 0
        %2170 = vmatpush1.bf16.msra.mxu0 %v952
        %2171 = vmatprep.subr.bf16.mxu0 0
        %2172 = vmatpush2.bf16.msra.mxu0 0
        %2173 = vmatprep.subr.bf16.mxu0 0
        %2174 = vmatpush2.bf16.msra.mxu0 0
        %2175 = vmatprep.subr.bf16.mxu0 0
        %2176 = vmatpush2.bf16.msra.mxu0 0
        %2177 = vmatprep.subr.bf16.mxu0 0
        %2178 = vmatpush2.bf16.msra.mxu0 0
        %2179 = vmatprep.subr.bf16.mxu0 0
        %2180 = vmatpush2.bf16.msra.mxu0 0
        %2181 = vmatprep.subr.bf16.mxu0 0
        %2182 = vmatpush2.bf16.msra.mxu0 0
        %2183 = vmatprep.subr.bf16.mxu0 0
        %2184 = vmatpush2.bf16.msra.mxu0 0
        %2185 = vmatprep.subr.bf16.mxu0 0
        %2186 = vmatpush2.bf16.msra.mxu0 0
        %2187 = vmatprep.mubr.bf16.mxu0 0
        %2188 = vmatmul.mubr.bf16.gmra.mxu0 %v1823
        %v2189 = vpop.f32.mrf.mxu0
        %v2190 = vadd.f32 0.0, %v2189
        %v2191 = vpop.f32.mrf.mxu0
        %v2192 = vpop.f32.mrf.mxu0
        %v2193 = vpop.f32.mrf.mxu0
        %2194 = vdwg.mxu0
        %v2195 = vadd.f32 %v2154, %v2190
        %s2196 = scalar_lea.vmem %s341, 30 [#allocation3]
        %v2197 = vld [vmem:[%s2196] sm:$0x3]
        %v2199 = vsel %vm419, %v2197, 0
        %2201 = vmatprep.subr.bf16.mxu0 0
        %2202 = vmatpush1.bf16.msra.mxu0 0
        %2203 = vmatprep.subr.bf16.mxu0 0
        %2204 = vmatpush1.bf16.msra.mxu0 0
        %2205 = vmatprep.subr.bf16.mxu0 0
        %2206 = vmatpush1.bf16.msra.mxu0 0
        %2207 = vmatprep.subr.bf16.mxu0 0
        %2208 = vmatpush1.bf16.msra.mxu0 0
        %2209 = vmatprep.subr.bf16.mxu0 0
        %2210 = vmatpush1.bf16.msra.mxu0 %v1034
        %2211 = vmatprep.subr.bf16.mxu0 0
        %2212 = vmatpush1.bf16.msra.mxu0 %v1033
        %2213 = vmatprep.subr.bf16.mxu0 0
        %2214 = vmatpush1.bf16.msra.mxu0 %v1032
        %2215 = vmatprep.subr.bf16.mxu0 0
        %2216 = vmatpush1.bf16.msra.mxu0 %v1031
        %2217 = vmatprep.subr.bf16.mxu0 0
        %2218 = vmatpush2.bf16.msra.mxu0 0
        %2219 = vmatprep.subr.bf16.mxu0 0
        %2220 = vmatpush2.bf16.msra.mxu0 0
        %2221 = vmatprep.subr.bf16.mxu0 0
        %2222 = vmatpush2.bf16.msra.mxu0 0
        %2223 = vmatprep.subr.bf16.mxu0 0
        %2224 = vmatpush2.bf16.msra.mxu0 0
        %2225 = vmatprep.subr.bf16.mxu0 0
        %2226 = vmatpush2.bf16.msra.mxu0 0
        %2227 = vmatprep.subr.bf16.mxu0 0
        %2228 = vmatpush2.bf16.msra.mxu0 0
        %2229 = vmatprep.subr.bf16.mxu0 0
        %2230 = vmatpush2.bf16.msra.mxu0 0
        %2231 = vmatprep.subr.bf16.mxu0 0
        %2232 = vmatpush2.bf16.msra.mxu0 0
        %2233 = vmatprep.mubr.bf16.mxu0 0
        %2234 = vmatmul.mubr.bf16.gmra.mxu0 %v2199
        %v2235 = vpop.f32.mrf.mxu0
        %v2236 = vadd.f32 0.0, %v2235
        %v2237 = vpop.f32.mrf.mxu0
        %v2238 = vpop.f32.mrf.mxu0
        %v2239 = vpop.f32.mrf.mxu0
        %2240 = vdwg.mxu0
        %v2241 = vadd.f32 %v2195, %v2236
        %v2242 = vmul.f32 %v2241, %v1087
        %v2243 = vadd.f32 %v2242, %v1094
        %v2244 = vmax.f32 %v2243, 0.0
        %v2245 = vmax.f32 %v1869, %v2244
        %v2246 = vld [vmem:[#allocation2] sm:$0x1]
        %vm2247 = vcmask 1043456
        %v2248 = vsel %vm2247, %v2245, 0.0
        %v2249 = vrot.slane %v2248, 4
        %v2250 = vadd.f32 %v2248, %v2249
        %v2251 = vrot.slane %v2250, 2
        %v2252 = vadd.f32 %v2250, %v2251
        %v2253 = vrot.slane %v2252, 1
        %v2254 = vadd.f32 %v2252, %v2253
        %v2255 = vadd.f32 %v2246, %v2254
        %2256 = vst [vmem:[#allocation2] sm:$0x1] %v2255
        // Predicated region
        $region90: #{simple_cnn_gray_forward.5} parent=80 // pred_check
          %p2257 = pneg %p368
        $region91: #{simple_cnn_gray_forward.5} parent=80 // pred_check_branch
          %2259 = sbr.rel (%p2257) target = $region93
        $region92: #{simple_cnn_gray_forward.5} parent=80 // pred_region
          %v2260 = vld [vmem:[#allocation2] sm:$0x1]
          %v2261 = vmul.f32 %v2260, 0.25
          %v2262 = vld [vmem:[%s4] sm:$0xff]
          %v2263 = vld [vmem:[%s4 + $0x8] sm:$0xff]
          %v2264 = vld [vmem:[%s4 + $0x10] sm:$0xff]
          %v2265 = vld [vmem:[%s4 + $0x18] sm:$0xff]
          %v2266 = vld [vmem:[%s4 + $0x20] sm:$0xff]
          %v2267 = vld [vmem:[%s4 + $0x28] sm:$0xff]
          %v2268 = vld [vmem:[%s4 + $0x30] sm:$0xff]
          %v2269 = vld [vmem:[%s4 + $0x38] sm:$0xff]
          %v2270 = vld [vmem:[%s4 + $0x40] sm:$0xff]
          %v2271 = vld [vmem:[%s4 + $0x48] sm:$0xff]
          %v2272 = vld [vmem:[%s4 + $0x50] sm:$0xff]
          %v2273 = vld [vmem:[%s4 + $0x58] sm:$0xff]
          %v2274 = vld [vmem:[%s4 + $0x60] sm:$0xff]
          %v2275 = vld [vmem:[%s4 + $0x68] sm:$0xff]
          %v2276 = vld [vmem:[%s4 + $0x70] sm:$0xff]
          %v2277 = vld [vmem:[%s4 + $0x78] sm:$0xff]
          %v2278 = vld [vmem:[%s5] sm:$0x1]
          %2279 = vmatprep.subr.mxu0 0.0
          %2280 = vmatpush1.msra.mxu0 %v2277
          %2281 = vmatprep.subr.mxu0 0.0
          %2282 = vmatpush1.msra.mxu0 %v2276
          %2283 = vmatprep.subr.mxu0 0.0
          %2284 = vmatpush1.msra.mxu0 %v2275
          %2285 = vmatprep.subr.mxu0 0.0
          %2286 = vmatpush1.msra.mxu0 %v2274
          %2287 = vmatprep.subr.mxu0 0.0
          %2288 = vmatpush1.msra.mxu0 %v2273
          %2289 = vmatprep.subr.mxu0 0.0
          %2290 = vmatpush1.msra.mxu0 %v2272
          %2291 = vmatprep.subr.mxu0 0.0
          %2292 = vmatpush1.msra.mxu0 %v2271
          %2293 = vmatprep.subr.mxu0 0.0
          %2294 = vmatpush1.msra.mxu0 %v2270
          %2295 = vmatprep.subr.mxu0 0.0
          %2296 = vmatpush1.msra.mxu0 %v2269
          %2297 = vmatprep.subr.mxu0 0.0
          %2298 = vmatpush1.msra.mxu0 %v2268
          %2299 = vmatprep.subr.mxu0 0.0
          %2300 = vmatpush1.msra.mxu0 %v2267
          %2301 = vmatprep.subr.mxu0 0.0
          %2302 = vmatpush1.msra.mxu0 %v2266
          %2303 = vmatprep.subr.mxu0 0.0
          %2304 = vmatpush1.msra.mxu0 %v2265
          %2305 = vmatprep.subr.mxu0 0.0
          %2306 = vmatpush1.msra.mxu0 %v2264
          %2307 = vmatprep.subr.mxu0 0.0
          %2308 = vmatpush1.msra.mxu0 %v2263
          %2309 = vmatprep.subr.mxu0 0.0
          %2310 = vmatpush1.msra.mxu0 %v2262
          %2311 = vmatprep.subr.mxu0 0.0
          %2312 = vmatpush2.msra.mxu0 0.0
          %2313 = vmatprep.subr.mxu0 0.0
          %2314 = vmatpush2.msra.mxu0 0.0
          %2315 = vmatprep.subr.mxu0 0.0
          %2316 = vmatpush2.msra.mxu0 0.0
          %2317 = vmatprep.subr.mxu0 0.0
          %2318 = vmatpush2.msra.mxu0 0.0
          %2319 = vmatprep.subr.mxu0 0.0
          %2320 = vmatpush2.msra.mxu0 0.0
          %2321 = vmatprep.subr.mxu0 0.0
          %2322 = vmatpush2.msra.mxu0 0.0
          %2323 = vmatprep.subr.mxu0 0.0
          %2324 = vmatpush2.msra.mxu0 0.0
          %2325 = vmatprep.subr.mxu0 0.0
          %2326 = vmatpush2.msra.mxu0 0.0
          %2327 = vmatprep.subr.mxu0 0.0
          %2328 = vmatpush2.msra.mxu0 0.0
          %2329 = vmatprep.subr.mxu0 0.0
          %2330 = vmatpush2.msra.mxu0 0.0
          %2331 = vmatprep.subr.mxu0 0.0
          %2332 = vmatpush2.msra.mxu0 0.0
          %2333 = vmatprep.subr.mxu0 0.0
          %2334 = vmatpush2.msra.mxu0 0.0
          %2335 = vmatprep.subr.mxu0 0.0
          %2336 = vmatpush2.msra.mxu0 0.0
          %2337 = vmatprep.subr.mxu0 0.0
          %2338 = vmatpush2.msra.mxu0 0.0
          %2339 = vmatprep.subr.mxu0 0.0
          %2340 = vmatpush2.msra.mxu0 0.0
          %2341 = vmatprep.subr.mxu0 0.0
          %2342 = vmatpush2.msra.mxu0 0.0
          %2343 = vmatprep.mubr.f32.mxu0 0.0
          %2344 = vmatmul.mubr.f32.gmra.mxu0 %v2261
          %v2345 = vpop.f32.mrf.mxu0
          %v2346 = vadd.f32 %v2278, %v2345
          %v2347 = vpop.f32.mrf.mxu0
          %2348 = vdwg.mxu0
          %vm2349 = vcmask 8192
          %2350 = vst.msk [vmem:[%s366] sm:$0x1] %vm2349, %v2346
        $region93: #{simple_cnn_gray_forward.5} parent=80 // pred_fallthru
          _
        %s2351 = sand.u32 %s173, 1
        %s2352 = scalar_lea.sflag [#allocation5], %s2351
        %s2353 = sand.u32 %s173, 1
        %s2354 = scalar_lea.vmem [#allocation4], %s2353
        // Predicated region
        $region94: #{simple_cnn_gray_forward.5} parent=80 // pred_check
          %p2355 = pneg %p183
        $region95: #{simple_cnn_gray_forward.5} parent=80 // pred_check_branch
          %2357 = sbr.rel (%p2355) target = $region97
        $region96: #{simple_cnn_gray_forward.5} parent=80 // pred_region
          %s2359 = ssub.s32 16, 16
          %2360 = vsyncadd %s2352, %s2359
          %s2361 = smul.addr %s24, 16
          %s2362 = scalar_lea.hbm %s6, %s2361
          %s2364 = sshll.u32 %s2354, 4
          %s2365 = int_to_ptr.vmem [resolvable:$true] %s2364
          %2367 = dma.vmem_to_hbm [thread:$0]  %s2365, 16, %s2362, %s2352
        $region97: #{simple_cnn_gray_forward.5} parent=80 // pred_fallthru
          _
      $region81: #{simple_cnn_gray_forward.5} parent=5 // pred_fallthru
        _
      %p2368 = scmp.le.s32.totalorder 2, %s15
      // Predicated region
      $region98: #{simple_cnn_gray_forward.5} parent=5 // pred_check
        %p2369 = pneg %p2368
      $region99: #{simple_cnn_gray_forward.5} parent=5 // pred_check_branch
        %2371 = sbr.rel (%p2369) target = $region101
      $region100: #{simple_cnn_gray_forward.5} parent=5 // pred_region
        %s2372 = ssub.s32 %s15, 2
        // Predicated region
        $region102: #{simple_cnn_gray_forward.5} parent=100 // pred_check
          %p2373 = pneg %p189
        $region103: #{simple_cnn_gray_forward.5} parent=100 // pred_check_branch
          %2375 = sbr.rel (%p2373) target = $region105
        $region104: #{simple_cnn_gray_forward.5} parent=100 // pred_region
          %s2376 = sand.u32 %s174, 1
          %s2377 = scalar_lea.sflag [#allocation5], %s2376
          %s2378 = sand.u32 %s174, 1
          %s2379 = scalar_lea.vmem [#allocation4], %s2378
          %2380 = dma.done %s2377, 16
        $region105: #{simple_cnn_gray_forward.5} parent=100 // pred_fallthru
          _
      $region101: #{simple_cnn_gray_forward.5} parent=5 // pred_fallthru
        _
    $region6: #{simple_cnn_gray_forward.5} parent=1 // loop_footer
      %s19 = sadd.s32 1, %s15
    $region7: #{simple_cnn_gray_forward.5} parent=1 // loop_footer_branch
      %14 = sbr.rel target = $region3
    $region8: #{simple_cnn_gray_forward.5} parent=1 // loop_exit
      _
    %2381 = vsyncpa [#allocation5], 1
    %s2382 = scalar_lea.sflag [#allocation5], 1
    %2383 = vsyncpa %s2382, 1

</llo_original>
